<compile_context>
chip_gen: v7x
topology: tpu7x:2x2x1
jax: 0.10.0
libtpu: 0.0.40
codegen_flags: <defaults>
</compile_context>

<pallas_src>
import functools

import jax
import jax.numpy as jnp
from jax.experimental import pallas as pl
from jax.experimental.pallas import tpu as pltpu


_VMEM_LIMIT = 48 * 1024 * 1024   # safe on v5e/v6e (128 MiB) and v7x (64 MiB)
_BN_EPS = 1e-5


def _row_tile(m, row_bytes, budget=2 << 20):
    """Largest multiple-of-8 divisor of m whose tile fits the byte budget."""
    for cand in (4096, 2048, 1024, 512, 256, 128, 64, 32, 16, 8):
        if m % cand == 0 and cand * row_bytes <= budget:
            return cand
    return m  # fall back to one full-height block (still a legal BlockSpec)


# ---------------------------------------------------------------------------
# Kernel 1: fused  (X @ W) * scale + shift  [+ ReLU]
#           (1x1 convs and the im2col'd 3x3 conv, BN folded into scale/shift)
# ---------------------------------------------------------------------------
def _matmul_affine_kernel(x_ref, w_ref, s_ref, t_ref, o_ref, *, act):
    acc = jnp.dot(x_ref[...], w_ref[...], preferred_element_type=jnp.float32)
    y = acc * s_ref[...] + t_ref[...]
    if act == "relu":
        y = jnp.maximum(y, 0.0)
    o_ref[...] = y.astype(o_ref.dtype)


def matmul_affine(x2d, w, scale, shift, *, act="none"):
    m, k = x2d.shape
    k2, n = w.shape
    assert k == k2
    tm = _row_tile(m, (k + n) * 4)
    s2 = scale.reshape(1, n).astype(jnp.float32)
    t2 = shift.reshape(1, n).astype(jnp.float32)
    kernel = functools.partial(_matmul_affine_kernel, act=act)
    return pl.pallas_call(
        kernel,
        out_shape=jax.ShapeDtypeStruct((m, n), jnp.float32),
        grid_spec=pltpu.PrefetchScalarGridSpec(
            num_scalar_prefetch=0,
            grid=(m // tm,),
            in_specs=[
                pl.BlockSpec((tm, k), lambda i: (i, 0)),
                pl.BlockSpec((k, n), lambda i: (0, 0)),
                pl.BlockSpec((1, n), lambda i: (0, 0)),
                pl.BlockSpec((1, n), lambda i: (0, 0)),
            ],
            out_specs=pl.BlockSpec((tm, n), lambda i: (i, 0)),
        ),
        compiler_params=pltpu.CompilerParams(
            dimension_semantics=("parallel",),
            vmem_limit_bytes=_VMEM_LIMIT),
    )(x2d.astype(jnp.float32), w.astype(jnp.float32), s2, t2)


# ---------------------------------------------------------------------------
# Kernel 2: residual add + ReLU
# ---------------------------------------------------------------------------
def _add_relu_kernel(a_ref, b_ref, o_ref):
    o_ref[...] = jnp.maximum(a_ref[...] + b_ref[...], 0.0).astype(o_ref.dtype)


def add_relu(a2d, b2d):
    m, c = a2d.shape
    tm = _row_tile(m, 2 * c * 4)
    return pl.pallas_call(
        _add_relu_kernel,
        out_shape=jax.ShapeDtypeStruct((m, c), jnp.float32),
        grid_spec=pltpu.PrefetchScalarGridSpec(
            num_scalar_prefetch=0,
            grid=(m // tm,),
            in_specs=[pl.BlockSpec((tm, c), lambda i: (i, 0)),
                      pl.BlockSpec((tm, c), lambda i: (i, 0))],
            out_specs=pl.BlockSpec((tm, c), lambda i: (i, 0)),
        ),
        compiler_params=pltpu.CompilerParams(
            dimension_semantics=("parallel",),
            vmem_limit_bytes=_VMEM_LIMIT),
    )(a2d.astype(jnp.float32), b2d.astype(jnp.float32))


# ---------------------------------------------------------------------------
# Kernel 3: channel gate
#   SELayer            -> use_max=False : gate = sig(fc2(relu(fc1(avg))))
#   Channel_Attention  -> use_max=True  : gate = sig(fc(avg) + fc(max))
#   out = x * gate     (x read once, written once; fc weights shared)
# ---------------------------------------------------------------------------
def _channel_gate_kernel(x_ref, w1_ref, w2_ref, o_ref, *, use_max):
    x = x_ref[...]                                    # (bn, HW, C) f32
    w1 = w1_ref[...]
    w2 = w2_ref[...]

    def fc(v):                                        # v: (bn, C)
        h = jnp.maximum(jnp.dot(v, w1, preferred_element_type=jnp.float32), 0.0)
        return jnp.dot(h, w2, preferred_element_type=jnp.float32)

    y = fc(jnp.mean(x, axis=1))
    if use_max:
        y = y + fc(jnp.max(x, axis=1))
    gate = jax.nn.sigmoid(y)[:, None, :]              # (bn, 1, C)
    o_ref[...] = (x * gate).astype(o_ref.dtype)


def channel_gate(x_nhwc, w1, w2, *, use_max):
    n, h, w, c = x_nhwc.shape
    hw = h * w
    x3 = x_nhwc.reshape(n, hw, c).astype(jnp.float32)
    bn = n if n * hw * c * 4 <= (4 << 20) else 1      # bigger block per step
    kernel = functools.partial(_channel_gate_kernel, use_max=use_max)
    out = pl.pallas_call(
        kernel,
        out_shape=jax.ShapeDtypeStruct((n, hw, c), jnp.float32),
        grid_spec=pltpu.PrefetchScalarGridSpec(
            num_scalar_prefetch=0,
            grid=(n // bn,),
            in_specs=[
                pl.BlockSpec((bn, hw, c), lambda i: (i, 0, 0)),
                pl.BlockSpec(w1.shape, lambda i: (0, 0)),
                pl.BlockSpec(w2.shape, lambda i: (0, 0)),
            ],
            out_specs=pl.BlockSpec((bn, hw, c), lambda i: (i, 0, 0)),
        ),
        input_output_aliases={0: 0},
        compiler_params=pltpu.CompilerParams(
            dimension_semantics=("parallel",),
            vmem_limit_bytes=_VMEM_LIMIT),
    )(x3, w1.astype(jnp.float32), w2.astype(jnp.float32))
    return out.reshape(n, h, w, c)


# ---------------------------------------------------------------------------
# Kernel 4: CBAM spatial attention
#   mask = sigmoid(conv_KxK([mean_c(x), max_c(x)]) + bias) ; out = x * mask
#   Channels-last block -> dense (W, C)=(16,128) loads/stores; the tiny KxK
#   conv uses a small zero-bordered VMEM scratch (border zeroed only once).
# ---------------------------------------------------------------------------
def _spatial_attention_kernel(w_ref, b_ref, x_ref, o_ref, pad_ref, *, kk):
    blk, h, w, _ = x_ref.shape
    p = (kk - 1) // 2

    # Scratch border must be zero; zero it once only (the interior is
    # overwritten every image).  Grid axis is "arbitrary" (sequential).
    @pl.when(pl.program_id(0) == 0)
    def _zero_scratch():
        pad_ref[...] = jnp.zeros_like(pad_ref)

    for b in range(blk):                               # static unroll, blk small
        xb = x_ref[b].astype(jnp.float32)              # (H, W, C)
        pad_ref[0, p:p + h, p:p + w] = jnp.mean(xb, axis=2)
        pad_ref[1, p:p + h, p:p + w] = jnp.max(xb, axis=2)

        acc = jnp.full((h, w), b_ref[0], dtype=jnp.float32)
        for c in range(2):
            for ki in range(kk):
                for kj in range(kk):
                    tap = pad_ref[c, ki:ki + h, kj:kj + w]
                    acc = acc + w_ref[c * kk * kk + ki * kk + kj] * tap
        mask = jax.nn.sigmoid(acc)                     # (H, W)
        o_ref[b] = (xb * mask[:, :, None]).astype(o_ref.dtype)


def spatial_attention(x_nhwc, weight, bias):
    n, h, w, c = x_nhwc.shape
    kk = weight.shape[-1]
    p = (kk - 1) // 2
    w_flat = weight.reshape(2 * kk * kk).astype(jnp.float32)
    b_flat = bias.reshape(1).astype(jnp.float32)

    blk = n if n * h * w * c * x_nhwc.dtype.itemsize <= (4 << 20) else 1

    kernel = functools.partial(_spatial_attention_kernel, kk=kk)
    return pl.pallas_call(
        kernel,
        out_shape=jax.ShapeDtypeStruct((n, h, w, c), x_nhwc.dtype),
        grid_spec=pltpu.PrefetchScalarGridSpec(
            num_scalar_prefetch=0,
            grid=(n // blk,),
            in_specs=[
                pl.BlockSpec(memory_space=pltpu.MemorySpace.SMEM),   # conv weights
                pl.BlockSpec(memory_space=pltpu.MemorySpace.SMEM),   # conv bias
                pl.BlockSpec((blk, h, w, c), lambda i: (i, 0, 0, 0)),
            ],
            out_specs=pl.BlockSpec((blk, h, w, c), lambda i: (i, 0, 0, 0)),
            scratch_shapes=[pltpu.VMEM((2, h + 2 * p, w + 2 * p), jnp.float32)],
        ),
        input_output_aliases={2: 0},
        compiler_params=pltpu.CompilerParams(
            dimension_semantics=("arbitrary",),
            vmem_limit_bytes=_VMEM_LIMIT),
    )(w_flat, b_flat, x_nhwc)


# ---------------------------------------------------------------------------
# Wrapper-side helpers (layout plumbing only)
# ---------------------------------------------------------------------------
def _im2col(x_nhwc, k, stride=1, dilation=1):
    """KxK patch extraction (padding = dilation*(k-1)//2, groups=1)."""
    n, h, w, c = x_nhwc.shape
    p = dilation * (k - 1) // 2
    ho = (h + 2 * p - dilation * (k - 1) - 1) // stride + 1
    wo = (w + 2 * p - dilation * (k - 1) - 1) // stride + 1
    xp = jnp.pad(x_nhwc, ((0, 0), (p, p), (p, p), (0, 0)))
    cols = []
    for ki in range(k):
        for kj in range(k):
            di, dj = ki * dilation, kj * dilation
            cols.append(xp[:, di:di + stride * (ho - 1) + 1:stride,
                           dj:dj + stride * (wo - 1) + 1:stride, :])
    return jnp.concatenate(cols, axis=-1), ho, wo


def _fold_bn(bn_params, eps=_BN_EPS):
    g, b, m, v = bn_params
    s = g / jnp.sqrt(v + eps)
    return s, b - m * s


def bottleneck_forward(x_nchw, params, *, stride=1, dilation=1,
                       se=False, cbam=False):
    """Pallas forward of Bottleneck (inference; BN folded from running stats)."""
    # TODO(synk): grouped conv (groups > 1) and training-mode BatchNorm
    # (batch statistics) are not implemented; inference semantics only.
    n, cin, h, w = x_nchw.shape
    x = jnp.transpose(x_nchw, (0, 2, 3, 1)).astype(jnp.float32)   # NHWC

    width = params["conv1_w"].shape[0]
    c4 = params["conv3_w"].shape[0]
    kk = params["conv2_w"].shape[-1]

    s1, t1 = _fold_bn(params["bn1"])
    s2, t2 = _fold_bn(params["bn2"])
    s3, t3 = _fold_bn(params["bn3"])

    # conv1 (1x1) + bn1 + relu
    w1 = params["conv1_w"].reshape(width, cin).T
    out = matmul_affine(x.reshape(n * h * w, cin), w1, s1, t1, act="relu")
    out = out.reshape(n, h, w, width)

    # conv2 (KxK) + bn2 + relu     (im2col in wrapper, fused matmul kernel)
    cols, ho, wo = _im2col(out, kk, stride=stride, dilation=dilation)
    w2 = jnp.transpose(params["conv2_w"], (2, 3, 1, 0)).reshape(kk * kk * width,
                                                                width)
    out = matmul_affine(cols.reshape(n * ho * wo, kk * kk * width), w2, s2, t2,
                        act="relu")
    out = out.reshape(n, ho, wo, width)

    # conv3 (1x1) + bn3
    w3 = params["conv3_w"].reshape(c4, width).T
    out = matmul_affine(out.reshape(n * ho * wo, width), w3, s3, t3, act="none")
    out = out.reshape(n, ho, wo, c4)

    if se:
        out = channel_gate(out, params["se_fc1_w"].T, params["se_fc2_w"].T,
                           use_max=False)
    if cbam:
        cr = params["ca_fc1_w"].shape[0]
        out = channel_gate(out,
                           params["ca_fc1_w"].reshape(cr, c4).T,
                           params["ca_fc2_w"].reshape(c4, cr).T,
                           use_max=True)
        out = spatial_attention(out, params["sa_w"], params["sa_b"])

    # identity / downsample path
    if "down_w" in params:
        sd, td = _fold_bn(params["bn_d"])
        wd = params["down_w"].reshape(c4, cin).T
        xs = x[:, ::stride, ::stride, :]
        ident = matmul_affine(xs.reshape(n * ho * wo, cin), wd, sd, td,
                              act="none")
    else:
        ident = x[:, ::stride, ::stride, :].reshape(n * ho * wo, c4)

    out = add_relu(out.reshape(n * ho * wo, c4), ident)
    return jnp.transpose(out.reshape(n, ho, wo, c4), (0, 3, 1, 2))


# ---------------------------------------------------------------------------
# Pure-JAX reference (mirrors the PyTorch module, eval-mode BN)
# ---------------------------------------------------------------------------
def _bottleneck_reference(x, params, *, stride=1, dilation=1,
                          se=False, cbam=False, eps=_BN_EPS):
    conv = lambda t, wt, s=1, d=1, pad=0: jax.lax.conv_general_dilated(
        t, wt, window_strides=(s, s), padding=[(pad, pad), (pad, pad)],
        rhs_dilation=(d, d), dimension_numbers=("NCHW", "OIHW", "NCHW"))

    def bn(t, prm):
        g, b, m, v = prm
        s = g / jnp.sqrt(v + eps)
        return t * s[None, :, None, None] + (b - m * s)[None, :, None, None]

    relu = lambda t: jnp.maximum(t, 0.0)

    kk = params["conv2_w"].shape[-1]
    out = relu(bn(conv(x, params["conv1_w"]), params["bn1"]))
    out = relu(bn(conv(out, params["conv2_w"], s=stride, d=dilation,
                       pad=dilation * (kk - 1) // 2), params["bn2"]))
    out = bn(conv(out, params["conv3_w"]), params["bn3"])

    if se:
        y = jnp.mean(out, axis=(2, 3))
        y = relu(y @ params["se_fc1_w"].T)
        y = jax.nn.sigmoid(y @ params["se_fc2_w"].T)
        out = out * y[:, :, None, None]
    if cbam:
        c4 = out.shape[1]
        cr = params["ca_fc1_w"].shape[0]
        wf1 = params["ca_fc1_w"].reshape(cr, c4)
        wf2 = params["ca_fc2_w"].reshape(c4, cr)
        fc = lambda t: relu(t @ wf1.T) @ wf2.T
        y = jax.nn.sigmoid(fc(jnp.mean(out, axis=(2, 3)))
                           + fc(jnp.max(out, axis=(2, 3))))
        out = out * y[:, :, None, None]
        avg_m = jnp.mean(out, axis=1, keepdims=True)
        max_m = jnp.max(out, axis=1, keepdims=True)
        skk = params["sa_w"].shape[-1]
        mask = conv(jnp.concatenate([avg_m, max_m], axis=1), params["sa_w"],
                    pad=(skk - 1) // 2) + params["sa_b"].reshape(1, 1, 1, 1)
        out = out * jax.nn.sigmoid(mask)

    identity = x
    if "down_w" in params:
        identity = bn(conv(x, params["down_w"], s=stride), params["bn_d"])
    return relu(out + identity)


# ---------------------------------------------------------------------------
# Deterministic parameter construction (PyTorch-default-style init)
# ---------------------------------------------------------------------------
def _make_params(key, inplanes, planes, *, r=16, k=3, se=True, cbam=True,
                 downsample=True):
    width = planes
    c4 = planes * 4
    it = iter(jax.random.split(key, 40))

    def unif(shape, bound):
        return jax.random.uniform(next(it), shape, jnp.float32, -bound, bound)

    def conv_w(shape):
        fan_in = shape[1] * shape[2] * shape[3]
        return unif(shape, 1.0 / fan_in ** 0.5)

    def lin_w(shape):
        return unif(shape, 1.0 / shape[1] ** 0.5)

    def bn_p(c):
        return (jax.random.uniform(next(it), (c,), jnp.float32, 0.5, 1.5),
                unif((c,), 0.5),
                0.1 * jax.random.normal(next(it), (c,), jnp.float32),
                jax.random.uniform(next(it), (c,), jnp.float32, 0.5, 1.5))

    p = {"conv1_w": conv_w((width, inplanes, 1, 1)), "bn1": bn_p(width),
         "conv2_w": conv_w((width, width, k, k)), "bn2": bn_p(width),
         "conv3_w": conv_w((c4, width, 1, 1)), "bn3": bn_p(c4)}
    if se:
        p["se_fc1_w"] = lin_w((c4 // r, c4))
        p["se_fc2_w"] = lin_w((c4, c4 // r))
    if cbam:
        p["ca_fc1_w"] = conv_w((c4 // r, c4, 1, 1))
        p["ca_fc2_w"] = conv_w((c4, c4 // r, 1, 1))
        p["sa_w"] = conv_w((1, 2, k, k))
        p["sa_b"] = unif((1,), 1.0 / (2 * k * k) ** 0.5)
    if downsample:
        p["down_w"] = conv_w((c4, inplanes, 1, 1))
        p["bn_d"] = bn_p(c4)
    return p


if __name__ == "__main__":
    key = jax.random.PRNGKey(0)
    kx, kp = jax.random.split(key)

    N, INPLANES, H, W = 2, 64, 16, 16
    PLANES = 32                       # width = 32, output channels = 128
    x = jax.random.normal(kx, (N, INPLANES, H, W), dtype=jnp.float32)
    params = _make_params(kp, INPLANES, PLANES, se=True, cbam=True,
                          downsample=True)

    fwd = jax.jit(functools.partial(bottleneck_forward, stride=1, dilation=1,
                                    se=True, cbam=True))
    out = jax.block_until_ready(fwd(x, params))
    assert out.shape == (N, 4 * PLANES, H, W)
    assert bool(jnp.all(jnp.isfinite(out)))

    ref = _bottleneck_reference(x, params, stride=1, dilation=1,
                                se=True, cbam=True)
    # Default (bf16-pass) MXU matmul precision differs slightly from XLA's
    # convolution path; structural bugs would be orders of magnitude larger.
    rel_err = float(jnp.max(jnp.abs(out - ref)) /
                    (jnp.max(jnp.abs(ref)) + 1e-6))
    assert rel_err < 5e-2, f"mismatch vs reference: rel_err={rel_err}"
    print("KERNEL_OK")
</pallas_src>

<mosaic_0001>
module attributes {stable_mosaic.version = 11 : i64} {
  func.func @_matmul_affine_kernel(%arg0: i32, %arg1: memref<512x64xf32, #tpu.memory_space<vmem>>, %arg2: memref<64x32xf32, #tpu.memory_space<vmem>>, %arg3: memref<1x32xf32, #tpu.memory_space<vmem>>, %arg4: memref<1x32xf32, #tpu.memory_space<vmem>>, %arg5: memref<512x32xf32, #tpu.memory_space<vmem>>) attributes {dimension_semantics = [#tpu.dimension_semantics<parallel>], iteration_bounds = array<i64: 1>, scalar_prefetch = 0 : i64, scratch_operands = 0 : i64, tpu.core_type = #tpu.core_type<tc>, window_params = [{transform_indices = @transform_0, window_bounds = array<i64: 512, 64>}, {pipeline_mode = #tpu.pipeline_mode<synchronous>, transform_indices = @transform_1, window_bounds = array<i64: 64, 32>}, {pipeline_mode = #tpu.pipeline_mode<synchronous>, transform_indices = @transform_2, window_bounds = array<i64: 1, 32>}, {pipeline_mode = #tpu.pipeline_mode<synchronous>, transform_indices = @transform_3, window_bounds = array<i64: 1, 32>}, {transform_indices = @transform_4, window_bounds = array<i64: 512, 32>}]} {
    %c0 = arith.constant 0 : index
    %c0_0 = arith.constant 0 : index
    %0 = vector.load %arg1[%c0, %c0_0] : memref<512x64xf32, #tpu.memory_space<vmem>>, vector<512x64xf32>
    %c0_1 = arith.constant 0 : index
    %c0_2 = arith.constant 0 : index
    %1 = vector.load %arg2[%c0_1, %c0_2] : memref<64x32xf32, #tpu.memory_space<vmem>>, vector<64x32xf32>
    %cst = arith.constant dense<0.000000e+00> : vector<512x32xf32>
    %2 = tpu.matmul %0, %1, %cst {dimension_numbers = #tpu.dot_dimension_numbers<[1], [0], [0], [1], [0, 0, 1, 1], [], []>} : vector<512x64xf32>, vector<64x32xf32>, vector<512x32xf32> -> vector<512x32xf32>
    %c0_3 = arith.constant 0 : index
    %c0_4 = arith.constant 0 : index
    %3 = vector.load %arg3[%c0_3, %c0_4] : memref<1x32xf32, #tpu.memory_space<vmem>>, vector<1x32xf32>
    %4 = vector.broadcast %3 : vector<1x32xf32> to vector<512x32xf32>
    %5 = arith.mulf %2, %4 : vector<512x32xf32>
    %c0_5 = arith.constant 0 : index
    %c0_6 = arith.constant 0 : index
    %6 = vector.load %arg4[%c0_5, %c0_6] : memref<1x32xf32, #tpu.memory_space<vmem>>, vector<1x32xf32>
    %7 = vector.broadcast %6 : vector<1x32xf32> to vector<512x32xf32>
    %8 = arith.addf %5, %7 : vector<512x32xf32>
    %cst_7 = arith.constant 0.000000e+00 : f32
    %9 = vector.broadcast %cst_7 : f32 to vector<512x32xf32>
    %10 = arith.maximumf %8, %9 : vector<512x32xf32>
    %c0_8 = arith.constant 0 : index
    %c0_9 = arith.constant 0 : index
    %11 = vector.load %arg5[%c0_8, %c0_9] : memref<512x32xf32, #tpu.memory_space<vmem>>, vector<512x32xf32>
    tpu.vector_store %arg5[%c0_8, %c0_9], %10 {strides = array<i32>} : memref<512x32xf32, #tpu.memory_space<vmem>>, vector<512x32xf32>,
    return
  }
  func.func @transform_0(%arg0: i32) -> (i32, i32) {
    %c0_i32 = arith.constant 0 : i32
    %c0_i32_0 = arith.constant 0 : i32
    return %arg0, %c0_i32 : i32, i32
  }
  func.func @transform_1(%arg0: i32) -> (i32, i32) {
    %c0_i32 = arith.constant 0 : i32
    %c0_i32_0 = arith.constant 0 : i32
    %c0_i32_1 = arith.constant 0 : i32
    return %c0_i32, %c0_i32_0 : i32, i32
  }
  func.func @transform_2(%arg0: i32) -> (i32, i32) {
    %c0_i32 = arith.constant 0 : i32
    %c0_i32_0 = arith.constant 0 : i32
    %c0_i32_1 = arith.constant 0 : i32
    return %c0_i32, %c0_i32_0 : i32, i32
  }
  func.func @transform_3(%arg0: i32) -> (i32, i32) {
    %c0_i32 = arith.constant 0 : i32
    %c0_i32_0 = arith.constant 0 : i32
    %c0_i32_1 = arith.constant 0 : i32
    return %c0_i32, %c0_i32_0 : i32, i32
  }
  func.func @transform_4(%arg0: i32) -> (i32, i32) {
    %c0_i32 = arith.constant 0 : i32
    %c0_i32_0 = arith.constant 0 : i32
    return %arg0, %c0_i32 : i32, i32
  }
}

module attributes {stable_mosaic.version = 11 : i64} {
  func.func @_matmul_affine_kernel(%arg0: i32, %arg1: memref<512x288xf32, #tpu.memory_space<vmem>>, %arg2: memref<288x32xf32, #tpu.memory_space<vmem>>, %arg3: memref<1x32xf32, #tpu.memory_space<vmem>>, %arg4: memref<1x32xf32, #tpu.memory_space<vmem>>, %arg5: memref<512x32xf32, #tpu.memory_space<vmem>>) attributes {dimension_semantics = [#tpu.dimension_semantics<parallel>], iteration_bounds = array<i64: 1>, scalar_prefetch = 0 : i64, scratch_operands = 0 : i64, tpu.core_type = #tpu.core_type<tc>, window_params = [{transform_indices = @transform_0, window_bounds = array<i64: 512, 288>}, {pipeline_mode = #tpu.pipeline_mode<synchronous>, transform_indices = @transform_1, window_bounds = array<i64: 288, 32>}, {pipeline_mode = #tpu.pipeline_mode<synchronous>, transform_indices = @transform_2, window_bounds = array<i64: 1, 32>}, {pipeline_mode = #tpu.pipeline_mode<synchronous>, transform_indices = @transform_3, window_bounds = array<i64: 1, 32>}, {transform_indices = @transform_4, window_bounds = array<i64: 512, 32>}]} {
    %c0 = arith.constant 0 : index
    %c0_0 = arith.constant 0 : index
    %0 = vector.load %arg1[%c0, %c0_0] : memref<512x288xf32, #tpu.memory_space<vmem>>, vector<512x288xf32>
    %c0_1 = arith.constant 0 : index
    %c0_2 = arith.constant 0 : index
    %1 = vector.load %arg2[%c0_1, %c0_2] : memref<288x32xf32, #tpu.memory_space<vmem>>, vector<288x32xf32>
    %cst = arith.constant dense<0.000000e+00> : vector<512x32xf32>
    %2 = tpu.matmul %0, %1, %cst {dimension_numbers = #tpu.dot_dimension_numbers<[1], [0], [0], [1], [0, 0, 1, 1], [], []>} : vector<512x288xf32>, vector<288x32xf32>, vector<512x32xf32> -> vector<512x32xf32>
    %c0_3 = arith.constant 0 : index
    %c0_4 = arith.constant 0 : index
    %3 = vector.load %arg3[%c0_3, %c0_4] : memref<1x32xf32, #tpu.memory_space<vmem>>, vector<1x32xf32>
    %4 = vector.broadcast %3 : vector<1x32xf32> to vector<512x32xf32>
    %5 = arith.mulf %2, %4 : vector<512x32xf32>
    %c0_5 = arith.constant 0 : index
    %c0_6 = arith.constant 0 : index
    %6 = vector.load %arg4[%c0_5, %c0_6] : memref<1x32xf32, #tpu.memory_space<vmem>>, vector<1x32xf32>
    %7 = vector.broadcast %6 : vector<1x32xf32> to vector<512x32xf32>
    %8 = arith.addf %5, %7 : vector<512x32xf32>
    %cst_7 = arith.constant 0.000000e+00 : f32
    %9 = vector.broadcast %cst_7 : f32 to vector<512x32xf32>
    %10 = arith.maximumf %8, %9 : vector<512x32xf32>
    %c0_8 = arith.constant 0 : index
    %c0_9 = arith.constant 0 : index
    %11 = vector.load %arg5[%c0_8, %c0_9] : memref<512x32xf32, #tpu.memory_space<vmem>>, vector<512x32xf32>
    tpu.vector_store %arg5[%c0_8, %c0_9], %10 {strides = array<i32>} : memref<512x32xf32, #tpu.memory_space<vmem>>, vector<512x32xf32>,
    return
  }
  func.func @transform_0(%arg0: i32) -> (i32, i32) {
    %c0_i32 = arith.constant 0 : i32
    %c0_i32_0 = arith.constant 0 : i32
    return %arg0, %c0_i32 : i32, i32
  }
  func.func @transform_1(%arg0: i32) -> (i32, i32) {
    %c0_i32 = arith.constant 0 : i32
    %c0_i32_0 = arith.constant 0 : i32
    %c0_i32_1 = arith.constant 0 : i32
    return %c0_i32, %c0_i32_0 : i32, i32
  }
  func.func @transform_2(%arg0: i32) -> (i32, i32) {
    %c0_i32 = arith.constant 0 : i32
    %c0_i32_0 = arith.constant 0 : i32
    %c0_i32_1 = arith.constant 0 : i32
    return %c0_i32, %c0_i32_0 : i32, i32
  }
  func.func @transform_3(%arg0: i32) -> (i32, i32) {
    %c0_i32 = arith.constant 0 : i32
    %c0_i32_0 = arith.constant 0 : i32
    %c0_i32_1 = arith.constant 0 : i32
    return %c0_i32, %c0_i32_0 : i32, i32
  }
  func.func @transform_4(%arg0: i32) -> (i32, i32) {
    %c0_i32 = arith.constant 0 : i32
    %c0_i32_0 = arith.constant 0 : i32
    return %arg0, %c0_i32 : i32, i32
  }
}

module attributes {stable_mosaic.version = 11 : i64} {
  func.func @_matmul_affine_kernel(%arg0: i32, %arg1: memref<512x32xf32, #tpu.memory_space<vmem>>, %arg2: memref<32x128xf32, #tpu.memory_space<vmem>>, %arg3: memref<1x128xf32, #tpu.memory_space<vmem>>, %arg4: memref<1x128xf32, #tpu.memory_space<vmem>>, %arg5: memref<512x128xf32, #tpu.memory_space<vmem>>) attributes {dimension_semantics = [#tpu.dimension_semantics<parallel>], iteration_bounds = array<i64: 1>, scalar_prefetch = 0 : i64, scratch_operands = 0 : i64, tpu.core_type = #tpu.core_type<tc>, window_params = [{transform_indices = @transform_0, window_bounds = array<i64: 512, 32>}, {pipeline_mode = #tpu.pipeline_mode<synchronous>, transform_indices = @transform_1, window_bounds = array<i64: 32, 128>}, {pipeline_mode = #tpu.pipeline_mode<synchronous>, transform_indices = @transform_2, window_bounds = array<i64: 1, 128>}, {pipeline_mode = #tpu.pipeline_mode<synchronous>, transform_indices = @transform_3, window_bounds = array<i64: 1, 128>}, {transform_indices = @transform_4, window_bounds = array<i64: 512, 128>}]} {
    %c0 = arith.constant 0 : index
    %c0_0 = arith.constant 0 : index
    %0 = vector.load %arg1[%c0, %c0_0] : memref<512x32xf32, #tpu.memory_space<vmem>>, vector<512x32xf32>
    %c0_1 = arith.constant 0 : index
    %c0_2 = arith.constant 0 : index
    %1 = vector.load %arg2[%c0_1, %c0_2] : memref<32x128xf32, #tpu.memory_space<vmem>>, vector<32x128xf32>
    %cst = arith.constant dense<0.000000e+00> : vector<512x128xf32>
    %2 = tpu.matmul %0, %1, %cst {dimension_numbers = #tpu.dot_dimension_numbers<[1], [0], [0], [1], [0, 0, 1, 1], [], []>} : vector<512x32xf32>, vector<32x128xf32>, vector<512x128xf32> -> vector<512x128xf32>
    %c0_3 = arith.constant 0 : index
    %c0_4 = arith.constant 0 : index
    %3 = vector.load %arg3[%c0_3, %c0_4] : memref<1x128xf32, #tpu.memory_space<vmem>>, vector<1x128xf32>
    %4 = vector.broadcast %3 : vector<1x128xf32> to vector<512x128xf32>
    %5 = arith.mulf %2, %4 : vector<512x128xf32>
    %c0_5 = arith.constant 0 : index
    %c0_6 = arith.constant 0 : index
    %6 = vector.load %arg4[%c0_5, %c0_6] : memref<1x128xf32, #tpu.memory_space<vmem>>, vector<1x128xf32>
    %7 = vector.broadcast %6 : vector<1x128xf32> to vector<512x128xf32>
    %8 = arith.addf %5, %7 : vector<512x128xf32>
    %c0_7 = arith.constant 0 : index
    %c0_8 = arith.constant 0 : index
    %9 = vector.load %arg5[%c0_7, %c0_8] : memref<512x128xf32, #tpu.memory_space<vmem>>, vector<512x128xf32>
    tpu.vector_store %arg5[%c0_7, %c0_8], %8 {strides = array<i32>} : memref<512x128xf32, #tpu.memory_space<vmem>>, vector<512x128xf32>,
    return
  }
  func.func @transform_0(%arg0: i32) -> (i32, i32) {
    %c0_i32 = arith.constant 0 : i32
    %c0_i32_0 = arith.constant 0 : i32
    return %arg0, %c0_i32 : i32, i32
  }
  func.func @transform_1(%arg0: i32) -> (i32, i32) {
    %c0_i32 = arith.constant 0 : i32
    %c0_i32_0 = arith.constant 0 : i32
    %c0_i32_1 = arith.constant 0 : i32
    return %c0_i32, %c0_i32_0 : i32, i32
  }
  func.func @transform_2(%arg0: i32) -> (i32, i32) {
    %c0_i32 = arith.constant 0 : i32
    %c0_i32_0 = arith.constant 0 : i32
    %c0_i32_1 = arith.constant 0 : i32
    return %c0_i32, %c0_i32_0 : i32, i32
  }
  func.func @transform_3(%arg0: i32) -> (i32, i32) {
    %c0_i32 = arith.constant 0 : i32
    %c0_i32_0 = arith.constant 0 : i32
    %c0_i32_1 = arith.constant 0 : i32
    return %c0_i32, %c0_i32_0 : i32, i32
  }
  func.func @transform_4(%arg0: i32) -> (i32, i32) {
    %c0_i32 = arith.constant 0 : i32
    %c0_i32_0 = arith.constant 0 : i32
    return %arg0, %c0_i32 : i32, i32
  }
}

module attributes {stable_mosaic.version = 11 : i64} {
  func.func @_channel_gate_kernel(%arg0: i32, %arg1: memref<2x256x128xf32, #tpu.memory_space<vmem>>, %arg2: memref<128x8xf32, #tpu.memory_space<vmem>>, %arg3: memref<8x128xf32, #tpu.memory_space<vmem>>, %arg4: memref<2x256x128xf32, #tpu.memory_space<vmem>>) attributes {dimension_semantics = [#tpu.dimension_semantics<parallel>], iteration_bounds = array<i64: 1>, scalar_prefetch = 0 : i64, scratch_operands = 0 : i64, tpu.core_type = #tpu.core_type<tc>, window_params = [{transform_indices = @transform_0, window_bounds = array<i64: 2, 256, 128>}, {pipeline_mode = #tpu.pipeline_mode<synchronous>, transform_indices = @transform_1, window_bounds = array<i64: 128, 8>}, {pipeline_mode = #tpu.pipeline_mode<synchronous>, transform_indices = @transform_2, window_bounds = array<i64: 8, 128>}, {transform_indices = @transform_3, window_bounds = array<i64: 2, 256, 128>}]} {
    %c0 = arith.constant 0 : index
    %c0_0 = arith.constant 0 : index
    %c0_1 = arith.constant 0 : index
    %0 = vector.load %arg1[%c0, %c0_0, %c0_1] : memref<2x256x128xf32, #tpu.memory_space<vmem>>, vector<2x256x128xf32>
    %c0_2 = arith.constant 0 : index
    %c0_3 = arith.constant 0 : index
    %1 = vector.load %arg2[%c0_2, %c0_3] : memref<128x8xf32, #tpu.memory_space<vmem>>, vector<128x8xf32>
    %c0_4 = arith.constant 0 : index
    %c0_5 = arith.constant 0 : index
    %2 = vector.load %arg3[%c0_4, %c0_5] : memref<8x128xf32, #tpu.memory_space<vmem>>, vector<8x128xf32>
    %cst = arith.constant dense<0.000000e+00> : vector<2x128xf32>
    %3 = vector.multi_reduction <add>, %0, %cst [1] : vector<2x256x128xf32> to vector<2x128xf32>
    %cst_6 = arith.constant 2.560000e+02 : f32
    %4 = vector.broadcast %cst_6 : f32 to vector<2x128xf32>
    %5 = arith.divf %3, %4 : vector<2x128xf32>
    %cst_7 = arith.constant dense<0.000000e+00> : vector<2x8xf32>
    %6 = tpu.matmul %5, %1, %cst_7 {dimension_numbers = #tpu.dot_dimension_numbers<[1], [0], [0], [1], [0, 0, 1, 1], [], []>} : vector<2x128xf32>, vector<128x8xf32>, vector<2x8xf32> -> vector<2x8xf32>
    %cst_8 = arith.constant 0.000000e+00 : f32
    %7 = vector.broadcast %cst_8 : f32 to vector<2x8xf32>
    %8 = arith.maximumf %6, %7 : vector<2x8xf32>
    %cst_9 = arith.constant dense<0.000000e+00> : vector<2x128xf32>
    %9 = tpu.matmul %8, %2, %cst_9 {dimension_numbers = #tpu.dot_dimension_numbers<[1], [0], [0], [1], [0, 0, 1, 1], [], []>} : vector<2x8xf32>, vector<8x128xf32>, vector<2x128xf32> -> vector<2x128xf32>
    %10 = arith.negf %9 : vector<2x128xf32>
    %11 = math.exp %10 : vector<2x128xf32>
    %cst_10 = arith.constant 1.000000e+00 : f32
    %12 = vector.broadcast %cst_10 : f32 to vector<2x128xf32>
    %13 = arith.addf %12, %11 : vector<2x128xf32>
    %14 = arith.divf %12, %13 : vector<2x128xf32>
    %15 = vector.shape_cast %14 : vector<2x128xf32> to vector<2x1x128xf32>
    %16 = vector.broadcast %15 : vector<2x1x128xf32> to vector<2x256x128xf32>
    %17 = arith.mulf %0, %16 : vector<2x256x128xf32>
    %c0_11 = arith.constant 0 : index
    %c0_12 = arith.constant 0 : index
    %c0_13 = arith.constant 0 : index
    %18 = vector.load %arg4[%c0_11, %c0_12, %c0_13] : memref<2x256x128xf32, #tpu.memory_space<vmem>>, vector<2x256x128xf32>
    tpu.vector_store %arg4[%c0_11, %c0_12, %c0_13], %17 {strides = array<i32>} : memref<2x256x128xf32, #tpu.memory_space<vmem>>, vector<2x256x128xf32>,
    return
  }
  func.func @transform_0(%arg0: i32) -> (i32, i32, i32) {
    %c0_i32 = arith.constant 0 : i32
    %c0_i32_0 = arith.constant 0 : i32
    %c0_i32_1 = arith.constant 0 : i32
    return %arg0, %c0_i32, %c0_i32_0 : i32, i32, i32
  }
  func.func @transform_1(%arg0: i32) -> (i32, i32) {
    %c0_i32 = arith.constant 0 : i32
    %c0_i32_0 = arith.constant 0 : i32
    %c0_i32_1 = arith.constant 0 : i32
    return %c0_i32, %c0_i32_0 : i32, i32
  }
  func.func @transform_2(%arg0: i32) -> (i32, i32) {
    %c0_i32 = arith.constant 0 : i32
    %c0_i32_0 = arith.constant 0 : i32
    %c0_i32_1 = arith.constant 0 : i32
    return %c0_i32, %c0_i32_0 : i32, i32
  }
  func.func @transform_3(%arg0: i32) -> (i32, i32, i32) {
    %c0_i32 = arith.constant 0 : i32
    %c0_i32_0 = arith.constant 0 : i32
    %c0_i32_1 = arith.constant 0 : i32
    return %arg0, %c0_i32, %c0_i32_0 : i32, i32, i32
  }
}

module attributes {stable_mosaic.version = 11 : i64} {
  func.func @_channel_gate_kernel(%arg0: i32, %arg1: memref<2x256x128xf32, #tpu.memory_space<vmem>>, %arg2: memref<128x8xf32, #tpu.memory_space<vmem>>, %arg3: memref<8x128xf32, #tpu.memory_space<vmem>>, %arg4: memref<2x256x128xf32, #tpu.memory_space<vmem>>) attributes {dimension_semantics = [#tpu.dimension_semantics<parallel>], iteration_bounds = array<i64: 1>, scalar_prefetch = 0 : i64, scratch_operands = 0 : i64, tpu.core_type = #tpu.core_type<tc>, window_params = [{transform_indices = @transform_0, window_bounds = array<i64: 2, 256, 128>}, {pipeline_mode = #tpu.pipeline_mode<synchronous>, transform_indices = @transform_1, window_bounds = array<i64: 128, 8>}, {pipeline_mode = #tpu.pipeline_mode<synchronous>, transform_indices = @transform_2, window_bounds = array<i64: 8, 128>}, {transform_indices = @transform_3, window_bounds = array<i64: 2, 256, 128>}]} {
    %c0 = arith.constant 0 : index
    %c0_0 = arith.constant 0 : index
    %c0_1 = arith.constant 0 : index
    %0 = vector.load %arg1[%c0, %c0_0, %c0_1] : memref<2x256x128xf32, #tpu.memory_space<vmem>>, vector<2x256x128xf32>
    %c0_2 = arith.constant 0 : index
    %c0_3 = arith.constant 0 : index
    %1 = vector.load %arg2[%c0_2, %c0_3] : memref<128x8xf32, #tpu.memory_space<vmem>>, vector<128x8xf32>
    %c0_4 = arith.constant 0 : index
    %c0_5 = arith.constant 0 : index
    %2 = vector.load %arg3[%c0_4, %c0_5] : memref<8x128xf32, #tpu.memory_space<vmem>>, vector<8x128xf32>
    %cst = arith.constant dense<0.000000e+00> : vector<2x128xf32>
    %3 = vector.multi_reduction <add>, %0, %cst [1] : vector<2x256x128xf32> to vector<2x128xf32>
    %cst_6 = arith.constant 2.560000e+02 : f32
    %4 = vector.broadcast %cst_6 : f32 to vector<2x128xf32>
    %5 = arith.divf %3, %4 : vector<2x128xf32>
    %cst_7 = arith.constant dense<0.000000e+00> : vector<2x8xf32>
    %6 = tpu.matmul %5, %1, %cst_7 {dimension_numbers = #tpu.dot_dimension_numbers<[1], [0], [0], [1], [0, 0, 1, 1], [], []>} : vector<2x128xf32>, vector<128x8xf32>, vector<2x8xf32> -> vector<2x8xf32>
    %cst_8 = arith.constant 0.000000e+00 : f32
    %7 = vector.broadcast %cst_8 : f32 to vector<2x8xf32>
    %8 = arith.maximumf %6, %7 : vector<2x8xf32>
    %cst_9 = arith.constant dense<0.000000e+00> : vector<2x128xf32>
    %9 = tpu.matmul %8, %2, %cst_9 {dimension_numbers = #tpu.dot_dimension_numbers<[1], [0], [0], [1], [0, 0, 1, 1], [], []>} : vector<2x8xf32>, vector<8x128xf32>, vector<2x128xf32> -> vector<2x128xf32>
    %cst_10 = arith.constant dense<0xFF800000> : vector<2x128xf32>
    %10 = vector.multi_reduction <maximumf>, %0, %cst_10 [1] : vector<2x256x128xf32> to vector<2x128xf32>
    %cst_11 = arith.constant dense<0.000000e+00> : vector<2x8xf32>
    %11 = tpu.matmul %10, %1, %cst_11 {dimension_numbers = #tpu.dot_dimension_numbers<[1], [0], [0], [1], [0, 0, 1, 1], [], []>} : vector<2x128xf32>, vector<128x8xf32>, vector<2x8xf32> -> vector<2x8xf32>
    %cst_12 = arith.constant 0.000000e+00 : f32
    %12 = vector.broadcast %cst_12 : f32 to vector<2x8xf32>
    %13 = arith.maximumf %11, %12 : vector<2x8xf32>
    %cst_13 = arith.constant dense<0.000000e+00> : vector<2x128xf32>
    %14 = tpu.matmul %13, %2, %cst_13 {dimension_numbers = #tpu.dot_dimension_numbers<[1], [0], [0], [1], [0, 0, 1, 1], [], []>} : vector<2x8xf32>, vector<8x128xf32>, vector<2x128xf32> -> vector<2x128xf32>
    %15 = arith.addf %9, %14 : vector<2x128xf32>
    %16 = arith.negf %15 : vector<2x128xf32>
    %17 = math.exp %16 : vector<2x128xf32>
    %cst_14 = arith.constant 1.000000e+00 : f32
    %18 = vector.broadcast %cst_14 : f32 to vector<2x128xf32>
    %19 = arith.addf %18, %17 : vector<2x128xf32>
    %20 = arith.divf %18, %19 : vector<2x128xf32>
    %21 = vector.shape_cast %20 : vector<2x128xf32> to vector<2x1x128xf32>
    %22 = vector.broadcast %21 : vector<2x1x128xf32> to vector<2x256x128xf32>
    %23 = arith.mulf %0, %22 : vector<2x256x128xf32>
    %c0_15 = arith.constant 0 : index
    %c0_16 = arith.constant 0 : index
    %c0_17 = arith.constant 0 : index
    %24 = vector.load %arg4[%c0_15, %c0_16, %c0_17] : memref<2x256x128xf32, #tpu.memory_space<vmem>>, vector<2x256x128xf32>
    tpu.vector_store %arg4[%c0_15, %c0_16, %c0_17], %23 {strides = array<i32>} : memref<2x256x128xf32, #tpu.memory_space<vmem>>, vector<2x256x128xf32>,
    return
  }
  func.func @transform_0(%arg0: i32) -> (i32, i32, i32) {
    %c0_i32 = arith.constant 0 : i32
    %c0_i32_0 = arith.constant 0 : i32
    %c0_i32_1 = arith.constant 0 : i32
    return %arg0, %c0_i32, %c0_i32_0 : i32, i32, i32
  }
  func.func @transform_1(%arg0: i32) -> (i32, i32) {
    %c0_i32 = arith.constant 0 : i32
    %c0_i32_0 = arith.constant 0 : i32
    %c0_i32_1 = arith.constant 0 : i32
    return %c0_i32, %c0_i32_0 : i32, i32
  }
  func.func @transform_2(%arg0: i32) -> (i32, i32) {
    %c0_i32 = arith.constant 0 : i32
    %c0_i32_0 = arith.constant 0 : i32
    %c0_i32_1 = arith.constant 0 : i32
    return %c0_i32, %c0_i32_0 : i32, i32
  }
  func.func @transform_3(%arg0: i32) -> (i32, i32, i32) {
    %c0_i32 = arith.constant 0 : i32
    %c0_i32_0 = arith.constant 0 : i32
    %c0_i32_1 = arith.constant 0 : i32
    return %arg0, %c0_i32, %c0_i32_0 : i32, i32, i32
  }
}

module attributes {stable_mosaic.version = 11 : i64} {
  func.func @_matmul_affine_kernel(%arg0: i32, %arg1: memref<512x64xf32, #tpu.memory_space<vmem>>, %arg2: memref<64x128xf32, #tpu.memory_space<vmem>>, %arg3: memref<1x128xf32, #tpu.memory_space<vmem>>, %arg4: memref<1x128xf32, #tpu.memory_space<vmem>>, %arg5: memref<512x128xf32, #tpu.memory_space<vmem>>) attributes {dimension_semantics = [#tpu.dimension_semantics<parallel>], iteration_bounds = array<i64: 1>, scalar_prefetch = 0 : i64, scratch_operands = 0 : i64, tpu.core_type = #tpu.core_type<tc>, window_params = [{transform_indices = @transform_0, window_bounds = array<i64: 512, 64>}, {pipeline_mode = #tpu.pipeline_mode<synchronous>, transform_indices = @transform_1, window_bounds = array<i64: 64, 128>}, {pipeline_mode = #tpu.pipeline_mode<synchronous>, transform_indices = @transform_2, window_bounds = array<i64: 1, 128>}, {pipeline_mode = #tpu.pipeline_mode<synchronous>, transform_indices = @transform_3, window_bounds = array<i64: 1, 128>}, {transform_indices = @transform_4, window_bounds = array<i64: 512, 128>}]} {
    %c0 = arith.constant 0 : index
    %c0_0 = arith.constant 0 : index
    %0 = vector.load %arg1[%c0, %c0_0] : memref<512x64xf32, #tpu.memory_space<vmem>>, vector<512x64xf32>
    %c0_1 = arith.constant 0 : index
    %c0_2 = arith.constant 0 : index
    %1 = vector.load %arg2[%c0_1, %c0_2] : memref<64x128xf32, #tpu.memory_space<vmem>>, vector<64x128xf32>
    %cst = arith.constant dense<0.000000e+00> : vector<512x128xf32>
    %2 = tpu.matmul %0, %1, %cst {dimension_numbers = #tpu.dot_dimension_numbers<[1], [0], [0], [1], [0, 0, 1, 1], [], []>} : vector<512x64xf32>, vector<64x128xf32>, vector<512x128xf32> -> vector<512x128xf32>
    %c0_3 = arith.constant 0 : index
    %c0_4 = arith.constant 0 : index
    %3 = vector.load %arg3[%c0_3, %c0_4] : memref<1x128xf32, #tpu.memory_space<vmem>>, vector<1x128xf32>
    %4 = vector.broadcast %3 : vector<1x128xf32> to vector<512x128xf32>
    %5 = arith.mulf %2, %4 : vector<512x128xf32>
    %c0_5 = arith.constant 0 : index
    %c0_6 = arith.constant 0 : index
    %6 = vector.load %arg4[%c0_5, %c0_6] : memref<1x128xf32, #tpu.memory_space<vmem>>, vector<1x128xf32>
    %7 = vector.broadcast %6 : vector<1x128xf32> to vector<512x128xf32>
    %8 = arith.addf %5, %7 : vector<512x128xf32>
    %c0_7 = arith.constant 0 : index
    %c0_8 = arith.constant 0 : index
    %9 = vector.load %arg5[%c0_7, %c0_8] : memref<512x128xf32, #tpu.memory_space<vmem>>, vector<512x128xf32>
    tpu.vector_store %arg5[%c0_7, %c0_8], %8 {strides = array<i32>} : memref<512x128xf32, #tpu.memory_space<vmem>>, vector<512x128xf32>,
    return
  }
  func.func @transform_0(%arg0: i32) -> (i32, i32) {
    %c0_i32 = arith.constant 0 : i32
    %c0_i32_0 = arith.constant 0 : i32
    return %arg0, %c0_i32 : i32, i32
  }
  func.func @transform_1(%arg0: i32) -> (i32, i32) {
    %c0_i32 = arith.constant 0 : i32
    %c0_i32_0 = arith.constant 0 : i32
    %c0_i32_1 = arith.constant 0 : i32
    return %c0_i32, %c0_i32_0 : i32, i32
  }
  func.func @transform_2(%arg0: i32) -> (i32, i32) {
    %c0_i32 = arith.constant 0 : i32
    %c0_i32_0 = arith.constant 0 : i32
    %c0_i32_1 = arith.constant 0 : i32
    return %c0_i32, %c0_i32_0 : i32, i32
  }
  func.func @transform_3(%arg0: i32) -> (i32, i32) {
    %c0_i32 = arith.constant 0 : i32
    %c0_i32_0 = arith.constant 0 : i32
    %c0_i32_1 = arith.constant 0 : i32
    return %c0_i32, %c0_i32_0 : i32, i32
  }
  func.func @transform_4(%arg0: i32) -> (i32, i32) {
    %c0_i32 = arith.constant 0 : i32
    %c0_i32_0 = arith.constant 0 : i32
    return %arg0, %c0_i32 : i32, i32
  }
}

module attributes {stable_mosaic.version = 11 : i64} {
  func.func @_spatial_attention_kernel(%arg0: i32, %arg1: memref<18xf32, #tpu.memory_space<smem>>, %arg2: memref<1xf32, #tpu.memory_space<smem>>, %arg3: memref<2x16x16x128xf32, #tpu.memory_space<vmem>>, %arg4: memref<2x16x16x128xf32, #tpu.memory_space<vmem>>, %arg5: memref<2x18x18xf32, #tpu.memory_space<vmem>>) attributes {dimension_semantics = [#tpu.dimension_semantics<arbitrary>], iteration_bounds = array<i64: 1>, scalar_prefetch = 0 : i64, scratch_operands = 1 : i64, tpu.core_type = #tpu.core_type<tc>, window_params = [{transform_indices = @transform_0, window_bounds = array<i64: 18>}, {transform_indices = @transform_1, window_bounds = array<i64: 1>}, {transform_indices = @transform_2, window_bounds = array<i64: 2, 16, 16, 128>}, {transform_indices = @transform_3, window_bounds = array<i64: 2, 16, 16, 128>}]} {
    %c0_i32 = arith.constant 0 : i32
    %0 = arith.cmpi eq, %arg0, %c0_i32 : i32
    %1 = arith.extui %0 : i1 to i32
    %c0_i32_0 = arith.constant 0 : i32
    %2 = arith.cmpi ne, %1, %c0_i32_0 : i32
    scf.if %2 {
      %cst_164 = arith.constant 0.000000e+00 : f32
      %269 = vector.broadcast %cst_164 : f32 to vector<2x18x18xf32>
      %c0_165 = arith.constant 0 : index
      %c0_166 = arith.constant 0 : index
      %c0_167 = arith.constant 0 : index
      %270 = vector.load %arg5[%c0_165, %c0_166, %c0_167] : memref<2x18x18xf32, #tpu.memory_space<vmem>>, vector<2x18x18xf32>
      tpu.vector_store %arg5[%c0_165, %c0_166, %c0_167], %269 {strides = array<i32>} : memref<2x18x18xf32, #tpu.memory_space<vmem>>, vector<2x18x18xf32>,
    } else {
    }
    %c0 = arith.constant 0 : index
    %c0_1 = arith.constant 0 : index
    %c0_2 = arith.constant 0 : index
    %c0_3 = arith.constant 0 : index
    %3 = vector.load %arg3[%c0, %c0_1, %c0_2, %c0_3] : memref<2x16x16x128xf32, #tpu.memory_space<vmem>>, vector<1x16x16x128xf32>
    %4 = vector.shape_cast %3 : vector<1x16x16x128xf32> to vector<16x16x128xf32>
    %cst = arith.constant dense<0.000000e+00> : vector<16x16xf32>
    %5 = vector.multi_reduction <add>, %4, %cst [2] : vector<16x16x128xf32> to vector<16x16xf32>
    %cst_4 = arith.constant 1.280000e+02 : f32
    %6 = vector.broadcast %cst_4 : f32 to vector<16x16xf32>
    %7 = arith.divf %5, %6 : vector<16x16xf32>
    %c0_5 = arith.constant 0 : index
    %c1 = arith.constant 1 : index
    %c1_6 = arith.constant 1 : index
    %8 = vector.load %arg5[%c0_5, %c1, %c1_6] : memref<2x18x18xf32, #tpu.memory_space<vmem>>, vector<1x16x16xf32>
    %9 = vector.shape_cast %8 : vector<1x16x16xf32> to vector<16x16xf32>
    %10 = vector.shape_cast %7 : vector<16x16xf32> to vector<1x16x16xf32>
    tpu.vector_store %arg5[%c0_5, %c1, %c1_6], %10 {strides = array<i32>} : memref<2x18x18xf32, #tpu.memory_space<vmem>>, vector<1x16x16xf32>,
    %cst_7 = arith.constant dense<0xFF800000> : vector<16x16xf32>
    %11 = vector.multi_reduction <maximumf>, %4, %cst_7 [2] : vector<16x16x128xf32> to vector<16x16xf32>
    %c1_8 = arith.constant 1 : index
    %c1_9 = arith.constant 1 : index
    %c1_10 = arith.constant 1 : index
    %12 = vector.load %arg5[%c1_8, %c1_9, %c1_10] : memref<2x18x18xf32, #tpu.memory_space<vmem>>, vector<1x16x16xf32>
    %13 = vector.shape_cast %12 : vector<1x16x16xf32> to vector<16x16xf32>
    %14 = vector.shape_cast %11 : vector<16x16xf32> to vector<1x16x16xf32>
    tpu.vector_store %arg5[%c1_8, %c1_9, %c1_10], %14 {strides = array<i32>} : memref<2x18x18xf32, #tpu.memory_space<vmem>>, vector<1x16x16xf32>,
    %c0_11 = arith.constant 0 : index
    %15 = memref.load %arg2[%c0_11] : memref<1xf32, #tpu.memory_space<smem>>
    %16 = vector.broadcast %15 : f32 to vector<16x16xf32>
    %c0_12 = arith.constant 0 : index
    %c0_13 = arith.constant 0 : index
    %c0_14 = arith.constant 0 : index
    %17 = vector.load %arg5[%c0_12, %c0_13, %c0_14] : memref<2x18x18xf32, #tpu.memory_space<vmem>>, vector<1x16x16xf32>
    %18 = vector.shape_cast %17 : vector<1x16x16xf32> to vector<16x16xf32>
    %c0_15 = arith.constant 0 : index
    %19 = memref.load %arg1[%c0_15] : memref<18xf32, #tpu.memory_space<smem>>
    %20 = vector.broadcast %19 : f32 to vector<16x16xf32>
    %21 = arith.mulf %20, %18 : vector<16x16xf32>
    %22 = arith.addf %16, %21 : vector<16x16xf32>
    %c0_16 = arith.constant 0 : index
    %c0_17 = arith.constant 0 : index
    %c1_18 = arith.constant 1 : index
    %23 = vector.load %arg5[%c0_16, %c0_17, %c1_18] : memref<2x18x18xf32, #tpu.memory_space<vmem>>, vector<1x16x16xf32>
    %24 = vector.shape_cast %23 : vector<1x16x16xf32> to vector<16x16xf32>
    %c1_19 = arith.constant 1 : index
    %25 = memref.load %arg1[%c1_19] : memref<18xf32, #tpu.memory_space<smem>>
    %26 = vector.broadcast %25 : f32 to vector<16x16xf32>
    %27 = arith.mulf %26, %24 : vector<16x16xf32>
    %28 = arith.addf %22, %27 : vector<16x16xf32>
    %c0_20 = arith.constant 0 : index
    %c0_21 = arith.constant 0 : index
    %c2 = arith.constant 2 : index
    %29 = vector.load %arg5[%c0_20, %c0_21, %c2] : memref<2x18x18xf32, #tpu.memory_space<vmem>>, vector<1x16x16xf32>
    %30 = vector.shape_cast %29 : vector<1x16x16xf32> to vector<16x16xf32>
    %c2_22 = arith.constant 2 : index
    %31 = memref.load %arg1[%c2_22] : memref<18xf32, #tpu.memory_space<smem>>
    %32 = vector.broadcast %31 : f32 to vector<16x16xf32>
    %33 = arith.mulf %32, %30 : vector<16x16xf32>
    %34 = arith.addf %28, %33 : vector<16x16xf32>
    %c0_23 = arith.constant 0 : index
    %c1_24 = arith.constant 1 : index
    %c0_25 = arith.constant 0 : index
    %35 = vector.load %arg5[%c0_23, %c1_24, %c0_25] : memref<2x18x18xf32, #tpu.memory_space<vmem>>, vector<1x16x16xf32>
    %36 = vector.shape_cast %35 : vector<1x16x16xf32> to vector<16x16xf32>
    %c3 = arith.constant 3 : index
    %37 = memref.load %arg1[%c3] : memref<18xf32, #tpu.memory_space<smem>>
    %38 = vector.broadcast %37 : f32 to vector<16x16xf32>
    %39 = arith.mulf %38, %36 : vector<16x16xf32>
    %40 = arith.addf %34, %39 : vector<16x16xf32>
    %c0_26 = arith.constant 0 : index
    %c1_27 = arith.constant 1 : index
    %c1_28 = arith.constant 1 : index
    %41 = vector.load %arg5[%c0_26, %c1_27, %c1_28] : memref<2x18x18xf32, #tpu.memory_space<vmem>>, vector<1x16x16xf32>
    %42 = vector.shape_cast %41 : vector<1x16x16xf32> to vector<16x16xf32>
    %c4 = arith.constant 4 : index
    %43 = memref.load %arg1[%c4] : memref<18xf32, #tpu.memory_space<smem>>
    %44 = vector.broadcast %43 : f32 to vector<16x16xf32>
    %45 = arith.mulf %44, %42 : vector<16x16xf32>
    %46 = arith.addf %40, %45 : vector<16x16xf32>
    %c0_29 = arith.constant 0 : index
    %c1_30 = arith.constant 1 : index
    %c2_31 = arith.constant 2 : index
    %47 = vector.load %arg5[%c0_29, %c1_30, %c2_31] : memref<2x18x18xf32, #tpu.memory_space<vmem>>, vector<1x16x16xf32>
    %48 = vector.shape_cast %47 : vector<1x16x16xf32> to vector<16x16xf32>
    %c5 = arith.constant 5 : index
    %49 = memref.load %arg1[%c5] : memref<18xf32, #tpu.memory_space<smem>>
    %50 = vector.broadcast %49 : f32 to vector<16x16xf32>
    %51 = arith.mulf %50, %48 : vector<16x16xf32>
    %52 = arith.addf %46, %51 : vector<16x16xf32>
    %c0_32 = arith.constant 0 : index
    %c2_33 = arith.constant 2 : index
    %c0_34 = arith.constant 0 : index
    %53 = vector.load %arg5[%c0_32, %c2_33, %c0_34] : memref<2x18x18xf32, #tpu.memory_space<vmem>>, vector<1x16x16xf32>
    %54 = vector.shape_cast %53 : vector<1x16x16xf32> to vector<16x16xf32>
    %c6 = arith.constant 6 : index
    %55 = memref.load %arg1[%c6] : memref<18xf32, #tpu.memory_space<smem>>
    %56 = vector.broadcast %55 : f32 to vector<16x16xf32>
    %57 = arith.mulf %56, %54 : vector<16x16xf32>
    %58 = arith.addf %52, %57 : vector<16x16xf32>
    %c0_35 = arith.constant 0 : index
    %c2_36 = arith.constant 2 : index
    %c1_37 = arith.constant 1 : index
    %59 = vector.load %arg5[%c0_35, %c2_36, %c1_37] : memref<2x18x18xf32, #tpu.memory_space<vmem>>, vector<1x16x16xf32>
    %60 = vector.shape_cast %59 : vector<1x16x16xf32> to vector<16x16xf32>
    %c7 = arith.constant 7 : index
    %61 = memref.load %arg1[%c7] : memref<18xf32, #tpu.memory_space<smem>>
    %62 = vector.broadcast %61 : f32 to vector<16x16xf32>
    %63 = arith.mulf %62, %60 : vector<16x16xf32>
    %64 = arith.addf %58, %63 : vector<16x16xf32>
    %c0_38 = arith.constant 0 : index
    %c2_39 = arith.constant 2 : index
    %c2_40 = arith.constant 2 : index
    %65 = vector.load %arg5[%c0_38, %c2_39, %c2_40] : memref<2x18x18xf32, #tpu.memory_space<vmem>>, vector<1x16x16xf32>
    %66 = vector.shape_cast %65 : vector<1x16x16xf32> to vector<16x16xf32>
    %c8 = arith.constant 8 : index
    %67 = memref.load %arg1[%c8] : memref<18xf32, #tpu.memory_space<smem>>
    %68 = vector.broadcast %67 : f32 to vector<16x16xf32>
    %69 = arith.mulf %68, %66 : vector<16x16xf32>
    %70 = arith.addf %64, %69 : vector<16x16xf32>
    %c1_41 = arith.constant 1 : index
    %c0_42 = arith.constant 0 : index
    %c0_43 = arith.constant 0 : index
    %71 = vector.load %arg5[%c1_41, %c0_42, %c0_43] : memref<2x18x18xf32, #tpu.memory_space<vmem>>, vector<1x16x16xf32>
    %72 = vector.shape_cast %71 : vector<1x16x16xf32> to vector<16x16xf32>
    %c9 = arith.constant 9 : index
    %73 = memref.load %arg1[%c9] : memref<18xf32, #tpu.memory_space<smem>>
    %74 = vector.broadcast %73 : f32 to vector<16x16xf32>
    %75 = arith.mulf %74, %72 : vector<16x16xf32>
    %76 = arith.addf %70, %75 : vector<16x16xf32>
    %c1_44 = arith.constant 1 : index
    %c0_45 = arith.constant 0 : index
    %c1_46 = arith.constant 1 : index
    %77 = vector.load %arg5[%c1_44, %c0_45, %c1_46] : memref<2x18x18xf32, #tpu.memory_space<vmem>>, vector<1x16x16xf32>
    %78 = vector.shape_cast %77 : vector<1x16x16xf32> to vector<16x16xf32>
    %c10 = arith.constant 10 : index
    %79 = memref.load %arg1[%c10] : memref<18xf32, #tpu.memory_space<smem>>
    %80 = vector.broadcast %79 : f32 to vector<16x16xf32>
    %81 = arith.mulf %80, %78 : vector<16x16xf32>
    %82 = arith.addf %76, %81 : vector<16x16xf32>
    %c1_47 = arith.constant 1 : index
    %c0_48 = arith.constant 0 : index
    %c2_49 = arith.constant 2 : index
    %83 = vector.load %arg5[%c1_47, %c0_48, %c2_49] : memref<2x18x18xf32, #tpu.memory_space<vmem>>, vector<1x16x16xf32>
    %84 = vector.shape_cast %83 : vector<1x16x16xf32> to vector<16x16xf32>
    %c11 = arith.constant 11 : index
    %85 = memref.load %arg1[%c11] : memref<18xf32, #tpu.memory_space<smem>>
    %86 = vector.broadcast %85 : f32 to vector<16x16xf32>
    %87 = arith.mulf %86, %84 : vector<16x16xf32>
    %88 = arith.addf %82, %87 : vector<16x16xf32>
    %c1_50 = arith.constant 1 : index
    %c1_51 = arith.constant 1 : index
    %c0_52 = arith.constant 0 : index
    %89 = vector.load %arg5[%c1_50, %c1_51, %c0_52] : memref<2x18x18xf32, #tpu.memory_space<vmem>>, vector<1x16x16xf32>
    %90 = vector.shape_cast %89 : vector<1x16x16xf32> to vector<16x16xf32>
    %c12 = arith.constant 12 : index
    %91 = memref.load %arg1[%c12] : memref<18xf32, #tpu.memory_space<smem>>
    %92 = vector.broadcast %91 : f32 to vector<16x16xf32>
    %93 = arith.mulf %92, %90 : vector<16x16xf32>
    %94 = arith.addf %88, %93 : vector<16x16xf32>
    %c1_53 = arith.constant 1 : index
    %c1_54 = arith.constant 1 : index
    %c1_55 = arith.constant 1 : index
    %95 = vector.load %arg5[%c1_53, %c1_54, %c1_55] : memref<2x18x18xf32, #tpu.memory_space<vmem>>, vector<1x16x16xf32>
    %96 = vector.shape_cast %95 : vector<1x16x16xf32> to vector<16x16xf32>
    %c13 = arith.constant 13 : index
    %97 = memref.load %arg1[%c13] : memref<18xf32, #tpu.memory_space<smem>>
    %98 = vector.broadcast %97 : f32 to vector<16x16xf32>
    %99 = arith.mulf %98, %96 : vector<16x16xf32>
    %100 = arith.addf %94, %99 : vector<16x16xf32>
    %c1_56 = arith.constant 1 : index
    %c1_57 = arith.constant 1 : index
    %c2_58 = arith.constant 2 : index
    %101 = vector.load %arg5[%c1_56, %c1_57, %c2_58] : memref<2x18x18xf32, #tpu.memory_space<vmem>>, vector<1x16x16xf32>
    %102 = vector.shape_cast %101 : vector<1x16x16xf32> to vector<16x16xf32>
    %c14 = arith.constant 14 : index
    %103 = memref.load %arg1[%c14] : memref<18xf32, #tpu.memory_space<smem>>
    %104 = vector.broadcast %103 : f32 to vector<16x16xf32>
    %105 = arith.mulf %104, %102 : vector<16x16xf32>
    %106 = arith.addf %100, %105 : vector<16x16xf32>
    %c1_59 = arith.constant 1 : index
    %c2_60 = arith.constant 2 : index
    %c0_61 = arith.constant 0 : index
    %107 = vector.load %arg5[%c1_59, %c2_60, %c0_61] : memref<2x18x18xf32, #tpu.memory_space<vmem>>, vector<1x16x16xf32>
    %108 = vector.shape_cast %107 : vector<1x16x16xf32> to vector<16x16xf32>
    %c15 = arith.constant 15 : index
    %109 = memref.load %arg1[%c15] : memref<18xf32, #tpu.memory_space<smem>>
    %110 = vector.broadcast %109 : f32 to vector<16x16xf32>
    %111 = arith.mulf %110, %108 : vector<16x16xf32>
    %112 = arith.addf %106, %111 : vector<16x16xf32>
    %c1_62 = arith.constant 1 : index
    %c2_63 = arith.constant 2 : index
    %c1_64 = arith.constant 1 : index
    %113 = vector.load %arg5[%c1_62, %c2_63, %c1_64] : memref<2x18x18xf32, #tpu.memory_space<vmem>>, vector<1x16x16xf32>
    %114 = vector.shape_cast %113 : vector<1x16x16xf32> to vector<16x16xf32>
    %c16 = arith.constant 16 : index
    %115 = memref.load %arg1[%c16] : memref<18xf32, #tpu.memory_space<smem>>
    %116 = vector.broadcast %115 : f32 to vector<16x16xf32>
    %117 = arith.mulf %116, %114 : vector<16x16xf32>
    %118 = arith.addf %112, %117 : vector<16x16xf32>
    %c1_65 = arith.constant 1 : index
    %c2_66 = arith.constant 2 : index
    %c2_67 = arith.constant 2 : index
    %119 = vector.load %arg5[%c1_65, %c2_66, %c2_67] : memref<2x18x18xf32, #tpu.memory_space<vmem>>, vector<1x16x16xf32>
    %120 = vector.shape_cast %119 : vector<1x16x16xf32> to vector<16x16xf32>
    %c17 = arith.constant 17 : index
    %121 = memref.load %arg1[%c17] : memref<18xf32, #tpu.memory_space<smem>>
    %122 = vector.broadcast %121 : f32 to vector<16x16xf32>
    %123 = arith.mulf %122, %120 : vector<16x16xf32>
    %124 = arith.addf %118, %123 : vector<16x16xf32>
    %125 = arith.negf %124 : vector<16x16xf32>
    %126 = math.exp %125 : vector<16x16xf32>
    %cst_68 = arith.constant 1.000000e+00 : f32
    %127 = vector.broadcast %cst_68 : f32 to vector<16x16xf32>
    %128 = arith.addf %127, %126 : vector<16x16xf32>
    %129 = arith.divf %127, %128 : vector<16x16xf32>
    %130 = vector.shape_cast %129 : vector<16x16xf32> to vector<16x16x1xf32>
    %131 = vector.broadcast %130 : vector<16x16x1xf32> to vector<16x16x128xf32>
    %132 = arith.mulf %4, %131 : vector<16x16x128xf32>
    %c0_69 = arith.constant 0 : index
    %c0_70 = arith.constant 0 : index
    %c0_71 = arith.constant 0 : index
    %c0_72 = arith.constant 0 : index
    %133 = vector.load %arg4[%c0_69, %c0_70, %c0_71, %c0_72] : memref<2x16x16x128xf32, #tpu.memory_space<vmem>>, vector<1x16x16x128xf32>
    %134 = vector.shape_cast %133 : vector<1x16x16x128xf32> to vector<16x16x128xf32>
    %135 = vector.shape_cast %132 : vector<16x16x128xf32> to vector<1x16x16x128xf32>
    tpu.vector_store %arg4[%c0_69, %c0_70, %c0_71, %c0_72], %135 {strides = array<i32>} : memref<2x16x16x128xf32, #tpu.memory_space<vmem>>, vector<1x16x16x128xf32>,
    %c1_73 = arith.constant 1 : index
    %c0_74 = arith.constant 0 : index
    %c0_75 = arith.constant 0 : index
    %c0_76 = arith.constant 0 : index
    %136 = vector.load %arg3[%c1_73, %c0_74, %c0_75, %c0_76] : memref<2x16x16x128xf32, #tpu.memory_space<vmem>>, vector<1x16x16x128xf32>
    %137 = vector.shape_cast %136 : vector<1x16x16x128xf32> to vector<16x16x128xf32>
    %cst_77 = arith.constant dense<0.000000e+00> : vector<16x16xf32>
    %138 = vector.multi_reduction <add>, %137, %cst_77 [2] : vector<16x16x128xf32> to vector<16x16xf32>
    %cst_78 = arith.constant 1.280000e+02 : f32
    %139 = vector.broadcast %cst_78 : f32 to vector<16x16xf32>
    %140 = arith.divf %138, %139 : vector<16x16xf32>
    %c0_79 = arith.constant 0 : index
    %c1_80 = arith.constant 1 : index
    %c1_81 = arith.constant 1 : index
    %141 = vector.load %arg5[%c0_79, %c1_80, %c1_81] : memref<2x18x18xf32, #tpu.memory_space<vmem>>, vector<1x16x16xf32>
    %142 = vector.shape_cast %141 : vector<1x16x16xf32> to vector<16x16xf32>
    %143 = vector.shape_cast %140 : vector<16x16xf32> to vector<1x16x16xf32>
    tpu.vector_store %arg5[%c0_79, %c1_80, %c1_81], %143 {strides = array<i32>} : memref<2x18x18xf32, #tpu.memory_space<vmem>>, vector<1x16x16xf32>,
    %cst_82 = arith.constant dense<0xFF800000> : vector<16x16xf32>
    %144 = vector.multi_reduction <maximumf>, %137, %cst_82 [2] : vector<16x16x128xf32> to vector<16x16xf32>
    %c1_83 = arith.constant 1 : index
    %c1_84 = arith.constant 1 : index
    %c1_85 = arith.constant 1 : index
    %145 = vector.load %arg5[%c1_83, %c1_84, %c1_85] : memref<2x18x18xf32, #tpu.memory_space<vmem>>, vector<1x16x16xf32>
    %146 = vector.shape_cast %145 : vector<1x16x16xf32> to vector<16x16xf32>
    %147 = vector.shape_cast %144 : vector<16x16xf32> to vector<1x16x16xf32>
    tpu.vector_store %arg5[%c1_83, %c1_84, %c1_85], %147 {strides = array<i32>} : memref<2x18x18xf32, #tpu.memory_space<vmem>>, vector<1x16x16xf32>,
    %c0_86 = arith.constant 0 : index
    %148 = memref.load %arg2[%c0_86] : memref<1xf32, #tpu.memory_space<smem>>
    %149 = vector.broadcast %148 : f32 to vector<16x16xf32>
    %c0_87 = arith.constant 0 : index
    %c0_88 = arith.constant 0 : index
    %c0_89 = arith.constant 0 : index
    %150 = vector.load %arg5[%c0_87, %c0_88, %c0_89] : memref<2x18x18xf32, #tpu.memory_space<vmem>>, vector<1x16x16xf32>
    %151 = vector.shape_cast %150 : vector<1x16x16xf32> to vector<16x16xf32>
    %c0_90 = arith.constant 0 : index
    %152 = memref.load %arg1[%c0_90] : memref<18xf32, #tpu.memory_space<smem>>
    %153 = vector.broadcast %152 : f32 to vector<16x16xf32>
    %154 = arith.mulf %153, %151 : vector<16x16xf32>
    %155 = arith.addf %149, %154 : vector<16x16xf32>
    %c0_91 = arith.constant 0 : index
    %c0_92 = arith.constant 0 : index
    %c1_93 = arith.constant 1 : index
    %156 = vector.load %arg5[%c0_91, %c0_92, %c1_93] : memref<2x18x18xf32, #tpu.memory_space<vmem>>, vector<1x16x16xf32>
    %157 = vector.shape_cast %156 : vector<1x16x16xf32> to vector<16x16xf32>
    %c1_94 = arith.constant 1 : index
    %158 = memref.load %arg1[%c1_94] : memref<18xf32, #tpu.memory_space<smem>>
    %159 = vector.broadcast %158 : f32 to vector<16x16xf32>
    %160 = arith.mulf %159, %157 : vector<16x16xf32>
    %161 = arith.addf %155, %160 : vector<16x16xf32>
    %c0_95 = arith.constant 0 : index
    %c0_96 = arith.constant 0 : index
    %c2_97 = arith.constant 2 : index
    %162 = vector.load %arg5[%c0_95, %c0_96, %c2_97] : memref<2x18x18xf32, #tpu.memory_space<vmem>>, vector<1x16x16xf32>
    %163 = vector.shape_cast %162 : vector<1x16x16xf32> to vector<16x16xf32>
    %c2_98 = arith.constant 2 : index
    %164 = memref.load %arg1[%c2_98] : memref<18xf32, #tpu.memory_space<smem>>
    %165 = vector.broadcast %164 : f32 to vector<16x16xf32>
    %166 = arith.mulf %165, %163 : vector<16x16xf32>
    %167 = arith.addf %161, %166 : vector<16x16xf32>
    %c0_99 = arith.constant 0 : index
    %c1_100 = arith.constant 1 : index
    %c0_101 = arith.constant 0 : index
    %168 = vector.load %arg5[%c0_99, %c1_100, %c0_101] : memref<2x18x18xf32, #tpu.memory_space<vmem>>, vector<1x16x16xf32>
    %169 = vector.shape_cast %168 : vector<1x16x16xf32> to vector<16x16xf32>
    %c3_102 = arith.constant 3 : index
    %170 = memref.load %arg1[%c3_102] : memref<18xf32, #tpu.memory_space<smem>>
    %171 = vector.broadcast %170 : f32 to vector<16x16xf32>
    %172 = arith.mulf %171, %169 : vector<16x16xf32>
    %173 = arith.addf %167, %172 : vector<16x16xf32>
    %c0_103 = arith.constant 0 : index
    %c1_104 = arith.constant 1 : index
    %c1_105 = arith.constant 1 : index
    %174 = vector.load %arg5[%c0_103, %c1_104, %c1_105] : memref<2x18x18xf32, #tpu.memory_space<vmem>>, vector<1x16x16xf32>
    %175 = vector.shape_cast %174 : vector<1x16x16xf32> to vector<16x16xf32>
    %c4_106 = arith.constant 4 : index
    %176 = memref.load %arg1[%c4_106] : memref<18xf32, #tpu.memory_space<smem>>
    %177 = vector.broadcast %176 : f32 to vector<16x16xf32>
    %178 = arith.mulf %177, %175 : vector<16x16xf32>
    %179 = arith.addf %173, %178 : vector<16x16xf32>
    %c0_107 = arith.constant 0 : index
    %c1_108 = arith.constant 1 : index
    %c2_109 = arith.constant 2 : index
    %180 = vector.load %arg5[%c0_107, %c1_108, %c2_109] : memref<2x18x18xf32, #tpu.memory_space<vmem>>, vector<1x16x16xf32>
    %181 = vector.shape_cast %180 : vector<1x16x16xf32> to vector<16x16xf32>
    %c5_110 = arith.constant 5 : index
    %182 = memref.load %arg1[%c5_110] : memref<18xf32, #tpu.memory_space<smem>>
    %183 = vector.broadcast %182 : f32 to vector<16x16xf32>
    %184 = arith.mulf %183, %181 : vector<16x16xf32>
    %185 = arith.addf %179, %184 : vector<16x16xf32>
    %c0_111 = arith.constant 0 : index
    %c2_112 = arith.constant 2 : index
    %c0_113 = arith.constant 0 : index
    %186 = vector.load %arg5[%c0_111, %c2_112, %c0_113] : memref<2x18x18xf32, #tpu.memory_space<vmem>>, vector<1x16x16xf32>
    %187 = vector.shape_cast %186 : vector<1x16x16xf32> to vector<16x16xf32>
    %c6_114 = arith.constant 6 : index
    %188 = memref.load %arg1[%c6_114] : memref<18xf32, #tpu.memory_space<smem>>
    %189 = vector.broadcast %188 : f32 to vector<16x16xf32>
    %190 = arith.mulf %189, %187 : vector<16x16xf32>
    %191 = arith.addf %185, %190 : vector<16x16xf32>
    %c0_115 = arith.constant 0 : index
    %c2_116 = arith.constant 2 : index
    %c1_117 = arith.constant 1 : index
    %192 = vector.load %arg5[%c0_115, %c2_116, %c1_117] : memref<2x18x18xf32, #tpu.memory_space<vmem>>, vector<1x16x16xf32>
    %193 = vector.shape_cast %192 : vector<1x16x16xf32> to vector<16x16xf32>
    %c7_118 = arith.constant 7 : index
    %194 = memref.load %arg1[%c7_118] : memref<18xf32, #tpu.memory_space<smem>>
    %195 = vector.broadcast %194 : f32 to vector<16x16xf32>
    %196 = arith.mulf %195, %193 : vector<16x16xf32>
    %197 = arith.addf %191, %196 : vector<16x16xf32>
    %c0_119 = arith.constant 0 : index
    %c2_120 = arith.constant 2 : index
    %c2_121 = arith.constant 2 : index
    %198 = vector.load %arg5[%c0_119, %c2_120, %c2_121] : memref<2x18x18xf32, #tpu.memory_space<vmem>>, vector<1x16x16xf32>
    %199 = vector.shape_cast %198 : vector<1x16x16xf32> to vector<16x16xf32>
    %c8_122 = arith.constant 8 : index
    %200 = memref.load %arg1[%c8_122] : memref<18xf32, #tpu.memory_space<smem>>
    %201 = vector.broadcast %200 : f32 to vector<16x16xf32>
    %202 = arith.mulf %201, %199 : vector<16x16xf32>
    %203 = arith.addf %197, %202 : vector<16x16xf32>
    %c1_123 = arith.constant 1 : index
    %c0_124 = arith.constant 0 : index
    %c0_125 = arith.constant 0 : index
    %204 = vector.load %arg5[%c1_123, %c0_124, %c0_125] : memref<2x18x18xf32, #tpu.memory_space<vmem>>, vector<1x16x16xf32>
    %205 = vector.shape_cast %204 : vector<1x16x16xf32> to vector<16x16xf32>
    %c9_126 = arith.constant 9 : index
    %206 = memref.load %arg1[%c9_126] : memref<18xf32, #tpu.memory_space<smem>>
    %207 = vector.broadcast %206 : f32 to vector<16x16xf32>
    %208 = arith.mulf %207, %205 : vector<16x16xf32>
    %209 = arith.addf %203, %208 : vector<16x16xf32>
    %c1_127 = arith.constant 1 : index
    %c0_128 = arith.constant 0 : index
    %c1_129 = arith.constant 1 : index
    %210 = vector.load %arg5[%c1_127, %c0_128, %c1_129] : memref<2x18x18xf32, #tpu.memory_space<vmem>>, vector<1x16x16xf32>
    %211 = vector.shape_cast %210 : vector<1x16x16xf32> to vector<16x16xf32>
    %c10_130 = arith.constant 10 : index
    %212 = memref.load %arg1[%c10_130] : memref<18xf32, #tpu.memory_space<smem>>
    %213 = vector.broadcast %212 : f32 to vector<16x16xf32>
    %214 = arith.mulf %213, %211 : vector<16x16xf32>
    %215 = arith.addf %209, %214 : vector<16x16xf32>
    %c1_131 = arith.constant 1 : index
    %c0_132 = arith.constant 0 : index
    %c2_133 = arith.constant 2 : index
    %216 = vector.load %arg5[%c1_131, %c0_132, %c2_133] : memref<2x18x18xf32, #tpu.memory_space<vmem>>, vector<1x16x16xf32>
    %217 = vector.shape_cast %216 : vector<1x16x16xf32> to vector<16x16xf32>
    %c11_134 = arith.constant 11 : index
    %218 = memref.load %arg1[%c11_134] : memref<18xf32, #tpu.memory_space<smem>>
    %219 = vector.broadcast %218 : f32 to vector<16x16xf32>
    %220 = arith.mulf %219, %217 : vector<16x16xf32>
    %221 = arith.addf %215, %220 : vector<16x16xf32>
    %c1_135 = arith.constant 1 : index
    %c1_136 = arith.constant 1 : index
    %c0_137 = arith.constant 0 : index
    %222 = vector.load %arg5[%c1_135, %c1_136, %c0_137] : memref<2x18x18xf32, #tpu.memory_space<vmem>>, vector<1x16x16xf32>
    %223 = vector.shape_cast %222 : vector<1x16x16xf32> to vector<16x16xf32>
    %c12_138 = arith.constant 12 : index
    %224 = memref.load %arg1[%c12_138] : memref<18xf32, #tpu.memory_space<smem>>
    %225 = vector.broadcast %224 : f32 to vector<16x16xf32>
    %226 = arith.mulf %225, %223 : vector<16x16xf32>
    %227 = arith.addf %221, %226 : vector<16x16xf32>
    %c1_139 = arith.constant 1 : index
    %c1_140 = arith.constant 1 : index
    %c1_141 = arith.constant 1 : index
    %228 = vector.load %arg5[%c1_139, %c1_140, %c1_141] : memref<2x18x18xf32, #tpu.memory_space<vmem>>, vector<1x16x16xf32>
    %229 = vector.shape_cast %228 : vector<1x16x16xf32> to vector<16x16xf32>
    %c13_142 = arith.constant 13 : index
    %230 = memref.load %arg1[%c13_142] : memref<18xf32, #tpu.memory_space<smem>>
    %231 = vector.broadcast %230 : f32 to vector<16x16xf32>
    %232 = arith.mulf %231, %229 : vector<16x16xf32>
    %233 = arith.addf %227, %232 : vector<16x16xf32>
    %c1_143 = arith.constant 1 : index
    %c1_144 = arith.constant 1 : index
    %c2_145 = arith.constant 2 : index
    %234 = vector.load %arg5[%c1_143, %c1_144, %c2_145] : memref<2x18x18xf32, #tpu.memory_space<vmem>>, vector<1x16x16xf32>
    %235 = vector.shape_cast %234 : vector<1x16x16xf32> to vector<16x16xf32>
    %c14_146 = arith.constant 14 : index
    %236 = memref.load %arg1[%c14_146] : memref<18xf32, #tpu.memory_space<smem>>
    %237 = vector.broadcast %236 : f32 to vector<16x16xf32>
    %238 = arith.mulf %237, %235 : vector<16x16xf32>
    %239 = arith.addf %233, %238 : vector<16x16xf32>
    %c1_147 = arith.constant 1 : index
    %c2_148 = arith.constant 2 : index
    %c0_149 = arith.constant 0 : index
    %240 = vector.load %arg5[%c1_147, %c2_148, %c0_149] : memref<2x18x18xf32, #tpu.memory_space<vmem>>, vector<1x16x16xf32>
    %241 = vector.shape_cast %240 : vector<1x16x16xf32> to vector<16x16xf32>
    %c15_150 = arith.constant 15 : index
    %242 = memref.load %arg1[%c15_150] : memref<18xf32, #tpu.memory_space<smem>>
    %243 = vector.broadcast %242 : f32 to vector<16x16xf32>
    %244 = arith.mulf %243, %241 : vector<16x16xf32>
    %245 = arith.addf %239, %244 : vector<16x16xf32>
    %c1_151 = arith.constant 1 : index
    %c2_152 = arith.constant 2 : index
    %c1_153 = arith.constant 1 : index
    %246 = vector.load %arg5[%c1_151, %c2_152, %c1_153] : memref<2x18x18xf32, #tpu.memory_space<vmem>>, vector<1x16x16xf32>
    %247 = vector.shape_cast %246 : vector<1x16x16xf32> to vector<16x16xf32>
    %c16_154 = arith.constant 16 : index
    %248 = memref.load %arg1[%c16_154] : memref<18xf32, #tpu.memory_space<smem>>
    %249 = vector.broadcast %248 : f32 to vector<16x16xf32>
    %250 = arith.mulf %249, %247 : vector<16x16xf32>
    %251 = arith.addf %245, %250 : vector<16x16xf32>
    %c1_155 = arith.constant 1 : index
    %c2_156 = arith.constant 2 : index
    %c2_157 = arith.constant 2 : index
    %252 = vector.load %arg5[%c1_155, %c2_156, %c2_157] : memref<2x18x18xf32, #tpu.memory_space<vmem>>, vector<1x16x16xf32>
    %253 = vector.shape_cast %252 : vector<1x16x16xf32> to vector<16x16xf32>
    %c17_158 = arith.constant 17 : index
    %254 = memref.load %arg1[%c17_158] : memref<18xf32, #tpu.memory_space<smem>>
    %255 = vector.broadcast %254 : f32 to vector<16x16xf32>
    %256 = arith.mulf %255, %253 : vector<16x16xf32>
    %257 = arith.addf %251, %256 : vector<16x16xf32>
    %258 = arith.negf %257 : vector<16x16xf32>
    %259 = math.exp %258 : vector<16x16xf32>
    %cst_159 = arith.constant 1.000000e+00 : f32
    %260 = vector.broadcast %cst_159 : f32 to vector<16x16xf32>
    %261 = arith.addf %260, %259 : vector<16x16xf32>
    %262 = arith.divf %260, %261 : vector<16x16xf32>
    %263 = vector.shape_cast %262 : vector<16x16xf32> to vector<16x16x1xf32>
    %264 = vector.broadcast %263 : vector<16x16x1xf32> to vector<16x16x128xf32>
    %265 = arith.mulf %137, %264 : vector<16x16x128xf32>
    %c1_160 = arith.constant 1 : index
    %c0_161 = arith.constant 0 : index
    %c0_162 = arith.constant 0 : index
    %c0_163 = arith.constant 0 : index
    %266 = vector.load %arg4[%c1_160, %c0_161, %c0_162, %c0_163] : memref<2x16x16x128xf32, #tpu.memory_space<vmem>>, vector<1x16x16x128xf32>
    %267 = vector.shape_cast %266 : vector<1x16x16x128xf32> to vector<16x16x128xf32>
    %268 = vector.shape_cast %265 : vector<16x16x128xf32> to vector<1x16x16x128xf32>
    tpu.vector_store %arg4[%c1_160, %c0_161, %c0_162, %c0_163], %268 {strides = array<i32>} : memref<2x16x16x128xf32, #tpu.memory_space<vmem>>, vector<1x16x16x128xf32>,
    return
  }
  func.func @transform_0(%arg0: i32) -> i32 {
    %c0_i32 = arith.constant 0 : i32
    %c0_i32_0 = arith.constant 0 : i32
    return %c0_i32 : i32
  }
  func.func @transform_1(%arg0: i32) -> i32 {
    %c0_i32 = arith.constant 0 : i32
    %c0_i32_0 = arith.constant 0 : i32
    return %c0_i32 : i32
  }
  func.func @transform_2(%arg0: i32) -> (i32, i32, i32, i32) {
    %c0_i32 = arith.constant 0 : i32
    %c0_i32_0 = arith.constant 0 : i32
    %c0_i32_1 = arith.constant 0 : i32
    %c0_i32_2 = arith.constant 0 : i32
    return %arg0, %c0_i32, %c0_i32_0, %c0_i32_1 : i32, i32, i32, i32
  }
  func.func @transform_3(%arg0: i32) -> (i32, i32, i32, i32) {
    %c0_i32 = arith.constant 0 : i32
    %c0_i32_0 = arith.constant 0 : i32
    %c0_i32_1 = arith.constant 0 : i32
    %c0_i32_2 = arith.constant 0 : i32
    return %arg0, %c0_i32, %c0_i32_0, %c0_i32_1 : i32, i32, i32, i32
  }
}

module attributes {stable_mosaic.version = 11 : i64} {
  func.func @_add_relu_kernel(%arg0: i32, %arg1: memref<512x128xf32, #tpu.memory_space<vmem>>, %arg2: memref<512x128xf32, #tpu.memory_space<vmem>>, %arg3: memref<512x128xf32, #tpu.memory_space<vmem>>) attributes {dimension_semantics = [#tpu.dimension_semantics<parallel>], iteration_bounds = array<i64: 1>, scalar_prefetch = 0 : i64, scratch_operands = 0 : i64, tpu.core_type = #tpu.core_type<tc>, window_params = [{transform_indices = @transform_0, window_bounds = array<i64: 512, 128>}, {transform_indices = @transform_1, window_bounds = array<i64: 512, 128>}, {transform_indices = @transform_2, window_bounds = array<i64: 512, 128>}]} {
    %c0 = arith.constant 0 : index
    %c0_0 = arith.constant 0 : index
    %0 = vector.load %arg1[%c0, %c0_0] : memref<512x128xf32, #tpu.memory_space<vmem>>, vector<512x128xf32>
    %c0_1 = arith.constant 0 : index
    %c0_2 = arith.constant 0 : index
    %1 = vector.load %arg2[%c0_1, %c0_2] : memref<512x128xf32, #tpu.memory_space<vmem>>, vector<512x128xf32>
    %2 = arith.addf %0, %1 : vector<512x128xf32>
    %cst = arith.constant 0.000000e+00 : f32
    %3 = vector.broadcast %cst : f32 to vector<512x128xf32>
    %4 = arith.maximumf %2, %3 : vector<512x128xf32>
    %c0_3 = arith.constant 0 : index
    %c0_4 = arith.constant 0 : index
    %5 = vector.load %arg3[%c0_3, %c0_4] : memref<512x128xf32, #tpu.memory_space<vmem>>, vector<512x128xf32>
    tpu.vector_store %arg3[%c0_3, %c0_4], %4 {strides = array<i32>} : memref<512x128xf32, #tpu.memory_space<vmem>>, vector<512x128xf32>,
    return
  }
  func.func @transform_0(%arg0: i32) -> (i32, i32) {
    %c0_i32 = arith.constant 0 : i32
    %c0_i32_0 = arith.constant 0 : i32
    return %arg0, %c0_i32 : i32, i32
  }
  func.func @transform_1(%arg0: i32) -> (i32, i32) {
    %c0_i32 = arith.constant 0 : i32
    %c0_i32_0 = arith.constant 0 : i32
    return %arg0, %c0_i32 : i32, i32
  }
  func.func @transform_2(%arg0: i32) -> (i32, i32) {
    %c0_i32 = arith.constant 0 : i32
    %c0_i32_0 = arith.constant 0 : i32
    return %arg0, %c0_i32 : i32, i32
  }
}

</mosaic_0001>

<llo_original>
// kernel: bottleneck_forward.8
$region0: #{bottleneck_forward.8}
  #allocation0 [shape = 'u32[]', space=smem, size = 0x4, offset = 0x4, fixed_abs, tag = 'smem constant byte address 0x4 - core index']
  #allocation1 [shape = 'u32[144,128]{1,0:T(1,128)}', space=vmem, size = 0x12000, scoped, tag = 'internal scratch']
  %s0 = inlined_call_operand.hbm [shape: f32[512,64], index: 0, kind: input, shape index: {}]
  %s1 = inlined_call_operand.vmem [shape: f32[64,32], index: 1, kind: input, shape index: {}]
  %s2 = inlined_call_operand.vmem [shape: f32[1,32], index: 2, kind: input, shape index: {}]
  %s3 = inlined_call_operand.vmem [shape: f32[1,32], index: 3, kind: input, shape index: {}]
  %s4 = inlined_call_operand.vmem [shape: f32[512,32], index: 4, kind: output, shape index: {}]
  %s5 = sld [smem:[#allocation0]]
  $region30: #{bottleneck_forward.8} parent=0
    _
  %s7 = ssub.s32 1, %s5
  %s8 = scalar_select 0, %s7, %s5
  $region1: #{bottleneck_forward.8} parent=0
    #allocation2 [shape = 'u8[262144]{0}', space=vmem, size = 0x40000, scoped, tag = 'input window, operand 0, single buffered']
    #allocation3 [shape = 's32[1]{0}', space=sflag, size = 0x4, scoped, tag = 'scoped memory for bottleneck_forward.8']
    %9 = vsyncpa [#allocation3], 0
    // Predicated region
    $region2: #{bottleneck_forward.8} parent=1 // pred_check
      _
    $region3: #{bottleneck_forward.8} parent=1 // pred_check_branch
      %11 = sbr.rel (0) target = $region5
    $region4: #{bottleneck_forward.8} parent=1 // pred_region
      %s13 = ssub.s32 8192, 8192
      %14 = vsyncadd [#allocation3], %s13
      %s15 = sshll.u32 [#allocation2], 4
      %s16 = int_to_ptr.vmem [resolvable:$true] %s15
      %21 = dma.hbm_to_vmem [thread:$0]  %s0, 8192, %s16, [#allocation3], 128, 128, 8
    $region5: #{bottleneck_forward.8} parent=1 // pred_fallthru
      _
    // Predicated region
    $region6: #{bottleneck_forward.8} parent=1 // pred_check
      _
    $region7: #{bottleneck_forward.8} parent=1 // pred_check_branch
      %23 = sbr.rel (0) target = $region9
    $region8: #{bottleneck_forward.8} parent=1 // pred_region
      _
    $region9: #{bottleneck_forward.8} parent=1 // pred_fallthru
      _
    // Predicated region
    $region10: #{bottleneck_forward.8} parent=1 // pred_check
      _
    $region11: #{bottleneck_forward.8} parent=1 // pred_check_branch
      %25 = sbr.rel (0) target = $region13
    $region12: #{bottleneck_forward.8} parent=1 // pred_region
      _
    $region13: #{bottleneck_forward.8} parent=1 // pred_fallthru
      _
    // Predicated region
    $region14: #{bottleneck_forward.8} parent=1 // pred_check
      _
    $region15: #{bottleneck_forward.8} parent=1 // pred_check_branch
      %27 = sbr.rel (0) target = $region17
    $region16: #{bottleneck_forward.8} parent=1 // pred_region
      _
    $region17: #{bottleneck_forward.8} parent=1 // pred_fallthru
      _
    // Predicated region
    $region18: #{bottleneck_forward.8} parent=1 // pred_check
      _
    $region19: #{bottleneck_forward.8} parent=1 // pred_check_branch
      %29 = sbr.rel (0) target = $region21
    $region20: #{bottleneck_forward.8} parent=1 // pred_region
      %30 = dma.done [#allocation3], 8192
    $region21: #{bottleneck_forward.8} parent=1 // pred_fallthru
      _
    %v31 = vld [vmem:[#allocation2] sm:$0xff]
    %v32 = vld [vmem:[#allocation2 + $0x8] sm:$0xff]
    %v33 = vld [vmem:[#allocation2 + $0x10] sm:$0xff]
    %v34 = vld [vmem:[#allocation2 + $0x18] sm:$0xff]
    %v35 = vld [vmem:[#allocation2 + $0x20] sm:$0xff]
    %v36 = vld [vmem:[#allocation2 + $0x28] sm:$0xff]
    %v37 = vld [vmem:[#allocation2 + $0x30] sm:$0xff]
    %v38 = vld [vmem:[#allocation2 + $0x38] sm:$0xff]
    %v39 = vld [vmem:[#allocation2 + $0x40] sm:$0xff]
    %v40 = vld [vmem:[#allocation2 + $0x48] sm:$0xff]
    %v41 = vld [vmem:[#allocation2 + $0x50] sm:$0xff]
    %v42 = vld [vmem:[#allocation2 + $0x58] sm:$0xff]
    %v43 = vld [vmem:[#allocation2 + $0x60] sm:$0xff]
    %v44 = vld [vmem:[#allocation2 + $0x68] sm:$0xff]
    %v45 = vld [vmem:[#allocation2 + $0x70] sm:$0xff]
    %v46 = vld [vmem:[#allocation2 + $0x78] sm:$0xff]
    %v47 = vld [vmem:[#allocation2 + $0x80] sm:$0xff]
    %v48 = vld [vmem:[#allocation2 + $0x88] sm:$0xff]
    %v49 = vld [vmem:[#allocation2 + $0x90] sm:$0xff]
    %v50 = vld [vmem:[#allocation2 + $0x98] sm:$0xff]
    %v51 = vld [vmem:[#allocation2 + $0xa0] sm:$0xff]
    %v52 = vld [vmem:[#allocation2 + $0xa8] sm:$0xff]
    %v53 = vld [vmem:[#allocation2 + $0xb0] sm:$0xff]
    %v54 = vld [vmem:[#allocation2 + $0xb8] sm:$0xff]
    %v55 = vld [vmem:[#allocation2 + $0xc0] sm:$0xff]
    %v56 = vld [vmem:[#allocation2 + $0xc8] sm:$0xff]
    %v57 = vld [vmem:[#allocation2 + $0xd0] sm:$0xff]
    %v58 = vld [vmem:[#allocation2 + $0xd8] sm:$0xff]
    %v59 = vld [vmem:[#allocation2 + $0xe0] sm:$0xff]
    %v60 = vld [vmem:[#allocation2 + $0xe8] sm:$0xff]
    %v61 = vld [vmem:[#allocation2 + $0xf0] sm:$0xff]
    %v62 = vld [vmem:[#allocation2 + $0xf8] sm:$0xff]
    %v63 = vld [vmem:[#allocation2 + $0x100] sm:$0xff]
    %v64 = vld [vmem:[#allocation2 + $0x108] sm:$0xff]
    %v65 = vld [vmem:[#allocation2 + $0x110] sm:$0xff]
    %v66 = vld [vmem:[#allocation2 + $0x118] sm:$0xff]
    %v67 = vld [vmem:[#allocation2 + $0x120] sm:$0xff]
    %v68 = vld [vmem:[#allocation2 + $0x128] sm:$0xff]
    %v69 = vld [vmem:[#allocation2 + $0x130] sm:$0xff]
    %v70 = vld [vmem:[#allocation2 + $0x138] sm:$0xff]
    %v71 = vld [vmem:[#allocation2 + $0x140] sm:$0xff]
    %v72 = vld [vmem:[#allocation2 + $0x148] sm:$0xff]
    %v73 = vld [vmem:[#allocation2 + $0x150] sm:$0xff]
    %v74 = vld [vmem:[#allocation2 + $0x158] sm:$0xff]
    %v75 = vld [vmem:[#allocation2 + $0x160] sm:$0xff]
    %v76 = vld [vmem:[#allocation2 + $0x168] sm:$0xff]
    %v77 = vld [vmem:[#allocation2 + $0x170] sm:$0xff]
    %v78 = vld [vmem:[#allocation2 + $0x178] sm:$0xff]
    %v79 = vld [vmem:[#allocation2 + $0x180] sm:$0xff]
    %v80 = vld [vmem:[#allocation2 + $0x188] sm:$0xff]
    %v81 = vld [vmem:[#allocation2 + $0x190] sm:$0xff]
    %v82 = vld [vmem:[#allocation2 + $0x198] sm:$0xff]
    %v83 = vld [vmem:[#allocation2 + $0x1a0] sm:$0xff]
    %v84 = vld [vmem:[#allocation2 + $0x1a8] sm:$0xff]
    %v85 = vld [vmem:[#allocation2 + $0x1b0] sm:$0xff]
    %v86 = vld [vmem:[#allocation2 + $0x1b8] sm:$0xff]
    %v87 = vld [vmem:[#allocation2 + $0x1c0] sm:$0xff]
    %v88 = vld [vmem:[#allocation2 + $0x1c8] sm:$0xff]
    %v89 = vld [vmem:[#allocation2 + $0x1d0] sm:$0xff]
    %v90 = vld [vmem:[#allocation2 + $0x1d8] sm:$0xff]
    %v91 = vld [vmem:[#allocation2 + $0x1e0] sm:$0xff]
    %v92 = vld [vmem:[#allocation2 + $0x1e8] sm:$0xff]
    %v93 = vld [vmem:[#allocation2 + $0x1f0] sm:$0xff]
    %v94 = vld [vmem:[#allocation2 + $0x1f8] sm:$0xff]
    %v95 = vld [vmem:[%s1] sm:$0xff]
    %v96 = vld [vmem:[%s1 + $0x8] sm:$0xff]
    %v97 = vld [vmem:[%s1 + $0x10] sm:$0xff]
    %v98 = vld [vmem:[%s1 + $0x18] sm:$0xff]
    %v99 = vld [vmem:[%s1 + $0x20] sm:$0xff]
    %v100 = vld [vmem:[%s1 + $0x28] sm:$0xff]
    %v101 = vld [vmem:[%s1 + $0x30] sm:$0xff]
    %v102 = vld [vmem:[%s1 + $0x38] sm:$0xff]
    %vm103 = vcmask 523264
    %v105 = vsel %vm103, %v31, 0
    %v108 = vsel %vm103, %v32, 0
    %v111 = vsel %vm103, %v33, 0
    %v114 = vsel %vm103, %v34, 0
    %v117 = vsel %vm103, %v35, 0
    %v120 = vsel %vm103, %v36, 0
    %v123 = vsel %vm103, %v37, 0
    %v126 = vsel %vm103, %v38, 0
    %v129 = vsel %vm103, %v39, 0
    %v132 = vsel %vm103, %v40, 0
    %v135 = vsel %vm103, %v41, 0
    %v138 = vsel %vm103, %v42, 0
    %v141 = vsel %vm103, %v43, 0
    %v144 = vsel %vm103, %v44, 0
    %v147 = vsel %vm103, %v45, 0
    %v150 = vsel %vm103, %v46, 0
    %v153 = vsel %vm103, %v47, 0
    %v156 = vsel %vm103, %v48, 0
    %v159 = vsel %vm103, %v49, 0
    %v162 = vsel %vm103, %v50, 0
    %v165 = vsel %vm103, %v51, 0
    %v168 = vsel %vm103, %v52, 0
    %v171 = vsel %vm103, %v53, 0
    %v174 = vsel %vm103, %v54, 0
    %v177 = vsel %vm103, %v55, 0
    %v180 = vsel %vm103, %v56, 0
    %v183 = vsel %vm103, %v57, 0
    %v186 = vsel %vm103, %v58, 0
    %v189 = vsel %vm103, %v59, 0
    %v192 = vsel %vm103, %v60, 0
    %v195 = vsel %vm103, %v61, 0
    %v198 = vsel %vm103, %v62, 0
    %v201 = vsel %vm103, %v63, 0
    %v204 = vsel %vm103, %v64, 0
    %v207 = vsel %vm103, %v65, 0
    %v210 = vsel %vm103, %v66, 0
    %v213 = vsel %vm103, %v67, 0
    %v216 = vsel %vm103, %v68, 0
    %v219 = vsel %vm103, %v69, 0
    %v222 = vsel %vm103, %v70, 0
    %v225 = vsel %vm103, %v71, 0
    %v228 = vsel %vm103, %v72, 0
    %v231 = vsel %vm103, %v73, 0
    %v234 = vsel %vm103, %v74, 0
    %v237 = vsel %vm103, %v75, 0
    %v240 = vsel %vm103, %v76, 0
    %v243 = vsel %vm103, %v77, 0
    %v246 = vsel %vm103, %v78, 0
    %v249 = vsel %vm103, %v79, 0
    %v252 = vsel %vm103, %v80, 0
    %v255 = vsel %vm103, %v81, 0
    %v258 = vsel %vm103, %v82, 0
    %v261 = vsel %vm103, %v83, 0
    %v264 = vsel %vm103, %v84, 0
    %v267 = vsel %vm103, %v85, 0
    %v270 = vsel %vm103, %v86, 0
    %v273 = vsel %vm103, %v87, 0
    %v276 = vsel %vm103, %v88, 0
    %v279 = vsel %vm103, %v89, 0
    %v282 = vsel %vm103, %v90, 0
    %v285 = vsel %vm103, %v91, 0
    %v288 = vsel %vm103, %v92, 0
    %v291 = vsel %vm103, %v93, 0
    %v294 = vsel %vm103, %v94, 0
    %296 = vmatprep.subr.mxu0 0.0
    %297 = vmatpush1.msra.mxu0 %v95
    %298 = vmatprep.subr.mxu0 0.0
    %299 = vmatpush1.msra.mxu0 %v96
    %300 = vmatprep.subr.mxu0 0.0
    %301 = vmatpush1.msra.mxu0 %v97
    %302 = vmatprep.subr.mxu0 0.0
    %303 = vmatpush1.msra.mxu0 %v98
    %304 = vmatprep.subr.mxu0 0.0
    %305 = vmatpush1.msra.mxu0 %v99
    %306 = vmatprep.subr.mxu0 0.0
    %307 = vmatpush1.msra.mxu0 %v100
    %308 = vmatprep.subr.mxu0 0.0
    %309 = vmatpush1.msra.mxu0 %v101
    %310 = vmatprep.subr.mxu0 0.0
    %311 = vmatpush1.msra.mxu0 %v102
    %312 = vmatprep.subr.mxu0 0.0
    %313 = vmatpush1.msra.mxu0 0.0
    %314 = vmatprep.subr.mxu0 0.0
    %315 = vmatpush1.msra.mxu0 0.0
    %316 = vmatprep.subr.mxu0 0.0
    %317 = vmatpush1.msra.mxu0 0.0
    %318 = vmatprep.subr.mxu0 0.0
    %319 = vmatpush1.msra.mxu0 0.0
    %320 = vmatprep.subr.mxu0 0.0
    %321 = vmatpush1.msra.mxu0 0.0
    %322 = vmatprep.subr.mxu0 0.0
    %323 = vmatpush1.msra.mxu0 0.0
    %324 = vmatprep.subr.mxu0 0.0
    %325 = vmatpush1.msra.mxu0 0.0
    %326 = vmatprep.subr.mxu0 0.0
    %327 = vmatpush1.msra.mxu0 0.0
    %328 = vmatprep.subr.mxu0 0.0
    %329 = vmatpush1.msra.mxu0 0.0
    %330 = vmatprep.subr.mxu0 0.0
    %331 = vmatpush1.msra.mxu0 0.0
    %332 = vmatprep.subr.mxu0 0.0
    %333 = vmatpush1.msra.mxu0 0.0
    %334 = vmatprep.subr.mxu0 0.0
    %335 = vmatpush1.msra.mxu0 0.0
    %336 = vmatprep.subr.mxu0 0.0
    %337 = vmatpush1.msra.mxu0 0.0
    %338 = vmatprep.subr.mxu0 0.0
    %339 = vmatpush1.msra.mxu0 0.0
    %340 = vmatprep.subr.mxu0 0.0
    %341 = vmatpush1.msra.mxu0 0.0
    %342 = vmatprep.subr.mxu0 0.0
    %343 = vmatpush1.msra.mxu0 0.0
    %344 = vmatprep.subr.mxu0 0.0
    %345 = vmatpush1.msra.mxu0 0.0
    %346 = vmatprep.subr.mxu0 0.0
    %347 = vmatpush1.msra.mxu0 0.0
    %348 = vmatprep.subr.mxu0 0.0
    %349 = vmatpush1.msra.mxu0 0.0
    %350 = vmatprep.subr.mxu0 0.0
    %351 = vmatpush1.msra.mxu0 0.0
    %352 = vmatprep.subr.mxu0 0.0
    %353 = vmatpush1.msra.mxu0 0.0
    %354 = vmatprep.subr.mxu0 0.0
    %355 = vmatpush1.msra.mxu0 0.0
    %356 = vmatprep.subr.mxu0 0.0
    %357 = vmatpush1.msra.mxu0 0.0
    %358 = vmatprep.subr.mxu0 0.0
    %359 = vmatpush1.msra.mxu0 0.0
    %360 = vmatprep.mubr.f32.mxu0 0.0
    %361 = vmatmul.mubr.f32.gmra.mrb[0].mxu0 %v105
    %v362 = vpop.f32.mrb[0].mxu0
    %v363 = vadd.f32 0.0, %v362
    %v364 = vpop.f32.mrb[0].mxu0
    %365 = vmatprep.mubr.f32.mxu0 0.0
    %366 = vmatmul.mubr.f32.gmra.mrb[0].mxu0 %v108
    %v367 = vpop.f32.mrb[0].mxu0
    %v368 = vadd.f32 0.0, %v367
    %v369 = vpop.f32.mrb[0].mxu0
    %370 = vmatprep.mubr.f32.mxu0 0.0
    %371 = vmatmul.mubr.f32.gmra.mrb[0].mxu0 %v111
    %v372 = vpop.f32.mrb[0].mxu0
    %v373 = vadd.f32 0.0, %v372
    %v374 = vpop.f32.mrb[0].mxu0
    %375 = vmatprep.mubr.f32.mxu0 0.0
    %376 = vmatmul.mubr.f32.gmra.mrb[0].mxu0 %v114
    %v377 = vpop.f32.mrb[0].mxu0
    %v378 = vadd.f32 0.0, %v377
    %v379 = vpop.f32.mrb[0].mxu0
    %380 = vmatprep.mubr.f32.mxu0 0.0
    %381 = vmatmul.mubr.f32.gmra.mrb[0].mxu0 %v117
    %v382 = vpop.f32.mrb[0].mxu0
    %v383 = vadd.f32 0.0, %v382
    %v384 = vpop.f32.mrb[0].mxu0
    %385 = vmatprep.mubr.f32.mxu0 0.0
    %386 = vmatmul.mubr.f32.gmra.mrb[0].mxu0 %v120
    %v387 = vpop.f32.mrb[0].mxu0
    %v388 = vadd.f32 0.0, %v387
    %v389 = vpop.f32.mrb[0].mxu0
    %390 = vmatprep.mubr.f32.mxu0 0.0
    %391 = vmatmul.mubr.f32.gmra.mrb[0].mxu0 %v123
    %v392 = vpop.f32.mrb[0].mxu0
    %v393 = vadd.f32 0.0, %v392
    %v394 = vpop.f32.mrb[0].mxu0
    %395 = vmatprep.mubr.f32.mxu0 0.0
    %396 = vmatmul.mubr.f32.gmra.mrb[0].mxu0 %v126
    %v397 = vpop.f32.mrb[0].mxu0
    %v398 = vadd.f32 0.0, %v397
    %v399 = vpop.f32.mrb[0].mxu0
    %400 = vmatprep.mubr.f32.mxu0 0.0
    %401 = vmatmul.mubr.f32.gmra.mrb[0].mxu0 %v129
    %v402 = vpop.f32.mrb[0].mxu0
    %v403 = vadd.f32 0.0, %v402
    %v404 = vpop.f32.mrb[0].mxu0
    %405 = vmatprep.mubr.f32.mxu0 0.0
    %406 = vmatmul.mubr.f32.gmra.mrb[0].mxu0 %v132
    %v407 = vpop.f32.mrb[0].mxu0
    %v408 = vadd.f32 0.0, %v407
    %v409 = vpop.f32.mrb[0].mxu0
    %410 = vmatprep.mubr.f32.mxu0 0.0
    %411 = vmatmul.mubr.f32.gmra.mrb[0].mxu0 %v135
    %v412 = vpop.f32.mrb[0].mxu0
    %v413 = vadd.f32 0.0, %v412
    %v414 = vpop.f32.mrb[0].mxu0
    %415 = vmatprep.mubr.f32.mxu0 0.0
    %416 = vmatmul.mubr.f32.gmra.mrb[0].mxu0 %v138
    %v417 = vpop.f32.mrb[0].mxu0
    %v418 = vadd.f32 0.0, %v417
    %v419 = vpop.f32.mrb[0].mxu0
    %420 = vmatprep.mubr.f32.mxu0 0.0
    %421 = vmatmul.mubr.f32.gmra.mrb[0].mxu0 %v141
    %v422 = vpop.f32.mrb[0].mxu0
    %v423 = vadd.f32 0.0, %v422
    %v424 = vpop.f32.mrb[0].mxu0
    %425 = vmatprep.mubr.f32.mxu0 0.0
    %426 = vmatmul.mubr.f32.gmra.mrb[0].mxu0 %v144
    %v427 = vpop.f32.mrb[0].mxu0
    %v428 = vadd.f32 0.0, %v427
    %v429 = vpop.f32.mrb[0].mxu0
    %430 = vmatprep.mubr.f32.mxu0 0.0
    %431 = vmatmul.mubr.f32.gmra.mrb[0].mxu0 %v147
    %v432 = vpop.f32.mrb[0].mxu0
    %v433 = vadd.f32 0.0, %v432
    %v434 = vpop.f32.mrb[0].mxu0
    %435 = vmatprep.mubr.f32.mxu0 0.0
    %436 = vmatmul.mubr.f32.gmra.mrb[0].mxu0 %v150
    %v437 = vpop.f32.mrb[0].mxu0
    %v438 = vadd.f32 0.0, %v437
    %v439 = vpop.f32.mrb[0].mxu0
    %440 = vmatprep.mubr.f32.mxu0 0.0
    %441 = vmatmul.mubr.f32.gmra.mrb[0].mxu0 %v153
    %v442 = vpop.f32.mrb[0].mxu0
    %v443 = vadd.f32 0.0, %v442
    %v444 = vpop.f32.mrb[0].mxu0
    %445 = vmatprep.mubr.f32.mxu0 0.0
    %446 = vmatmul.mubr.f32.gmra.mrb[0].mxu0 %v156
    %v447 = vpop.f32.mrb[0].mxu0
    %v448 = vadd.f32 0.0, %v447
    %v449 = vpop.f32.mrb[0].mxu0
    %450 = vmatprep.mubr.f32.mxu0 0.0
    %451 = vmatmul.mubr.f32.gmra.mrb[0].mxu0 %v159
    %v452 = vpop.f32.mrb[0].mxu0
    %v453 = vadd.f32 0.0, %v452
    %v454 = vpop.f32.mrb[0].mxu0
    %455 = vmatprep.mubr.f32.mxu0 0.0
    %456 = vmatmul.mubr.f32.gmra.mrb[0].mxu0 %v162
    %v457 = vpop.f32.mrb[0].mxu0
    %v458 = vadd.f32 0.0, %v457
    %v459 = vpop.f32.mrb[0].mxu0
    %460 = vmatprep.mubr.f32.mxu0 0.0
    %461 = vmatmul.mubr.f32.gmra.mrb[0].mxu0 %v165
    %v462 = vpop.f32.mrb[0].mxu0
    %v463 = vadd.f32 0.0, %v462
    %v464 = vpop.f32.mrb[0].mxu0
    %465 = vmatprep.mubr.f32.mxu0 0.0
    %466 = vmatmul.mubr.f32.gmra.mrb[0].mxu0 %v168
    %v467 = vpop.f32.mrb[0].mxu0
    %v468 = vadd.f32 0.0, %v467
    %v469 = vpop.f32.mrb[0].mxu0
    %470 = vmatprep.mubr.f32.mxu0 0.0
    %471 = vmatmul.mubr.f32.gmra.mrb[0].mxu0 %v171
    %v472 = vpop.f32.mrb[0].mxu0
    %v473 = vadd.f32 0.0, %v472
    %v474 = vpop.f32.mrb[0].mxu0
    %475 = vmatprep.mubr.f32.mxu0 0.0
    %476 = vmatmul.mubr.f32.gmra.mrb[0].mxu0 %v174
    %v477 = vpop.f32.mrb[0].mxu0
    %v478 = vadd.f32 0.0, %v477
    %v479 = vpop.f32.mrb[0].mxu0
    %480 = vmatprep.mubr.f32.mxu0 0.0
    %481 = vmatmul.mubr.f32.gmra.mrb[0].mxu0 %v177
    %v482 = vpop.f32.mrb[0].mxu0
    %v483 = vadd.f32 0.0, %v482
    %v484 = vpop.f32.mrb[0].mxu0
    %485 = vmatprep.mubr.f32.mxu0 0.0
    %486 = vmatmul.mubr.f32.gmra.mrb[0].mxu0 %v180
    %v487 = vpop.f32.mrb[0].mxu0
    %v488 = vadd.f32 0.0, %v487
    %v489 = vpop.f32.mrb[0].mxu0
    %490 = vmatprep.mubr.f32.mxu0 0.0
    %491 = vmatmul.mubr.f32.gmra.mrb[0].mxu0 %v183
    %v492 = vpop.f32.mrb[0].mxu0
    %v493 = vadd.f32 0.0, %v492
    %v494 = vpop.f32.mrb[0].mxu0
    %495 = vmatprep.mubr.f32.mxu0 0.0
    %496 = vmatmul.mubr.f32.gmra.mrb[0].mxu0 %v186
    %v497 = vpop.f32.mrb[0].mxu0
    %v498 = vadd.f32 0.0, %v497
    %v499 = vpop.f32.mrb[0].mxu0
    %500 = vmatprep.mubr.f32.mxu0 0.0
    %501 = vmatmul.mubr.f32.gmra.mrb[0].mxu0 %v189
    %v502 = vpop.f32.mrb[0].mxu0
    %v503 = vadd.f32 0.0, %v502
    %v504 = vpop.f32.mrb[0].mxu0
    %505 = vmatprep.mubr.f32.mxu0 0.0
    %506 = vmatmul.mubr.f32.gmra.mrb[0].mxu0 %v192
    %v507 = vpop.f32.mrb[0].mxu0
    %v508 = vadd.f32 0.0, %v507
    %v509 = vpop.f32.mrb[0].mxu0
    %510 = vmatprep.mubr.f32.mxu0 0.0
    %511 = vmatmul.mubr.f32.gmra.mrb[0].mxu0 %v195
    %v512 = vpop.f32.mrb[0].mxu0
    %v513 = vadd.f32 0.0, %v512
    %v514 = vpop.f32.mrb[0].mxu0
    %515 = vmatprep.mubr.f32.mxu0 0.0
    %516 = vmatmul.mubr.f32.gmra.mrb[0].mxu0 %v198
    %v517 = vpop.f32.mrb[0].mxu0
    %v518 = vadd.f32 0.0, %v517
    %v519 = vpop.f32.mrb[0].mxu0
    %520 = vmatprep.mubr.f32.mxu0 0.0
    %521 = vmatmul.mubr.f32.gmra.mrb[0].mxu0 %v201
    %v522 = vpop.f32.mrb[0].mxu0
    %v523 = vadd.f32 0.0, %v522
    %v524 = vpop.f32.mrb[0].mxu0
    %525 = vmatprep.mubr.f32.mxu0 0.0
    %526 = vmatmul.mubr.f32.gmra.mrb[0].mxu0 %v204
    %v527 = vpop.f32.mrb[0].mxu0
    %v528 = vadd.f32 0.0, %v527
    %v529 = vpop.f32.mrb[0].mxu0
    %530 = vmatprep.mubr.f32.mxu0 0.0
    %531 = vmatmul.mubr.f32.gmra.mrb[0].mxu0 %v207
    %v532 = vpop.f32.mrb[0].mxu0
    %v533 = vadd.f32 0.0, %v532
    %v534 = vpop.f32.mrb[0].mxu0
    %535 = vmatprep.mubr.f32.mxu0 0.0
    %536 = vmatmul.mubr.f32.gmra.mrb[0].mxu0 %v210
    %v537 = vpop.f32.mrb[0].mxu0
    %v538 = vadd.f32 0.0, %v537
    %v539 = vpop.f32.mrb[0].mxu0
    %540 = vmatprep.mubr.f32.mxu0 0.0
    %541 = vmatmul.mubr.f32.gmra.mrb[0].mxu0 %v213
    %v542 = vpop.f32.mrb[0].mxu0
    %v543 = vadd.f32 0.0, %v542
    %v544 = vpop.f32.mrb[0].mxu0
    %545 = vmatprep.mubr.f32.mxu0 0.0
    %546 = vmatmul.mubr.f32.gmra.mrb[0].mxu0 %v216
    %v547 = vpop.f32.mrb[0].mxu0
    %v548 = vadd.f32 0.0, %v547
    %v549 = vpop.f32.mrb[0].mxu0
    %550 = vmatprep.mubr.f32.mxu0 0.0
    %551 = vmatmul.mubr.f32.gmra.mrb[0].mxu0 %v219
    %v552 = vpop.f32.mrb[0].mxu0
    %v553 = vadd.f32 0.0, %v552
    %v554 = vpop.f32.mrb[0].mxu0
    %555 = vmatprep.mubr.f32.mxu0 0.0
    %556 = vmatmul.mubr.f32.gmra.mrb[0].mxu0 %v222
    %v557 = vpop.f32.mrb[0].mxu0
    %v558 = vadd.f32 0.0, %v557
    %v559 = vpop.f32.mrb[0].mxu0
    %560 = vmatprep.mubr.f32.mxu0 0.0
    %561 = vmatmul.mubr.f32.gmra.mrb[0].mxu0 %v225
    %v562 = vpop.f32.mrb[0].mxu0
    %v563 = vadd.f32 0.0, %v562
    %v564 = vpop.f32.mrb[0].mxu0
    %565 = vmatprep.mubr.f32.mxu0 0.0
    %566 = vmatmul.mubr.f32.gmra.mrb[0].mxu0 %v228
    %v567 = vpop.f32.mrb[0].mxu0
    %v568 = vadd.f32 0.0, %v567
    %v569 = vpop.f32.mrb[0].mxu0
    %570 = vmatprep.mubr.f32.mxu0 0.0
    %571 = vmatmul.mubr.f32.gmra.mrb[0].mxu0 %v231
    %v572 = vpop.f32.mrb[0].mxu0
    %v573 = vadd.f32 0.0, %v572
    %v574 = vpop.f32.mrb[0].mxu0
    %575 = vmatprep.mubr.f32.mxu0 0.0
    %576 = vmatmul.mubr.f32.gmra.mrb[0].mxu0 %v234
    %v577 = vpop.f32.mrb[0].mxu0
    %v578 = vadd.f32 0.0, %v577
    %v579 = vpop.f32.mrb[0].mxu0
    %580 = vmatprep.mubr.f32.mxu0 0.0
    %581 = vmatmul.mubr.f32.gmra.mrb[0].mxu0 %v237
    %v582 = vpop.f32.mrb[0].mxu0
    %v583 = vadd.f32 0.0, %v582
    %v584 = vpop.f32.mrb[0].mxu0
    %585 = vmatprep.mubr.f32.mxu0 0.0
    %586 = vmatmul.mubr.f32.gmra.mrb[0].mxu0 %v240
    %v587 = vpop.f32.mrb[0].mxu0
    %v588 = vadd.f32 0.0, %v587
    %v589 = vpop.f32.mrb[0].mxu0
    %590 = vmatprep.mubr.f32.mxu0 0.0
    %591 = vmatmul.mubr.f32.gmra.mrb[0].mxu0 %v243
    %v592 = vpop.f32.mrb[0].mxu0
    %v593 = vadd.f32 0.0, %v592
    %v594 = vpop.f32.mrb[0].mxu0
    %595 = vmatprep.mubr.f32.mxu0 0.0
    %596 = vmatmul.mubr.f32.gmra.mrb[0].mxu0 %v246
    %v597 = vpop.f32.mrb[0].mxu0
    %v598 = vadd.f32 0.0, %v597
    %v599 = vpop.f32.mrb[0].mxu0
    %600 = vmatprep.mubr.f32.mxu0 0.0
    %601 = vmatmul.mubr.f32.gmra.mrb[0].mxu0 %v249
    %v602 = vpop.f32.mrb[0].mxu0
    %v603 = vadd.f32 0.0, %v602
    %v604 = vpop.f32.mrb[0].mxu0
    %605 = vmatprep.mubr.f32.mxu0 0.0
    %606 = vmatmul.mubr.f32.gmra.mrb[0].mxu0 %v252
    %v607 = vpop.f32.mrb[0].mxu0
    %v608 = vadd.f32 0.0, %v607
    %v609 = vpop.f32.mrb[0].mxu0
    %610 = vmatprep.mubr.f32.mxu0 0.0
    %611 = vmatmul.mubr.f32.gmra.mrb[0].mxu0 %v255
    %v612 = vpop.f32.mrb[0].mxu0
    %v613 = vadd.f32 0.0, %v612
    %v614 = vpop.f32.mrb[0].mxu0
    %615 = vmatprep.mubr.f32.mxu0 0.0
    %616 = vmatmul.mubr.f32.gmra.mrb[0].mxu0 %v258
    %v617 = vpop.f32.mrb[0].mxu0
    %v618 = vadd.f32 0.0, %v617
    %v619 = vpop.f32.mrb[0].mxu0
    %620 = vmatprep.mubr.f32.mxu0 0.0
    %621 = vmatmul.mubr.f32.gmra.mrb[0].mxu0 %v261
    %v622 = vpop.f32.mrb[0].mxu0
    %v623 = vadd.f32 0.0, %v622
    %v624 = vpop.f32.mrb[0].mxu0
    %625 = vmatprep.mubr.f32.mxu0 0.0
    %626 = vmatmul.mubr.f32.gmra.mrb[0].mxu0 %v264
    %v627 = vpop.f32.mrb[0].mxu0
    %v628 = vadd.f32 0.0, %v627
    %v629 = vpop.f32.mrb[0].mxu0
    %630 = vmatprep.mubr.f32.mxu0 0.0
    %631 = vmatmul.mubr.f32.gmra.mrb[0].mxu0 %v267
    %v632 = vpop.f32.mrb[0].mxu0
    %v633 = vadd.f32 0.0, %v632
    %v634 = vpop.f32.mrb[0].mxu0
    %635 = vmatprep.mubr.f32.mxu0 0.0
    %636 = vmatmul.mubr.f32.gmra.mrb[0].mxu0 %v270
    %v637 = vpop.f32.mrb[0].mxu0
    %v638 = vadd.f32 0.0, %v637
    %v639 = vpop.f32.mrb[0].mxu0
    %640 = vmatprep.mubr.f32.mxu0 0.0
    %641 = vmatmul.mubr.f32.gmra.mrb[0].mxu0 %v273
    %v642 = vpop.f32.mrb[0].mxu0
    %v643 = vadd.f32 0.0, %v642
    %v644 = vpop.f32.mrb[0].mxu0
    %645 = vmatprep.mubr.f32.mxu0 0.0
    %646 = vmatmul.mubr.f32.gmra.mrb[0].mxu0 %v276
    %v647 = vpop.f32.mrb[0].mxu0
    %v648 = vadd.f32 0.0, %v647
    %v649 = vpop.f32.mrb[0].mxu0
    %650 = vmatprep.mubr.f32.mxu0 0.0
    %651 = vmatmul.mubr.f32.gmra.mrb[0].mxu0 %v279
    %v652 = vpop.f32.mrb[0].mxu0
    %v653 = vadd.f32 0.0, %v652
    %v654 = vpop.f32.mrb[0].mxu0
    %655 = vmatprep.mubr.f32.mxu0 0.0
    %656 = vmatmul.mubr.f32.gmra.mrb[0].mxu0 %v282
    %v657 = vpop.f32.mrb[0].mxu0
    %v658 = vadd.f32 0.0, %v657
    %v659 = vpop.f32.mrb[0].mxu0
    %660 = vmatprep.mubr.f32.mxu0 0.0
    %661 = vmatmul.mubr.f32.gmra.mrb[0].mxu0 %v285
    %v662 = vpop.f32.mrb[0].mxu0
    %v663 = vadd.f32 0.0, %v662
    %v664 = vpop.f32.mrb[0].mxu0
    %665 = vmatprep.mubr.f32.mxu0 0.0
    %666 = vmatmul.mubr.f32.gmra.mrb[0].mxu0 %v288
    %v667 = vpop.f32.mrb[0].mxu0
    %v668 = vadd.f32 0.0, %v667
    %v669 = vpop.f32.mrb[0].mxu0
    %670 = vmatprep.mubr.f32.mxu0 0.0
    %671 = vmatmul.mubr.f32.gmra.mrb[0].mxu0 %v291
    %v672 = vpop.f32.mrb[0].mxu0
    %v673 = vadd.f32 0.0, %v672
    %v674 = vpop.f32.mrb[0].mxu0
    %675 = vmatprep.mubr.f32.mxu0 0.0
    %676 = vmatmul.mubr.f32.gmra.mrb[0].mxu0 %v294
    %v677 = vpop.f32.mrb[0].mxu0
    %v678 = vadd.f32 0.0, %v677
    %v679 = vpop.f32.mrb[0].mxu0
    %680 = vdwg.mxu0
    %v681 = vld [vmem:[%s2] sm:$0x1]
    %v683 = vlaneseq
    %v684 = vshrl.u32 %v683, 7
    %v685 = vsub.s32 0, %v684
    %v686 = vrot.slane %v681, %v685
    %v688 = vmul.f32 %v363, %v686
    %v689 = vmul.f32 %v368, %v686
    %v690 = vmul.f32 %v373, %v686
    %v691 = vmul.f32 %v378, %v686
    %v692 = vmul.f32 %v383, %v686
    %v693 = vmul.f32 %v388, %v686
    %v694 = vmul.f32 %v393, %v686
    %v695 = vmul.f32 %v398, %v686
    %v696 = vmul.f32 %v403, %v686
    %v697 = vmul.f32 %v408, %v686
    %v698 = vmul.f32 %v413, %v686
    %v699 = vmul.f32 %v418, %v686
    %v700 = vmul.f32 %v423, %v686
    %v701 = vmul.f32 %v428, %v686
    %v702 = vmul.f32 %v433, %v686
    %v703 = vmul.f32 %v438, %v686
    %v704 = vmul.f32 %v443, %v686
    %v705 = vmul.f32 %v448, %v686
    %v706 = vmul.f32 %v453, %v686
    %v707 = vmul.f32 %v458, %v686
    %v708 = vmul.f32 %v463, %v686
    %v709 = vmul.f32 %v468, %v686
    %v710 = vmul.f32 %v473, %v686
    %v711 = vmul.f32 %v478, %v686
    %v712 = vmul.f32 %v483, %v686
    %v713 = vmul.f32 %v488, %v686
    %v714 = vmul.f32 %v493, %v686
    %v715 = vmul.f32 %v498, %v686
    %v716 = vmul.f32 %v503, %v686
    %v717 = vmul.f32 %v508, %v686
    %v718 = vmul.f32 %v513, %v686
    %v719 = vmul.f32 %v518, %v686
    %v720 = vmul.f32 %v523, %v686
    %v721 = vmul.f32 %v528, %v686
    %v722 = vmul.f32 %v533, %v686
    %v723 = vmul.f32 %v538, %v686
    %v724 = vmul.f32 %v543, %v686
    %v725 = vmul.f32 %v548, %v686
    %v726 = vmul.f32 %v553, %v686
    %v727 = vmul.f32 %v558, %v686
    %v728 = vmul.f32 %v563, %v686
    %v729 = vmul.f32 %v568, %v686
    %v730 = vmul.f32 %v573, %v686
    %v731 = vmul.f32 %v578, %v686
    %v732 = vmul.f32 %v583, %v686
    %v733 = vmul.f32 %v588, %v686
    %v734 = vmul.f32 %v593, %v686
    %v735 = vmul.f32 %v598, %v686
    %v736 = vmul.f32 %v603, %v686
    %v737 = vmul.f32 %v608, %v686
    %v738 = vmul.f32 %v613, %v686
    %v739 = vmul.f32 %v618, %v686
    %v740 = vmul.f32 %v623, %v686
    %v741 = vmul.f32 %v628, %v686
    %v742 = vmul.f32 %v633, %v686
    %v743 = vmul.f32 %v638, %v686
    %v744 = vmul.f32 %v643, %v686
    %v745 = vmul.f32 %v648, %v686
    %v746 = vmul.f32 %v653, %v686
    %v747 = vmul.f32 %v658, %v686
    %v748 = vmul.f32 %v663, %v686
    %v749 = vmul.f32 %v668, %v686
    %v750 = vmul.f32 %v673, %v686
    %v751 = vmul.f32 %v678, %v686
    %v752 = vld [vmem:[%s3] sm:$0x1]
    %v754 = vlaneseq
    %v755 = vshrl.u32 %v754, 7
    %v756 = vsub.s32 0, %v755
    %v757 = vrot.slane %v752, %v756
    %v759 = vadd.f32 %v688, %v757
    %v760 = vadd.f32 %v689, %v757
    %v761 = vadd.f32 %v690, %v757
    %v762 = vadd.f32 %v691, %v757
    %v763 = vadd.f32 %v692, %v757
    %v764 = vadd.f32 %v693, %v757
    %v765 = vadd.f32 %v694, %v757
    %v766 = vadd.f32 %v695, %v757
    %v767 = vadd.f32 %v696, %v757
    %v768 = vadd.f32 %v697, %v757
    %v769 = vadd.f32 %v698, %v757
    %v770 = vadd.f32 %v699, %v757
    %v771 = vadd.f32 %v700, %v757
    %v772 = vadd.f32 %v701, %v757
    %v773 = vadd.f32 %v702, %v757
    %v774 = vadd.f32 %v703, %v757
    %v775 = vadd.f32 %v704, %v757
    %v776 = vadd.f32 %v705, %v757
    %v777 = vadd.f32 %v706, %v757
    %v778 = vadd.f32 %v707, %v757
    %v779 = vadd.f32 %v708, %v757
    %v780 = vadd.f32 %v709, %v757
    %v781 = vadd.f32 %v710, %v757
    %v782 = vadd.f32 %v711, %v757
    %v783 = vadd.f32 %v712, %v757
    %v784 = vadd.f32 %v713, %v757
    %v785 = vadd.f32 %v714, %v757
    %v786 = vadd.f32 %v715, %v757
    %v787 = vadd.f32 %v716, %v757
    %v788 = vadd.f32 %v717, %v757
    %v789 = vadd.f32 %v718, %v757
    %v790 = vadd.f32 %v719, %v757
    %v791 = vadd.f32 %v720, %v757
    %v792 = vadd.f32 %v721, %v757
    %v793 = vadd.f32 %v722, %v757
    %v794 = vadd.f32 %v723, %v757
    %v795 = vadd.f32 %v724, %v757
    %v796 = vadd.f32 %v725, %v757
    %v797 = vadd.f32 %v726, %v757
    %v798 = vadd.f32 %v727, %v757
    %v799 = vadd.f32 %v728, %v757
    %v800 = vadd.f32 %v729, %v757
    %v801 = vadd.f32 %v730, %v757
    %v802 = vadd.f32 %v731, %v757
    %v803 = vadd.f32 %v732, %v757
    %v804 = vadd.f32 %v733, %v757
    %v805 = vadd.f32 %v734, %v757
    %v806 = vadd.f32 %v735, %v757
    %v807 = vadd.f32 %v736, %v757
    %v808 = vadd.f32 %v737, %v757
    %v809 = vadd.f32 %v738, %v757
    %v810 = vadd.f32 %v739, %v757
    %v811 = vadd.f32 %v740, %v757
    %v812 = vadd.f32 %v741, %v757
    %v813 = vadd.f32 %v742, %v757
    %v814 = vadd.f32 %v743, %v757
    %v815 = vadd.f32 %v744, %v757
    %v816 = vadd.f32 %v745, %v757
    %v817 = vadd.f32 %v746, %v757
    %v818 = vadd.f32 %v747, %v757
    %v819 = vadd.f32 %v748, %v757
    %v820 = vadd.f32 %v749, %v757
    %v821 = vadd.f32 %v750, %v757
    %v822 = vadd.f32 %v751, %v757
    %v823 = vmax.f32 %v759, 0.0
    %v824 = vmax.f32 %v760, 0.0
    %v825 = vmax.f32 %v761, 0.0
    %v826 = vmax.f32 %v762, 0.0
    %v827 = vmax.f32 %v763, 0.0
    %v828 = vmax.f32 %v764, 0.0
    %v829 = vmax.f32 %v765, 0.0
    %v830 = vmax.f32 %v766, 0.0
    %v831 = vmax.f32 %v767, 0.0
    %v832 = vmax.f32 %v768, 0.0
    %v833 = vmax.f32 %v769, 0.0
    %v834 = vmax.f32 %v770, 0.0
    %v835 = vmax.f32 %v771, 0.0
    %v836 = vmax.f32 %v772, 0.0
    %v837 = vmax.f32 %v773, 0.0
    %v838 = vmax.f32 %v774, 0.0
    %v839 = vmax.f32 %v775, 0.0
    %v840 = vmax.f32 %v776, 0.0
    %v841 = vmax.f32 %v777, 0.0
    %v842 = vmax.f32 %v778, 0.0
    %v843 = vmax.f32 %v779, 0.0
    %v844 = vmax.f32 %v780, 0.0
    %v845 = vmax.f32 %v781, 0.0
    %v846 = vmax.f32 %v782, 0.0
    %v847 = vmax.f32 %v783, 0.0
    %v848 = vmax.f32 %v784, 0.0
    %v849 = vmax.f32 %v785, 0.0
    %v850 = vmax.f32 %v786, 0.0
    %v851 = vmax.f32 %v787, 0.0
    %v852 = vmax.f32 %v788, 0.0
    %v853 = vmax.f32 %v789, 0.0
    %v854 = vmax.f32 %v790, 0.0
    %v855 = vmax.f32 %v791, 0.0
    %v856 = vmax.f32 %v792, 0.0
    %v857 = vmax.f32 %v793, 0.0
    %v858 = vmax.f32 %v794, 0.0
    %v859 = vmax.f32 %v795, 0.0
    %v860 = vmax.f32 %v796, 0.0
    %v861 = vmax.f32 %v797, 0.0
    %v862 = vmax.f32 %v798, 0.0
    %v863 = vmax.f32 %v799, 0.0
    %v864 = vmax.f32 %v800, 0.0
    %v865 = vmax.f32 %v801, 0.0
    %v866 = vmax.f32 %v802, 0.0
    %v867 = vmax.f32 %v803, 0.0
    %v868 = vmax.f32 %v804, 0.0
    %v869 = vmax.f32 %v805, 0.0
    %v870 = vmax.f32 %v806, 0.0
    %v871 = vmax.f32 %v807, 0.0
    %v872 = vmax.f32 %v808, 0.0
    %v873 = vmax.f32 %v809, 0.0
    %v874 = vmax.f32 %v810, 0.0
    %v875 = vmax.f32 %v811, 0.0
    %v876 = vmax.f32 %v812, 0.0
    %v877 = vmax.f32 %v813, 0.0
    %v878 = vmax.f32 %v814, 0.0
    %v879 = vmax.f32 %v815, 0.0
    %v880 = vmax.f32 %v816, 0.0
    %v881 = vmax.f32 %v817, 0.0
    %v882 = vmax.f32 %v818, 0.0
    %v883 = vmax.f32 %v819, 0.0
    %v884 = vmax.f32 %v820, 0.0
    %v885 = vmax.f32 %v821, 0.0
    %v886 = vmax.f32 %v822, 0.0
    %vm887 = vcmask 261120
    %888 = vst.msk [vmem:[%s4] sm:$0xff] %vm887, %v823
    %889 = vst.msk [vmem:[%s4 + $0x8] sm:$0xff] %vm887, %v824
    %890 = vst.msk [vmem:[%s4 + $0x10] sm:$0xff] %vm887, %v825
    %891 = vst.msk [vmem:[%s4 + $0x18] sm:$0xff] %vm887, %v826
    %892 = vst.msk [vmem:[%s4 + $0x20] sm:$0xff] %vm887, %v827
    %893 = vst.msk [vmem:[%s4 + $0x28] sm:$0xff] %vm887, %v828
    %894 = vst.msk [vmem:[%s4 + $0x30] sm:$0xff] %vm887, %v829
    %895 = vst.msk [vmem:[%s4 + $0x38] sm:$0xff] %vm887, %v830
    %896 = vst.msk [vmem:[%s4 + $0x40] sm:$0xff] %vm887, %v831
    %897 = vst.msk [vmem:[%s4 + $0x48] sm:$0xff] %vm887, %v832
    %898 = vst.msk [vmem:[%s4 + $0x50] sm:$0xff] %vm887, %v833
    %899 = vst.msk [vmem:[%s4 + $0x58] sm:$0xff] %vm887, %v834
    %900 = vst.msk [vmem:[%s4 + $0x60] sm:$0xff] %vm887, %v835
    %901 = vst.msk [vmem:[%s4 + $0x68] sm:$0xff] %vm887, %v836
    %902 = vst.msk [vmem:[%s4 + $0x70] sm:$0xff] %vm887, %v837
    %903 = vst.msk [vmem:[%s4 + $0x78] sm:$0xff] %vm887, %v838
    %904 = vst.msk [vmem:[%s4 + $0x80] sm:$0xff] %vm887, %v839
    %905 = vst.msk [vmem:[%s4 + $0x88] sm:$0xff] %vm887, %v840
    %906 = vst.msk [vmem:[%s4 + $0x90] sm:$0xff] %vm887, %v841
    %907 = vst.msk [vmem:[%s4 + $0x98] sm:$0xff] %vm887, %v842
    %908 = vst.msk [vmem:[%s4 + $0xa0] sm:$0xff] %vm887, %v843
    %909 = vst.msk [vmem:[%s4 + $0xa8] sm:$0xff] %vm887, %v844
    %910 = vst.msk [vmem:[%s4 + $0xb0] sm:$0xff] %vm887, %v845
    %911 = vst.msk [vmem:[%s4 + $0xb8] sm:$0xff] %vm887, %v846
    %912 = vst.msk [vmem:[%s4 + $0xc0] sm:$0xff] %vm887, %v847
    %913 = vst.msk [vmem:[%s4 + $0xc8] sm:$0xff] %vm887, %v848
    %914 = vst.msk [vmem:[%s4 + $0xd0] sm:$0xff] %vm887, %v849
    %915 = vst.msk [vmem:[%s4 + $0xd8] sm:$0xff] %vm887, %v850
    %916 = vst.msk [vmem:[%s4 + $0xe0] sm:$0xff] %vm887, %v851
    %917 = vst.msk [vmem:[%s4 + $0xe8] sm:$0xff] %vm887, %v852
    %918 = vst.msk [vmem:[%s4 + $0xf0] sm:$0xff] %vm887, %v853
    %919 = vst.msk [vmem:[%s4 + $0xf8] sm:$0xff] %vm887, %v854
    %920 = vst.msk [vmem:[%s4 + $0x100] sm:$0xff] %vm887, %v855
    %921 = vst.msk [vmem:[%s4 + $0x108] sm:$0xff] %vm887, %v856
    %922 = vst.msk [vmem:[%s4 + $0x110] sm:$0xff] %vm887, %v857
    %923 = vst.msk [vmem:[%s4 + $0x118] sm:$0xff] %vm887, %v858
    %924 = vst.msk [vmem:[%s4 + $0x120] sm:$0xff] %vm887, %v859
    %925 = vst.msk [vmem:[%s4 + $0x128] sm:$0xff] %vm887, %v860
    %926 = vst.msk [vmem:[%s4 + $0x130] sm:$0xff] %vm887, %v861
    %927 = vst.msk [vmem:[%s4 + $0x138] sm:$0xff] %vm887, %v862
    %928 = vst.msk [vmem:[%s4 + $0x140] sm:$0xff] %vm887, %v863
    %929 = vst.msk [vmem:[%s4 + $0x148] sm:$0xff] %vm887, %v864
    %930 = vst.msk [vmem:[%s4 + $0x150] sm:$0xff] %vm887, %v865
    %931 = vst.msk [vmem:[%s4 + $0x158] sm:$0xff] %vm887, %v866
    %932 = vst.msk [vmem:[%s4 + $0x160] sm:$0xff] %vm887, %v867
    %933 = vst.msk [vmem:[%s4 + $0x168] sm:$0xff] %vm887, %v868
    %934 = vst.msk [vmem:[%s4 + $0x170] sm:$0xff] %vm887, %v869
    %935 = vst.msk [vmem:[%s4 + $0x178] sm:$0xff] %vm887, %v870
    %936 = vst.msk [vmem:[%s4 + $0x180] sm:$0xff] %vm887, %v871
    %937 = vst.msk [vmem:[%s4 + $0x188] sm:$0xff] %vm887, %v872
    %938 = vst.msk [vmem:[%s4 + $0x190] sm:$0xff] %vm887, %v873
    %939 = vst.msk [vmem:[%s4 + $0x198] sm:$0xff] %vm887, %v874
    %940 = vst.msk [vmem:[%s4 + $0x1a0] sm:$0xff] %vm887, %v875
    %941 = vst.msk [vmem:[%s4 + $0x1a8] sm:$0xff] %vm887, %v876
    %942 = vst.msk [vmem:[%s4 + $0x1b0] sm:$0xff] %vm887, %v877
    %943 = vst.msk [vmem:[%s4 + $0x1b8] sm:$0xff] %vm887, %v878
    %944 = vst.msk [vmem:[%s4 + $0x1c0] sm:$0xff] %vm887, %v879
    %945 = vst.msk [vmem:[%s4 + $0x1c8] sm:$0xff] %vm887, %v880
    %946 = vst.msk [vmem:[%s4 + $0x1d0] sm:$0xff] %vm887, %v881
    %947 = vst.msk [vmem:[%s4 + $0x1d8] sm:$0xff] %vm887, %v882
    %948 = vst.msk [vmem:[%s4 + $0x1e0] sm:$0xff] %vm887, %v883
    %949 = vst.msk [vmem:[%s4 + $0x1e8] sm:$0xff] %vm887, %v884
    %950 = vst.msk [vmem:[%s4 + $0x1f0] sm:$0xff] %vm887, %v885
    %951 = vst.msk [vmem:[%s4 + $0x1f8] sm:$0xff] %vm887, %v886
    // Predicated region
    $region22: #{bottleneck_forward.8} parent=1 // pred_check
      _
    $region23: #{bottleneck_forward.8} parent=1 // pred_check_branch
      %953 = sbr.rel (0) target = $region25
    $region24: #{bottleneck_forward.8} parent=1 // pred_region
      _
    $region25: #{bottleneck_forward.8} parent=1 // pred_fallthru
      _
    // Predicated region
    $region26: #{bottleneck_forward.8} parent=1 // pred_check
      _
    $region27: #{bottleneck_forward.8} parent=1 // pred_check_branch
      %955 = sbr.rel (0) target = $region29
    $region28: #{bottleneck_forward.8} parent=1 // pred_region
      _
    $region29: #{bottleneck_forward.8} parent=1 // pred_fallthru
      _
    %956 = vsyncpa [#allocation3], 1

// kernel: bottleneck_forward.9
$region0: #{bottleneck_forward.9}
  #allocation0 [shape = 'u32[]', space=smem, size = 0x4, offset = 0x4, fixed_abs, tag = 'smem constant byte address 0x4 - core index']
  #allocation1 [shape = 'u32[144,128]{1,0:T(1,128)}', space=vmem, size = 0x12000, scoped, tag = 'internal scratch']
  %s0 = inlined_call_operand.vmem [shape: f32[512,288], index: 0, kind: input, shape index: {}]
  %s1 = inlined_call_operand.vmem [shape: f32[288,32], index: 1, kind: input, shape index: {}]
  %s2 = inlined_call_operand.vmem [shape: f32[1,32], index: 2, kind: input, shape index: {}]
  %s3 = inlined_call_operand.vmem [shape: f32[1,32], index: 3, kind: input, shape index: {}]
  %s4 = inlined_call_operand.vmem [shape: f32[512,32], index: 4, kind: output, shape index: {}]
  %s5 = sld [smem:[#allocation0]]
  $region26: #{bottleneck_forward.9} parent=0
    _
  %s7 = ssub.s32 1, %s5
  %s8 = scalar_select 0, %s7, %s5
  // Predicated region
  $region2: #{bottleneck_forward.9} parent=0 // pred_check
    _
  $region3: #{bottleneck_forward.9} parent=0 // pred_check_branch
    %10 = sbr.rel (0) target = $region5
  $region4: #{bottleneck_forward.9} parent=0 // pred_region
    _
  $region5: #{bottleneck_forward.9} parent=0 // pred_fallthru
    _
  // Predicated region
  $region6: #{bottleneck_forward.9} parent=0 // pred_check
    _
  $region7: #{bottleneck_forward.9} parent=0 // pred_check_branch
    %12 = sbr.rel (0) target = $region9
  $region8: #{bottleneck_forward.9} parent=0 // pred_region
    _
  $region9: #{bottleneck_forward.9} parent=0 // pred_fallthru
    _
  // Predicated region
  $region10: #{bottleneck_forward.9} parent=0 // pred_check
    _
  $region11: #{bottleneck_forward.9} parent=0 // pred_check_branch
    %14 = sbr.rel (0) target = $region13
  $region12: #{bottleneck_forward.9} parent=0 // pred_region
    _
  $region13: #{bottleneck_forward.9} parent=0 // pred_fallthru
    _
  // Predicated region
  $region14: #{bottleneck_forward.9} parent=0 // pred_check
    _
  $region15: #{bottleneck_forward.9} parent=0 // pred_check_branch
    %16 = sbr.rel (0) target = $region17
  $region16: #{bottleneck_forward.9} parent=0 // pred_region
    _
  $region17: #{bottleneck_forward.9} parent=0 // pred_fallthru
    _
  %v17 = vld [vmem:[%s0] sm:$0xff]
  %v18 = vld [vmem:[%s0 + $0x8] sm:$0xff]
  %v19 = vld [vmem:[%s0 + $0x10] sm:$0xff]
  %v20 = vld [vmem:[%s0 + $0x18] sm:$0xff]
  %v21 = vld [vmem:[%s0 + $0x20] sm:$0xff]
  %v22 = vld [vmem:[%s0 + $0x28] sm:$0xff]
  %v23 = vld [vmem:[%s0 + $0x30] sm:$0xff]
  %v24 = vld [vmem:[%s0 + $0x38] sm:$0xff]
  %v25 = vld [vmem:[%s0 + $0x40] sm:$0xff]
  %v26 = vld [vmem:[%s0 + $0x48] sm:$0xff]
  %v27 = vld [vmem:[%s0 + $0x50] sm:$0xff]
  %v28 = vld [vmem:[%s0 + $0x58] sm:$0xff]
  %v29 = vld [vmem:[%s0 + $0x60] sm:$0xff]
  %v30 = vld [vmem:[%s0 + $0x68] sm:$0xff]
  %v31 = vld [vmem:[%s0 + $0x70] sm:$0xff]
  %v32 = vld [vmem:[%s0 + $0x78] sm:$0xff]
  %v33 = vld [vmem:[%s0 + $0x80] sm:$0xff]
  %v34 = vld [vmem:[%s0 + $0x88] sm:$0xff]
  %v35 = vld [vmem:[%s0 + $0x90] sm:$0xff]
  %v36 = vld [vmem:[%s0 + $0x98] sm:$0xff]
  %v37 = vld [vmem:[%s0 + $0xa0] sm:$0xff]
  %v38 = vld [vmem:[%s0 + $0xa8] sm:$0xff]
  %v39 = vld [vmem:[%s0 + $0xb0] sm:$0xff]
  %v40 = vld [vmem:[%s0 + $0xb8] sm:$0xff]
  %v41 = vld [vmem:[%s0 + $0xc0] sm:$0xff]
  %v42 = vld [vmem:[%s0 + $0xc8] sm:$0xff]
  %v43 = vld [vmem:[%s0 + $0xd0] sm:$0xff]
  %v44 = vld [vmem:[%s0 + $0xd8] sm:$0xff]
  %v45 = vld [vmem:[%s0 + $0xe0] sm:$0xff]
  %v46 = vld [vmem:[%s0 + $0xe8] sm:$0xff]
  %v47 = vld [vmem:[%s0 + $0xf0] sm:$0xff]
  %v48 = vld [vmem:[%s0 + $0xf8] sm:$0xff]
  %v49 = vld [vmem:[%s0 + $0x100] sm:$0xff]
  %v50 = vld [vmem:[%s0 + $0x108] sm:$0xff]
  %v51 = vld [vmem:[%s0 + $0x110] sm:$0xff]
  %v52 = vld [vmem:[%s0 + $0x118] sm:$0xff]
  %v53 = vld [vmem:[%s0 + $0x120] sm:$0xff]
  %v54 = vld [vmem:[%s0 + $0x128] sm:$0xff]
  %v55 = vld [vmem:[%s0 + $0x130] sm:$0xff]
  %v56 = vld [vmem:[%s0 + $0x138] sm:$0xff]
  %v57 = vld [vmem:[%s0 + $0x140] sm:$0xff]
  %v58 = vld [vmem:[%s0 + $0x148] sm:$0xff]
  %v59 = vld [vmem:[%s0 + $0x150] sm:$0xff]
  %v60 = vld [vmem:[%s0 + $0x158] sm:$0xff]
  %v61 = vld [vmem:[%s0 + $0x160] sm:$0xff]
  %v62 = vld [vmem:[%s0 + $0x168] sm:$0xff]
  %v63 = vld [vmem:[%s0 + $0x170] sm:$0xff]
  %v64 = vld [vmem:[%s0 + $0x178] sm:$0xff]
  %v65 = vld [vmem:[%s0 + $0x180] sm:$0xff]
  %v66 = vld [vmem:[%s0 + $0x188] sm:$0xff]
  %v67 = vld [vmem:[%s0 + $0x190] sm:$0xff]
  %v68 = vld [vmem:[%s0 + $0x198] sm:$0xff]
  %v69 = vld [vmem:[%s0 + $0x1a0] sm:$0xff]
  %v70 = vld [vmem:[%s0 + $0x1a8] sm:$0xff]
  %v71 = vld [vmem:[%s0 + $0x1b0] sm:$0xff]
  %v72 = vld [vmem:[%s0 + $0x1b8] sm:$0xff]
  %v73 = vld [vmem:[%s0 + $0x1c0] sm:$0xff]
  %v74 = vld [vmem:[%s0 + $0x1c8] sm:$0xff]
  %v75 = vld [vmem:[%s0 + $0x1d0] sm:$0xff]
  %v76 = vld [vmem:[%s0 + $0x1d8] sm:$0xff]
  %v77 = vld [vmem:[%s0 + $0x1e0] sm:$0xff]
  %v78 = vld [vmem:[%s0 + $0x1e8] sm:$0xff]
  %v79 = vld [vmem:[%s0 + $0x1f0] sm:$0xff]
  %v80 = vld [vmem:[%s0 + $0x1f8] sm:$0xff]
  %v81 = vld [vmem:[%s0 + $0x200] sm:$0xff]
  %v82 = vld [vmem:[%s0 + $0x208] sm:$0xff]
  %v83 = vld [vmem:[%s0 + $0x210] sm:$0xff]
  %v84 = vld [vmem:[%s0 + $0x218] sm:$0xff]
  %v85 = vld [vmem:[%s0 + $0x220] sm:$0xff]
  %v86 = vld [vmem:[%s0 + $0x228] sm:$0xff]
  %v87 = vld [vmem:[%s0 + $0x230] sm:$0xff]
  %v88 = vld [vmem:[%s0 + $0x238] sm:$0xff]
  %v89 = vld [vmem:[%s0 + $0x240] sm:$0xff]
  %v90 = vld [vmem:[%s0 + $0x248] sm:$0xff]
  %v91 = vld [vmem:[%s0 + $0x250] sm:$0xff]
  %v92 = vld [vmem:[%s0 + $0x258] sm:$0xff]
  %v93 = vld [vmem:[%s0 + $0x260] sm:$0xff]
  %v94 = vld [vmem:[%s0 + $0x268] sm:$0xff]
  %v95 = vld [vmem:[%s0 + $0x270] sm:$0xff]
  %v96 = vld [vmem:[%s0 + $0x278] sm:$0xff]
  %v97 = vld [vmem:[%s0 + $0x280] sm:$0xff]
  %v98 = vld [vmem:[%s0 + $0x288] sm:$0xff]
  %v99 = vld [vmem:[%s0 + $0x290] sm:$0xff]
  %v100 = vld [vmem:[%s0 + $0x298] sm:$0xff]
  %v101 = vld [vmem:[%s0 + $0x2a0] sm:$0xff]
  %v102 = vld [vmem:[%s0 + $0x2a8] sm:$0xff]
  %v103 = vld [vmem:[%s0 + $0x2b0] sm:$0xff]
  %v104 = vld [vmem:[%s0 + $0x2b8] sm:$0xff]
  %v105 = vld [vmem:[%s0 + $0x2c0] sm:$0xff]
  %v106 = vld [vmem:[%s0 + $0x2c8] sm:$0xff]
  %v107 = vld [vmem:[%s0 + $0x2d0] sm:$0xff]
  %v108 = vld [vmem:[%s0 + $0x2d8] sm:$0xff]
  %v109 = vld [vmem:[%s0 + $0x2e0] sm:$0xff]
  %v110 = vld [vmem:[%s0 + $0x2e8] sm:$0xff]
  %v111 = vld [vmem:[%s0 + $0x2f0] sm:$0xff]
  %v112 = vld [vmem:[%s0 + $0x2f8] sm:$0xff]
  %v113 = vld [vmem:[%s0 + $0x300] sm:$0xff]
  %v114 = vld [vmem:[%s0 + $0x308] sm:$0xff]
  %v115 = vld [vmem:[%s0 + $0x310] sm:$0xff]
  %v116 = vld [vmem:[%s0 + $0x318] sm:$0xff]
  %v117 = vld [vmem:[%s0 + $0x320] sm:$0xff]
  %v118 = vld [vmem:[%s0 + $0x328] sm:$0xff]
  %v119 = vld [vmem:[%s0 + $0x330] sm:$0xff]
  %v120 = vld [vmem:[%s0 + $0x338] sm:$0xff]
  %v121 = vld [vmem:[%s0 + $0x340] sm:$0xff]
  %v122 = vld [vmem:[%s0 + $0x348] sm:$0xff]
  %v123 = vld [vmem:[%s0 + $0x350] sm:$0xff]
  %v124 = vld [vmem:[%s0 + $0x358] sm:$0xff]
  %v125 = vld [vmem:[%s0 + $0x360] sm:$0xff]
  %v126 = vld [vmem:[%s0 + $0x368] sm:$0xff]
  %v127 = vld [vmem:[%s0 + $0x370] sm:$0xff]
  %v128 = vld [vmem:[%s0 + $0x378] sm:$0xff]
  %v129 = vld [vmem:[%s0 + $0x380] sm:$0xff]
  %v130 = vld [vmem:[%s0 + $0x388] sm:$0xff]
  %v131 = vld [vmem:[%s0 + $0x390] sm:$0xff]
  %v132 = vld [vmem:[%s0 + $0x398] sm:$0xff]
  %v133 = vld [vmem:[%s0 + $0x3a0] sm:$0xff]
  %v134 = vld [vmem:[%s0 + $0x3a8] sm:$0xff]
  %v135 = vld [vmem:[%s0 + $0x3b0] sm:$0xff]
  %v136 = vld [vmem:[%s0 + $0x3b8] sm:$0xff]
  %v137 = vld [vmem:[%s0 + $0x3c0] sm:$0xff]
  %v138 = vld [vmem:[%s0 + $0x3c8] sm:$0xff]
  %v139 = vld [vmem:[%s0 + $0x3d0] sm:$0xff]
  %v140 = vld [vmem:[%s0 + $0x3d8] sm:$0xff]
  %v141 = vld [vmem:[%s0 + $0x3e0] sm:$0xff]
  %v142 = vld [vmem:[%s0 + $0x3e8] sm:$0xff]
  %v143 = vld [vmem:[%s0 + $0x3f0] sm:$0xff]
  %v144 = vld [vmem:[%s0 + $0x3f8] sm:$0xff]
  %v145 = vld [vmem:[%s0 + $0x400] sm:$0xff]
  %v146 = vld [vmem:[%s0 + $0x408] sm:$0xff]
  %v147 = vld [vmem:[%s0 + $0x410] sm:$0xff]
  %v148 = vld [vmem:[%s0 + $0x418] sm:$0xff]
  %v149 = vld [vmem:[%s0 + $0x420] sm:$0xff]
  %v150 = vld [vmem:[%s0 + $0x428] sm:$0xff]
  %v151 = vld [vmem:[%s0 + $0x430] sm:$0xff]
  %v152 = vld [vmem:[%s0 + $0x438] sm:$0xff]
  %v153 = vld [vmem:[%s0 + $0x440] sm:$0xff]
  %v154 = vld [vmem:[%s0 + $0x448] sm:$0xff]
  %v155 = vld [vmem:[%s0 + $0x450] sm:$0xff]
  %v156 = vld [vmem:[%s0 + $0x458] sm:$0xff]
  %v157 = vld [vmem:[%s0 + $0x460] sm:$0xff]
  %v158 = vld [vmem:[%s0 + $0x468] sm:$0xff]
  %v159 = vld [vmem:[%s0 + $0x470] sm:$0xff]
  %v160 = vld [vmem:[%s0 + $0x478] sm:$0xff]
  %v161 = vld [vmem:[%s0 + $0x480] sm:$0xff]
  %v162 = vld [vmem:[%s0 + $0x488] sm:$0xff]
  %v163 = vld [vmem:[%s0 + $0x490] sm:$0xff]
  %v164 = vld [vmem:[%s0 + $0x498] sm:$0xff]
  %v165 = vld [vmem:[%s0 + $0x4a0] sm:$0xff]
  %v166 = vld [vmem:[%s0 + $0x4a8] sm:$0xff]
  %v167 = vld [vmem:[%s0 + $0x4b0] sm:$0xff]
  %v168 = vld [vmem:[%s0 + $0x4b8] sm:$0xff]
  %v169 = vld [vmem:[%s0 + $0x4c0] sm:$0xff]
  %v170 = vld [vmem:[%s0 + $0x4c8] sm:$0xff]
  %v171 = vld [vmem:[%s0 + $0x4d0] sm:$0xff]
  %v172 = vld [vmem:[%s0 + $0x4d8] sm:$0xff]
  %v173 = vld [vmem:[%s0 + $0x4e0] sm:$0xff]
  %v174 = vld [vmem:[%s0 + $0x4e8] sm:$0xff]
  %v175 = vld [vmem:[%s0 + $0x4f0] sm:$0xff]
  %v176 = vld [vmem:[%s0 + $0x4f8] sm:$0xff]
  %v177 = vld [vmem:[%s0 + $0x500] sm:$0xff]
  %v178 = vld [vmem:[%s0 + $0x508] sm:$0xff]
  %v179 = vld [vmem:[%s0 + $0x510] sm:$0xff]
  %v180 = vld [vmem:[%s0 + $0x518] sm:$0xff]
  %v181 = vld [vmem:[%s0 + $0x520] sm:$0xff]
  %v182 = vld [vmem:[%s0 + $0x528] sm:$0xff]
  %v183 = vld [vmem:[%s0 + $0x530] sm:$0xff]
  %v184 = vld [vmem:[%s0 + $0x538] sm:$0xff]
  %v185 = vld [vmem:[%s0 + $0x540] sm:$0xff]
  %v186 = vld [vmem:[%s0 + $0x548] sm:$0xff]
  %v187 = vld [vmem:[%s0 + $0x550] sm:$0xff]
  %v188 = vld [vmem:[%s0 + $0x558] sm:$0xff]
  %v189 = vld [vmem:[%s0 + $0x560] sm:$0xff]
  %v190 = vld [vmem:[%s0 + $0x568] sm:$0xff]
  %v191 = vld [vmem:[%s0 + $0x570] sm:$0xff]
  %v192 = vld [vmem:[%s0 + $0x578] sm:$0xff]
  %v193 = vld [vmem:[%s0 + $0x580] sm:$0xff]
  %v194 = vld [vmem:[%s0 + $0x588] sm:$0xff]
  %v195 = vld [vmem:[%s0 + $0x590] sm:$0xff]
  %v196 = vld [vmem:[%s0 + $0x598] sm:$0xff]
  %v197 = vld [vmem:[%s0 + $0x5a0] sm:$0xff]
  %v198 = vld [vmem:[%s0 + $0x5a8] sm:$0xff]
  %v199 = vld [vmem:[%s0 + $0x5b0] sm:$0xff]
  %v200 = vld [vmem:[%s0 + $0x5b8] sm:$0xff]
  %v201 = vld [vmem:[%s0 + $0x5c0] sm:$0xff]
  %v202 = vld [vmem:[%s0 + $0x5c8] sm:$0xff]
  %v203 = vld [vmem:[%s0 + $0x5d0] sm:$0xff]
  %v204 = vld [vmem:[%s0 + $0x5d8] sm:$0xff]
  %v205 = vld [vmem:[%s0 + $0x5e0] sm:$0xff]
  %v206 = vld [vmem:[%s0 + $0x5e8] sm:$0xff]
  %v207 = vld [vmem:[%s0 + $0x5f0] sm:$0xff]
  %v208 = vld [vmem:[%s0 + $0x5f8] sm:$0xff]
  %v209 = vld [vmem:[%s1] sm:$0xff]
  %v210 = vld [vmem:[%s1 + $0x8] sm:$0xff]
  %v211 = vld [vmem:[%s1 + $0x10] sm:$0xff]
  %v212 = vld [vmem:[%s1 + $0x18] sm:$0xff]
  %v213 = vld [vmem:[%s1 + $0x20] sm:$0xff]
  %v214 = vld [vmem:[%s1 + $0x28] sm:$0xff]
  %v215 = vld [vmem:[%s1 + $0x30] sm:$0xff]
  %v216 = vld [vmem:[%s1 + $0x38] sm:$0xff]
  %v217 = vld [vmem:[%s1 + $0x40] sm:$0xff]
  %v218 = vld [vmem:[%s1 + $0x48] sm:$0xff]
  %v219 = vld [vmem:[%s1 + $0x50] sm:$0xff]
  %v220 = vld [vmem:[%s1 + $0x58] sm:$0xff]
  %v221 = vld [vmem:[%s1 + $0x60] sm:$0xff]
  %v222 = vld [vmem:[%s1 + $0x68] sm:$0xff]
  %v223 = vld [vmem:[%s1 + $0x70] sm:$0xff]
  %v224 = vld [vmem:[%s1 + $0x78] sm:$0xff]
  %v225 = vld [vmem:[%s1 + $0x80] sm:$0xff]
  %v226 = vld [vmem:[%s1 + $0x88] sm:$0xff]
  %v227 = vld [vmem:[%s1 + $0x90] sm:$0xff]
  %v228 = vld [vmem:[%s1 + $0x98] sm:$0xff]
  %v229 = vld [vmem:[%s1 + $0xa0] sm:$0xff]
  %v230 = vld [vmem:[%s1 + $0xa8] sm:$0xff]
  %v231 = vld [vmem:[%s1 + $0xb0] sm:$0xff]
  %v232 = vld [vmem:[%s1 + $0xb8] sm:$0xff]
  %v233 = vld [vmem:[%s1 + $0xc0] sm:$0xff]
  %v234 = vld [vmem:[%s1 + $0xc8] sm:$0xff]
  %v235 = vld [vmem:[%s1 + $0xd0] sm:$0xff]
  %v236 = vld [vmem:[%s1 + $0xd8] sm:$0xff]
  %v237 = vld [vmem:[%s1 + $0xe0] sm:$0xff]
  %v238 = vld [vmem:[%s1 + $0xe8] sm:$0xff]
  %v239 = vld [vmem:[%s1 + $0xf0] sm:$0xff]
  %v240 = vld [vmem:[%s1 + $0xf8] sm:$0xff]
  %v241 = vld [vmem:[%s1 + $0x100] sm:$0xff]
  %v242 = vld [vmem:[%s1 + $0x108] sm:$0xff]
  %v243 = vld [vmem:[%s1 + $0x110] sm:$0xff]
  %v244 = vld [vmem:[%s1 + $0x118] sm:$0xff]
  %vm245 = vcmask 261120
  %v247 = vsel %vm245, %v19, 0
  %v250 = vsel %vm245, %v22, 0
  %v253 = vsel %vm245, %v25, 0
  %v256 = vsel %vm245, %v28, 0
  %v259 = vsel %vm245, %v31, 0
  %v262 = vsel %vm245, %v34, 0
  %v265 = vsel %vm245, %v37, 0
  %v268 = vsel %vm245, %v40, 0
  %v271 = vsel %vm245, %v43, 0
  %v274 = vsel %vm245, %v46, 0
  %v277 = vsel %vm245, %v49, 0
  %v280 = vsel %vm245, %v52, 0
  %v283 = vsel %vm245, %v55, 0
  %v286 = vsel %vm245, %v58, 0
  %v289 = vsel %vm245, %v61, 0
  %v292 = vsel %vm245, %v64, 0
  %v295 = vsel %vm245, %v67, 0
  %v298 = vsel %vm245, %v70, 0
  %v301 = vsel %vm245, %v73, 0
  %v304 = vsel %vm245, %v76, 0
  %v307 = vsel %vm245, %v79, 0
  %v310 = vsel %vm245, %v82, 0
  %v313 = vsel %vm245, %v85, 0
  %v316 = vsel %vm245, %v88, 0
  %v319 = vsel %vm245, %v91, 0
  %v322 = vsel %vm245, %v94, 0
  %v325 = vsel %vm245, %v97, 0
  %v328 = vsel %vm245, %v100, 0
  %v331 = vsel %vm245, %v103, 0
  %v334 = vsel %vm245, %v106, 0
  %v337 = vsel %vm245, %v109, 0
  %v340 = vsel %vm245, %v112, 0
  %v343 = vsel %vm245, %v115, 0
  %v346 = vsel %vm245, %v118, 0
  %v349 = vsel %vm245, %v121, 0
  %v352 = vsel %vm245, %v124, 0
  %v355 = vsel %vm245, %v127, 0
  %v358 = vsel %vm245, %v130, 0
  %v361 = vsel %vm245, %v133, 0
  %v364 = vsel %vm245, %v136, 0
  %v367 = vsel %vm245, %v139, 0
  %v370 = vsel %vm245, %v142, 0
  %v373 = vsel %vm245, %v145, 0
  %v376 = vsel %vm245, %v148, 0
  %v379 = vsel %vm245, %v151, 0
  %v382 = vsel %vm245, %v154, 0
  %v385 = vsel %vm245, %v157, 0
  %v388 = vsel %vm245, %v160, 0
  %v391 = vsel %vm245, %v163, 0
  %v394 = vsel %vm245, %v166, 0
  %v397 = vsel %vm245, %v169, 0
  %v400 = vsel %vm245, %v172, 0
  %v403 = vsel %vm245, %v175, 0
  %v406 = vsel %vm245, %v178, 0
  %v409 = vsel %vm245, %v181, 0
  %v412 = vsel %vm245, %v184, 0
  %v415 = vsel %vm245, %v187, 0
  %v418 = vsel %vm245, %v190, 0
  %v421 = vsel %vm245, %v193, 0
  %v424 = vsel %vm245, %v196, 0
  %v427 = vsel %vm245, %v199, 0
  %v430 = vsel %vm245, %v202, 0
  %v433 = vsel %vm245, %v205, 0
  %v436 = vsel %vm245, %v208, 0
  %438 = vmatprep.subr.mxu0 0.0
  %439 = vmatpush1.msra.mxu0 %v209
  %440 = vmatprep.subr.mxu0 0.0
  %441 = vmatpush1.msra.mxu0 %v210
  %442 = vmatprep.subr.mxu0 0.0
  %443 = vmatpush1.msra.mxu0 %v211
  %444 = vmatprep.subr.mxu0 0.0
  %445 = vmatpush1.msra.mxu0 %v212
  %446 = vmatprep.subr.mxu0 0.0
  %447 = vmatpush1.msra.mxu0 %v213
  %448 = vmatprep.subr.mxu0 0.0
  %449 = vmatpush1.msra.mxu0 %v214
  %450 = vmatprep.subr.mxu0 0.0
  %451 = vmatpush1.msra.mxu0 %v215
  %452 = vmatprep.subr.mxu0 0.0
  %453 = vmatpush1.msra.mxu0 %v216
  %454 = vmatprep.subr.mxu0 0.0
  %455 = vmatpush1.msra.mxu0 %v217
  %456 = vmatprep.subr.mxu0 0.0
  %457 = vmatpush1.msra.mxu0 %v218
  %458 = vmatprep.subr.mxu0 0.0
  %459 = vmatpush1.msra.mxu0 %v219
  %460 = vmatprep.subr.mxu0 0.0
  %461 = vmatpush1.msra.mxu0 %v220
  %462 = vmatprep.subr.mxu0 0.0
  %463 = vmatpush1.msra.mxu0 %v221
  %464 = vmatprep.subr.mxu0 0.0
  %465 = vmatpush1.msra.mxu0 %v222
  %466 = vmatprep.subr.mxu0 0.0
  %467 = vmatpush1.msra.mxu0 %v223
  %468 = vmatprep.subr.mxu0 0.0
  %469 = vmatpush1.msra.mxu0 %v224
  %470 = vmatprep.subr.mxu0 0.0
  %471 = vmatpush1.msra.mxu0 %v225
  %472 = vmatprep.subr.mxu0 0.0
  %473 = vmatpush1.msra.mxu0 %v226
  %474 = vmatprep.subr.mxu0 0.0
  %475 = vmatpush1.msra.mxu0 %v227
  %476 = vmatprep.subr.mxu0 0.0
  %477 = vmatpush1.msra.mxu0 %v228
  %478 = vmatprep.subr.mxu0 0.0
  %479 = vmatpush1.msra.mxu0 %v229
  %480 = vmatprep.subr.mxu0 0.0
  %481 = vmatpush1.msra.mxu0 %v230
  %482 = vmatprep.subr.mxu0 0.0
  %483 = vmatpush1.msra.mxu0 %v231
  %484 = vmatprep.subr.mxu0 0.0
  %485 = vmatpush1.msra.mxu0 %v232
  %486 = vmatprep.subr.mxu0 0.0
  %487 = vmatpush1.msra.mxu0 %v233
  %488 = vmatprep.subr.mxu0 0.0
  %489 = vmatpush1.msra.mxu0 %v234
  %490 = vmatprep.subr.mxu0 0.0
  %491 = vmatpush1.msra.mxu0 %v235
  %492 = vmatprep.subr.mxu0 0.0
  %493 = vmatpush1.msra.mxu0 %v236
  %494 = vmatprep.subr.mxu0 0.0
  %495 = vmatpush1.msra.mxu0 %v237
  %496 = vmatprep.subr.mxu0 0.0
  %497 = vmatpush1.msra.mxu0 %v238
  %498 = vmatprep.subr.mxu0 0.0
  %499 = vmatpush1.msra.mxu0 %v239
  %500 = vmatprep.subr.mxu0 0.0
  %501 = vmatpush1.msra.mxu0 %v240
  %502 = vmatprep.mubr.f32.mxu0 %v18
  %503 = vmatmul.mubr.f32.gmra.mrb[0].mxu0 %v17
  %v504 = vpop.f32.mrb[0].mxu0
  %v505 = vadd.f32 0.0, %v504
  %v506 = vpop.f32.mrb[0].mxu0
  %507 = vmatprep.mubr.f32.mxu0 %v21
  %508 = vmatmul.mubr.f32.gmra.mrb[0].mxu0 %v20
  %v509 = vpop.f32.mrb[0].mxu0
  %v510 = vadd.f32 0.0, %v509
  %v511 = vpop.f32.mrb[0].mxu0
  %512 = vmatprep.mubr.f32.mxu0 %v24
  %513 = vmatmul.mubr.f32.gmra.mrb[0].mxu0 %v23
  %v514 = vpop.f32.mrb[0].mxu0
  %v515 = vadd.f32 0.0, %v514
  %v516 = vpop.f32.mrb[0].mxu0
  %517 = vmatprep.mubr.f32.mxu0 %v27
  %518 = vmatmul.mubr.f32.gmra.mrb[0].mxu0 %v26
  %v519 = vpop.f32.mrb[0].mxu0
  %v520 = vadd.f32 0.0, %v519
  %v521 = vpop.f32.mrb[0].mxu0
  %522 = vmatprep.mubr.f32.mxu0 %v30
  %523 = vmatmul.mubr.f32.gmra.mrb[0].mxu0 %v29
  %v524 = vpop.f32.mrb[0].mxu0
  %v525 = vadd.f32 0.0, %v524
  %v526 = vpop.f32.mrb[0].mxu0
  %527 = vmatprep.mubr.f32.mxu0 %v33
  %528 = vmatmul.mubr.f32.gmra.mrb[0].mxu0 %v32
  %v529 = vpop.f32.mrb[0].mxu0
  %v530 = vadd.f32 0.0, %v529
  %v531 = vpop.f32.mrb[0].mxu0
  %532 = vmatprep.mubr.f32.mxu0 %v36
  %533 = vmatmul.mubr.f32.gmra.mrb[0].mxu0 %v35
  %v534 = vpop.f32.mrb[0].mxu0
  %v535 = vadd.f32 0.0, %v534
  %v536 = vpop.f32.mrb[0].mxu0
  %537 = vmatprep.mubr.f32.mxu0 %v39
  %538 = vmatmul.mubr.f32.gmra.mrb[0].mxu0 %v38
  %v539 = vpop.f32.mrb[0].mxu0
  %v540 = vadd.f32 0.0, %v539
  %v541 = vpop.f32.mrb[0].mxu0
  %542 = vmatprep.mubr.f32.mxu0 %v42
  %543 = vmatmul.mubr.f32.gmra.mrb[0].mxu0 %v41
  %v544 = vpop.f32.mrb[0].mxu0
  %v545 = vadd.f32 0.0, %v544
  %v546 = vpop.f32.mrb[0].mxu0
  %547 = vmatprep.mubr.f32.mxu0 %v45
  %548 = vmatmul.mubr.f32.gmra.mrb[0].mxu0 %v44
  %v549 = vpop.f32.mrb[0].mxu0
  %v550 = vadd.f32 0.0, %v549
  %v551 = vpop.f32.mrb[0].mxu0
  %552 = vmatprep.mubr.f32.mxu0 %v48
  %553 = vmatmul.mubr.f32.gmra.mrb[0].mxu0 %v47
  %v554 = vpop.f32.mrb[0].mxu0
  %v555 = vadd.f32 0.0, %v554
  %v556 = vpop.f32.mrb[0].mxu0
  %557 = vmatprep.mubr.f32.mxu0 %v51
  %558 = vmatmul.mubr.f32.gmra.mrb[0].mxu0 %v50
  %v559 = vpop.f32.mrb[0].mxu0
  %v560 = vadd.f32 0.0, %v559
  %v561 = vpop.f32.mrb[0].mxu0
  %562 = vmatprep.mubr.f32.mxu0 %v54
  %563 = vmatmul.mubr.f32.gmra.mrb[0].mxu0 %v53
  %v564 = vpop.f32.mrb[0].mxu0
  %v565 = vadd.f32 0.0, %v564
  %v566 = vpop.f32.mrb[0].mxu0
  %567 = vmatprep.mubr.f32.mxu0 %v57
  %568 = vmatmul.mubr.f32.gmra.mrb[0].mxu0 %v56
  %v569 = vpop.f32.mrb[0].mxu0
  %v570 = vadd.f32 0.0, %v569
  %v571 = vpop.f32.mrb[0].mxu0
  %572 = vmatprep.mubr.f32.mxu0 %v60
  %573 = vmatmul.mubr.f32.gmra.mrb[0].mxu0 %v59
  %v574 = vpop.f32.mrb[0].mxu0
  %v575 = vadd.f32 0.0, %v574
  %v576 = vpop.f32.mrb[0].mxu0
  %577 = vmatprep.mubr.f32.mxu0 %v63
  %578 = vmatmul.mubr.f32.gmra.mrb[0].mxu0 %v62
  %v579 = vpop.f32.mrb[0].mxu0
  %v580 = vadd.f32 0.0, %v579
  %v581 = vpop.f32.mrb[0].mxu0
  %582 = vmatprep.mubr.f32.mxu0 %v66
  %583 = vmatmul.mubr.f32.gmra.mrb[0].mxu0 %v65
  %v584 = vpop.f32.mrb[0].mxu0
  %v585 = vadd.f32 0.0, %v584
  %v586 = vpop.f32.mrb[0].mxu0
  %587 = vmatprep.mubr.f32.mxu0 %v69
  %588 = vmatmul.mubr.f32.gmra.mrb[0].mxu0 %v68
  %v589 = vpop.f32.mrb[0].mxu0
  %v590 = vadd.f32 0.0, %v589
  %v591 = vpop.f32.mrb[0].mxu0
  %592 = vmatprep.mubr.f32.mxu0 %v72
  %593 = vmatmul.mubr.f32.gmra.mrb[0].mxu0 %v71
  %v594 = vpop.f32.mrb[0].mxu0
  %v595 = vadd.f32 0.0, %v594
  %v596 = vpop.f32.mrb[0].mxu0
  %597 = vmatprep.mubr.f32.mxu0 %v75
  %598 = vmatmul.mubr.f32.gmra.mrb[0].mxu0 %v74
  %v599 = vpop.f32.mrb[0].mxu0
  %v600 = vadd.f32 0.0, %v599
  %v601 = vpop.f32.mrb[0].mxu0
  %602 = vmatprep.mubr.f32.mxu0 %v78
  %603 = vmatmul.mubr.f32.gmra.mrb[0].mxu0 %v77
  %v604 = vpop.f32.mrb[0].mxu0
  %v605 = vadd.f32 0.0, %v604
  %v606 = vpop.f32.mrb[0].mxu0
  %607 = vmatprep.mubr.f32.mxu0 %v81
  %608 = vmatmul.mubr.f32.gmra.mrb[0].mxu0 %v80
  %v609 = vpop.f32.mrb[0].mxu0
  %v610 = vadd.f32 0.0, %v609
  %v611 = vpop.f32.mrb[0].mxu0
  %612 = vmatprep.mubr.f32.mxu0 %v84
  %613 = vmatmul.mubr.f32.gmra.mrb[0].mxu0 %v83
  %v614 = vpop.f32.mrb[0].mxu0
  %v615 = vadd.f32 0.0, %v614
  %v616 = vpop.f32.mrb[0].mxu0
  %617 = vmatprep.mubr.f32.mxu0 %v87
  %618 = vmatmul.mubr.f32.gmra.mrb[0].mxu0 %v86
  %v619 = vpop.f32.mrb[0].mxu0
  %v620 = vadd.f32 0.0, %v619
  %v621 = vpop.f32.mrb[0].mxu0
  %622 = vmatprep.mubr.f32.mxu0 %v90
  %623 = vmatmul.mubr.f32.gmra.mrb[0].mxu0 %v89
  %v624 = vpop.f32.mrb[0].mxu0
  %v625 = vadd.f32 0.0, %v624
  %v626 = vpop.f32.mrb[0].mxu0
  %627 = vmatprep.mubr.f32.mxu0 %v93
  %628 = vmatmul.mubr.f32.gmra.mrb[0].mxu0 %v92
  %v629 = vpop.f32.mrb[0].mxu0
  %v630 = vadd.f32 0.0, %v629
  %v631 = vpop.f32.mrb[0].mxu0
  %632 = vmatprep.mubr.f32.mxu0 %v96
  %633 = vmatmul.mubr.f32.gmra.mrb[0].mxu0 %v95
  %v634 = vpop.f32.mrb[0].mxu0
  %v635 = vadd.f32 0.0, %v634
  %v636 = vpop.f32.mrb[0].mxu0
  %637 = vmatprep.mubr.f32.mxu0 %v99
  %638 = vmatmul.mubr.f32.gmra.mrb[0].mxu0 %v98
  %v639 = vpop.f32.mrb[0].mxu0
  %v640 = vadd.f32 0.0, %v639
  %v641 = vpop.f32.mrb[0].mxu0
  %642 = vmatprep.mubr.f32.mxu0 %v102
  %643 = vmatmul.mubr.f32.gmra.mrb[0].mxu0 %v101
  %v644 = vpop.f32.mrb[0].mxu0
  %v645 = vadd.f32 0.0, %v644
  %v646 = vpop.f32.mrb[0].mxu0
  %647 = vmatprep.mubr.f32.mxu0 %v105
  %648 = vmatmul.mubr.f32.gmra.mrb[0].mxu0 %v104
  %v649 = vpop.f32.mrb[0].mxu0
  %v650 = vadd.f32 0.0, %v649
  %v651 = vpop.f32.mrb[0].mxu0
  %652 = vmatprep.mubr.f32.mxu0 %v108
  %653 = vmatmul.mubr.f32.gmra.mrb[0].mxu0 %v107
  %v654 = vpop.f32.mrb[0].mxu0
  %v655 = vadd.f32 0.0, %v654
  %v656 = vpop.f32.mrb[0].mxu0
  %657 = vmatprep.mubr.f32.mxu0 %v111
  %658 = vmatmul.mubr.f32.gmra.mrb[0].mxu0 %v110
  %v659 = vpop.f32.mrb[0].mxu0
  %v660 = vadd.f32 0.0, %v659
  %v661 = vpop.f32.mrb[0].mxu0
  %662 = vmatprep.mubr.f32.mxu0 %v114
  %663 = vmatmul.mubr.f32.gmra.mrb[0].mxu0 %v113
  %v664 = vpop.f32.mrb[0].mxu0
  %v665 = vadd.f32 0.0, %v664
  %v666 = vpop.f32.mrb[0].mxu0
  %667 = vmatprep.mubr.f32.mxu0 %v117
  %668 = vmatmul.mubr.f32.gmra.mrb[0].mxu0 %v116
  %v669 = vpop.f32.mrb[0].mxu0
  %v670 = vadd.f32 0.0, %v669
  %v671 = vpop.f32.mrb[0].mxu0
  %672 = vmatprep.mubr.f32.mxu0 %v120
  %673 = vmatmul.mubr.f32.gmra.mrb[0].mxu0 %v119
  %v674 = vpop.f32.mrb[0].mxu0
  %v675 = vadd.f32 0.0, %v674
  %v676 = vpop.f32.mrb[0].mxu0
  %677 = vmatprep.mubr.f32.mxu0 %v123
  %678 = vmatmul.mubr.f32.gmra.mrb[0].mxu0 %v122
  %v679 = vpop.f32.mrb[0].mxu0
  %v680 = vadd.f32 0.0, %v679
  %v681 = vpop.f32.mrb[0].mxu0
  %682 = vmatprep.mubr.f32.mxu0 %v126
  %683 = vmatmul.mubr.f32.gmra.mrb[0].mxu0 %v125
  %v684 = vpop.f32.mrb[0].mxu0
  %v685 = vadd.f32 0.0, %v684
  %v686 = vpop.f32.mrb[0].mxu0
  %687 = vmatprep.mubr.f32.mxu0 %v129
  %688 = vmatmul.mubr.f32.gmra.mrb[0].mxu0 %v128
  %v689 = vpop.f32.mrb[0].mxu0
  %v690 = vadd.f32 0.0, %v689
  %v691 = vpop.f32.mrb[0].mxu0
  %692 = vmatprep.mubr.f32.mxu0 %v132
  %693 = vmatmul.mubr.f32.gmra.mrb[0].mxu0 %v131
  %v694 = vpop.f32.mrb[0].mxu0
  %v695 = vadd.f32 0.0, %v694
  %v696 = vpop.f32.mrb[0].mxu0
  %697 = vmatprep.mubr.f32.mxu0 %v135
  %698 = vmatmul.mubr.f32.gmra.mrb[0].mxu0 %v134
  %v699 = vpop.f32.mrb[0].mxu0
  %v700 = vadd.f32 0.0, %v699
  %v701 = vpop.f32.mrb[0].mxu0
  %702 = vmatprep.mubr.f32.mxu0 %v138
  %703 = vmatmul.mubr.f32.gmra.mrb[0].mxu0 %v137
  %v704 = vpop.f32.mrb[0].mxu0
  %v705 = vadd.f32 0.0, %v704
  %v706 = vpop.f32.mrb[0].mxu0
  %707 = vmatprep.mubr.f32.mxu0 %v141
  %708 = vmatmul.mubr.f32.gmra.mrb[0].mxu0 %v140
  %v709 = vpop.f32.mrb[0].mxu0
  %v710 = vadd.f32 0.0, %v709
  %v711 = vpop.f32.mrb[0].mxu0
  %712 = vmatprep.mubr.f32.mxu0 %v144
  %713 = vmatmul.mubr.f32.gmra.mrb[0].mxu0 %v143
  %v714 = vpop.f32.mrb[0].mxu0
  %v715 = vadd.f32 0.0, %v714
  %v716 = vpop.f32.mrb[0].mxu0
  %717 = vmatprep.mubr.f32.mxu0 %v147
  %718 = vmatmul.mubr.f32.gmra.mrb[0].mxu0 %v146
  %v719 = vpop.f32.mrb[0].mxu0
  %v720 = vadd.f32 0.0, %v719
  %v721 = vpop.f32.mrb[0].mxu0
  %722 = vmatprep.mubr.f32.mxu0 %v150
  %723 = vmatmul.mubr.f32.gmra.mrb[0].mxu0 %v149
  %v724 = vpop.f32.mrb[0].mxu0
  %v725 = vadd.f32 0.0, %v724
  %v726 = vpop.f32.mrb[0].mxu0
  %727 = vmatprep.mubr.f32.mxu0 %v153
  %728 = vmatmul.mubr.f32.gmra.mrb[0].mxu0 %v152
  %v729 = vpop.f32.mrb[0].mxu0
  %v730 = vadd.f32 0.0, %v729
  %v731 = vpop.f32.mrb[0].mxu0
  %732 = vmatprep.mubr.f32.mxu0 %v156
  %733 = vmatmul.mubr.f32.gmra.mrb[0].mxu0 %v155
  %v734 = vpop.f32.mrb[0].mxu0
  %v735 = vadd.f32 0.0, %v734
  %v736 = vpop.f32.mrb[0].mxu0
  %737 = vmatprep.mubr.f32.mxu0 %v159
  %738 = vmatmul.mubr.f32.gmra.mrb[0].mxu0 %v158
  %v739 = vpop.f32.mrb[0].mxu0
  %v740 = vadd.f32 0.0, %v739
  %v741 = vpop.f32.mrb[0].mxu0
  %742 = vmatprep.mubr.f32.mxu0 %v162
  %743 = vmatmul.mubr.f32.gmra.mrb[0].mxu0 %v161
  %v744 = vpop.f32.mrb[0].mxu0
  %v745 = vadd.f32 0.0, %v744
  %v746 = vpop.f32.mrb[0].mxu0
  %747 = vmatprep.mubr.f32.mxu0 %v165
  %748 = vmatmul.mubr.f32.gmra.mrb[0].mxu0 %v164
  %v749 = vpop.f32.mrb[0].mxu0
  %v750 = vadd.f32 0.0, %v749
  %v751 = vpop.f32.mrb[0].mxu0
  %752 = vmatprep.mubr.f32.mxu0 %v168
  %753 = vmatmul.mubr.f32.gmra.mrb[0].mxu0 %v167
  %v754 = vpop.f32.mrb[0].mxu0
  %v755 = vadd.f32 0.0, %v754
  %v756 = vpop.f32.mrb[0].mxu0
  %757 = vmatprep.mubr.f32.mxu0 %v171
  %758 = vmatmul.mubr.f32.gmra.mrb[0].mxu0 %v170
  %v759 = vpop.f32.mrb[0].mxu0
  %v760 = vadd.f32 0.0, %v759
  %v761 = vpop.f32.mrb[0].mxu0
  %762 = vmatprep.mubr.f32.mxu0 %v174
  %763 = vmatmul.mubr.f32.gmra.mrb[0].mxu0 %v173
  %v764 = vpop.f32.mrb[0].mxu0
  %v765 = vadd.f32 0.0, %v764
  %v766 = vpop.f32.mrb[0].mxu0
  %767 = vmatprep.mubr.f32.mxu0 %v177
  %768 = vmatmul.mubr.f32.gmra.mrb[0].mxu0 %v176
  %v769 = vpop.f32.mrb[0].mxu0
  %v770 = vadd.f32 0.0, %v769
  %v771 = vpop.f32.mrb[0].mxu0
  %772 = vmatprep.mubr.f32.mxu0 %v180
  %773 = vmatmul.mubr.f32.gmra.mrb[0].mxu0 %v179
  %v774 = vpop.f32.mrb[0].mxu0
  %v775 = vadd.f32 0.0, %v774
  %v776 = vpop.f32.mrb[0].mxu0
  %777 = vmatprep.mubr.f32.mxu0 %v183
  %778 = vmatmul.mubr.f32.gmra.mrb[0].mxu0 %v182
  %v779 = vpop.f32.mrb[0].mxu0
  %v780 = vadd.f32 0.0, %v779
  %v781 = vpop.f32.mrb[0].mxu0
  %782 = vmatprep.mubr.f32.mxu0 %v186
  %783 = vmatmul.mubr.f32.gmra.mrb[0].mxu0 %v185
  %v784 = vpop.f32.mrb[0].mxu0
  %v785 = vadd.f32 0.0, %v784
  %v786 = vpop.f32.mrb[0].mxu0
  %787 = vmatprep.mubr.f32.mxu0 %v189
  %788 = vmatmul.mubr.f32.gmra.mrb[0].mxu0 %v188
  %v789 = vpop.f32.mrb[0].mxu0
  %v790 = vadd.f32 0.0, %v789
  %v791 = vpop.f32.mrb[0].mxu0
  %792 = vmatprep.mubr.f32.mxu0 %v192
  %793 = vmatmul.mubr.f32.gmra.mrb[0].mxu0 %v191
  %v794 = vpop.f32.mrb[0].mxu0
  %v795 = vadd.f32 0.0, %v794
  %v796 = vpop.f32.mrb[0].mxu0
  %797 = vmatprep.mubr.f32.mxu0 %v195
  %798 = vmatmul.mubr.f32.gmra.mrb[0].mxu0 %v194
  %v799 = vpop.f32.mrb[0].mxu0
  %v800 = vadd.f32 0.0, %v799
  %v801 = vpop.f32.mrb[0].mxu0
  %802 = vmatprep.mubr.f32.mxu0 %v198
  %803 = vmatmul.mubr.f32.gmra.mrb[0].mxu0 %v197
  %v804 = vpop.f32.mrb[0].mxu0
  %v805 = vadd.f32 0.0, %v804
  %v806 = vpop.f32.mrb[0].mxu0
  %807 = vmatprep.mubr.f32.mxu0 %v201
  %808 = vmatmul.mubr.f32.gmra.mrb[0].mxu0 %v200
  %v809 = vpop.f32.mrb[0].mxu0
  %v810 = vadd.f32 0.0, %v809
  %v811 = vpop.f32.mrb[0].mxu0
  %812 = vmatprep.mubr.f32.mxu0 %v204
  %813 = vmatmul.mubr.f32.gmra.mrb[0].mxu0 %v203
  %v814 = vpop.f32.mrb[0].mxu0
  %v815 = vadd.f32 0.0, %v814
  %v816 = vpop.f32.mrb[0].mxu0
  %817 = vmatprep.mubr.f32.mxu0 %v207
  %818 = vmatmul.mubr.f32.gmra.mrb[0].mxu0 %v206
  %v819 = vpop.f32.mrb[0].mxu0
  %v820 = vadd.f32 0.0, %v819
  %v821 = vpop.f32.mrb[0].mxu0
  %822 = vdwg.mxu0
  %823 = vmatprep.subr.mxu0 0.0
  %824 = vmatpush1.msra.mxu0 %v241
  %825 = vmatprep.subr.mxu0 0.0
  %826 = vmatpush1.msra.mxu0 %v242
  %827 = vmatprep.subr.mxu0 0.0
  %828 = vmatpush1.msra.mxu0 %v243
  %829 = vmatprep.subr.mxu0 0.0
  %830 = vmatpush1.msra.mxu0 %v244
  %831 = vmatprep.subr.mxu0 0.0
  %832 = vmatpush1.msra.mxu0 0.0
  %833 = vmatprep.subr.mxu0 0.0
  %834 = vmatpush1.msra.mxu0 0.0
  %835 = vmatprep.subr.mxu0 0.0
  %836 = vmatpush1.msra.mxu0 0.0
  %837 = vmatprep.subr.mxu0 0.0
  %838 = vmatpush1.msra.mxu0 0.0
  %839 = vmatprep.subr.mxu0 0.0
  %840 = vmatpush1.msra.mxu0 0.0
  %841 = vmatprep.subr.mxu0 0.0
  %842 = vmatpush1.msra.mxu0 0.0
  %843 = vmatprep.subr.mxu0 0.0
  %844 = vmatpush1.msra.mxu0 0.0
  %845 = vmatprep.subr.mxu0 0.0
  %846 = vmatpush1.msra.mxu0 0.0
  %847 = vmatprep.subr.mxu0 0.0
  %848 = vmatpush1.msra.mxu0 0.0
  %849 = vmatprep.subr.mxu0 0.0
  %850 = vmatpush1.msra.mxu0 0.0
  %851 = vmatprep.subr.mxu0 0.0
  %852 = vmatpush1.msra.mxu0 0.0
  %853 = vmatprep.subr.mxu0 0.0
  %854 = vmatpush1.msra.mxu0 0.0
  %855 = vmatprep.subr.mxu0 0.0
  %856 = vmatpush1.msra.mxu0 0.0
  %857 = vmatprep.subr.mxu0 0.0
  %858 = vmatpush1.msra.mxu0 0.0
  %859 = vmatprep.subr.mxu0 0.0
  %860 = vmatpush1.msra.mxu0 0.0
  %861 = vmatprep.subr.mxu0 0.0
  %862 = vmatpush1.msra.mxu0 0.0
  %863 = vmatprep.subr.mxu0 0.0
  %864 = vmatpush1.msra.mxu0 0.0
  %865 = vmatprep.subr.mxu0 0.0
  %866 = vmatpush1.msra.mxu0 0.0
  %867 = vmatprep.subr.mxu0 0.0
  %868 = vmatpush1.msra.mxu0 0.0
  %869 = vmatprep.subr.mxu0 0.0
  %870 = vmatpush1.msra.mxu0 0.0
  %871 = vmatprep.subr.mxu0 0.0
  %872 = vmatpush1.msra.mxu0 0.0
  %873 = vmatprep.subr.mxu0 0.0
  %874 = vmatpush1.msra.mxu0 0.0
  %875 = vmatprep.subr.mxu0 0.0
  %876 = vmatpush1.msra.mxu0 0.0
  %877 = vmatprep.subr.mxu0 0.0
  %878 = vmatpush1.msra.mxu0 0.0
  %879 = vmatprep.subr.mxu0 0.0
  %880 = vmatpush1.msra.mxu0 0.0
  %881 = vmatprep.subr.mxu0 0.0
  %882 = vmatpush1.msra.mxu0 0.0
  %883 = vmatprep.subr.mxu0 0.0
  %884 = vmatpush1.msra.mxu0 0.0
  %885 = vmatprep.subr.mxu0 0.0
  %886 = vmatpush1.msra.mxu0 0.0
  %887 = vmatprep.mubr.f32.mxu0 0.0
  %888 = vmatmul.mubr.f32.gmra.mrb[0].mxu0 %v247
  %v889 = vpop.f32.mrb[0].mxu0
  %v890 = vadd.f32 %v505, %v889
  %v891 = vpop.f32.mrb[0].mxu0
  %892 = vmatprep.mubr.f32.mxu0 0.0
  %893 = vmatmul.mubr.f32.gmra.mrb[0].mxu0 %v250
  %v894 = vpop.f32.mrb[0].mxu0
  %v895 = vadd.f32 %v510, %v894
  %v896 = vpop.f32.mrb[0].mxu0
  %897 = vmatprep.mubr.f32.mxu0 0.0
  %898 = vmatmul.mubr.f32.gmra.mrb[0].mxu0 %v253
  %v899 = vpop.f32.mrb[0].mxu0
  %v900 = vadd.f32 %v515, %v899
  %v901 = vpop.f32.mrb[0].mxu0
  %902 = vmatprep.mubr.f32.mxu0 0.0
  %903 = vmatmul.mubr.f32.gmra.mrb[0].mxu0 %v256
  %v904 = vpop.f32.mrb[0].mxu0
  %v905 = vadd.f32 %v520, %v904
  %v906 = vpop.f32.mrb[0].mxu0
  %907 = vmatprep.mubr.f32.mxu0 0.0
  %908 = vmatmul.mubr.f32.gmra.mrb[0].mxu0 %v259
  %v909 = vpop.f32.mrb[0].mxu0
  %v910 = vadd.f32 %v525, %v909
  %v911 = vpop.f32.mrb[0].mxu0
  %912 = vmatprep.mubr.f32.mxu0 0.0
  %913 = vmatmul.mubr.f32.gmra.mrb[0].mxu0 %v262
  %v914 = vpop.f32.mrb[0].mxu0
  %v915 = vadd.f32 %v530, %v914
  %v916 = vpop.f32.mrb[0].mxu0
  %917 = vmatprep.mubr.f32.mxu0 0.0
  %918 = vmatmul.mubr.f32.gmra.mrb[0].mxu0 %v265
  %v919 = vpop.f32.mrb[0].mxu0
  %v920 = vadd.f32 %v535, %v919
  %v921 = vpop.f32.mrb[0].mxu0
  %922 = vmatprep.mubr.f32.mxu0 0.0
  %923 = vmatmul.mubr.f32.gmra.mrb[0].mxu0 %v268
  %v924 = vpop.f32.mrb[0].mxu0
  %v925 = vadd.f32 %v540, %v924
  %v926 = vpop.f32.mrb[0].mxu0
  %927 = vmatprep.mubr.f32.mxu0 0.0
  %928 = vmatmul.mubr.f32.gmra.mrb[0].mxu0 %v271
  %v929 = vpop.f32.mrb[0].mxu0
  %v930 = vadd.f32 %v545, %v929
  %v931 = vpop.f32.mrb[0].mxu0
  %932 = vmatprep.mubr.f32.mxu0 0.0
  %933 = vmatmul.mubr.f32.gmra.mrb[0].mxu0 %v274
  %v934 = vpop.f32.mrb[0].mxu0
  %v935 = vadd.f32 %v550, %v934
  %v936 = vpop.f32.mrb[0].mxu0
  %937 = vmatprep.mubr.f32.mxu0 0.0
  %938 = vmatmul.mubr.f32.gmra.mrb[0].mxu0 %v277
  %v939 = vpop.f32.mrb[0].mxu0
  %v940 = vadd.f32 %v555, %v939
  %v941 = vpop.f32.mrb[0].mxu0
  %942 = vmatprep.mubr.f32.mxu0 0.0
  %943 = vmatmul.mubr.f32.gmra.mrb[0].mxu0 %v280
  %v944 = vpop.f32.mrb[0].mxu0
  %v945 = vadd.f32 %v560, %v944
  %v946 = vpop.f32.mrb[0].mxu0
  %947 = vmatprep.mubr.f32.mxu0 0.0
  %948 = vmatmul.mubr.f32.gmra.mrb[0].mxu0 %v283
  %v949 = vpop.f32.mrb[0].mxu0
  %v950 = vadd.f32 %v565, %v949
  %v951 = vpop.f32.mrb[0].mxu0
  %952 = vmatprep.mubr.f32.mxu0 0.0
  %953 = vmatmul.mubr.f32.gmra.mrb[0].mxu0 %v286
  %v954 = vpop.f32.mrb[0].mxu0
  %v955 = vadd.f32 %v570, %v954
  %v956 = vpop.f32.mrb[0].mxu0
  %957 = vmatprep.mubr.f32.mxu0 0.0
  %958 = vmatmul.mubr.f32.gmra.mrb[0].mxu0 %v289
  %v959 = vpop.f32.mrb[0].mxu0
  %v960 = vadd.f32 %v575, %v959
  %v961 = vpop.f32.mrb[0].mxu0
  %962 = vmatprep.mubr.f32.mxu0 0.0
  %963 = vmatmul.mubr.f32.gmra.mrb[0].mxu0 %v292
  %v964 = vpop.f32.mrb[0].mxu0
  %v965 = vadd.f32 %v580, %v964
  %v966 = vpop.f32.mrb[0].mxu0
  %967 = vmatprep.mubr.f32.mxu0 0.0
  %968 = vmatmul.mubr.f32.gmra.mrb[0].mxu0 %v295
  %v969 = vpop.f32.mrb[0].mxu0
  %v970 = vadd.f32 %v585, %v969
  %v971 = vpop.f32.mrb[0].mxu0
  %972 = vmatprep.mubr.f32.mxu0 0.0
  %973 = vmatmul.mubr.f32.gmra.mrb[0].mxu0 %v298
  %v974 = vpop.f32.mrb[0].mxu0
  %v975 = vadd.f32 %v590, %v974
  %v976 = vpop.f32.mrb[0].mxu0
  %977 = vmatprep.mubr.f32.mxu0 0.0
  %978 = vmatmul.mubr.f32.gmra.mrb[0].mxu0 %v301
  %v979 = vpop.f32.mrb[0].mxu0
  %v980 = vadd.f32 %v595, %v979
  %v981 = vpop.f32.mrb[0].mxu0
  %982 = vmatprep.mubr.f32.mxu0 0.0
  %983 = vmatmul.mubr.f32.gmra.mrb[0].mxu0 %v304
  %v984 = vpop.f32.mrb[0].mxu0
  %v985 = vadd.f32 %v600, %v984
  %v986 = vpop.f32.mrb[0].mxu0
  %987 = vmatprep.mubr.f32.mxu0 0.0
  %988 = vmatmul.mubr.f32.gmra.mrb[0].mxu0 %v307
  %v989 = vpop.f32.mrb[0].mxu0
  %v990 = vadd.f32 %v605, %v989
  %v991 = vpop.f32.mrb[0].mxu0
  %992 = vmatprep.mubr.f32.mxu0 0.0
  %993 = vmatmul.mubr.f32.gmra.mrb[0].mxu0 %v310
  %v994 = vpop.f32.mrb[0].mxu0
  %v995 = vadd.f32 %v610, %v994
  %v996 = vpop.f32.mrb[0].mxu0
  %997 = vmatprep.mubr.f32.mxu0 0.0
  %998 = vmatmul.mubr.f32.gmra.mrb[0].mxu0 %v313
  %v999 = vpop.f32.mrb[0].mxu0
  %v1000 = vadd.f32 %v615, %v999
  %v1001 = vpop.f32.mrb[0].mxu0
  %1002 = vmatprep.mubr.f32.mxu0 0.0
  %1003 = vmatmul.mubr.f32.gmra.mrb[0].mxu0 %v316
  %v1004 = vpop.f32.mrb[0].mxu0
  %v1005 = vadd.f32 %v620, %v1004
  %v1006 = vpop.f32.mrb[0].mxu0
  %1007 = vmatprep.mubr.f32.mxu0 0.0
  %1008 = vmatmul.mubr.f32.gmra.mrb[0].mxu0 %v319
  %v1009 = vpop.f32.mrb[0].mxu0
  %v1010 = vadd.f32 %v625, %v1009
  %v1011 = vpop.f32.mrb[0].mxu0
  %1012 = vmatprep.mubr.f32.mxu0 0.0
  %1013 = vmatmul.mubr.f32.gmra.mrb[0].mxu0 %v322
  %v1014 = vpop.f32.mrb[0].mxu0
  %v1015 = vadd.f32 %v630, %v1014
  %v1016 = vpop.f32.mrb[0].mxu0
  %1017 = vmatprep.mubr.f32.mxu0 0.0
  %1018 = vmatmul.mubr.f32.gmra.mrb[0].mxu0 %v325
  %v1019 = vpop.f32.mrb[0].mxu0
  %v1020 = vadd.f32 %v635, %v1019
  %v1021 = vpop.f32.mrb[0].mxu0
  %1022 = vmatprep.mubr.f32.mxu0 0.0
  %1023 = vmatmul.mubr.f32.gmra.mrb[0].mxu0 %v328
  %v1024 = vpop.f32.mrb[0].mxu0
  %v1025 = vadd.f32 %v640, %v1024
  %v1026 = vpop.f32.mrb[0].mxu0
  %1027 = vmatprep.mubr.f32.mxu0 0.0
  %1028 = vmatmul.mubr.f32.gmra.mrb[0].mxu0 %v331
  %v1029 = vpop.f32.mrb[0].mxu0
  %v1030 = vadd.f32 %v645, %v1029
  %v1031 = vpop.f32.mrb[0].mxu0
  %1032 = vmatprep.mubr.f32.mxu0 0.0
  %1033 = vmatmul.mubr.f32.gmra.mrb[0].mxu0 %v334
  %v1034 = vpop.f32.mrb[0].mxu0
  %v1035 = vadd.f32 %v650, %v1034
  %v1036 = vpop.f32.mrb[0].mxu0
  %1037 = vmatprep.mubr.f32.mxu0 0.0
  %1038 = vmatmul.mubr.f32.gmra.mrb[0].mxu0 %v337
  %v1039 = vpop.f32.mrb[0].mxu0
  %v1040 = vadd.f32 %v655, %v1039
  %v1041 = vpop.f32.mrb[0].mxu0
  %1042 = vmatprep.mubr.f32.mxu0 0.0
  %1043 = vmatmul.mubr.f32.gmra.mrb[0].mxu0 %v340
  %v1044 = vpop.f32.mrb[0].mxu0
  %v1045 = vadd.f32 %v660, %v1044
  %v1046 = vpop.f32.mrb[0].mxu0
  %1047 = vmatprep.mubr.f32.mxu0 0.0
  %1048 = vmatmul.mubr.f32.gmra.mrb[0].mxu0 %v343
  %v1049 = vpop.f32.mrb[0].mxu0
  %v1050 = vadd.f32 %v665, %v1049
  %v1051 = vpop.f32.mrb[0].mxu0
  %1052 = vmatprep.mubr.f32.mxu0 0.0
  %1053 = vmatmul.mubr.f32.gmra.mrb[0].mxu0 %v346
  %v1054 = vpop.f32.mrb[0].mxu0
  %v1055 = vadd.f32 %v670, %v1054
  %v1056 = vpop.f32.mrb[0].mxu0
  %1057 = vmatprep.mubr.f32.mxu0 0.0
  %1058 = vmatmul.mubr.f32.gmra.mrb[0].mxu0 %v349
  %v1059 = vpop.f32.mrb[0].mxu0
  %v1060 = vadd.f32 %v675, %v1059
  %v1061 = vpop.f32.mrb[0].mxu0
  %1062 = vmatprep.mubr.f32.mxu0 0.0
  %1063 = vmatmul.mubr.f32.gmra.mrb[0].mxu0 %v352
  %v1064 = vpop.f32.mrb[0].mxu0
  %v1065 = vadd.f32 %v680, %v1064
  %v1066 = vpop.f32.mrb[0].mxu0
  %1067 = vmatprep.mubr.f32.mxu0 0.0
  %1068 = vmatmul.mubr.f32.gmra.mrb[0].mxu0 %v355
  %v1069 = vpop.f32.mrb[0].mxu0
  %v1070 = vadd.f32 %v685, %v1069
  %v1071 = vpop.f32.mrb[0].mxu0
  %1072 = vmatprep.mubr.f32.mxu0 0.0
  %1073 = vmatmul.mubr.f32.gmra.mrb[0].mxu0 %v358
  %v1074 = vpop.f32.mrb[0].mxu0
  %v1075 = vadd.f32 %v690, %v1074
  %v1076 = vpop.f32.mrb[0].mxu0
  %1077 = vmatprep.mubr.f32.mxu0 0.0
  %1078 = vmatmul.mubr.f32.gmra.mrb[0].mxu0 %v361
  %v1079 = vpop.f32.mrb[0].mxu0
  %v1080 = vadd.f32 %v695, %v1079
  %v1081 = vpop.f32.mrb[0].mxu0
  %1082 = vmatprep.mubr.f32.mxu0 0.0
  %1083 = vmatmul.mubr.f32.gmra.mrb[0].mxu0 %v364
  %v1084 = vpop.f32.mrb[0].mxu0
  %v1085 = vadd.f32 %v700, %v1084
  %v1086 = vpop.f32.mrb[0].mxu0
  %1087 = vmatprep.mubr.f32.mxu0 0.0
  %1088 = vmatmul.mubr.f32.gmra.mrb[0].mxu0 %v367
  %v1089 = vpop.f32.mrb[0].mxu0
  %v1090 = vadd.f32 %v705, %v1089
  %v1091 = vpop.f32.mrb[0].mxu0
  %1092 = vmatprep.mubr.f32.mxu0 0.0
  %1093 = vmatmul.mubr.f32.gmra.mrb[0].mxu0 %v370
  %v1094 = vpop.f32.mrb[0].mxu0
  %v1095 = vadd.f32 %v710, %v1094
  %v1096 = vpop.f32.mrb[0].mxu0
  %1097 = vmatprep.mubr.f32.mxu0 0.0
  %1098 = vmatmul.mubr.f32.gmra.mrb[0].mxu0 %v373
  %v1099 = vpop.f32.mrb[0].mxu0
  %v1100 = vadd.f32 %v715, %v1099
  %v1101 = vpop.f32.mrb[0].mxu0
  %1102 = vmatprep.mubr.f32.mxu0 0.0
  %1103 = vmatmul.mubr.f32.gmra.mrb[0].mxu0 %v376
  %v1104 = vpop.f32.mrb[0].mxu0
  %v1105 = vadd.f32 %v720, %v1104
  %v1106 = vpop.f32.mrb[0].mxu0
  %1107 = vmatprep.mubr.f32.mxu0 0.0
  %1108 = vmatmul.mubr.f32.gmra.mrb[0].mxu0 %v379
  %v1109 = vpop.f32.mrb[0].mxu0
  %v1110 = vadd.f32 %v725, %v1109
  %v1111 = vpop.f32.mrb[0].mxu0
  %1112 = vmatprep.mubr.f32.mxu0 0.0
  %1113 = vmatmul.mubr.f32.gmra.mrb[0].mxu0 %v382
  %v1114 = vpop.f32.mrb[0].mxu0
  %v1115 = vadd.f32 %v730, %v1114
  %v1116 = vpop.f32.mrb[0].mxu0
  %1117 = vmatprep.mubr.f32.mxu0 0.0
  %1118 = vmatmul.mubr.f32.gmra.mrb[0].mxu0 %v385
  %v1119 = vpop.f32.mrb[0].mxu0
  %v1120 = vadd.f32 %v735, %v1119
  %v1121 = vpop.f32.mrb[0].mxu0
  %1122 = vmatprep.mubr.f32.mxu0 0.0
  %1123 = vmatmul.mubr.f32.gmra.mrb[0].mxu0 %v388
  %v1124 = vpop.f32.mrb[0].mxu0
  %v1125 = vadd.f32 %v740, %v1124
  %v1126 = vpop.f32.mrb[0].mxu0
  %1127 = vmatprep.mubr.f32.mxu0 0.0
  %1128 = vmatmul.mubr.f32.gmra.mrb[0].mxu0 %v391
  %v1129 = vpop.f32.mrb[0].mxu0
  %v1130 = vadd.f32 %v745, %v1129
  %v1131 = vpop.f32.mrb[0].mxu0
  %1132 = vmatprep.mubr.f32.mxu0 0.0
  %1133 = vmatmul.mubr.f32.gmra.mrb[0].mxu0 %v394
  %v1134 = vpop.f32.mrb[0].mxu0
  %v1135 = vadd.f32 %v750, %v1134
  %v1136 = vpop.f32.mrb[0].mxu0
  %1137 = vmatprep.mubr.f32.mxu0 0.0
  %1138 = vmatmul.mubr.f32.gmra.mrb[0].mxu0 %v397
  %v1139 = vpop.f32.mrb[0].mxu0
  %v1140 = vadd.f32 %v755, %v1139
  %v1141 = vpop.f32.mrb[0].mxu0
  %1142 = vmatprep.mubr.f32.mxu0 0.0
  %1143 = vmatmul.mubr.f32.gmra.mrb[0].mxu0 %v400
  %v1144 = vpop.f32.mrb[0].mxu0
  %v1145 = vadd.f32 %v760, %v1144
  %v1146 = vpop.f32.mrb[0].mxu0
  %1147 = vmatprep.mubr.f32.mxu0 0.0
  %1148 = vmatmul.mubr.f32.gmra.mrb[0].mxu0 %v403
  %v1149 = vpop.f32.mrb[0].mxu0
  %v1150 = vadd.f32 %v765, %v1149
  %v1151 = vpop.f32.mrb[0].mxu0
  %1152 = vmatprep.mubr.f32.mxu0 0.0
  %1153 = vmatmul.mubr.f32.gmra.mrb[0].mxu0 %v406
  %v1154 = vpop.f32.mrb[0].mxu0
  %v1155 = vadd.f32 %v770, %v1154
  %v1156 = vpop.f32.mrb[0].mxu0
  %1157 = vmatprep.mubr.f32.mxu0 0.0
  %1158 = vmatmul.mubr.f32.gmra.mrb[0].mxu0 %v409
  %v1159 = vpop.f32.mrb[0].mxu0
  %v1160 = vadd.f32 %v775, %v1159
  %v1161 = vpop.f32.mrb[0].mxu0
  %1162 = vmatprep.mubr.f32.mxu0 0.0
  %1163 = vmatmul.mubr.f32.gmra.mrb[0].mxu0 %v412
  %v1164 = vpop.f32.mrb[0].mxu0
  %v1165 = vadd.f32 %v780, %v1164
  %v1166 = vpop.f32.mrb[0].mxu0
  %1167 = vmatprep.mubr.f32.mxu0 0.0
  %1168 = vmatmul.mubr.f32.gmra.mrb[0].mxu0 %v415
  %v1169 = vpop.f32.mrb[0].mxu0
  %v1170 = vadd.f32 %v785, %v1169
  %v1171 = vpop.f32.mrb[0].mxu0
  %1172 = vmatprep.mubr.f32.mxu0 0.0
  %1173 = vmatmul.mubr.f32.gmra.mrb[0].mxu0 %v418
  %v1174 = vpop.f32.mrb[0].mxu0
  %v1175 = vadd.f32 %v790, %v1174
  %v1176 = vpop.f32.mrb[0].mxu0
  %1177 = vmatprep.mubr.f32.mxu0 0.0
  %1178 = vmatmul.mubr.f32.gmra.mrb[0].mxu0 %v421
  %v1179 = vpop.f32.mrb[0].mxu0
  %v1180 = vadd.f32 %v795, %v1179
  %v1181 = vpop.f32.mrb[0].mxu0
  %1182 = vmatprep.mubr.f32.mxu0 0.0
  %1183 = vmatmul.mubr.f32.gmra.mrb[0].mxu0 %v424
  %v1184 = vpop.f32.mrb[0].mxu0
  %v1185 = vadd.f32 %v800, %v1184
  %v1186 = vpop.f32.mrb[0].mxu0
  %1187 = vmatprep.mubr.f32.mxu0 0.0
  %1188 = vmatmul.mubr.f32.gmra.mrb[0].mxu0 %v427
  %v1189 = vpop.f32.mrb[0].mxu0
  %v1190 = vadd.f32 %v805, %v1189
  %v1191 = vpop.f32.mrb[0].mxu0
  %1192 = vmatprep.mubr.f32.mxu0 0.0
  %1193 = vmatmul.mubr.f32.gmra.mrb[0].mxu0 %v430
  %v1194 = vpop.f32.mrb[0].mxu0
  %v1195 = vadd.f32 %v810, %v1194
  %v1196 = vpop.f32.mrb[0].mxu0
  %1197 = vmatprep.mubr.f32.mxu0 0.0
  %1198 = vmatmul.mubr.f32.gmra.mrb[0].mxu0 %v433
  %v1199 = vpop.f32.mrb[0].mxu0
  %v1200 = vadd.f32 %v815, %v1199
  %v1201 = vpop.f32.mrb[0].mxu0
  %1202 = vmatprep.mubr.f32.mxu0 0.0
  %1203 = vmatmul.mubr.f32.gmra.mrb[0].mxu0 %v436
  %v1204 = vpop.f32.mrb[0].mxu0
  %v1205 = vadd.f32 %v820, %v1204
  %v1206 = vpop.f32.mrb[0].mxu0
  %1207 = vdwg.mxu0
  %v1208 = vld [vmem:[%s2] sm:$0x1]
  %v1210 = vlaneseq
  %v1211 = vshrl.u32 %v1210, 7
  %v1212 = vsub.s32 0, %v1211
  %v1213 = vrot.slane %v1208, %v1212
  %v1215 = vmul.f32 %v890, %v1213
  %v1216 = vmul.f32 %v895, %v1213
  %v1217 = vmul.f32 %v900, %v1213
  %v1218 = vmul.f32 %v905, %v1213
  %v1219 = vmul.f32 %v910, %v1213
  %v1220 = vmul.f32 %v915, %v1213
  %v1221 = vmul.f32 %v920, %v1213
  %v1222 = vmul.f32 %v925, %v1213
  %v1223 = vmul.f32 %v930, %v1213
  %v1224 = vmul.f32 %v935, %v1213
  %v1225 = vmul.f32 %v940, %v1213
  %v1226 = vmul.f32 %v945, %v1213
  %v1227 = vmul.f32 %v950, %v1213
  %v1228 = vmul.f32 %v955, %v1213
  %v1229 = vmul.f32 %v960, %v1213
  %v1230 = vmul.f32 %v965, %v1213
  %v1231 = vmul.f32 %v970, %v1213
  %v1232 = vmul.f32 %v975, %v1213
  %v1233 = vmul.f32 %v980, %v1213
  %v1234 = vmul.f32 %v985, %v1213
  %v1235 = vmul.f32 %v990, %v1213
  %v1236 = vmul.f32 %v995, %v1213
  %v1237 = vmul.f32 %v1000, %v1213
  %v1238 = vmul.f32 %v1005, %v1213
  %v1239 = vmul.f32 %v1010, %v1213
  %v1240 = vmul.f32 %v1015, %v1213
  %v1241 = vmul.f32 %v1020, %v1213
  %v1242 = vmul.f32 %v1025, %v1213
  %v1243 = vmul.f32 %v1030, %v1213
  %v1244 = vmul.f32 %v1035, %v1213
  %v1245 = vmul.f32 %v1040, %v1213
  %v1246 = vmul.f32 %v1045, %v1213
  %v1247 = vmul.f32 %v1050, %v1213
  %v1248 = vmul.f32 %v1055, %v1213
  %v1249 = vmul.f32 %v1060, %v1213
  %v1250 = vmul.f32 %v1065, %v1213
  %v1251 = vmul.f32 %v1070, %v1213
  %v1252 = vmul.f32 %v1075, %v1213
  %v1253 = vmul.f32 %v1080, %v1213
  %v1254 = vmul.f32 %v1085, %v1213
  %v1255 = vmul.f32 %v1090, %v1213
  %v1256 = vmul.f32 %v1095, %v1213
  %v1257 = vmul.f32 %v1100, %v1213
  %v1258 = vmul.f32 %v1105, %v1213
  %v1259 = vmul.f32 %v1110, %v1213
  %v1260 = vmul.f32 %v1115, %v1213
  %v1261 = vmul.f32 %v1120, %v1213
  %v1262 = vmul.f32 %v1125, %v1213
  %v1263 = vmul.f32 %v1130, %v1213
  %v1264 = vmul.f32 %v1135, %v1213
  %v1265 = vmul.f32 %v1140, %v1213
  %v1266 = vmul.f32 %v1145, %v1213
  %v1267 = vmul.f32 %v1150, %v1213
  %v1268 = vmul.f32 %v1155, %v1213
  %v1269 = vmul.f32 %v1160, %v1213
  %v1270 = vmul.f32 %v1165, %v1213
  %v1271 = vmul.f32 %v1170, %v1213
  %v1272 = vmul.f32 %v1175, %v1213
  %v1273 = vmul.f32 %v1180, %v1213
  %v1274 = vmul.f32 %v1185, %v1213
  %v1275 = vmul.f32 %v1190, %v1213
  %v1276 = vmul.f32 %v1195, %v1213
  %v1277 = vmul.f32 %v1200, %v1213
  %v1278 = vmul.f32 %v1205, %v1213
  %v1279 = vld [vmem:[%s3] sm:$0x1]
  %v1281 = vlaneseq
  %v1282 = vshrl.u32 %v1281, 7
  %v1283 = vsub.s32 0, %v1282
  %v1284 = vrot.slane %v1279, %v1283
  %v1286 = vadd.f32 %v1215, %v1284
  %v1287 = vadd.f32 %v1216, %v1284
  %v1288 = vadd.f32 %v1217, %v1284
  %v1289 = vadd.f32 %v1218, %v1284
  %v1290 = vadd.f32 %v1219, %v1284
  %v1291 = vadd.f32 %v1220, %v1284
  %v1292 = vadd.f32 %v1221, %v1284
  %v1293 = vadd.f32 %v1222, %v1284
  %v1294 = vadd.f32 %v1223, %v1284
  %v1295 = vadd.f32 %v1224, %v1284
  %v1296 = vadd.f32 %v1225, %v1284
  %v1297 = vadd.f32 %v1226, %v1284
  %v1298 = vadd.f32 %v1227, %v1284
  %v1299 = vadd.f32 %v1228, %v1284
  %v1300 = vadd.f32 %v1229, %v1284
  %v1301 = vadd.f32 %v1230, %v1284
  %v1302 = vadd.f32 %v1231, %v1284
  %v1303 = vadd.f32 %v1232, %v1284
  %v1304 = vadd.f32 %v1233, %v1284
  %v1305 = vadd.f32 %v1234, %v1284
  %v1306 = vadd.f32 %v1235, %v1284
  %v1307 = vadd.f32 %v1236, %v1284
  %v1308 = vadd.f32 %v1237, %v1284
  %v1309 = vadd.f32 %v1238, %v1284
  %v1310 = vadd.f32 %v1239, %v1284
  %v1311 = vadd.f32 %v1240, %v1284
  %v1312 = vadd.f32 %v1241, %v1284
  %v1313 = vadd.f32 %v1242, %v1284
  %v1314 = vadd.f32 %v1243, %v1284
  %v1315 = vadd.f32 %v1244, %v1284
  %v1316 = vadd.f32 %v1245, %v1284
  %v1317 = vadd.f32 %v1246, %v1284
  %v1318 = vadd.f32 %v1247, %v1284
  %v1319 = vadd.f32 %v1248, %v1284
  %v1320 = vadd.f32 %v1249, %v1284
  %v1321 = vadd.f32 %v1250, %v1284
  %v1322 = vadd.f32 %v1251, %v1284
  %v1323 = vadd.f32 %v1252, %v1284
  %v1324 = vadd.f32 %v1253, %v1284
  %v1325 = vadd.f32 %v1254, %v1284
  %v1326 = vadd.f32 %v1255, %v1284
  %v1327 = vadd.f32 %v1256, %v1284
  %v1328 = vadd.f32 %v1257, %v1284
  %v1329 = vadd.f32 %v1258, %v1284
  %v1330 = vadd.f32 %v1259, %v1284
  %v1331 = vadd.f32 %v1260, %v1284
  %v1332 = vadd.f32 %v1261, %v1284
  %v1333 = vadd.f32 %v1262, %v1284
  %v1334 = vadd.f32 %v1263, %v1284
  %v1335 = vadd.f32 %v1264, %v1284
  %v1336 = vadd.f32 %v1265, %v1284
  %v1337 = vadd.f32 %v1266, %v1284
  %v1338 = vadd.f32 %v1267, %v1284
  %v1339 = vadd.f32 %v1268, %v1284
  %v1340 = vadd.f32 %v1269, %v1284
  %v1341 = vadd.f32 %v1270, %v1284
  %v1342 = vadd.f32 %v1271, %v1284
  %v1343 = vadd.f32 %v1272, %v1284
  %v1344 = vadd.f32 %v1273, %v1284
  %v1345 = vadd.f32 %v1274, %v1284
  %v1346 = vadd.f32 %v1275, %v1284
  %v1347 = vadd.f32 %v1276, %v1284
  %v1348 = vadd.f32 %v1277, %v1284
  %v1349 = vadd.f32 %v1278, %v1284
  %v1350 = vmax.f32 %v1286, 0.0
  %v1351 = vmax.f32 %v1287, 0.0
  %v1352 = vmax.f32 %v1288, 0.0
  %v1353 = vmax.f32 %v1289, 0.0
  %v1354 = vmax.f32 %v1290, 0.0
  %v1355 = vmax.f32 %v1291, 0.0
  %v1356 = vmax.f32 %v1292, 0.0
  %v1357 = vmax.f32 %v1293, 0.0
  %v1358 = vmax.f32 %v1294, 0.0
  %v1359 = vmax.f32 %v1295, 0.0
  %v1360 = vmax.f32 %v1296, 0.0
  %v1361 = vmax.f32 %v1297, 0.0
  %v1362 = vmax.f32 %v1298, 0.0
  %v1363 = vmax.f32 %v1299, 0.0
  %v1364 = vmax.f32 %v1300, 0.0
  %v1365 = vmax.f32 %v1301, 0.0
  %v1366 = vmax.f32 %v1302, 0.0
  %v1367 = vmax.f32 %v1303, 0.0
  %v1368 = vmax.f32 %v1304, 0.0
  %v1369 = vmax.f32 %v1305, 0.0
  %v1370 = vmax.f32 %v1306, 0.0
  %v1371 = vmax.f32 %v1307, 0.0
  %v1372 = vmax.f32 %v1308, 0.0
  %v1373 = vmax.f32 %v1309, 0.0
  %v1374 = vmax.f32 %v1310, 0.0
  %v1375 = vmax.f32 %v1311, 0.0
  %v1376 = vmax.f32 %v1312, 0.0
  %v1377 = vmax.f32 %v1313, 0.0
  %v1378 = vmax.f32 %v1314, 0.0
  %v1379 = vmax.f32 %v1315, 0.0
  %v1380 = vmax.f32 %v1316, 0.0
  %v1381 = vmax.f32 %v1317, 0.0
  %v1382 = vmax.f32 %v1318, 0.0
  %v1383 = vmax.f32 %v1319, 0.0
  %v1384 = vmax.f32 %v1320, 0.0
  %v1385 = vmax.f32 %v1321, 0.0
  %v1386 = vmax.f32 %v1322, 0.0
  %v1387 = vmax.f32 %v1323, 0.0
  %v1388 = vmax.f32 %v1324, 0.0
  %v1389 = vmax.f32 %v1325, 0.0
  %v1390 = vmax.f32 %v1326, 0.0
  %v1391 = vmax.f32 %v1327, 0.0
  %v1392 = vmax.f32 %v1328, 0.0
  %v1393 = vmax.f32 %v1329, 0.0
  %v1394 = vmax.f32 %v1330, 0.0
  %v1395 = vmax.f32 %v1331, 0.0
  %v1396 = vmax.f32 %v1332, 0.0
  %v1397 = vmax.f32 %v1333, 0.0
  %v1398 = vmax.f32 %v1334, 0.0
  %v1399 = vmax.f32 %v1335, 0.0
  %v1400 = vmax.f32 %v1336, 0.0
  %v1401 = vmax.f32 %v1337, 0.0
  %v1402 = vmax.f32 %v1338, 0.0
  %v1403 = vmax.f32 %v1339, 0.0
  %v1404 = vmax.f32 %v1340, 0.0
  %v1405 = vmax.f32 %v1341, 0.0
  %v1406 = vmax.f32 %v1342, 0.0
  %v1407 = vmax.f32 %v1343, 0.0
  %v1408 = vmax.f32 %v1344, 0.0
  %v1409 = vmax.f32 %v1345, 0.0
  %v1410 = vmax.f32 %v1346, 0.0
  %v1411 = vmax.f32 %v1347, 0.0
  %v1412 = vmax.f32 %v1348, 0.0
  %v1413 = vmax.f32 %v1349, 0.0
  %1414 = vst.msk [vmem:[%s4] sm:$0xff] %vm245, %v1350
  %1415 = vst.msk [vmem:[%s4 + $0x8] sm:$0xff] %vm245, %v1351
  %1416 = vst.msk [vmem:[%s4 + $0x10] sm:$0xff] %vm245, %v1352
  %1417 = vst.msk [vmem:[%s4 + $0x18] sm:$0xff] %vm245, %v1353
  %1418 = vst.msk [vmem:[%s4 + $0x20] sm:$0xff] %vm245, %v1354
  %1419 = vst.msk [vmem:[%s4 + $0x28] sm:$0xff] %vm245, %v1355
  %1420 = vst.msk [vmem:[%s4 + $0x30] sm:$0xff] %vm245, %v1356
  %1421 = vst.msk [vmem:[%s4 + $0x38] sm:$0xff] %vm245, %v1357
  %1422 = vst.msk [vmem:[%s4 + $0x40] sm:$0xff] %vm245, %v1358
  %1423 = vst.msk [vmem:[%s4 + $0x48] sm:$0xff] %vm245, %v1359
  %1424 = vst.msk [vmem:[%s4 + $0x50] sm:$0xff] %vm245, %v1360
  %1425 = vst.msk [vmem:[%s4 + $0x58] sm:$0xff] %vm245, %v1361
  %1426 = vst.msk [vmem:[%s4 + $0x60] sm:$0xff] %vm245, %v1362
  %1427 = vst.msk [vmem:[%s4 + $0x68] sm:$0xff] %vm245, %v1363
  %1428 = vst.msk [vmem:[%s4 + $0x70] sm:$0xff] %vm245, %v1364
  %1429 = vst.msk [vmem:[%s4 + $0x78] sm:$0xff] %vm245, %v1365
  %1430 = vst.msk [vmem:[%s4 + $0x80] sm:$0xff] %vm245, %v1366
  %1431 = vst.msk [vmem:[%s4 + $0x88] sm:$0xff] %vm245, %v1367
  %1432 = vst.msk [vmem:[%s4 + $0x90] sm:$0xff] %vm245, %v1368
  %1433 = vst.msk [vmem:[%s4 + $0x98] sm:$0xff] %vm245, %v1369
  %1434 = vst.msk [vmem:[%s4 + $0xa0] sm:$0xff] %vm245, %v1370
  %1435 = vst.msk [vmem:[%s4 + $0xa8] sm:$0xff] %vm245, %v1371
  %1436 = vst.msk [vmem:[%s4 + $0xb0] sm:$0xff] %vm245, %v1372
  %1437 = vst.msk [vmem:[%s4 + $0xb8] sm:$0xff] %vm245, %v1373
  %1438 = vst.msk [vmem:[%s4 + $0xc0] sm:$0xff] %vm245, %v1374
  %1439 = vst.msk [vmem:[%s4 + $0xc8] sm:$0xff] %vm245, %v1375
  %1440 = vst.msk [vmem:[%s4 + $0xd0] sm:$0xff] %vm245, %v1376
  %1441 = vst.msk [vmem:[%s4 + $0xd8] sm:$0xff] %vm245, %v1377
  %1442 = vst.msk [vmem:[%s4 + $0xe0] sm:$0xff] %vm245, %v1378
  %1443 = vst.msk [vmem:[%s4 + $0xe8] sm:$0xff] %vm245, %v1379
  %1444 = vst.msk [vmem:[%s4 + $0xf0] sm:$0xff] %vm245, %v1380
  %1445 = vst.msk [vmem:[%s4 + $0xf8] sm:$0xff] %vm245, %v1381
  %1446 = vst.msk [vmem:[%s4 + $0x100] sm:$0xff] %vm245, %v1382
  %1447 = vst.msk [vmem:[%s4 + $0x108] sm:$0xff] %vm245, %v1383
  %1448 = vst.msk [vmem:[%s4 + $0x110] sm:$0xff] %vm245, %v1384
  %1449 = vst.msk [vmem:[%s4 + $0x118] sm:$0xff] %vm245, %v1385
  %1450 = vst.msk [vmem:[%s4 + $0x120] sm:$0xff] %vm245, %v1386
  %1451 = vst.msk [vmem:[%s4 + $0x128] sm:$0xff] %vm245, %v1387
  %1452 = vst.msk [vmem:[%s4 + $0x130] sm:$0xff] %vm245, %v1388
  %1453 = vst.msk [vmem:[%s4 + $0x138] sm:$0xff] %vm245, %v1389
  %1454 = vst.msk [vmem:[%s4 + $0x140] sm:$0xff] %vm245, %v1390
  %1455 = vst.msk [vmem:[%s4 + $0x148] sm:$0xff] %vm245, %v1391
  %1456 = vst.msk [vmem:[%s4 + $0x150] sm:$0xff] %vm245, %v1392
  %1457 = vst.msk [vmem:[%s4 + $0x158] sm:$0xff] %vm245, %v1393
  %1458 = vst.msk [vmem:[%s4 + $0x160] sm:$0xff] %vm245, %v1394
  %1459 = vst.msk [vmem:[%s4 + $0x168] sm:$0xff] %vm245, %v1395
  %1460 = vst.msk [vmem:[%s4 + $0x170] sm:$0xff] %vm245, %v1396
  %1461 = vst.msk [vmem:[%s4 + $0x178] sm:$0xff] %vm245, %v1397
  %1462 = vst.msk [vmem:[%s4 + $0x180] sm:$0xff] %vm245, %v1398
  %1463 = vst.msk [vmem:[%s4 + $0x188] sm:$0xff] %vm245, %v1399
  %1464 = vst.msk [vmem:[%s4 + $0x190] sm:$0xff] %vm245, %v1400
  %1465 = vst.msk [vmem:[%s4 + $0x198] sm:$0xff] %vm245, %v1401
  %1466 = vst.msk [vmem:[%s4 + $0x1a0] sm:$0xff] %vm245, %v1402
  %1467 = vst.msk [vmem:[%s4 + $0x1a8] sm:$0xff] %vm245, %v1403
  %1468 = vst.msk [vmem:[%s4 + $0x1b0] sm:$0xff] %vm245, %v1404
  %1469 = vst.msk [vmem:[%s4 + $0x1b8] sm:$0xff] %vm245, %v1405
  %1470 = vst.msk [vmem:[%s4 + $0x1c0] sm:$0xff] %vm245, %v1406
  %1471 = vst.msk [vmem:[%s4 + $0x1c8] sm:$0xff] %vm245, %v1407
  %1472 = vst.msk [vmem:[%s4 + $0x1d0] sm:$0xff] %vm245, %v1408
  %1473 = vst.msk [vmem:[%s4 + $0x1d8] sm:$0xff] %vm245, %v1409
  %1474 = vst.msk [vmem:[%s4 + $0x1e0] sm:$0xff] %vm245, %v1410
  %1475 = vst.msk [vmem:[%s4 + $0x1e8] sm:$0xff] %vm245, %v1411
  %1476 = vst.msk [vmem:[%s4 + $0x1f0] sm:$0xff] %vm245, %v1412
  %1477 = vst.msk [vmem:[%s4 + $0x1f8] sm:$0xff] %vm245, %v1413
  // Predicated region
  $region18: #{bottleneck_forward.9} parent=0 // pred_check
    _
  $region19: #{bottleneck_forward.9} parent=0 // pred_check_branch
    %1479 = sbr.rel (0) target = $region21
  $region20: #{bottleneck_forward.9} parent=0 // pred_region
    _
  $region21: #{bottleneck_forward.9} parent=0 // pred_fallthru
    _
  // Predicated region
  $region22: #{bottleneck_forward.9} parent=0 // pred_check
    _
  $region23: #{bottleneck_forward.9} parent=0 // pred_check_branch
    %1481 = sbr.rel (0) target = $region25
  $region24: #{bottleneck_forward.9} parent=0 // pred_region
    _
  $region25: #{bottleneck_forward.9} parent=0 // pred_fallthru
    _

// kernel: bottleneck_forward.10
$region0: #{bottleneck_forward.10}
  #allocation0 [shape = 'u32[]', space=smem, size = 0x4, offset = 0x4, fixed_abs, tag = 'smem constant byte address 0x4 - core index']
  #allocation1 [shape = 'u32[144,128]{1,0:T(1,128)}', space=vmem, size = 0x12000, scoped, tag = 'internal scratch']
  %s0 = inlined_call_operand.vmem [shape: f32[512,32], index: 0, kind: input, shape index: {}]
  %s1 = inlined_call_operand.vmem [shape: f32[32,128], index: 1, kind: input, shape index: {}]
  %s2 = inlined_call_operand.vmem [shape: f32[1,128], index: 2, kind: input, shape index: {}]
  %s3 = inlined_call_operand.vmem [shape: f32[1,128], index: 3, kind: input, shape index: {}]
  %s4 = inlined_call_operand.vmem [shape: f32[512,128], index: 4, kind: output, shape index: {}]
  %s5 = sld [smem:[#allocation0]]
  $region26: #{bottleneck_forward.10} parent=0
    _
  %s7 = ssub.s32 1, %s5
  %s8 = scalar_select 0, %s7, %s5
  // Predicated region
  $region2: #{bottleneck_forward.10} parent=0 // pred_check
    _
  $region3: #{bottleneck_forward.10} parent=0 // pred_check_branch
    %10 = sbr.rel (0) target = $region5
  $region4: #{bottleneck_forward.10} parent=0 // pred_region
    _
  $region5: #{bottleneck_forward.10} parent=0 // pred_fallthru
    _
  // Predicated region
  $region6: #{bottleneck_forward.10} parent=0 // pred_check
    _
  $region7: #{bottleneck_forward.10} parent=0 // pred_check_branch
    %12 = sbr.rel (0) target = $region9
  $region8: #{bottleneck_forward.10} parent=0 // pred_region
    _
  $region9: #{bottleneck_forward.10} parent=0 // pred_fallthru
    _
  // Predicated region
  $region10: #{bottleneck_forward.10} parent=0 // pred_check
    _
  $region11: #{bottleneck_forward.10} parent=0 // pred_check_branch
    %14 = sbr.rel (0) target = $region13
  $region12: #{bottleneck_forward.10} parent=0 // pred_region
    _
  $region13: #{bottleneck_forward.10} parent=0 // pred_fallthru
    _
  // Predicated region
  $region14: #{bottleneck_forward.10} parent=0 // pred_check
    _
  $region15: #{bottleneck_forward.10} parent=0 // pred_check_branch
    %16 = sbr.rel (0) target = $region17
  $region16: #{bottleneck_forward.10} parent=0 // pred_region
    _
  $region17: #{bottleneck_forward.10} parent=0 // pred_fallthru
    _
  %v17 = vld [vmem:[%s0] sm:$0xff]
  %v18 = vld [vmem:[%s0 + $0x8] sm:$0xff]
  %v19 = vld [vmem:[%s0 + $0x10] sm:$0xff]
  %v20 = vld [vmem:[%s0 + $0x18] sm:$0xff]
  %v21 = vld [vmem:[%s0 + $0x20] sm:$0xff]
  %v22 = vld [vmem:[%s0 + $0x28] sm:$0xff]
  %v23 = vld [vmem:[%s0 + $0x30] sm:$0xff]
  %v24 = vld [vmem:[%s0 + $0x38] sm:$0xff]
  %v25 = vld [vmem:[%s0 + $0x40] sm:$0xff]
  %v26 = vld [vmem:[%s0 + $0x48] sm:$0xff]
  %v27 = vld [vmem:[%s0 + $0x50] sm:$0xff]
  %v28 = vld [vmem:[%s0 + $0x58] sm:$0xff]
  %v29 = vld [vmem:[%s0 + $0x60] sm:$0xff]
  %v30 = vld [vmem:[%s0 + $0x68] sm:$0xff]
  %v31 = vld [vmem:[%s0 + $0x70] sm:$0xff]
  %v32 = vld [vmem:[%s0 + $0x78] sm:$0xff]
  %v33 = vld [vmem:[%s0 + $0x80] sm:$0xff]
  %v34 = vld [vmem:[%s0 + $0x88] sm:$0xff]
  %v35 = vld [vmem:[%s0 + $0x90] sm:$0xff]
  %v36 = vld [vmem:[%s0 + $0x98] sm:$0xff]
  %v37 = vld [vmem:[%s0 + $0xa0] sm:$0xff]
  %v38 = vld [vmem:[%s0 + $0xa8] sm:$0xff]
  %v39 = vld [vmem:[%s0 + $0xb0] sm:$0xff]
  %v40 = vld [vmem:[%s0 + $0xb8] sm:$0xff]
  %v41 = vld [vmem:[%s0 + $0xc0] sm:$0xff]
  %v42 = vld [vmem:[%s0 + $0xc8] sm:$0xff]
  %v43 = vld [vmem:[%s0 + $0xd0] sm:$0xff]
  %v44 = vld [vmem:[%s0 + $0xd8] sm:$0xff]
  %v45 = vld [vmem:[%s0 + $0xe0] sm:$0xff]
  %v46 = vld [vmem:[%s0 + $0xe8] sm:$0xff]
  %v47 = vld [vmem:[%s0 + $0xf0] sm:$0xff]
  %v48 = vld [vmem:[%s0 + $0xf8] sm:$0xff]
  %v49 = vld [vmem:[%s0 + $0x100] sm:$0xff]
  %v50 = vld [vmem:[%s0 + $0x108] sm:$0xff]
  %v51 = vld [vmem:[%s0 + $0x110] sm:$0xff]
  %v52 = vld [vmem:[%s0 + $0x118] sm:$0xff]
  %v53 = vld [vmem:[%s0 + $0x120] sm:$0xff]
  %v54 = vld [vmem:[%s0 + $0x128] sm:$0xff]
  %v55 = vld [vmem:[%s0 + $0x130] sm:$0xff]
  %v56 = vld [vmem:[%s0 + $0x138] sm:$0xff]
  %v57 = vld [vmem:[%s0 + $0x140] sm:$0xff]
  %v58 = vld [vmem:[%s0 + $0x148] sm:$0xff]
  %v59 = vld [vmem:[%s0 + $0x150] sm:$0xff]
  %v60 = vld [vmem:[%s0 + $0x158] sm:$0xff]
  %v61 = vld [vmem:[%s0 + $0x160] sm:$0xff]
  %v62 = vld [vmem:[%s0 + $0x168] sm:$0xff]
  %v63 = vld [vmem:[%s0 + $0x170] sm:$0xff]
  %v64 = vld [vmem:[%s0 + $0x178] sm:$0xff]
  %v65 = vld [vmem:[%s0 + $0x180] sm:$0xff]
  %v66 = vld [vmem:[%s0 + $0x188] sm:$0xff]
  %v67 = vld [vmem:[%s0 + $0x190] sm:$0xff]
  %v68 = vld [vmem:[%s0 + $0x198] sm:$0xff]
  %v69 = vld [vmem:[%s0 + $0x1a0] sm:$0xff]
  %v70 = vld [vmem:[%s0 + $0x1a8] sm:$0xff]
  %v71 = vld [vmem:[%s0 + $0x1b0] sm:$0xff]
  %v72 = vld [vmem:[%s0 + $0x1b8] sm:$0xff]
  %v73 = vld [vmem:[%s0 + $0x1c0] sm:$0xff]
  %v74 = vld [vmem:[%s0 + $0x1c8] sm:$0xff]
  %v75 = vld [vmem:[%s0 + $0x1d0] sm:$0xff]
  %v76 = vld [vmem:[%s0 + $0x1d8] sm:$0xff]
  %v77 = vld [vmem:[%s0 + $0x1e0] sm:$0xff]
  %v78 = vld [vmem:[%s0 + $0x1e8] sm:$0xff]
  %v79 = vld [vmem:[%s0 + $0x1f0] sm:$0xff]
  %v80 = vld [vmem:[%s0 + $0x1f8] sm:$0xff]
  %v81 = vld [vmem:[%s1] sm:$0xff]
  %v82 = vld [vmem:[%s1 + $0x8] sm:$0xff]
  %v83 = vld [vmem:[%s1 + $0x10] sm:$0xff]
  %v84 = vld [vmem:[%s1 + $0x18] sm:$0xff]
  %vm85 = vcmask 261120
  %v87 = vsel %vm85, %v17, 0
  %v90 = vsel %vm85, %v18, 0
  %v93 = vsel %vm85, %v19, 0
  %v96 = vsel %vm85, %v20, 0
  %v99 = vsel %vm85, %v21, 0
  %v102 = vsel %vm85, %v22, 0
  %v105 = vsel %vm85, %v23, 0
  %v108 = vsel %vm85, %v24, 0
  %v111 = vsel %vm85, %v25, 0
  %v114 = vsel %vm85, %v26, 0
  %v117 = vsel %vm85, %v27, 0
  %v120 = vsel %vm85, %v28, 0
  %v123 = vsel %vm85, %v29, 0
  %v126 = vsel %vm85, %v30, 0
  %v129 = vsel %vm85, %v31, 0
  %v132 = vsel %vm85, %v32, 0
  %v135 = vsel %vm85, %v33, 0
  %v138 = vsel %vm85, %v34, 0
  %v141 = vsel %vm85, %v35, 0
  %v144 = vsel %vm85, %v36, 0
  %v147 = vsel %vm85, %v37, 0
  %v150 = vsel %vm85, %v38, 0
  %v153 = vsel %vm85, %v39, 0
  %v156 = vsel %vm85, %v40, 0
  %v159 = vsel %vm85, %v41, 0
  %v162 = vsel %vm85, %v42, 0
  %v165 = vsel %vm85, %v43, 0
  %v168 = vsel %vm85, %v44, 0
  %v171 = vsel %vm85, %v45, 0
  %v174 = vsel %vm85, %v46, 0
  %v177 = vsel %vm85, %v47, 0
  %v180 = vsel %vm85, %v48, 0
  %v183 = vsel %vm85, %v49, 0
  %v186 = vsel %vm85, %v50, 0
  %v189 = vsel %vm85, %v51, 0
  %v192 = vsel %vm85, %v52, 0
  %v195 = vsel %vm85, %v53, 0
  %v198 = vsel %vm85, %v54, 0
  %v201 = vsel %vm85, %v55, 0
  %v204 = vsel %vm85, %v56, 0
  %v207 = vsel %vm85, %v57, 0
  %v210 = vsel %vm85, %v58, 0
  %v213 = vsel %vm85, %v59, 0
  %v216 = vsel %vm85, %v60, 0
  %v219 = vsel %vm85, %v61, 0
  %v222 = vsel %vm85, %v62, 0
  %v225 = vsel %vm85, %v63, 0
  %v228 = vsel %vm85, %v64, 0
  %v231 = vsel %vm85, %v65, 0
  %v234 = vsel %vm85, %v66, 0
  %v237 = vsel %vm85, %v67, 0
  %v240 = vsel %vm85, %v68, 0
  %v243 = vsel %vm85, %v69, 0
  %v246 = vsel %vm85, %v70, 0
  %v249 = vsel %vm85, %v71, 0
  %v252 = vsel %vm85, %v72, 0
  %v255 = vsel %vm85, %v73, 0
  %v258 = vsel %vm85, %v74, 0
  %v261 = vsel %vm85, %v75, 0
  %v264 = vsel %vm85, %v76, 0
  %v267 = vsel %vm85, %v77, 0
  %v270 = vsel %vm85, %v78, 0
  %v273 = vsel %vm85, %v79, 0
  %v276 = vsel %vm85, %v80, 0
  %278 = vmatprep.subr.mxu0 0.0
  %279 = vmatpush1.msra.mxu0 %v81
  %280 = vmatprep.subr.mxu0 0.0
  %281 = vmatpush1.msra.mxu0 %v82
  %282 = vmatprep.subr.mxu0 0.0
  %283 = vmatpush1.msra.mxu0 %v83
  %284 = vmatprep.subr.mxu0 0.0
  %285 = vmatpush1.msra.mxu0 %v84
  %286 = vmatprep.subr.mxu0 0.0
  %287 = vmatpush1.msra.mxu0 0.0
  %288 = vmatprep.subr.mxu0 0.0
  %289 = vmatpush1.msra.mxu0 0.0
  %290 = vmatprep.subr.mxu0 0.0
  %291 = vmatpush1.msra.mxu0 0.0
  %292 = vmatprep.subr.mxu0 0.0
  %293 = vmatpush1.msra.mxu0 0.0
  %294 = vmatprep.subr.mxu0 0.0
  %295 = vmatpush1.msra.mxu0 0.0
  %296 = vmatprep.subr.mxu0 0.0
  %297 = vmatpush1.msra.mxu0 0.0
  %298 = vmatprep.subr.mxu0 0.0
  %299 = vmatpush1.msra.mxu0 0.0
  %300 = vmatprep.subr.mxu0 0.0
  %301 = vmatpush1.msra.mxu0 0.0
  %302 = vmatprep.subr.mxu0 0.0
  %303 = vmatpush1.msra.mxu0 0.0
  %304 = vmatprep.subr.mxu0 0.0
  %305 = vmatpush1.msra.mxu0 0.0
  %306 = vmatprep.subr.mxu0 0.0
  %307 = vmatpush1.msra.mxu0 0.0
  %308 = vmatprep.subr.mxu0 0.0
  %309 = vmatpush1.msra.mxu0 0.0
  %310 = vmatprep.subr.mxu0 0.0
  %311 = vmatpush1.msra.mxu0 0.0
  %312 = vmatprep.subr.mxu0 0.0
  %313 = vmatpush1.msra.mxu0 0.0
  %314 = vmatprep.subr.mxu0 0.0
  %315 = vmatpush1.msra.mxu0 0.0
  %316 = vmatprep.subr.mxu0 0.0
  %317 = vmatpush1.msra.mxu0 0.0
  %318 = vmatprep.subr.mxu0 0.0
  %319 = vmatpush1.msra.mxu0 0.0
  %320 = vmatprep.subr.mxu0 0.0
  %321 = vmatpush1.msra.mxu0 0.0
  %322 = vmatprep.subr.mxu0 0.0
  %323 = vmatpush1.msra.mxu0 0.0
  %324 = vmatprep.subr.mxu0 0.0
  %325 = vmatpush1.msra.mxu0 0.0
  %326 = vmatprep.subr.mxu0 0.0
  %327 = vmatpush1.msra.mxu0 0.0
  %328 = vmatprep.subr.mxu0 0.0
  %329 = vmatpush1.msra.mxu0 0.0
  %330 = vmatprep.subr.mxu0 0.0
  %331 = vmatpush1.msra.mxu0 0.0
  %332 = vmatprep.subr.mxu0 0.0
  %333 = vmatpush1.msra.mxu0 0.0
  %334 = vmatprep.subr.mxu0 0.0
  %335 = vmatpush1.msra.mxu0 0.0
  %336 = vmatprep.subr.mxu0 0.0
  %337 = vmatpush1.msra.mxu0 0.0
  %338 = vmatprep.subr.mxu0 0.0
  %339 = vmatpush1.msra.mxu0 0.0
  %340 = vmatprep.subr.mxu0 0.0
  %341 = vmatpush1.msra.mxu0 0.0
  %342 = vmatprep.mubr.f32.mxu0 0.0
  %343 = vmatmul.mubr.f32.gmra.mrb[0].mxu0 %v87
  %v344 = vpop.f32.mrb[0].mxu0
  %v345 = vadd.f32 0.0, %v344
  %v346 = vpop.f32.mrb[0].mxu0
  %347 = vmatprep.mubr.f32.mxu0 0.0
  %348 = vmatmul.mubr.f32.gmra.mrb[0].mxu0 %v90
  %v349 = vpop.f32.mrb[0].mxu0
  %v350 = vadd.f32 0.0, %v349
  %v351 = vpop.f32.mrb[0].mxu0
  %352 = vmatprep.mubr.f32.mxu0 0.0
  %353 = vmatmul.mubr.f32.gmra.mrb[0].mxu0 %v93
  %v354 = vpop.f32.mrb[0].mxu0
  %v355 = vadd.f32 0.0, %v354
  %v356 = vpop.f32.mrb[0].mxu0
  %357 = vmatprep.mubr.f32.mxu0 0.0
  %358 = vmatmul.mubr.f32.gmra.mrb[0].mxu0 %v96
  %v359 = vpop.f32.mrb[0].mxu0
  %v360 = vadd.f32 0.0, %v359
  %v361 = vpop.f32.mrb[0].mxu0
  %362 = vmatprep.mubr.f32.mxu0 0.0
  %363 = vmatmul.mubr.f32.gmra.mrb[0].mxu0 %v99
  %v364 = vpop.f32.mrb[0].mxu0
  %v365 = vadd.f32 0.0, %v364
  %v366 = vpop.f32.mrb[0].mxu0
  %367 = vmatprep.mubr.f32.mxu0 0.0
  %368 = vmatmul.mubr.f32.gmra.mrb[0].mxu0 %v102
  %v369 = vpop.f32.mrb[0].mxu0
  %v370 = vadd.f32 0.0, %v369
  %v371 = vpop.f32.mrb[0].mxu0
  %372 = vmatprep.mubr.f32.mxu0 0.0
  %373 = vmatmul.mubr.f32.gmra.mrb[0].mxu0 %v105
  %v374 = vpop.f32.mrb[0].mxu0
  %v375 = vadd.f32 0.0, %v374
  %v376 = vpop.f32.mrb[0].mxu0
  %377 = vmatprep.mubr.f32.mxu0 0.0
  %378 = vmatmul.mubr.f32.gmra.mrb[0].mxu0 %v108
  %v379 = vpop.f32.mrb[0].mxu0
  %v380 = vadd.f32 0.0, %v379
  %v381 = vpop.f32.mrb[0].mxu0
  %382 = vmatprep.mubr.f32.mxu0 0.0
  %383 = vmatmul.mubr.f32.gmra.mrb[0].mxu0 %v111
  %v384 = vpop.f32.mrb[0].mxu0
  %v385 = vadd.f32 0.0, %v384
  %v386 = vpop.f32.mrb[0].mxu0
  %387 = vmatprep.mubr.f32.mxu0 0.0
  %388 = vmatmul.mubr.f32.gmra.mrb[0].mxu0 %v114
  %v389 = vpop.f32.mrb[0].mxu0
  %v390 = vadd.f32 0.0, %v389
  %v391 = vpop.f32.mrb[0].mxu0
  %392 = vmatprep.mubr.f32.mxu0 0.0
  %393 = vmatmul.mubr.f32.gmra.mrb[0].mxu0 %v117
  %v394 = vpop.f32.mrb[0].mxu0
  %v395 = vadd.f32 0.0, %v394
  %v396 = vpop.f32.mrb[0].mxu0
  %397 = vmatprep.mubr.f32.mxu0 0.0
  %398 = vmatmul.mubr.f32.gmra.mrb[0].mxu0 %v120
  %v399 = vpop.f32.mrb[0].mxu0
  %v400 = vadd.f32 0.0, %v399
  %v401 = vpop.f32.mrb[0].mxu0
  %402 = vmatprep.mubr.f32.mxu0 0.0
  %403 = vmatmul.mubr.f32.gmra.mrb[0].mxu0 %v123
  %v404 = vpop.f32.mrb[0].mxu0
  %v405 = vadd.f32 0.0, %v404
  %v406 = vpop.f32.mrb[0].mxu0
  %407 = vmatprep.mubr.f32.mxu0 0.0
  %408 = vmatmul.mubr.f32.gmra.mrb[0].mxu0 %v126
  %v409 = vpop.f32.mrb[0].mxu0
  %v410 = vadd.f32 0.0, %v409
  %v411 = vpop.f32.mrb[0].mxu0
  %412 = vmatprep.mubr.f32.mxu0 0.0
  %413 = vmatmul.mubr.f32.gmra.mrb[0].mxu0 %v129
  %v414 = vpop.f32.mrb[0].mxu0
  %v415 = vadd.f32 0.0, %v414
  %v416 = vpop.f32.mrb[0].mxu0
  %417 = vmatprep.mubr.f32.mxu0 0.0
  %418 = vmatmul.mubr.f32.gmra.mrb[0].mxu0 %v132
  %v419 = vpop.f32.mrb[0].mxu0
  %v420 = vadd.f32 0.0, %v419
  %v421 = vpop.f32.mrb[0].mxu0
  %422 = vmatprep.mubr.f32.mxu0 0.0
  %423 = vmatmul.mubr.f32.gmra.mrb[0].mxu0 %v135
  %v424 = vpop.f32.mrb[0].mxu0
  %v425 = vadd.f32 0.0, %v424
  %v426 = vpop.f32.mrb[0].mxu0
  %427 = vmatprep.mubr.f32.mxu0 0.0
  %428 = vmatmul.mubr.f32.gmra.mrb[0].mxu0 %v138
  %v429 = vpop.f32.mrb[0].mxu0
  %v430 = vadd.f32 0.0, %v429
  %v431 = vpop.f32.mrb[0].mxu0
  %432 = vmatprep.mubr.f32.mxu0 0.0
  %433 = vmatmul.mubr.f32.gmra.mrb[0].mxu0 %v141
  %v434 = vpop.f32.mrb[0].mxu0
  %v435 = vadd.f32 0.0, %v434
  %v436 = vpop.f32.mrb[0].mxu0
  %437 = vmatprep.mubr.f32.mxu0 0.0
  %438 = vmatmul.mubr.f32.gmra.mrb[0].mxu0 %v144
  %v439 = vpop.f32.mrb[0].mxu0
  %v440 = vadd.f32 0.0, %v439
  %v441 = vpop.f32.mrb[0].mxu0
  %442 = vmatprep.mubr.f32.mxu0 0.0
  %443 = vmatmul.mubr.f32.gmra.mrb[0].mxu0 %v147
  %v444 = vpop.f32.mrb[0].mxu0
  %v445 = vadd.f32 0.0, %v444
  %v446 = vpop.f32.mrb[0].mxu0
  %447 = vmatprep.mubr.f32.mxu0 0.0
  %448 = vmatmul.mubr.f32.gmra.mrb[0].mxu0 %v150
  %v449 = vpop.f32.mrb[0].mxu0
  %v450 = vadd.f32 0.0, %v449
  %v451 = vpop.f32.mrb[0].mxu0
  %452 = vmatprep.mubr.f32.mxu0 0.0
  %453 = vmatmul.mubr.f32.gmra.mrb[0].mxu0 %v153
  %v454 = vpop.f32.mrb[0].mxu0
  %v455 = vadd.f32 0.0, %v454
  %v456 = vpop.f32.mrb[0].mxu0
  %457 = vmatprep.mubr.f32.mxu0 0.0
  %458 = vmatmul.mubr.f32.gmra.mrb[0].mxu0 %v156
  %v459 = vpop.f32.mrb[0].mxu0
  %v460 = vadd.f32 0.0, %v459
  %v461 = vpop.f32.mrb[0].mxu0
  %462 = vmatprep.mubr.f32.mxu0 0.0
  %463 = vmatmul.mubr.f32.gmra.mrb[0].mxu0 %v159
  %v464 = vpop.f32.mrb[0].mxu0
  %v465 = vadd.f32 0.0, %v464
  %v466 = vpop.f32.mrb[0].mxu0
  %467 = vmatprep.mubr.f32.mxu0 0.0
  %468 = vmatmul.mubr.f32.gmra.mrb[0].mxu0 %v162
  %v469 = vpop.f32.mrb[0].mxu0
  %v470 = vadd.f32 0.0, %v469
  %v471 = vpop.f32.mrb[0].mxu0
  %472 = vmatprep.mubr.f32.mxu0 0.0
  %473 = vmatmul.mubr.f32.gmra.mrb[0].mxu0 %v165
  %v474 = vpop.f32.mrb[0].mxu0
  %v475 = vadd.f32 0.0, %v474
  %v476 = vpop.f32.mrb[0].mxu0
  %477 = vmatprep.mubr.f32.mxu0 0.0
  %478 = vmatmul.mubr.f32.gmra.mrb[0].mxu0 %v168
  %v479 = vpop.f32.mrb[0].mxu0
  %v480 = vadd.f32 0.0, %v479
  %v481 = vpop.f32.mrb[0].mxu0
  %482 = vmatprep.mubr.f32.mxu0 0.0
  %483 = vmatmul.mubr.f32.gmra.mrb[0].mxu0 %v171
  %v484 = vpop.f32.mrb[0].mxu0
  %v485 = vadd.f32 0.0, %v484
  %v486 = vpop.f32.mrb[0].mxu0
  %487 = vmatprep.mubr.f32.mxu0 0.0
  %488 = vmatmul.mubr.f32.gmra.mrb[0].mxu0 %v174
  %v489 = vpop.f32.mrb[0].mxu0
  %v490 = vadd.f32 0.0, %v489
  %v491 = vpop.f32.mrb[0].mxu0
  %492 = vmatprep.mubr.f32.mxu0 0.0
  %493 = vmatmul.mubr.f32.gmra.mrb[0].mxu0 %v177
  %v494 = vpop.f32.mrb[0].mxu0
  %v495 = vadd.f32 0.0, %v494
  %v496 = vpop.f32.mrb[0].mxu0
  %497 = vmatprep.mubr.f32.mxu0 0.0
  %498 = vmatmul.mubr.f32.gmra.mrb[0].mxu0 %v180
  %v499 = vpop.f32.mrb[0].mxu0
  %v500 = vadd.f32 0.0, %v499
  %v501 = vpop.f32.mrb[0].mxu0
  %502 = vmatprep.mubr.f32.mxu0 0.0
  %503 = vmatmul.mubr.f32.gmra.mrb[0].mxu0 %v183
  %v504 = vpop.f32.mrb[0].mxu0
  %v505 = vadd.f32 0.0, %v504
  %v506 = vpop.f32.mrb[0].mxu0
  %507 = vmatprep.mubr.f32.mxu0 0.0
  %508 = vmatmul.mubr.f32.gmra.mrb[0].mxu0 %v186
  %v509 = vpop.f32.mrb[0].mxu0
  %v510 = vadd.f32 0.0, %v509
  %v511 = vpop.f32.mrb[0].mxu0
  %512 = vmatprep.mubr.f32.mxu0 0.0
  %513 = vmatmul.mubr.f32.gmra.mrb[0].mxu0 %v189
  %v514 = vpop.f32.mrb[0].mxu0
  %v515 = vadd.f32 0.0, %v514
  %v516 = vpop.f32.mrb[0].mxu0
  %517 = vmatprep.mubr.f32.mxu0 0.0
  %518 = vmatmul.mubr.f32.gmra.mrb[0].mxu0 %v192
  %v519 = vpop.f32.mrb[0].mxu0
  %v520 = vadd.f32 0.0, %v519
  %v521 = vpop.f32.mrb[0].mxu0
  %522 = vmatprep.mubr.f32.mxu0 0.0
  %523 = vmatmul.mubr.f32.gmra.mrb[0].mxu0 %v195
  %v524 = vpop.f32.mrb[0].mxu0
  %v525 = vadd.f32 0.0, %v524
  %v526 = vpop.f32.mrb[0].mxu0
  %527 = vmatprep.mubr.f32.mxu0 0.0
  %528 = vmatmul.mubr.f32.gmra.mrb[0].mxu0 %v198
  %v529 = vpop.f32.mrb[0].mxu0
  %v530 = vadd.f32 0.0, %v529
  %v531 = vpop.f32.mrb[0].mxu0
  %532 = vmatprep.mubr.f32.mxu0 0.0
  %533 = vmatmul.mubr.f32.gmra.mrb[0].mxu0 %v201
  %v534 = vpop.f32.mrb[0].mxu0
  %v535 = vadd.f32 0.0, %v534
  %v536 = vpop.f32.mrb[0].mxu0
  %537 = vmatprep.mubr.f32.mxu0 0.0
  %538 = vmatmul.mubr.f32.gmra.mrb[0].mxu0 %v204
  %v539 = vpop.f32.mrb[0].mxu0
  %v540 = vadd.f32 0.0, %v539
  %v541 = vpop.f32.mrb[0].mxu0
  %542 = vmatprep.mubr.f32.mxu0 0.0
  %543 = vmatmul.mubr.f32.gmra.mrb[0].mxu0 %v207
  %v544 = vpop.f32.mrb[0].mxu0
  %v545 = vadd.f32 0.0, %v544
  %v546 = vpop.f32.mrb[0].mxu0
  %547 = vmatprep.mubr.f32.mxu0 0.0
  %548 = vmatmul.mubr.f32.gmra.mrb[0].mxu0 %v210
  %v549 = vpop.f32.mrb[0].mxu0
  %v550 = vadd.f32 0.0, %v549
  %v551 = vpop.f32.mrb[0].mxu0
  %552 = vmatprep.mubr.f32.mxu0 0.0
  %553 = vmatmul.mubr.f32.gmra.mrb[0].mxu0 %v213
  %v554 = vpop.f32.mrb[0].mxu0
  %v555 = vadd.f32 0.0, %v554
  %v556 = vpop.f32.mrb[0].mxu0
  %557 = vmatprep.mubr.f32.mxu0 0.0
  %558 = vmatmul.mubr.f32.gmra.mrb[0].mxu0 %v216
  %v559 = vpop.f32.mrb[0].mxu0
  %v560 = vadd.f32 0.0, %v559
  %v561 = vpop.f32.mrb[0].mxu0
  %562 = vmatprep.mubr.f32.mxu0 0.0
  %563 = vmatmul.mubr.f32.gmra.mrb[0].mxu0 %v219
  %v564 = vpop.f32.mrb[0].mxu0
  %v565 = vadd.f32 0.0, %v564
  %v566 = vpop.f32.mrb[0].mxu0
  %567 = vmatprep.mubr.f32.mxu0 0.0
  %568 = vmatmul.mubr.f32.gmra.mrb[0].mxu0 %v222
  %v569 = vpop.f32.mrb[0].mxu0
  %v570 = vadd.f32 0.0, %v569
  %v571 = vpop.f32.mrb[0].mxu0
  %572 = vmatprep.mubr.f32.mxu0 0.0
  %573 = vmatmul.mubr.f32.gmra.mrb[0].mxu0 %v225
  %v574 = vpop.f32.mrb[0].mxu0
  %v575 = vadd.f32 0.0, %v574
  %v576 = vpop.f32.mrb[0].mxu0
  %577 = vmatprep.mubr.f32.mxu0 0.0
  %578 = vmatmul.mubr.f32.gmra.mrb[0].mxu0 %v228
  %v579 = vpop.f32.mrb[0].mxu0
  %v580 = vadd.f32 0.0, %v579
  %v581 = vpop.f32.mrb[0].mxu0
  %582 = vmatprep.mubr.f32.mxu0 0.0
  %583 = vmatmul.mubr.f32.gmra.mrb[0].mxu0 %v231
  %v584 = vpop.f32.mrb[0].mxu0
  %v585 = vadd.f32 0.0, %v584
  %v586 = vpop.f32.mrb[0].mxu0
  %587 = vmatprep.mubr.f32.mxu0 0.0
  %588 = vmatmul.mubr.f32.gmra.mrb[0].mxu0 %v234
  %v589 = vpop.f32.mrb[0].mxu0
  %v590 = vadd.f32 0.0, %v589
  %v591 = vpop.f32.mrb[0].mxu0
  %592 = vmatprep.mubr.f32.mxu0 0.0
  %593 = vmatmul.mubr.f32.gmra.mrb[0].mxu0 %v237
  %v594 = vpop.f32.mrb[0].mxu0
  %v595 = vadd.f32 0.0, %v594
  %v596 = vpop.f32.mrb[0].mxu0
  %597 = vmatprep.mubr.f32.mxu0 0.0
  %598 = vmatmul.mubr.f32.gmra.mrb[0].mxu0 %v240
  %v599 = vpop.f32.mrb[0].mxu0
  %v600 = vadd.f32 0.0, %v599
  %v601 = vpop.f32.mrb[0].mxu0
  %602 = vmatprep.mubr.f32.mxu0 0.0
  %603 = vmatmul.mubr.f32.gmra.mrb[0].mxu0 %v243
  %v604 = vpop.f32.mrb[0].mxu0
  %v605 = vadd.f32 0.0, %v604
  %v606 = vpop.f32.mrb[0].mxu0
  %607 = vmatprep.mubr.f32.mxu0 0.0
  %608 = vmatmul.mubr.f32.gmra.mrb[0].mxu0 %v246
  %v609 = vpop.f32.mrb[0].mxu0
  %v610 = vadd.f32 0.0, %v609
  %v611 = vpop.f32.mrb[0].mxu0
  %612 = vmatprep.mubr.f32.mxu0 0.0
  %613 = vmatmul.mubr.f32.gmra.mrb[0].mxu0 %v249
  %v614 = vpop.f32.mrb[0].mxu0
  %v615 = vadd.f32 0.0, %v614
  %v616 = vpop.f32.mrb[0].mxu0
  %617 = vmatprep.mubr.f32.mxu0 0.0
  %618 = vmatmul.mubr.f32.gmra.mrb[0].mxu0 %v252
  %v619 = vpop.f32.mrb[0].mxu0
  %v620 = vadd.f32 0.0, %v619
  %v621 = vpop.f32.mrb[0].mxu0
  %622 = vmatprep.mubr.f32.mxu0 0.0
  %623 = vmatmul.mubr.f32.gmra.mrb[0].mxu0 %v255
  %v624 = vpop.f32.mrb[0].mxu0
  %v625 = vadd.f32 0.0, %v624
  %v626 = vpop.f32.mrb[0].mxu0
  %627 = vmatprep.mubr.f32.mxu0 0.0
  %628 = vmatmul.mubr.f32.gmra.mrb[0].mxu0 %v258
  %v629 = vpop.f32.mrb[0].mxu0
  %v630 = vadd.f32 0.0, %v629
  %v631 = vpop.f32.mrb[0].mxu0
  %632 = vmatprep.mubr.f32.mxu0 0.0
  %633 = vmatmul.mubr.f32.gmra.mrb[0].mxu0 %v261
  %v634 = vpop.f32.mrb[0].mxu0
  %v635 = vadd.f32 0.0, %v634
  %v636 = vpop.f32.mrb[0].mxu0
  %637 = vmatprep.mubr.f32.mxu0 0.0
  %638 = vmatmul.mubr.f32.gmra.mrb[0].mxu0 %v264
  %v639 = vpop.f32.mrb[0].mxu0
  %v640 = vadd.f32 0.0, %v639
  %v641 = vpop.f32.mrb[0].mxu0
  %642 = vmatprep.mubr.f32.mxu0 0.0
  %643 = vmatmul.mubr.f32.gmra.mrb[0].mxu0 %v267
  %v644 = vpop.f32.mrb[0].mxu0
  %v645 = vadd.f32 0.0, %v644
  %v646 = vpop.f32.mrb[0].mxu0
  %647 = vmatprep.mubr.f32.mxu0 0.0
  %648 = vmatmul.mubr.f32.gmra.mrb[0].mxu0 %v270
  %v649 = vpop.f32.mrb[0].mxu0
  %v650 = vadd.f32 0.0, %v649
  %v651 = vpop.f32.mrb[0].mxu0
  %652 = vmatprep.mubr.f32.mxu0 0.0
  %653 = vmatmul.mubr.f32.gmra.mrb[0].mxu0 %v273
  %v654 = vpop.f32.mrb[0].mxu0
  %v655 = vadd.f32 0.0, %v654
  %v656 = vpop.f32.mrb[0].mxu0
  %657 = vmatprep.mubr.f32.mxu0 0.0
  %658 = vmatmul.mubr.f32.gmra.mrb[0].mxu0 %v276
  %v659 = vpop.f32.mrb[0].mxu0
  %v660 = vadd.f32 0.0, %v659
  %v661 = vpop.f32.mrb[0].mxu0
  %662 = vdwg.mxu0
  %v663 = vld [vmem:[%s2] sm:$0x1]
  %v665 = vlaneseq
  %v666 = vshrl.u32 %v665, 7
  %v667 = vsub.s32 0, %v666
  %v668 = vrot.slane %v663, %v667
  %v670 = vmul.f32 %v345, %v668
  %v671 = vmul.f32 %v350, %v668
  %v672 = vmul.f32 %v355, %v668
  %v673 = vmul.f32 %v360, %v668
  %v674 = vmul.f32 %v365, %v668
  %v675 = vmul.f32 %v370, %v668
  %v676 = vmul.f32 %v375, %v668
  %v677 = vmul.f32 %v380, %v668
  %v678 = vmul.f32 %v385, %v668
  %v679 = vmul.f32 %v390, %v668
  %v680 = vmul.f32 %v395, %v668
  %v681 = vmul.f32 %v400, %v668
  %v682 = vmul.f32 %v405, %v668
  %v683 = vmul.f32 %v410, %v668
  %v684 = vmul.f32 %v415, %v668
  %v685 = vmul.f32 %v420, %v668
  %v686 = vmul.f32 %v425, %v668
  %v687 = vmul.f32 %v430, %v668
  %v688 = vmul.f32 %v435, %v668
  %v689 = vmul.f32 %v440, %v668
  %v690 = vmul.f32 %v445, %v668
  %v691 = vmul.f32 %v450, %v668
  %v692 = vmul.f32 %v455, %v668
  %v693 = vmul.f32 %v460, %v668
  %v694 = vmul.f32 %v465, %v668
  %v695 = vmul.f32 %v470, %v668
  %v696 = vmul.f32 %v475, %v668
  %v697 = vmul.f32 %v480, %v668
  %v698 = vmul.f32 %v485, %v668
  %v699 = vmul.f32 %v490, %v668
  %v700 = vmul.f32 %v495, %v668
  %v701 = vmul.f32 %v500, %v668
  %v702 = vmul.f32 %v505, %v668
  %v703 = vmul.f32 %v510, %v668
  %v704 = vmul.f32 %v515, %v668
  %v705 = vmul.f32 %v520, %v668
  %v706 = vmul.f32 %v525, %v668
  %v707 = vmul.f32 %v530, %v668
  %v708 = vmul.f32 %v535, %v668
  %v709 = vmul.f32 %v540, %v668
  %v710 = vmul.f32 %v545, %v668
  %v711 = vmul.f32 %v550, %v668
  %v712 = vmul.f32 %v555, %v668
  %v713 = vmul.f32 %v560, %v668
  %v714 = vmul.f32 %v565, %v668
  %v715 = vmul.f32 %v570, %v668
  %v716 = vmul.f32 %v575, %v668
  %v717 = vmul.f32 %v580, %v668
  %v718 = vmul.f32 %v585, %v668
  %v719 = vmul.f32 %v590, %v668
  %v720 = vmul.f32 %v595, %v668
  %v721 = vmul.f32 %v600, %v668
  %v722 = vmul.f32 %v605, %v668
  %v723 = vmul.f32 %v610, %v668
  %v724 = vmul.f32 %v615, %v668
  %v725 = vmul.f32 %v620, %v668
  %v726 = vmul.f32 %v625, %v668
  %v727 = vmul.f32 %v630, %v668
  %v728 = vmul.f32 %v635, %v668
  %v729 = vmul.f32 %v640, %v668
  %v730 = vmul.f32 %v645, %v668
  %v731 = vmul.f32 %v650, %v668
  %v732 = vmul.f32 %v655, %v668
  %v733 = vmul.f32 %v660, %v668
  %v734 = vld [vmem:[%s3] sm:$0x1]
  %v736 = vlaneseq
  %v737 = vshrl.u32 %v736, 7
  %v738 = vsub.s32 0, %v737
  %v739 = vrot.slane %v734, %v738
  %v741 = vadd.f32 %v670, %v739
  %v742 = vadd.f32 %v671, %v739
  %v743 = vadd.f32 %v672, %v739
  %v744 = vadd.f32 %v673, %v739
  %v745 = vadd.f32 %v674, %v739
  %v746 = vadd.f32 %v675, %v739
  %v747 = vadd.f32 %v676, %v739
  %v748 = vadd.f32 %v677, %v739
  %v749 = vadd.f32 %v678, %v739
  %v750 = vadd.f32 %v679, %v739
  %v751 = vadd.f32 %v680, %v739
  %v752 = vadd.f32 %v681, %v739
  %v753 = vadd.f32 %v682, %v739
  %v754 = vadd.f32 %v683, %v739
  %v755 = vadd.f32 %v684, %v739
  %v756 = vadd.f32 %v685, %v739
  %v757 = vadd.f32 %v686, %v739
  %v758 = vadd.f32 %v687, %v739
  %v759 = vadd.f32 %v688, %v739
  %v760 = vadd.f32 %v689, %v739
  %v761 = vadd.f32 %v690, %v739
  %v762 = vadd.f32 %v691, %v739
  %v763 = vadd.f32 %v692, %v739
  %v764 = vadd.f32 %v693, %v739
  %v765 = vadd.f32 %v694, %v739
  %v766 = vadd.f32 %v695, %v739
  %v767 = vadd.f32 %v696, %v739
  %v768 = vadd.f32 %v697, %v739
  %v769 = vadd.f32 %v698, %v739
  %v770 = vadd.f32 %v699, %v739
  %v771 = vadd.f32 %v700, %v739
  %v772 = vadd.f32 %v701, %v739
  %v773 = vadd.f32 %v702, %v739
  %v774 = vadd.f32 %v703, %v739
  %v775 = vadd.f32 %v704, %v739
  %v776 = vadd.f32 %v705, %v739
  %v777 = vadd.f32 %v706, %v739
  %v778 = vadd.f32 %v707, %v739
  %v779 = vadd.f32 %v708, %v739
  %v780 = vadd.f32 %v709, %v739
  %v781 = vadd.f32 %v710, %v739
  %v782 = vadd.f32 %v711, %v739
  %v783 = vadd.f32 %v712, %v739
  %v784 = vadd.f32 %v713, %v739
  %v785 = vadd.f32 %v714, %v739
  %v786 = vadd.f32 %v715, %v739
  %v787 = vadd.f32 %v716, %v739
  %v788 = vadd.f32 %v717, %v739
  %v789 = vadd.f32 %v718, %v739
  %v790 = vadd.f32 %v719, %v739
  %v791 = vadd.f32 %v720, %v739
  %v792 = vadd.f32 %v721, %v739
  %v793 = vadd.f32 %v722, %v739
  %v794 = vadd.f32 %v723, %v739
  %v795 = vadd.f32 %v724, %v739
  %v796 = vadd.f32 %v725, %v739
  %v797 = vadd.f32 %v726, %v739
  %v798 = vadd.f32 %v727, %v739
  %v799 = vadd.f32 %v728, %v739
  %v800 = vadd.f32 %v729, %v739
  %v801 = vadd.f32 %v730, %v739
  %v802 = vadd.f32 %v731, %v739
  %v803 = vadd.f32 %v732, %v739
  %v804 = vadd.f32 %v733, %v739
  %805 = vst [vmem:[%s4] sm:$0xff] %v741
  %806 = vst [vmem:[%s4 + $0x8] sm:$0xff] %v742
  %807 = vst [vmem:[%s4 + $0x10] sm:$0xff] %v743
  %808 = vst [vmem:[%s4 + $0x18] sm:$0xff] %v744
  %809 = vst [vmem:[%s4 + $0x20] sm:$0xff] %v745
  %810 = vst [vmem:[%s4 + $0x28] sm:$0xff] %v746
  %811 = vst [vmem:[%s4 + $0x30] sm:$0xff] %v747
  %812 = vst [vmem:[%s4 + $0x38] sm:$0xff] %v748
  %813 = vst [vmem:[%s4 + $0x40] sm:$0xff] %v749
  %814 = vst [vmem:[%s4 + $0x48] sm:$0xff] %v750
  %815 = vst [vmem:[%s4 + $0x50] sm:$0xff] %v751
  %816 = vst [vmem:[%s4 + $0x58] sm:$0xff] %v752
  %817 = vst [vmem:[%s4 + $0x60] sm:$0xff] %v753
  %818 = vst [vmem:[%s4 + $0x68] sm:$0xff] %v754
  %819 = vst [vmem:[%s4 + $0x70] sm:$0xff] %v755
  %820 = vst [vmem:[%s4 + $0x78] sm:$0xff] %v756
  %821 = vst [vmem:[%s4 + $0x80] sm:$0xff] %v757
  %822 = vst [vmem:[%s4 + $0x88] sm:$0xff] %v758
  %823 = vst [vmem:[%s4 + $0x90] sm:$0xff] %v759
  %824 = vst [vmem:[%s4 + $0x98] sm:$0xff] %v760
  %825 = vst [vmem:[%s4 + $0xa0] sm:$0xff] %v761
  %826 = vst [vmem:[%s4 + $0xa8] sm:$0xff] %v762
  %827 = vst [vmem:[%s4 + $0xb0] sm:$0xff] %v763
  %828 = vst [vmem:[%s4 + $0xb8] sm:$0xff] %v764
  %829 = vst [vmem:[%s4 + $0xc0] sm:$0xff] %v765
  %830 = vst [vmem:[%s4 + $0xc8] sm:$0xff] %v766
  %831 = vst [vmem:[%s4 + $0xd0] sm:$0xff] %v767
  %832 = vst [vmem:[%s4 + $0xd8] sm:$0xff] %v768
  %833 = vst [vmem:[%s4 + $0xe0] sm:$0xff] %v769
  %834 = vst [vmem:[%s4 + $0xe8] sm:$0xff] %v770
  %835 = vst [vmem:[%s4 + $0xf0] sm:$0xff] %v771
  %836 = vst [vmem:[%s4 + $0xf8] sm:$0xff] %v772
  %837 = vst [vmem:[%s4 + $0x100] sm:$0xff] %v773
  %838 = vst [vmem:[%s4 + $0x108] sm:$0xff] %v774
  %839 = vst [vmem:[%s4 + $0x110] sm:$0xff] %v775
  %840 = vst [vmem:[%s4 + $0x118] sm:$0xff] %v776
  %841 = vst [vmem:[%s4 + $0x120] sm:$0xff] %v777
  %842 = vst [vmem:[%s4 + $0x128] sm:$0xff] %v778
  %843 = vst [vmem:[%s4 + $0x130] sm:$0xff] %v779
  %844 = vst [vmem:[%s4 + $0x138] sm:$0xff] %v780
  %845 = vst [vmem:[%s4 + $0x140] sm:$0xff] %v781
  %846 = vst [vmem:[%s4 + $0x148] sm:$0xff] %v782
  %847 = vst [vmem:[%s4 + $0x150] sm:$0xff] %v783
  %848 = vst [vmem:[%s4 + $0x158] sm:$0xff] %v784
  %849 = vst [vmem:[%s4 + $0x160] sm:$0xff] %v785
  %850 = vst [vmem:[%s4 + $0x168] sm:$0xff] %v786
  %851 = vst [vmem:[%s4 + $0x170] sm:$0xff] %v787
  %852 = vst [vmem:[%s4 + $0x178] sm:$0xff] %v788
  %853 = vst [vmem:[%s4 + $0x180] sm:$0xff] %v789
  %854 = vst [vmem:[%s4 + $0x188] sm:$0xff] %v790
  %855 = vst [vmem:[%s4 + $0x190] sm:$0xff] %v791
  %856 = vst [vmem:[%s4 + $0x198] sm:$0xff] %v792
  %857 = vst [vmem:[%s4 + $0x1a0] sm:$0xff] %v793
  %858 = vst [vmem:[%s4 + $0x1a8] sm:$0xff] %v794
  %859 = vst [vmem:[%s4 + $0x1b0] sm:$0xff] %v795
  %860 = vst [vmem:[%s4 + $0x1b8] sm:$0xff] %v796
  %861 = vst [vmem:[%s4 + $0x1c0] sm:$0xff] %v797
  %862 = vst [vmem:[%s4 + $0x1c8] sm:$0xff] %v798
  %863 = vst [vmem:[%s4 + $0x1d0] sm:$0xff] %v799
  %864 = vst [vmem:[%s4 + $0x1d8] sm:$0xff] %v800
  %865 = vst [vmem:[%s4 + $0x1e0] sm:$0xff] %v801
  %866 = vst [vmem:[%s4 + $0x1e8] sm:$0xff] %v802
  %867 = vst [vmem:[%s4 + $0x1f0] sm:$0xff] %v803
  %868 = vst [vmem:[%s4 + $0x1f8] sm:$0xff] %v804
  // Predicated region
  $region18: #{bottleneck_forward.10} parent=0 // pred_check
    _
  $region19: #{bottleneck_forward.10} parent=0 // pred_check_branch
    %870 = sbr.rel (0) target = $region21
  $region20: #{bottleneck_forward.10} parent=0 // pred_region
    _
  $region21: #{bottleneck_forward.10} parent=0 // pred_fallthru
    _
  // Predicated region
  $region22: #{bottleneck_forward.10} parent=0 // pred_check
    _
  $region23: #{bottleneck_forward.10} parent=0 // pred_check_branch
    %872 = sbr.rel (0) target = $region25
  $region24: #{bottleneck_forward.10} parent=0 // pred_region
    _
  $region25: #{bottleneck_forward.10} parent=0 // pred_fallthru
    _

// kernel: bottleneck_forward.11
$region0: #{bottleneck_forward.11}
  #allocation0 [shape = 'u32[]', space=smem, size = 0x4, offset = 0x4, fixed_abs, tag = 'smem constant byte address 0x4 - core index']
  #allocation1 [shape = 'u32[144,128]{1,0:T(1,128)}', space=vmem, size = 0x12000, scoped, tag = 'internal scratch']
  %s0 = inlined_call_operand.vmem [shape: f32[2,256,128], index: 0, kind: input, shape index: {}, may-alias: {0,3}]
  %s1 = inlined_call_operand.vmem [shape: f32[128,8], index: 1, kind: input, shape index: {}]
  %s2 = inlined_call_operand.vmem [shape: f32[8,128], index: 2, kind: input, shape index: {}]
  %s3 = inlined_call_operand.vmem [shape: f32[2,256,128], index: 3, kind: output, shape index: {}, may-alias: {0,3}]
  %s4 = sld [smem:[#allocation0]]
  $region22: #{bottleneck_forward.11} parent=0
    _
  %s6 = ssub.s32 1, %s4
  %s7 = scalar_select 0, %s6, %s4
  // Predicated region
  $region2: #{bottleneck_forward.11} parent=0 // pred_check
    _
  $region3: #{bottleneck_forward.11} parent=0 // pred_check_branch
    %9 = sbr.rel (0) target = $region5
  $region4: #{bottleneck_forward.11} parent=0 // pred_region
    _
  $region5: #{bottleneck_forward.11} parent=0 // pred_fallthru
    _
  // Predicated region
  $region6: #{bottleneck_forward.11} parent=0 // pred_check
    _
  $region7: #{bottleneck_forward.11} parent=0 // pred_check_branch
    %11 = sbr.rel (0) target = $region9
  $region8: #{bottleneck_forward.11} parent=0 // pred_region
    _
  $region9: #{bottleneck_forward.11} parent=0 // pred_fallthru
    _
  // Predicated region
  $region10: #{bottleneck_forward.11} parent=0 // pred_check
    _
  $region11: #{bottleneck_forward.11} parent=0 // pred_check_branch
    %13 = sbr.rel (0) target = $region13
  $region12: #{bottleneck_forward.11} parent=0 // pred_region
    _
  $region13: #{bottleneck_forward.11} parent=0 // pred_fallthru
    _
  %v14 = vld [vmem:[%s0] sm:$0xff]
  %v15 = vld [vmem:[%s0 + $0x8] sm:$0xff]
  %v16 = vld [vmem:[%s0 + $0x10] sm:$0xff]
  %v17 = vld [vmem:[%s0 + $0x18] sm:$0xff]
  %v18 = vld [vmem:[%s0 + $0x20] sm:$0xff]
  %v19 = vld [vmem:[%s0 + $0x28] sm:$0xff]
  %v20 = vld [vmem:[%s0 + $0x30] sm:$0xff]
  %v21 = vld [vmem:[%s0 + $0x38] sm:$0xff]
  %v22 = vld [vmem:[%s0 + $0x40] sm:$0xff]
  %v23 = vld [vmem:[%s0 + $0x48] sm:$0xff]
  %v24 = vld [vmem:[%s0 + $0x50] sm:$0xff]
  %v25 = vld [vmem:[%s0 + $0x58] sm:$0xff]
  %v26 = vld [vmem:[%s0 + $0x60] sm:$0xff]
  %v27 = vld [vmem:[%s0 + $0x68] sm:$0xff]
  %v28 = vld [vmem:[%s0 + $0x70] sm:$0xff]
  %v29 = vld [vmem:[%s0 + $0x78] sm:$0xff]
  %v30 = vld [vmem:[%s0 + $0x80] sm:$0xff]
  %v31 = vld [vmem:[%s0 + $0x88] sm:$0xff]
  %v32 = vld [vmem:[%s0 + $0x90] sm:$0xff]
  %v33 = vld [vmem:[%s0 + $0x98] sm:$0xff]
  %v34 = vld [vmem:[%s0 + $0xa0] sm:$0xff]
  %v35 = vld [vmem:[%s0 + $0xa8] sm:$0xff]
  %v36 = vld [vmem:[%s0 + $0xb0] sm:$0xff]
  %v37 = vld [vmem:[%s0 + $0xb8] sm:$0xff]
  %v38 = vld [vmem:[%s0 + $0xc0] sm:$0xff]
  %v39 = vld [vmem:[%s0 + $0xc8] sm:$0xff]
  %v40 = vld [vmem:[%s0 + $0xd0] sm:$0xff]
  %v41 = vld [vmem:[%s0 + $0xd8] sm:$0xff]
  %v42 = vld [vmem:[%s0 + $0xe0] sm:$0xff]
  %v43 = vld [vmem:[%s0 + $0xe8] sm:$0xff]
  %v44 = vld [vmem:[%s0 + $0xf0] sm:$0xff]
  %v45 = vld [vmem:[%s0 + $0xf8] sm:$0xff]
  %v46 = vld [vmem:[%s0 + $0x100] sm:$0xff]
  %v47 = vld [vmem:[%s0 + $0x108] sm:$0xff]
  %v48 = vld [vmem:[%s0 + $0x110] sm:$0xff]
  %v49 = vld [vmem:[%s0 + $0x118] sm:$0xff]
  %v50 = vld [vmem:[%s0 + $0x120] sm:$0xff]
  %v51 = vld [vmem:[%s0 + $0x128] sm:$0xff]
  %v52 = vld [vmem:[%s0 + $0x130] sm:$0xff]
  %v53 = vld [vmem:[%s0 + $0x138] sm:$0xff]
  %v54 = vld [vmem:[%s0 + $0x140] sm:$0xff]
  %v55 = vld [vmem:[%s0 + $0x148] sm:$0xff]
  %v56 = vld [vmem:[%s0 + $0x150] sm:$0xff]
  %v57 = vld [vmem:[%s0 + $0x158] sm:$0xff]
  %v58 = vld [vmem:[%s0 + $0x160] sm:$0xff]
  %v59 = vld [vmem:[%s0 + $0x168] sm:$0xff]
  %v60 = vld [vmem:[%s0 + $0x170] sm:$0xff]
  %v61 = vld [vmem:[%s0 + $0x178] sm:$0xff]
  %v62 = vld [vmem:[%s0 + $0x180] sm:$0xff]
  %v63 = vld [vmem:[%s0 + $0x188] sm:$0xff]
  %v64 = vld [vmem:[%s0 + $0x190] sm:$0xff]
  %v65 = vld [vmem:[%s0 + $0x198] sm:$0xff]
  %v66 = vld [vmem:[%s0 + $0x1a0] sm:$0xff]
  %v67 = vld [vmem:[%s0 + $0x1a8] sm:$0xff]
  %v68 = vld [vmem:[%s0 + $0x1b0] sm:$0xff]
  %v69 = vld [vmem:[%s0 + $0x1b8] sm:$0xff]
  %v70 = vld [vmem:[%s0 + $0x1c0] sm:$0xff]
  %v71 = vld [vmem:[%s0 + $0x1c8] sm:$0xff]
  %v72 = vld [vmem:[%s0 + $0x1d0] sm:$0xff]
  %v73 = vld [vmem:[%s0 + $0x1d8] sm:$0xff]
  %v74 = vld [vmem:[%s0 + $0x1e0] sm:$0xff]
  %v75 = vld [vmem:[%s0 + $0x1e8] sm:$0xff]
  %v76 = vld [vmem:[%s0 + $0x1f0] sm:$0xff]
  %v77 = vld [vmem:[%s0 + $0x1f8] sm:$0xff]
  %v78 = vld [vmem:[%s1] sm:$0xff]
  %v79 = vld [vmem:[%s1 + $0x8] sm:$0xff]
  %v80 = vld [vmem:[%s1 + $0x10] sm:$0xff]
  %v81 = vld [vmem:[%s1 + $0x18] sm:$0xff]
  %v82 = vld [vmem:[%s1 + $0x20] sm:$0xff]
  %v83 = vld [vmem:[%s1 + $0x28] sm:$0xff]
  %v84 = vld [vmem:[%s1 + $0x30] sm:$0xff]
  %v85 = vld [vmem:[%s1 + $0x38] sm:$0xff]
  %v86 = vld [vmem:[%s1 + $0x40] sm:$0xff]
  %v87 = vld [vmem:[%s1 + $0x48] sm:$0xff]
  %v88 = vld [vmem:[%s1 + $0x50] sm:$0xff]
  %v89 = vld [vmem:[%s1 + $0x58] sm:$0xff]
  %v90 = vld [vmem:[%s1 + $0x60] sm:$0xff]
  %v91 = vld [vmem:[%s1 + $0x68] sm:$0xff]
  %v92 = vld [vmem:[%s1 + $0x70] sm:$0xff]
  %v93 = vld [vmem:[%s1 + $0x78] sm:$0xff]
  %v94 = vld [vmem:[%s2] sm:$0xff]
  %v95 = vadd.f32 %v14, %v15
  %v96 = vadd.f32 %v95, %v16
  %v97 = vadd.f32 %v96, %v17
  %v98 = vadd.f32 %v97, %v18
  %v99 = vadd.f32 %v98, %v19
  %v100 = vadd.f32 %v99, %v20
  %v101 = vadd.f32 %v100, %v21
  %v102 = vadd.f32 %v101, %v22
  %v103 = vadd.f32 %v102, %v23
  %v104 = vadd.f32 %v103, %v24
  %v105 = vadd.f32 %v104, %v25
  %v106 = vadd.f32 %v105, %v26
  %v107 = vadd.f32 %v106, %v27
  %v108 = vadd.f32 %v107, %v28
  %v109 = vadd.f32 %v108, %v29
  %v110 = vadd.f32 %v109, %v30
  %v111 = vadd.f32 %v110, %v31
  %v112 = vadd.f32 %v111, %v32
  %v113 = vadd.f32 %v112, %v33
  %v114 = vadd.f32 %v113, %v34
  %v115 = vadd.f32 %v114, %v35
  %v116 = vadd.f32 %v115, %v36
  %v117 = vadd.f32 %v116, %v37
  %v118 = vadd.f32 %v117, %v38
  %v119 = vadd.f32 %v118, %v39
  %v120 = vadd.f32 %v119, %v40
  %v121 = vadd.f32 %v120, %v41
  %v122 = vadd.f32 %v121, %v42
  %v123 = vadd.f32 %v122, %v43
  %v124 = vadd.f32 %v123, %v44
  %v125 = vadd.f32 %v124, %v45
  %v126 = vrot.slane %v125, 4
  %v127 = vadd.f32 %v125, %v126
  %v128 = vrot.slane %v127, 2
  %v129 = vadd.f32 %v127, %v128
  %v130 = vrot.slane %v129, 1
  %v131 = vadd.f32 %v129, %v130
  %v132 = vadd.f32 %v46, %v47
  %v133 = vadd.f32 %v132, %v48
  %v134 = vadd.f32 %v133, %v49
  %v135 = vadd.f32 %v134, %v50
  %v136 = vadd.f32 %v135, %v51
  %v137 = vadd.f32 %v136, %v52
  %v138 = vadd.f32 %v137, %v53
  %v139 = vadd.f32 %v138, %v54
  %v140 = vadd.f32 %v139, %v55
  %v141 = vadd.f32 %v140, %v56
  %v142 = vadd.f32 %v141, %v57
  %v143 = vadd.f32 %v142, %v58
  %v144 = vadd.f32 %v143, %v59
  %v145 = vadd.f32 %v144, %v60
  %v146 = vadd.f32 %v145, %v61
  %v147 = vadd.f32 %v146, %v62
  %v148 = vadd.f32 %v147, %v63
  %v149 = vadd.f32 %v148, %v64
  %v150 = vadd.f32 %v149, %v65
  %v151 = vadd.f32 %v150, %v66
  %v152 = vadd.f32 %v151, %v67
  %v153 = vadd.f32 %v152, %v68
  %v154 = vadd.f32 %v153, %v69
  %v155 = vadd.f32 %v154, %v70
  %v156 = vadd.f32 %v155, %v71
  %v157 = vadd.f32 %v156, %v72
  %v158 = vadd.f32 %v157, %v73
  %v159 = vadd.f32 %v158, %v74
  %v160 = vadd.f32 %v159, %v75
  %v161 = vadd.f32 %v160, %v76
  %v162 = vadd.f32 %v161, %v77
  %v163 = vrot.slane %v162, 4
  %v164 = vadd.f32 %v162, %v163
  %v165 = vrot.slane %v164, 2
  %v166 = vadd.f32 %v164, %v165
  %v167 = vrot.slane %v166, 1
  %v168 = vadd.f32 %v166, %v167
  %v169 = vrcp.pop 256.0
  %v170 = vmul.f32 %v131, %v169
  %v171 = vmul.f32 %v168, %v169
  %vm174 = vcmask 1041409
  %v175 = vsel %vm174, %v171, %v170
  %177 = vmatprep.subr.mxu0 0.0
  %178 = vmatpush1.msra.mxu0 %v78
  %179 = vmatprep.subr.mxu0 0.0
  %180 = vmatpush1.msra.mxu0 %v79
  %181 = vmatprep.subr.mxu0 0.0
  %182 = vmatpush1.msra.mxu0 %v80
  %183 = vmatprep.subr.mxu0 0.0
  %184 = vmatpush1.msra.mxu0 %v81
  %185 = vmatprep.subr.mxu0 0.0
  %186 = vmatpush1.msra.mxu0 %v82
  %187 = vmatprep.subr.mxu0 0.0
  %188 = vmatpush1.msra.mxu0 %v83
  %189 = vmatprep.subr.mxu0 0.0
  %190 = vmatpush1.msra.mxu0 %v84
  %191 = vmatprep.subr.mxu0 0.0
  %192 = vmatpush1.msra.mxu0 %v85
  %193 = vmatprep.subr.mxu0 0.0
  %194 = vmatpush1.msra.mxu0 %v86
  %195 = vmatprep.subr.mxu0 0.0
  %196 = vmatpush1.msra.mxu0 %v87
  %197 = vmatprep.subr.mxu0 0.0
  %198 = vmatpush1.msra.mxu0 %v88
  %199 = vmatprep.subr.mxu0 0.0
  %200 = vmatpush1.msra.mxu0 %v89
  %201 = vmatprep.subr.mxu0 0.0
  %202 = vmatpush1.msra.mxu0 %v90
  %203 = vmatprep.subr.mxu0 0.0
  %204 = vmatpush1.msra.mxu0 %v91
  %205 = vmatprep.subr.mxu0 0.0
  %206 = vmatpush1.msra.mxu0 %v92
  %207 = vmatprep.subr.mxu0 0.0
  %208 = vmatpush1.msra.mxu0 %v93
  %209 = vmatprep.subr.mxu0 0.0
  %210 = vmatpush1.msra.mxu0 0.0
  %211 = vmatprep.subr.mxu0 0.0
  %212 = vmatpush1.msra.mxu0 0.0
  %213 = vmatprep.subr.mxu0 0.0
  %214 = vmatpush1.msra.mxu0 0.0
  %215 = vmatprep.subr.mxu0 0.0
  %216 = vmatpush1.msra.mxu0 0.0
  %217 = vmatprep.subr.mxu0 0.0
  %218 = vmatpush1.msra.mxu0 0.0
  %219 = vmatprep.subr.mxu0 0.0
  %220 = vmatpush1.msra.mxu0 0.0
  %221 = vmatprep.subr.mxu0 0.0
  %222 = vmatpush1.msra.mxu0 0.0
  %223 = vmatprep.subr.mxu0 0.0
  %224 = vmatpush1.msra.mxu0 0.0
  %225 = vmatprep.subr.mxu0 0.0
  %226 = vmatpush1.msra.mxu0 0.0
  %227 = vmatprep.subr.mxu0 0.0
  %228 = vmatpush1.msra.mxu0 0.0
  %229 = vmatprep.subr.mxu0 0.0
  %230 = vmatpush1.msra.mxu0 0.0
  %231 = vmatprep.subr.mxu0 0.0
  %232 = vmatpush1.msra.mxu0 0.0
  %233 = vmatprep.subr.mxu0 0.0
  %234 = vmatpush1.msra.mxu0 0.0
  %235 = vmatprep.subr.mxu0 0.0
  %236 = vmatpush1.msra.mxu0 0.0
  %237 = vmatprep.subr.mxu0 0.0
  %238 = vmatpush1.msra.mxu0 0.0
  %239 = vmatprep.subr.mxu0 0.0
  %240 = vmatpush1.msra.mxu0 0.0
  %241 = vmatprep.mubr.f32.mxu0 0.0
  %242 = vmatmul.mubr.f32.gmra.mrb[0].mxu0 %v175
  %v243 = vpop.f32.mrb[0].mxu0
  %v244 = vadd.f32 0.0, %v243
  %v245 = vpop.f32.mrb[0].mxu0
  %246 = vdwg.mxu0
  %v247 = vmax.f32 %v244, 0.0
  %vm248 = vcmask 64512
  %v250 = vsel %vm248, %v247, 0
  %252 = vmatprep.subr.mxu0 0.0
  %253 = vmatpush1.msra.mxu0 %v94
  %254 = vmatprep.subr.mxu0 0.0
  %255 = vmatpush1.msra.mxu0 0.0
  %256 = vmatprep.subr.mxu0 0.0
  %257 = vmatpush1.msra.mxu0 0.0
  %258 = vmatprep.subr.mxu0 0.0
  %259 = vmatpush1.msra.mxu0 0.0
  %260 = vmatprep.subr.mxu0 0.0
  %261 = vmatpush1.msra.mxu0 0.0
  %262 = vmatprep.subr.mxu0 0.0
  %263 = vmatpush1.msra.mxu0 0.0
  %264 = vmatprep.subr.mxu0 0.0
  %265 = vmatpush1.msra.mxu0 0.0
  %266 = vmatprep.subr.mxu0 0.0
  %267 = vmatpush1.msra.mxu0 0.0
  %268 = vmatprep.subr.mxu0 0.0
  %269 = vmatpush1.msra.mxu0 0.0
  %270 = vmatprep.subr.mxu0 0.0
  %271 = vmatpush1.msra.mxu0 0.0
  %272 = vmatprep.subr.mxu0 0.0
  %273 = vmatpush1.msra.mxu0 0.0
  %274 = vmatprep.subr.mxu0 0.0
  %275 = vmatpush1.msra.mxu0 0.0
  %276 = vmatprep.subr.mxu0 0.0
  %277 = vmatpush1.msra.mxu0 0.0
  %278 = vmatprep.subr.mxu0 0.0
  %279 = vmatpush1.msra.mxu0 0.0
  %280 = vmatprep.subr.mxu0 0.0
  %281 = vmatpush1.msra.mxu0 0.0
  %282 = vmatprep.subr.mxu0 0.0
  %283 = vmatpush1.msra.mxu0 0.0
  %284 = vmatprep.subr.mxu0 0.0
  %285 = vmatpush1.msra.mxu0 0.0
  %286 = vmatprep.subr.mxu0 0.0
  %287 = vmatpush1.msra.mxu0 0.0
  %288 = vmatprep.subr.mxu0 0.0
  %289 = vmatpush1.msra.mxu0 0.0
  %290 = vmatprep.subr.mxu0 0.0
  %291 = vmatpush1.msra.mxu0 0.0
  %292 = vmatprep.subr.mxu0 0.0
  %293 = vmatpush1.msra.mxu0 0.0
  %294 = vmatprep.subr.mxu0 0.0
  %295 = vmatpush1.msra.mxu0 0.0
  %296 = vmatprep.subr.mxu0 0.0
  %297 = vmatpush1.msra.mxu0 0.0
  %298 = vmatprep.subr.mxu0 0.0
  %299 = vmatpush1.msra.mxu0 0.0
  %300 = vmatprep.subr.mxu0 0.0
  %301 = vmatpush1.msra.mxu0 0.0
  %302 = vmatprep.subr.mxu0 0.0
  %303 = vmatpush1.msra.mxu0 0.0
  %304 = vmatprep.subr.mxu0 0.0
  %305 = vmatpush1.msra.mxu0 0.0
  %306 = vmatprep.subr.mxu0 0.0
  %307 = vmatpush1.msra.mxu0 0.0
  %308 = vmatprep.subr.mxu0 0.0
  %309 = vmatpush1.msra.mxu0 0.0
  %310 = vmatprep.subr.mxu0 0.0
  %311 = vmatpush1.msra.mxu0 0.0
  %312 = vmatprep.subr.mxu0 0.0
  %313 = vmatpush1.msra.mxu0 0.0
  %314 = vmatprep.subr.mxu0 0.0
  %315 = vmatpush1.msra.mxu0 0.0
  %316 = vmatprep.mubr.f32.mxu0 0.0
  %317 = vmatmul.mubr.f32.gmra.mrb[0].mxu0 %v250
  %v318 = vpop.f32.mrb[0].mxu0
  %v319 = vadd.f32 0.0, %v318
  %v320 = vpop.f32.mrb[0].mxu0
  %321 = vdwg.mxu0
  %v322 = vxor.u32 %v319, 2147483648
  %v323 = vmul.f32 %v322, 1.442695
  %v324 = vpow.pop %v323
  %v325 = vadd.f32 %v324, 1.0
  %v326 = vrcp.pop %v325
  %v327 = vmul.f32 1.0, %v326
  %v330 = vunpack.c.l.s4 1966171168
  %v331 = vunpack.c.0.s8 %v330
  %v332 = vlaneseq
  %v333 = vshrl.u32 %v332, 7
  %v334 = vsub.s32 %v331, %v333
  %v335 = vrot.slane %v327, %v334
  %v336 = vcombine.high %v335, %v335
  %v338 = vunpack.c.l.s4 1966171168
  %v339 = vunpack.c.0.s8 %v338
  %v340 = vlaneseq
  %v341 = vshrl.u32 %v340, 7
  %v342 = vsub.s32 %v339, %v341
  %v343 = vrot.slane %v335, %v342
  %v345 = vunpack.c.l.s4 1966171168
  %v346 = vunpack.c.0.s8 %v345
  %v347 = vlaneseq
  %v348 = vshrl.u32 %v347, 7
  %v349 = vsub.s32 %v346, %v348
  %v350 = vrot.slane %v336, %v349
  %v351 = vlaneseq
  %v352 = vshrl.u32 %v351, 7
  %v353 = vsub.s32 0, %v352
  %v354 = vrot.slane %v343, %v353
  %v355 = vlaneseq
  %v356 = vshrl.u32 %v355, 7
  %v357 = vsub.s32 0, %v356
  %v358 = vrot.slane %v350, %v357
  %v361 = vmul.f32 %v14, %v354
  %v362 = vmul.f32 %v15, %v354
  %v363 = vmul.f32 %v16, %v354
  %v364 = vmul.f32 %v17, %v354
  %v365 = vmul.f32 %v18, %v354
  %v366 = vmul.f32 %v19, %v354
  %v367 = vmul.f32 %v20, %v354
  %v368 = vmul.f32 %v21, %v354
  %v369 = vmul.f32 %v22, %v354
  %v370 = vmul.f32 %v23, %v354
  %v371 = vmul.f32 %v24, %v354
  %v372 = vmul.f32 %v25, %v354
  %v373 = vmul.f32 %v26, %v354
  %v374 = vmul.f32 %v27, %v354
  %v375 = vmul.f32 %v28, %v354
  %v376 = vmul.f32 %v29, %v354
  %v377 = vmul.f32 %v30, %v354
  %v378 = vmul.f32 %v31, %v354
  %v379 = vmul.f32 %v32, %v354
  %v380 = vmul.f32 %v33, %v354
  %v381 = vmul.f32 %v34, %v354
  %v382 = vmul.f32 %v35, %v354
  %v383 = vmul.f32 %v36, %v354
  %v384 = vmul.f32 %v37, %v354
  %v385 = vmul.f32 %v38, %v354
  %v386 = vmul.f32 %v39, %v354
  %v387 = vmul.f32 %v40, %v354
  %v388 = vmul.f32 %v41, %v354
  %v389 = vmul.f32 %v42, %v354
  %v390 = vmul.f32 %v43, %v354
  %v391 = vmul.f32 %v44, %v354
  %v392 = vmul.f32 %v45, %v354
  %v393 = vmul.f32 %v46, %v358
  %v394 = vmul.f32 %v47, %v358
  %v395 = vmul.f32 %v48, %v358
  %v396 = vmul.f32 %v49, %v358
  %v397 = vmul.f32 %v50, %v358
  %v398 = vmul.f32 %v51, %v358
  %v399 = vmul.f32 %v52, %v358
  %v400 = vmul.f32 %v53, %v358
  %v401 = vmul.f32 %v54, %v358
  %v402 = vmul.f32 %v55, %v358
  %v403 = vmul.f32 %v56, %v358
  %v404 = vmul.f32 %v57, %v358
  %v405 = vmul.f32 %v58, %v358
  %v406 = vmul.f32 %v59, %v358
  %v407 = vmul.f32 %v60, %v358
  %v408 = vmul.f32 %v61, %v358
  %v409 = vmul.f32 %v62, %v358
  %v410 = vmul.f32 %v63, %v358
  %v411 = vmul.f32 %v64, %v358
  %v412 = vmul.f32 %v65, %v358
  %v413 = vmul.f32 %v66, %v358
  %v414 = vmul.f32 %v67, %v358
  %v415 = vmul.f32 %v68, %v358
  %v416 = vmul.f32 %v69, %v358
  %v417 = vmul.f32 %v70, %v358
  %v418 = vmul.f32 %v71, %v358
  %v419 = vmul.f32 %v72, %v358
  %v420 = vmul.f32 %v73, %v358
  %v421 = vmul.f32 %v74, %v358
  %v422 = vmul.f32 %v75, %v358
  %v423 = vmul.f32 %v76, %v358
  %v424 = vmul.f32 %v77, %v358
  %425 = vst [vmem:[%s3] sm:$0xff] %v361
  %426 = vst [vmem:[%s3 + $0x8] sm:$0xff] %v362
  %427 = vst [vmem:[%s3 + $0x10] sm:$0xff] %v363
  %428 = vst [vmem:[%s3 + $0x18] sm:$0xff] %v364
  %429 = vst [vmem:[%s3 + $0x20] sm:$0xff] %v365
  %430 = vst [vmem:[%s3 + $0x28] sm:$0xff] %v366
  %431 = vst [vmem:[%s3 + $0x30] sm:$0xff] %v367
  %432 = vst [vmem:[%s3 + $0x38] sm:$0xff] %v368
  %433 = vst [vmem:[%s3 + $0x40] sm:$0xff] %v369
  %434 = vst [vmem:[%s3 + $0x48] sm:$0xff] %v370
  %435 = vst [vmem:[%s3 + $0x50] sm:$0xff] %v371
  %436 = vst [vmem:[%s3 + $0x58] sm:$0xff] %v372
  %437 = vst [vmem:[%s3 + $0x60] sm:$0xff] %v373
  %438 = vst [vmem:[%s3 + $0x68] sm:$0xff] %v374
  %439 = vst [vmem:[%s3 + $0x70] sm:$0xff] %v375
  %440 = vst [vmem:[%s3 + $0x78] sm:$0xff] %v376
  %441 = vst [vmem:[%s3 + $0x80] sm:$0xff] %v377
  %442 = vst [vmem:[%s3 + $0x88] sm:$0xff] %v378
  %443 = vst [vmem:[%s3 + $0x90] sm:$0xff] %v379
  %444 = vst [vmem:[%s3 + $0x98] sm:$0xff] %v380
  %445 = vst [vmem:[%s3 + $0xa0] sm:$0xff] %v381
  %446 = vst [vmem:[%s3 + $0xa8] sm:$0xff] %v382
  %447 = vst [vmem:[%s3 + $0xb0] sm:$0xff] %v383
  %448 = vst [vmem:[%s3 + $0xb8] sm:$0xff] %v384
  %449 = vst [vmem:[%s3 + $0xc0] sm:$0xff] %v385
  %450 = vst [vmem:[%s3 + $0xc8] sm:$0xff] %v386
  %451 = vst [vmem:[%s3 + $0xd0] sm:$0xff] %v387
  %452 = vst [vmem:[%s3 + $0xd8] sm:$0xff] %v388
  %453 = vst [vmem:[%s3 + $0xe0] sm:$0xff] %v389
  %454 = vst [vmem:[%s3 + $0xe8] sm:$0xff] %v390
  %455 = vst [vmem:[%s3 + $0xf0] sm:$0xff] %v391
  %456 = vst [vmem:[%s3 + $0xf8] sm:$0xff] %v392
  %457 = vst [vmem:[%s3 + $0x100] sm:$0xff] %v393
  %458 = vst [vmem:[%s3 + $0x108] sm:$0xff] %v394
  %459 = vst [vmem:[%s3 + $0x110] sm:$0xff] %v395
  %460 = vst [vmem:[%s3 + $0x118] sm:$0xff] %v396
  %461 = vst [vmem:[%s3 + $0x120] sm:$0xff] %v397
  %462 = vst [vmem:[%s3 + $0x128] sm:$0xff] %v398
  %463 = vst [vmem:[%s3 + $0x130] sm:$0xff] %v399
  %464 = vst [vmem:[%s3 + $0x138] sm:$0xff] %v400
  %465 = vst [vmem:[%s3 + $0x140] sm:$0xff] %v401
  %466 = vst [vmem:[%s3 + $0x148] sm:$0xff] %v402
  %467 = vst [vmem:[%s3 + $0x150] sm:$0xff] %v403
  %468 = vst [vmem:[%s3 + $0x158] sm:$0xff] %v404
  %469 = vst [vmem:[%s3 + $0x160] sm:$0xff] %v405
  %470 = vst [vmem:[%s3 + $0x168] sm:$0xff] %v406
  %471 = vst [vmem:[%s3 + $0x170] sm:$0xff] %v407
  %472 = vst [vmem:[%s3 + $0x178] sm:$0xff] %v408
  %473 = vst [vmem:[%s3 + $0x180] sm:$0xff] %v409
  %474 = vst [vmem:[%s3 + $0x188] sm:$0xff] %v410
  %475 = vst [vmem:[%s3 + $0x190] sm:$0xff] %v411
  %476 = vst [vmem:[%s3 + $0x198] sm:$0xff] %v412
  %477 = vst [vmem:[%s3 + $0x1a0] sm:$0xff] %v413
  %478 = vst [vmem:[%s3 + $0x1a8] sm:$0xff] %v414
  %479 = vst [vmem:[%s3 + $0x1b0] sm:$0xff] %v415
  %480 = vst [vmem:[%s3 + $0x1b8] sm:$0xff] %v416
  %481 = vst [vmem:[%s3 + $0x1c0] sm:$0xff] %v417
  %482 = vst [vmem:[%s3 + $0x1c8] sm:$0xff] %v418
  %483 = vst [vmem:[%s3 + $0x1d0] sm:$0xff] %v419
  %484 = vst [vmem:[%s3 + $0x1d8] sm:$0xff] %v420
  %485 = vst [vmem:[%s3 + $0x1e0] sm:$0xff] %v421
  %486 = vst [vmem:[%s3 + $0x1e8] sm:$0xff] %v422
  %487 = vst [vmem:[%s3 + $0x1f0] sm:$0xff] %v423
  %488 = vst [vmem:[%s3 + $0x1f8] sm:$0xff] %v424
  // Predicated region
  $region14: #{bottleneck_forward.11} parent=0 // pred_check
    _
  $region15: #{bottleneck_forward.11} parent=0 // pred_check_branch
    %490 = sbr.rel (0) target = $region17
  $region16: #{bottleneck_forward.11} parent=0 // pred_region
    _
  $region17: #{bottleneck_forward.11} parent=0 // pred_fallthru
    _
  // Predicated region
  $region18: #{bottleneck_forward.11} parent=0 // pred_check
    _
  $region19: #{bottleneck_forward.11} parent=0 // pred_check_branch
    %492 = sbr.rel (0) target = $region21
  $region20: #{bottleneck_forward.11} parent=0 // pred_region
    _
  $region21: #{bottleneck_forward.11} parent=0 // pred_fallthru
    _

// kernel: bottleneck_forward.12
$region0: #{bottleneck_forward.12}
  #allocation0 [shape = 'u32[]', space=smem, size = 0x4, offset = 0x4, fixed_abs, tag = 'smem constant byte address 0x4 - core index']
  #allocation1 [shape = 'u32[144,128]{1,0:T(1,128)}', space=vmem, size = 0x12000, scoped, tag = 'internal scratch']
  %s0 = inlined_call_operand.vmem [shape: f32[2,256,128], index: 0, kind: input, shape index: {}, may-alias: {0,3}]
  %s1 = inlined_call_operand.vmem [shape: f32[128,8], index: 1, kind: input, shape index: {}]
  %s2 = inlined_call_operand.vmem [shape: f32[8,128], index: 2, kind: input, shape index: {}]
  %s3 = inlined_call_operand.vmem [shape: f32[2,256,128], index: 3, kind: output, shape index: {}, may-alias: {0,3}]
  %s4 = sld [smem:[#allocation0]]
  $region22: #{bottleneck_forward.12} parent=0
    _
  %s6 = ssub.s32 1, %s4
  %s7 = scalar_select 0, %s6, %s4
  // Predicated region
  $region2: #{bottleneck_forward.12} parent=0 // pred_check
    _
  $region3: #{bottleneck_forward.12} parent=0 // pred_check_branch
    %9 = sbr.rel (0) target = $region5
  $region4: #{bottleneck_forward.12} parent=0 // pred_region
    _
  $region5: #{bottleneck_forward.12} parent=0 // pred_fallthru
    _
  // Predicated region
  $region6: #{bottleneck_forward.12} parent=0 // pred_check
    _
  $region7: #{bottleneck_forward.12} parent=0 // pred_check_branch
    %11 = sbr.rel (0) target = $region9
  $region8: #{bottleneck_forward.12} parent=0 // pred_region
    _
  $region9: #{bottleneck_forward.12} parent=0 // pred_fallthru
    _
  // Predicated region
  $region10: #{bottleneck_forward.12} parent=0 // pred_check
    _
  $region11: #{bottleneck_forward.12} parent=0 // pred_check_branch
    %13 = sbr.rel (0) target = $region13
  $region12: #{bottleneck_forward.12} parent=0 // pred_region
    _
  $region13: #{bottleneck_forward.12} parent=0 // pred_fallthru
    _
  %v14 = vld [vmem:[%s0] sm:$0xff]
  %v15 = vld [vmem:[%s0 + $0x8] sm:$0xff]
  %v16 = vld [vmem:[%s0 + $0x10] sm:$0xff]
  %v17 = vld [vmem:[%s0 + $0x18] sm:$0xff]
  %v18 = vld [vmem:[%s0 + $0x20] sm:$0xff]
  %v19 = vld [vmem:[%s0 + $0x28] sm:$0xff]
  %v20 = vld [vmem:[%s0 + $0x30] sm:$0xff]
  %v21 = vld [vmem:[%s0 + $0x38] sm:$0xff]
  %v22 = vld [vmem:[%s0 + $0x40] sm:$0xff]
  %v23 = vld [vmem:[%s0 + $0x48] sm:$0xff]
  %v24 = vld [vmem:[%s0 + $0x50] sm:$0xff]
  %v25 = vld [vmem:[%s0 + $0x58] sm:$0xff]
  %v26 = vld [vmem:[%s0 + $0x60] sm:$0xff]
  %v27 = vld [vmem:[%s0 + $0x68] sm:$0xff]
  %v28 = vld [vmem:[%s0 + $0x70] sm:$0xff]
  %v29 = vld [vmem:[%s0 + $0x78] sm:$0xff]
  %v30 = vld [vmem:[%s0 + $0x80] sm:$0xff]
  %v31 = vld [vmem:[%s0 + $0x88] sm:$0xff]
  %v32 = vld [vmem:[%s0 + $0x90] sm:$0xff]
  %v33 = vld [vmem:[%s0 + $0x98] sm:$0xff]
  %v34 = vld [vmem:[%s0 + $0xa0] sm:$0xff]
  %v35 = vld [vmem:[%s0 + $0xa8] sm:$0xff]
  %v36 = vld [vmem:[%s0 + $0xb0] sm:$0xff]
  %v37 = vld [vmem:[%s0 + $0xb8] sm:$0xff]
  %v38 = vld [vmem:[%s0 + $0xc0] sm:$0xff]
  %v39 = vld [vmem:[%s0 + $0xc8] sm:$0xff]
  %v40 = vld [vmem:[%s0 + $0xd0] sm:$0xff]
  %v41 = vld [vmem:[%s0 + $0xd8] sm:$0xff]
  %v42 = vld [vmem:[%s0 + $0xe0] sm:$0xff]
  %v43 = vld [vmem:[%s0 + $0xe8] sm:$0xff]
  %v44 = vld [vmem:[%s0 + $0xf0] sm:$0xff]
  %v45 = vld [vmem:[%s0 + $0xf8] sm:$0xff]
  %v46 = vld [vmem:[%s0 + $0x100] sm:$0xff]
  %v47 = vld [vmem:[%s0 + $0x108] sm:$0xff]
  %v48 = vld [vmem:[%s0 + $0x110] sm:$0xff]
  %v49 = vld [vmem:[%s0 + $0x118] sm:$0xff]
  %v50 = vld [vmem:[%s0 + $0x120] sm:$0xff]
  %v51 = vld [vmem:[%s0 + $0x128] sm:$0xff]
  %v52 = vld [vmem:[%s0 + $0x130] sm:$0xff]
  %v53 = vld [vmem:[%s0 + $0x138] sm:$0xff]
  %v54 = vld [vmem:[%s0 + $0x140] sm:$0xff]
  %v55 = vld [vmem:[%s0 + $0x148] sm:$0xff]
  %v56 = vld [vmem:[%s0 + $0x150] sm:$0xff]
  %v57 = vld [vmem:[%s0 + $0x158] sm:$0xff]
  %v58 = vld [vmem:[%s0 + $0x160] sm:$0xff]
  %v59 = vld [vmem:[%s0 + $0x168] sm:$0xff]
  %v60 = vld [vmem:[%s0 + $0x170] sm:$0xff]
  %v61 = vld [vmem:[%s0 + $0x178] sm:$0xff]
  %v62 = vld [vmem:[%s0 + $0x180] sm:$0xff]
  %v63 = vld [vmem:[%s0 + $0x188] sm:$0xff]
  %v64 = vld [vmem:[%s0 + $0x190] sm:$0xff]
  %v65 = vld [vmem:[%s0 + $0x198] sm:$0xff]
  %v66 = vld [vmem:[%s0 + $0x1a0] sm:$0xff]
  %v67 = vld [vmem:[%s0 + $0x1a8] sm:$0xff]
  %v68 = vld [vmem:[%s0 + $0x1b0] sm:$0xff]
  %v69 = vld [vmem:[%s0 + $0x1b8] sm:$0xff]
  %v70 = vld [vmem:[%s0 + $0x1c0] sm:$0xff]
  %v71 = vld [vmem:[%s0 + $0x1c8] sm:$0xff]
  %v72 = vld [vmem:[%s0 + $0x1d0] sm:$0xff]
  %v73 = vld [vmem:[%s0 + $0x1d8] sm:$0xff]
  %v74 = vld [vmem:[%s0 + $0x1e0] sm:$0xff]
  %v75 = vld [vmem:[%s0 + $0x1e8] sm:$0xff]
  %v76 = vld [vmem:[%s0 + $0x1f0] sm:$0xff]
  %v77 = vld [vmem:[%s0 + $0x1f8] sm:$0xff]
  %v78 = vld [vmem:[%s1] sm:$0xff]
  %v79 = vld [vmem:[%s1 + $0x8] sm:$0xff]
  %v80 = vld [vmem:[%s1 + $0x10] sm:$0xff]
  %v81 = vld [vmem:[%s1 + $0x18] sm:$0xff]
  %v82 = vld [vmem:[%s1 + $0x20] sm:$0xff]
  %v83 = vld [vmem:[%s1 + $0x28] sm:$0xff]
  %v84 = vld [vmem:[%s1 + $0x30] sm:$0xff]
  %v85 = vld [vmem:[%s1 + $0x38] sm:$0xff]
  %v86 = vld [vmem:[%s1 + $0x40] sm:$0xff]
  %v87 = vld [vmem:[%s1 + $0x48] sm:$0xff]
  %v88 = vld [vmem:[%s1 + $0x50] sm:$0xff]
  %v89 = vld [vmem:[%s1 + $0x58] sm:$0xff]
  %v90 = vld [vmem:[%s1 + $0x60] sm:$0xff]
  %v91 = vld [vmem:[%s1 + $0x68] sm:$0xff]
  %v92 = vld [vmem:[%s1 + $0x70] sm:$0xff]
  %v93 = vld [vmem:[%s1 + $0x78] sm:$0xff]
  %v94 = vld [vmem:[%s2] sm:$0xff]
  %v95 = vadd.f32 %v14, %v15
  %v96 = vadd.f32 %v95, %v16
  %v97 = vadd.f32 %v96, %v17
  %v98 = vadd.f32 %v97, %v18
  %v99 = vadd.f32 %v98, %v19
  %v100 = vadd.f32 %v99, %v20
  %v101 = vadd.f32 %v100, %v21
  %v102 = vadd.f32 %v101, %v22
  %v103 = vadd.f32 %v102, %v23
  %v104 = vadd.f32 %v103, %v24
  %v105 = vadd.f32 %v104, %v25
  %v106 = vadd.f32 %v105, %v26
  %v107 = vadd.f32 %v106, %v27
  %v108 = vadd.f32 %v107, %v28
  %v109 = vadd.f32 %v108, %v29
  %v110 = vadd.f32 %v109, %v30
  %v111 = vadd.f32 %v110, %v31
  %v112 = vadd.f32 %v111, %v32
  %v113 = vadd.f32 %v112, %v33
  %v114 = vadd.f32 %v113, %v34
  %v115 = vadd.f32 %v114, %v35
  %v116 = vadd.f32 %v115, %v36
  %v117 = vadd.f32 %v116, %v37
  %v118 = vadd.f32 %v117, %v38
  %v119 = vadd.f32 %v118, %v39
  %v120 = vadd.f32 %v119, %v40
  %v121 = vadd.f32 %v120, %v41
  %v122 = vadd.f32 %v121, %v42
  %v123 = vadd.f32 %v122, %v43
  %v124 = vadd.f32 %v123, %v44
  %v125 = vadd.f32 %v124, %v45
  %v126 = vrot.slane %v125, 4
  %v127 = vadd.f32 %v125, %v126
  %v128 = vrot.slane %v127, 2
  %v129 = vadd.f32 %v127, %v128
  %v130 = vrot.slane %v129, 1
  %v131 = vadd.f32 %v129, %v130
  %v132 = vadd.f32 %v46, %v47
  %v133 = vadd.f32 %v132, %v48
  %v134 = vadd.f32 %v133, %v49
  %v135 = vadd.f32 %v134, %v50
  %v136 = vadd.f32 %v135, %v51
  %v137 = vadd.f32 %v136, %v52
  %v138 = vadd.f32 %v137, %v53
  %v139 = vadd.f32 %v138, %v54
  %v140 = vadd.f32 %v139, %v55
  %v141 = vadd.f32 %v140, %v56
  %v142 = vadd.f32 %v141, %v57
  %v143 = vadd.f32 %v142, %v58
  %v144 = vadd.f32 %v143, %v59
  %v145 = vadd.f32 %v144, %v60
  %v146 = vadd.f32 %v145, %v61
  %v147 = vadd.f32 %v146, %v62
  %v148 = vadd.f32 %v147, %v63
  %v149 = vadd.f32 %v148, %v64
  %v150 = vadd.f32 %v149, %v65
  %v151 = vadd.f32 %v150, %v66
  %v152 = vadd.f32 %v151, %v67
  %v153 = vadd.f32 %v152, %v68
  %v154 = vadd.f32 %v153, %v69
  %v155 = vadd.f32 %v154, %v70
  %v156 = vadd.f32 %v155, %v71
  %v157 = vadd.f32 %v156, %v72
  %v158 = vadd.f32 %v157, %v73
  %v159 = vadd.f32 %v158, %v74
  %v160 = vadd.f32 %v159, %v75
  %v161 = vadd.f32 %v160, %v76
  %v162 = vadd.f32 %v161, %v77
  %v163 = vrot.slane %v162, 4
  %v164 = vadd.f32 %v162, %v163
  %v165 = vrot.slane %v164, 2
  %v166 = vadd.f32 %v164, %v165
  %v167 = vrot.slane %v166, 1
  %v168 = vadd.f32 %v166, %v167
  %v169 = vrcp.pop 256.0
  %v170 = vmul.f32 %v131, %v169
  %v171 = vmul.f32 %v168, %v169
  %vm174 = vcmask 1041409
  %v175 = vsel %vm174, %v171, %v170
  %177 = vmatprep.subr.mxu0 0.0
  %178 = vmatpush1.msra.mxu0 %v78
  %179 = vmatprep.subr.mxu0 0.0
  %180 = vmatpush1.msra.mxu0 %v79
  %181 = vmatprep.subr.mxu0 0.0
  %182 = vmatpush1.msra.mxu0 %v80
  %183 = vmatprep.subr.mxu0 0.0
  %184 = vmatpush1.msra.mxu0 %v81
  %185 = vmatprep.subr.mxu0 0.0
  %186 = vmatpush1.msra.mxu0 %v82
  %187 = vmatprep.subr.mxu0 0.0
  %188 = vmatpush1.msra.mxu0 %v83
  %189 = vmatprep.subr.mxu0 0.0
  %190 = vmatpush1.msra.mxu0 %v84
  %191 = vmatprep.subr.mxu0 0.0
  %192 = vmatpush1.msra.mxu0 %v85
  %193 = vmatprep.subr.mxu0 0.0
  %194 = vmatpush1.msra.mxu0 %v86
  %195 = vmatprep.subr.mxu0 0.0
  %196 = vmatpush1.msra.mxu0 %v87
  %197 = vmatprep.subr.mxu0 0.0
  %198 = vmatpush1.msra.mxu0 %v88
  %199 = vmatprep.subr.mxu0 0.0
  %200 = vmatpush1.msra.mxu0 %v89
  %201 = vmatprep.subr.mxu0 0.0
  %202 = vmatpush1.msra.mxu0 %v90
  %203 = vmatprep.subr.mxu0 0.0
  %204 = vmatpush1.msra.mxu0 %v91
  %205 = vmatprep.subr.mxu0 0.0
  %206 = vmatpush1.msra.mxu0 %v92
  %207 = vmatprep.subr.mxu0 0.0
  %208 = vmatpush1.msra.mxu0 %v93
  %209 = vmatprep.subr.mxu0 0.0
  %210 = vmatpush1.msra.mxu0 0.0
  %211 = vmatprep.subr.mxu0 0.0
  %212 = vmatpush1.msra.mxu0 0.0
  %213 = vmatprep.subr.mxu0 0.0
  %214 = vmatpush1.msra.mxu0 0.0
  %215 = vmatprep.subr.mxu0 0.0
  %216 = vmatpush1.msra.mxu0 0.0
  %217 = vmatprep.subr.mxu0 0.0
  %218 = vmatpush1.msra.mxu0 0.0
  %219 = vmatprep.subr.mxu0 0.0
  %220 = vmatpush1.msra.mxu0 0.0
  %221 = vmatprep.subr.mxu0 0.0
  %222 = vmatpush1.msra.mxu0 0.0
  %223 = vmatprep.subr.mxu0 0.0
  %224 = vmatpush1.msra.mxu0 0.0
  %225 = vmatprep.subr.mxu0 0.0
  %226 = vmatpush1.msra.mxu0 0.0
  %227 = vmatprep.subr.mxu0 0.0
  %228 = vmatpush1.msra.mxu0 0.0
  %229 = vmatprep.subr.mxu0 0.0
  %230 = vmatpush1.msra.mxu0 0.0
  %231 = vmatprep.subr.mxu0 0.0
  %232 = vmatpush1.msra.mxu0 0.0
  %233 = vmatprep.subr.mxu0 0.0
  %234 = vmatpush1.msra.mxu0 0.0
  %235 = vmatprep.subr.mxu0 0.0
  %236 = vmatpush1.msra.mxu0 0.0
  %237 = vmatprep.subr.mxu0 0.0
  %238 = vmatpush1.msra.mxu0 0.0
  %239 = vmatprep.subr.mxu0 0.0
  %240 = vmatpush1.msra.mxu0 0.0
  %241 = vmatprep.mubr.f32.mxu0 0.0
  %242 = vmatmul.mubr.f32.gmra.mrb[0].mxu0 %v175
  %v243 = vpop.f32.mrb[0].mxu0
  %v244 = vadd.f32 0.0, %v243
  %v245 = vpop.f32.mrb[0].mxu0
  %246 = vdwg.mxu0
  %v247 = vmax.f32 %v244, 0.0
  %v248 = vmax.f32 %v14, %v16
  %v249 = vmax.f32 %v15, %v17
  %v250 = vmax.f32 %v248, %v18
  %v251 = vmax.f32 %v249, %v19
  %v252 = vmax.f32 %v250, %v20
  %v253 = vmax.f32 %v251, %v21
  %v254 = vmax.f32 %v252, %v22
  %v255 = vmax.f32 %v253, %v23
  %v256 = vmax.f32 %v254, %v24
  %v257 = vmax.f32 %v255, %v25
  %v258 = vmax.f32 %v256, %v26
  %v259 = vmax.f32 %v257, %v27
  %v260 = vmax.f32 %v258, %v28
  %v261 = vmax.f32 %v259, %v29
  %v262 = vmax.f32 %v260, %v30
  %v263 = vmax.f32 %v261, %v31
  %v264 = vmax.f32 %v262, %v32
  %v265 = vmax.f32 %v263, %v33
  %v266 = vmax.f32 %v264, %v34
  %v267 = vmax.f32 %v265, %v35
  %v268 = vmax.f32 %v266, %v36
  %v269 = vmax.f32 %v267, %v37
  %v270 = vmax.f32 %v268, %v38
  %v271 = vmax.f32 %v269, %v39
  %v272 = vmax.f32 %v270, %v40
  %v273 = vmax.f32 %v271, %v41
  %v274 = vmax.f32 %v272, %v42
  %v275 = vmax.f32 %v273, %v43
  %v276 = vmax.f32 %v274, %v44
  %v277 = vmax.f32 %v275, %v45
  %v278 = vmax.f32 %v276, %v277
  %v279 = vrot.slane %v278, 4
  %v280 = vmax.f32 %v278, %v279
  %v281 = vrot.slane %v280, 2
  %v282 = vmax.f32 %v280, %v281
  %v283 = vrot.slane %v282, 1
  %v284 = vmax.f32 %v282, %v283
  %v285 = vmax.f32 %v46, %v48
  %v286 = vmax.f32 %v47, %v49
  %v287 = vmax.f32 %v285, %v50
  %v288 = vmax.f32 %v286, %v51
  %v289 = vmax.f32 %v287, %v52
  %v290 = vmax.f32 %v288, %v53
  %v291 = vmax.f32 %v289, %v54
  %v292 = vmax.f32 %v290, %v55
  %v293 = vmax.f32 %v291, %v56
  %v294 = vmax.f32 %v292, %v57
  %v295 = vmax.f32 %v293, %v58
  %v296 = vmax.f32 %v294, %v59
  %v297 = vmax.f32 %v295, %v60
  %v298 = vmax.f32 %v296, %v61
  %v299 = vmax.f32 %v297, %v62
  %v300 = vmax.f32 %v298, %v63
  %v301 = vmax.f32 %v299, %v64
  %v302 = vmax.f32 %v300, %v65
  %v303 = vmax.f32 %v301, %v66
  %v304 = vmax.f32 %v302, %v67
  %v305 = vmax.f32 %v303, %v68
  %v306 = vmax.f32 %v304, %v69
  %v307 = vmax.f32 %v305, %v70
  %v308 = vmax.f32 %v306, %v71
  %v309 = vmax.f32 %v307, %v72
  %v310 = vmax.f32 %v308, %v73
  %v311 = vmax.f32 %v309, %v74
  %v312 = vmax.f32 %v310, %v75
  %v313 = vmax.f32 %v311, %v76
  %v314 = vmax.f32 %v312, %v77
  %v315 = vmax.f32 %v313, %v314
  %v316 = vrot.slane %v315, 4
  %v317 = vmax.f32 %v315, %v316
  %v318 = vrot.slane %v317, 2
  %v319 = vmax.f32 %v317, %v318
  %v320 = vrot.slane %v319, 1
  %v321 = vmax.f32 %v319, %v320
  %v324 = vsel %vm174, %v321, %v284
  %326 = vmatprep.subr.mxu0 0.0
  %327 = vmatpush1.msra.mxu0 %v78
  %328 = vmatprep.subr.mxu0 0.0
  %329 = vmatpush1.msra.mxu0 %v79
  %330 = vmatprep.subr.mxu0 0.0
  %331 = vmatpush1.msra.mxu0 %v80
  %332 = vmatprep.subr.mxu0 0.0
  %333 = vmatpush1.msra.mxu0 %v81
  %334 = vmatprep.subr.mxu0 0.0
  %335 = vmatpush1.msra.mxu0 %v82
  %336 = vmatprep.subr.mxu0 0.0
  %337 = vmatpush1.msra.mxu0 %v83
  %338 = vmatprep.subr.mxu0 0.0
  %339 = vmatpush1.msra.mxu0 %v84
  %340 = vmatprep.subr.mxu0 0.0
  %341 = vmatpush1.msra.mxu0 %v85
  %342 = vmatprep.subr.mxu0 0.0
  %343 = vmatpush1.msra.mxu0 %v86
  %344 = vmatprep.subr.mxu0 0.0
  %345 = vmatpush1.msra.mxu0 %v87
  %346 = vmatprep.subr.mxu0 0.0
  %347 = vmatpush1.msra.mxu0 %v88
  %348 = vmatprep.subr.mxu0 0.0
  %349 = vmatpush1.msra.mxu0 %v89
  %350 = vmatprep.subr.mxu0 0.0
  %351 = vmatpush1.msra.mxu0 %v90
  %352 = vmatprep.subr.mxu0 0.0
  %353 = vmatpush1.msra.mxu0 %v91
  %354 = vmatprep.subr.mxu0 0.0
  %355 = vmatpush1.msra.mxu0 %v92
  %356 = vmatprep.subr.mxu0 0.0
  %357 = vmatpush1.msra.mxu0 %v93
  %358 = vmatprep.subr.mxu0 0.0
  %359 = vmatpush1.msra.mxu0 0.0
  %360 = vmatprep.subr.mxu0 0.0
  %361 = vmatpush1.msra.mxu0 0.0
  %362 = vmatprep.subr.mxu0 0.0
  %363 = vmatpush1.msra.mxu0 0.0
  %364 = vmatprep.subr.mxu0 0.0
  %365 = vmatpush1.msra.mxu0 0.0
  %366 = vmatprep.subr.mxu0 0.0
  %367 = vmatpush1.msra.mxu0 0.0
  %368 = vmatprep.subr.mxu0 0.0
  %369 = vmatpush1.msra.mxu0 0.0
  %370 = vmatprep.subr.mxu0 0.0
  %371 = vmatpush1.msra.mxu0 0.0
  %372 = vmatprep.subr.mxu0 0.0
  %373 = vmatpush1.msra.mxu0 0.0
  %374 = vmatprep.subr.mxu0 0.0
  %375 = vmatpush1.msra.mxu0 0.0
  %376 = vmatprep.subr.mxu0 0.0
  %377 = vmatpush1.msra.mxu0 0.0
  %378 = vmatprep.subr.mxu0 0.0
  %379 = vmatpush1.msra.mxu0 0.0
  %380 = vmatprep.subr.mxu0 0.0
  %381 = vmatpush1.msra.mxu0 0.0
  %382 = vmatprep.subr.mxu0 0.0
  %383 = vmatpush1.msra.mxu0 0.0
  %384 = vmatprep.subr.mxu0 0.0
  %385 = vmatpush1.msra.mxu0 0.0
  %386 = vmatprep.subr.mxu0 0.0
  %387 = vmatpush1.msra.mxu0 0.0
  %388 = vmatprep.subr.mxu0 0.0
  %389 = vmatpush1.msra.mxu0 0.0
  %390 = vmatprep.mubr.f32.mxu0 0.0
  %391 = vmatmul.mubr.f32.gmra.mrb[0].mxu0 %v324
  %v392 = vpop.f32.mrb[0].mxu0
  %v393 = vadd.f32 0.0, %v392
  %v394 = vpop.f32.mrb[0].mxu0
  %395 = vdwg.mxu0
  %v396 = vmax.f32 %v393, 0.0
  %vm397 = vcmask 64512
  %v399 = vsel %vm397, %v396, 0
  %401 = vmatprep.subr.mxu0 0.0
  %402 = vmatpush1.msra.mxu0 %v94
  %403 = vmatprep.subr.mxu0 0.0
  %404 = vmatpush1.msra.mxu0 0.0
  %405 = vmatprep.subr.mxu0 0.0
  %406 = vmatpush1.msra.mxu0 0.0
  %407 = vmatprep.subr.mxu0 0.0
  %408 = vmatpush1.msra.mxu0 0.0
  %409 = vmatprep.subr.mxu0 0.0
  %410 = vmatpush1.msra.mxu0 0.0
  %411 = vmatprep.subr.mxu0 0.0
  %412 = vmatpush1.msra.mxu0 0.0
  %413 = vmatprep.subr.mxu0 0.0
  %414 = vmatpush1.msra.mxu0 0.0
  %415 = vmatprep.subr.mxu0 0.0
  %416 = vmatpush1.msra.mxu0 0.0
  %417 = vmatprep.subr.mxu0 0.0
  %418 = vmatpush1.msra.mxu0 0.0
  %419 = vmatprep.subr.mxu0 0.0
  %420 = vmatpush1.msra.mxu0 0.0
  %421 = vmatprep.subr.mxu0 0.0
  %422 = vmatpush1.msra.mxu0 0.0
  %423 = vmatprep.subr.mxu0 0.0
  %424 = vmatpush1.msra.mxu0 0.0
  %425 = vmatprep.subr.mxu0 0.0
  %426 = vmatpush1.msra.mxu0 0.0
  %427 = vmatprep.subr.mxu0 0.0
  %428 = vmatpush1.msra.mxu0 0.0
  %429 = vmatprep.subr.mxu0 0.0
  %430 = vmatpush1.msra.mxu0 0.0
  %431 = vmatprep.subr.mxu0 0.0
  %432 = vmatpush1.msra.mxu0 0.0
  %433 = vmatprep.subr.mxu0 0.0
  %434 = vmatpush1.msra.mxu0 0.0
  %435 = vmatprep.subr.mxu0 0.0
  %436 = vmatpush1.msra.mxu0 0.0
  %437 = vmatprep.subr.mxu0 0.0
  %438 = vmatpush1.msra.mxu0 0.0
  %439 = vmatprep.subr.mxu0 0.0
  %440 = vmatpush1.msra.mxu0 0.0
  %441 = vmatprep.subr.mxu0 0.0
  %442 = vmatpush1.msra.mxu0 0.0
  %443 = vmatprep.subr.mxu0 0.0
  %444 = vmatpush1.msra.mxu0 0.0
  %445 = vmatprep.subr.mxu0 0.0
  %446 = vmatpush1.msra.mxu0 0.0
  %447 = vmatprep.subr.mxu0 0.0
  %448 = vmatpush1.msra.mxu0 0.0
  %449 = vmatprep.subr.mxu0 0.0
  %450 = vmatpush1.msra.mxu0 0.0
  %451 = vmatprep.subr.mxu0 0.0
  %452 = vmatpush1.msra.mxu0 0.0
  %453 = vmatprep.subr.mxu0 0.0
  %454 = vmatpush1.msra.mxu0 0.0
  %455 = vmatprep.subr.mxu0 0.0
  %456 = vmatpush1.msra.mxu0 0.0
  %457 = vmatprep.subr.mxu0 0.0
  %458 = vmatpush1.msra.mxu0 0.0
  %459 = vmatprep.subr.mxu0 0.0
  %460 = vmatpush1.msra.mxu0 0.0
  %461 = vmatprep.subr.mxu0 0.0
  %462 = vmatpush1.msra.mxu0 0.0
  %463 = vmatprep.subr.mxu0 0.0
  %464 = vmatpush1.msra.mxu0 0.0
  %465 = vmatprep.mubr.f32.mxu0 0.0
  %466 = vmatmul.mubr.f32.gmra.mrb[0].mxu0 %v399
  %v467 = vpop.f32.mrb[0].mxu0
  %v468 = vadd.f32 0.0, %v467
  %v469 = vpop.f32.mrb[0].mxu0
  %470 = vdwg.mxu0
  %v472 = vsel %vm397, %v247, 0
  %474 = vmatprep.subr.mxu0 0.0
  %475 = vmatpush1.msra.mxu0 %v94
  %476 = vmatprep.subr.mxu0 0.0
  %477 = vmatpush1.msra.mxu0 0.0
  %478 = vmatprep.subr.mxu0 0.0
  %479 = vmatpush1.msra.mxu0 0.0
  %480 = vmatprep.subr.mxu0 0.0
  %481 = vmatpush1.msra.mxu0 0.0
  %482 = vmatprep.subr.mxu0 0.0
  %483 = vmatpush1.msra.mxu0 0.0
  %484 = vmatprep.subr.mxu0 0.0
  %485 = vmatpush1.msra.mxu0 0.0
  %486 = vmatprep.subr.mxu0 0.0
  %487 = vmatpush1.msra.mxu0 0.0
  %488 = vmatprep.subr.mxu0 0.0
  %489 = vmatpush1.msra.mxu0 0.0
  %490 = vmatprep.subr.mxu0 0.0
  %491 = vmatpush1.msra.mxu0 0.0
  %492 = vmatprep.subr.mxu0 0.0
  %493 = vmatpush1.msra.mxu0 0.0
  %494 = vmatprep.subr.mxu0 0.0
  %495 = vmatpush1.msra.mxu0 0.0
  %496 = vmatprep.subr.mxu0 0.0
  %497 = vmatpush1.msra.mxu0 0.0
  %498 = vmatprep.subr.mxu0 0.0
  %499 = vmatpush1.msra.mxu0 0.0
  %500 = vmatprep.subr.mxu0 0.0
  %501 = vmatpush1.msra.mxu0 0.0
  %502 = vmatprep.subr.mxu0 0.0
  %503 = vmatpush1.msra.mxu0 0.0
  %504 = vmatprep.subr.mxu0 0.0
  %505 = vmatpush1.msra.mxu0 0.0
  %506 = vmatprep.subr.mxu0 0.0
  %507 = vmatpush1.msra.mxu0 0.0
  %508 = vmatprep.subr.mxu0 0.0
  %509 = vmatpush1.msra.mxu0 0.0
  %510 = vmatprep.subr.mxu0 0.0
  %511 = vmatpush1.msra.mxu0 0.0
  %512 = vmatprep.subr.mxu0 0.0
  %513 = vmatpush1.msra.mxu0 0.0
  %514 = vmatprep.subr.mxu0 0.0
  %515 = vmatpush1.msra.mxu0 0.0
  %516 = vmatprep.subr.mxu0 0.0
  %517 = vmatpush1.msra.mxu0 0.0
  %518 = vmatprep.subr.mxu0 0.0
  %519 = vmatpush1.msra.mxu0 0.0
  %520 = vmatprep.subr.mxu0 0.0
  %521 = vmatpush1.msra.mxu0 0.0
  %522 = vmatprep.subr.mxu0 0.0
  %523 = vmatpush1.msra.mxu0 0.0
  %524 = vmatprep.subr.mxu0 0.0
  %525 = vmatpush1.msra.mxu0 0.0
  %526 = vmatprep.subr.mxu0 0.0
  %527 = vmatpush1.msra.mxu0 0.0
  %528 = vmatprep.subr.mxu0 0.0
  %529 = vmatpush1.msra.mxu0 0.0
  %530 = vmatprep.subr.mxu0 0.0
  %531 = vmatpush1.msra.mxu0 0.0
  %532 = vmatprep.subr.mxu0 0.0
  %533 = vmatpush1.msra.mxu0 0.0
  %534 = vmatprep.subr.mxu0 0.0
  %535 = vmatpush1.msra.mxu0 0.0
  %536 = vmatprep.subr.mxu0 0.0
  %537 = vmatpush1.msra.mxu0 0.0
  %538 = vmatprep.mubr.f32.mxu0 0.0
  %539 = vmatmul.mubr.f32.gmra.mrb[0].mxu0 %v472
  %v540 = vpop.f32.mrb[0].mxu0
  %v541 = vadd.f32 %v468, %v540
  %v542 = vpop.f32.mrb[0].mxu0
  %543 = vdwg.mxu0
  %v544 = vxor.u32 %v541, 2147483648
  %v545 = vmul.f32 %v544, 1.442695
  %v546 = vpow.pop %v545
  %v547 = vadd.f32 %v546, 1.0
  %v548 = vrcp.pop %v547
  %v549 = vmul.f32 1.0, %v548
  %v552 = vunpack.c.l.s4 1966171168
  %v553 = vunpack.c.0.s8 %v552
  %v554 = vlaneseq
  %v555 = vshrl.u32 %v554, 7
  %v556 = vsub.s32 %v553, %v555
  %v557 = vrot.slane %v549, %v556
  %v558 = vcombine.high %v557, %v557
  %v560 = vunpack.c.l.s4 1966171168
  %v561 = vunpack.c.0.s8 %v560
  %v562 = vlaneseq
  %v563 = vshrl.u32 %v562, 7
  %v564 = vsub.s32 %v561, %v563
  %v565 = vrot.slane %v557, %v564
  %v567 = vunpack.c.l.s4 1966171168
  %v568 = vunpack.c.0.s8 %v567
  %v569 = vlaneseq
  %v570 = vshrl.u32 %v569, 7
  %v571 = vsub.s32 %v568, %v570
  %v572 = vrot.slane %v558, %v571
  %v573 = vlaneseq
  %v574 = vshrl.u32 %v573, 7
  %v575 = vsub.s32 0, %v574
  %v576 = vrot.slane %v565, %v575
  %v577 = vlaneseq
  %v578 = vshrl.u32 %v577, 7
  %v579 = vsub.s32 0, %v578
  %v580 = vrot.slane %v572, %v579
  %v583 = vmul.f32 %v14, %v576
  %v584 = vmul.f32 %v15, %v576
  %v585 = vmul.f32 %v16, %v576
  %v586 = vmul.f32 %v17, %v576
  %v587 = vmul.f32 %v18, %v576
  %v588 = vmul.f32 %v19, %v576
  %v589 = vmul.f32 %v20, %v576
  %v590 = vmul.f32 %v21, %v576
  %v591 = vmul.f32 %v22, %v576
  %v592 = vmul.f32 %v23, %v576
  %v593 = vmul.f32 %v24, %v576
  %v594 = vmul.f32 %v25, %v576
  %v595 = vmul.f32 %v26, %v576
  %v596 = vmul.f32 %v27, %v576
  %v597 = vmul.f32 %v28, %v576
  %v598 = vmul.f32 %v29, %v576
  %v599 = vmul.f32 %v30, %v576
  %v600 = vmul.f32 %v31, %v576
  %v601 = vmul.f32 %v32, %v576
  %v602 = vmul.f32 %v33, %v576
  %v603 = vmul.f32 %v34, %v576
  %v604 = vmul.f32 %v35, %v576
  %v605 = vmul.f32 %v36, %v576
  %v606 = vmul.f32 %v37, %v576
  %v607 = vmul.f32 %v38, %v576
  %v608 = vmul.f32 %v39, %v576
  %v609 = vmul.f32 %v40, %v576
  %v610 = vmul.f32 %v41, %v576
  %v611 = vmul.f32 %v42, %v576
  %v612 = vmul.f32 %v43, %v576
  %v613 = vmul.f32 %v44, %v576
  %v614 = vmul.f32 %v45, %v576
  %v615 = vmul.f32 %v46, %v580
  %v616 = vmul.f32 %v47, %v580
  %v617 = vmul.f32 %v48, %v580
  %v618 = vmul.f32 %v49, %v580
  %v619 = vmul.f32 %v50, %v580
  %v620 = vmul.f32 %v51, %v580
  %v621 = vmul.f32 %v52, %v580
  %v622 = vmul.f32 %v53, %v580
  %v623 = vmul.f32 %v54, %v580
  %v624 = vmul.f32 %v55, %v580
  %v625 = vmul.f32 %v56, %v580
  %v626 = vmul.f32 %v57, %v580
  %v627 = vmul.f32 %v58, %v580
  %v628 = vmul.f32 %v59, %v580
  %v629 = vmul.f32 %v60, %v580
  %v630 = vmul.f32 %v61, %v580
  %v631 = vmul.f32 %v62, %v580
  %v632 = vmul.f32 %v63, %v580
  %v633 = vmul.f32 %v64, %v580
  %v634 = vmul.f32 %v65, %v580
  %v635 = vmul.f32 %v66, %v580
  %v636 = vmul.f32 %v67, %v580
  %v637 = vmul.f32 %v68, %v580
  %v638 = vmul.f32 %v69, %v580
  %v639 = vmul.f32 %v70, %v580
  %v640 = vmul.f32 %v71, %v580
  %v641 = vmul.f32 %v72, %v580
  %v642 = vmul.f32 %v73, %v580
  %v643 = vmul.f32 %v74, %v580
  %v644 = vmul.f32 %v75, %v580
  %v645 = vmul.f32 %v76, %v580
  %v646 = vmul.f32 %v77, %v580
  %647 = vst [vmem:[%s3] sm:$0xff] %v583
  %648 = vst [vmem:[%s3 + $0x8] sm:$0xff] %v584
  %649 = vst [vmem:[%s3 + $0x10] sm:$0xff] %v585
  %650 = vst [vmem:[%s3 + $0x18] sm:$0xff] %v586
  %651 = vst [vmem:[%s3 + $0x20] sm:$0xff] %v587
  %652 = vst [vmem:[%s3 + $0x28] sm:$0xff] %v588
  %653 = vst [vmem:[%s3 + $0x30] sm:$0xff] %v589
  %654 = vst [vmem:[%s3 + $0x38] sm:$0xff] %v590
  %655 = vst [vmem:[%s3 + $0x40] sm:$0xff] %v591
  %656 = vst [vmem:[%s3 + $0x48] sm:$0xff] %v592
  %657 = vst [vmem:[%s3 + $0x50] sm:$0xff] %v593
  %658 = vst [vmem:[%s3 + $0x58] sm:$0xff] %v594
  %659 = vst [vmem:[%s3 + $0x60] sm:$0xff] %v595
  %660 = vst [vmem:[%s3 + $0x68] sm:$0xff] %v596
  %661 = vst [vmem:[%s3 + $0x70] sm:$0xff] %v597
  %662 = vst [vmem:[%s3 + $0x78] sm:$0xff] %v598
  %663 = vst [vmem:[%s3 + $0x80] sm:$0xff] %v599
  %664 = vst [vmem:[%s3 + $0x88] sm:$0xff] %v600
  %665 = vst [vmem:[%s3 + $0x90] sm:$0xff] %v601
  %666 = vst [vmem:[%s3 + $0x98] sm:$0xff] %v602
  %667 = vst [vmem:[%s3 + $0xa0] sm:$0xff] %v603
  %668 = vst [vmem:[%s3 + $0xa8] sm:$0xff] %v604
  %669 = vst [vmem:[%s3 + $0xb0] sm:$0xff] %v605
  %670 = vst [vmem:[%s3 + $0xb8] sm:$0xff] %v606
  %671 = vst [vmem:[%s3 + $0xc0] sm:$0xff] %v607
  %672 = vst [vmem:[%s3 + $0xc8] sm:$0xff] %v608
  %673 = vst [vmem:[%s3 + $0xd0] sm:$0xff] %v609
  %674 = vst [vmem:[%s3 + $0xd8] sm:$0xff] %v610
  %675 = vst [vmem:[%s3 + $0xe0] sm:$0xff] %v611
  %676 = vst [vmem:[%s3 + $0xe8] sm:$0xff] %v612
  %677 = vst [vmem:[%s3 + $0xf0] sm:$0xff] %v613
  %678 = vst [vmem:[%s3 + $0xf8] sm:$0xff] %v614
  %679 = vst [vmem:[%s3 + $0x100] sm:$0xff] %v615
  %680 = vst [vmem:[%s3 + $0x108] sm:$0xff] %v616
  %681 = vst [vmem:[%s3 + $0x110] sm:$0xff] %v617
  %682 = vst [vmem:[%s3 + $0x118] sm:$0xff] %v618
  %683 = vst [vmem:[%s3 + $0x120] sm:$0xff] %v619
  %684 = vst [vmem:[%s3 + $0x128] sm:$0xff] %v620
  %685 = vst [vmem:[%s3 + $0x130] sm:$0xff] %v621
  %686 = vst [vmem:[%s3 + $0x138] sm:$0xff] %v622
  %687 = vst [vmem:[%s3 + $0x140] sm:$0xff] %v623
  %688 = vst [vmem:[%s3 + $0x148] sm:$0xff] %v624
  %689 = vst [vmem:[%s3 + $0x150] sm:$0xff] %v625
  %690 = vst [vmem:[%s3 + $0x158] sm:$0xff] %v626
  %691 = vst [vmem:[%s3 + $0x160] sm:$0xff] %v627
  %692 = vst [vmem:[%s3 + $0x168] sm:$0xff] %v628
  %693 = vst [vmem:[%s3 + $0x170] sm:$0xff] %v629
  %694 = vst [vmem:[%s3 + $0x178] sm:$0xff] %v630
  %695 = vst [vmem:[%s3 + $0x180] sm:$0xff] %v631
  %696 = vst [vmem:[%s3 + $0x188] sm:$0xff] %v632
  %697 = vst [vmem:[%s3 + $0x190] sm:$0xff] %v633
  %698 = vst [vmem:[%s3 + $0x198] sm:$0xff] %v634
  %699 = vst [vmem:[%s3 + $0x1a0] sm:$0xff] %v635
  %700 = vst [vmem:[%s3 + $0x1a8] sm:$0xff] %v636
  %701 = vst [vmem:[%s3 + $0x1b0] sm:$0xff] %v637
  %702 = vst [vmem:[%s3 + $0x1b8] sm:$0xff] %v638
  %703 = vst [vmem:[%s3 + $0x1c0] sm:$0xff] %v639
  %704 = vst [vmem:[%s3 + $0x1c8] sm:$0xff] %v640
  %705 = vst [vmem:[%s3 + $0x1d0] sm:$0xff] %v641
  %706 = vst [vmem:[%s3 + $0x1d8] sm:$0xff] %v642
  %707 = vst [vmem:[%s3 + $0x1e0] sm:$0xff] %v643
  %708 = vst [vmem:[%s3 + $0x1e8] sm:$0xff] %v644
  %709 = vst [vmem:[%s3 + $0x1f0] sm:$0xff] %v645
  %710 = vst [vmem:[%s3 + $0x1f8] sm:$0xff] %v646
  // Predicated region
  $region14: #{bottleneck_forward.12} parent=0 // pred_check
    _
  $region15: #{bottleneck_forward.12} parent=0 // pred_check_branch
    %712 = sbr.rel (0) target = $region17
  $region16: #{bottleneck_forward.12} parent=0 // pred_region
    _
  $region17: #{bottleneck_forward.12} parent=0 // pred_fallthru
    _
  // Predicated region
  $region18: #{bottleneck_forward.12} parent=0 // pred_check
    _
  $region19: #{bottleneck_forward.12} parent=0 // pred_check_branch
    %714 = sbr.rel (0) target = $region21
  $region20: #{bottleneck_forward.12} parent=0 // pred_region
    _
  $region21: #{bottleneck_forward.12} parent=0 // pred_fallthru
    _

// kernel: bottleneck_forward.14
$region0: #{bottleneck_forward.14}
  #allocation0 [shape = 'u32[]', space=smem, size = 0x4, offset = 0x4, fixed_abs, tag = 'smem constant byte address 0x4 - core index']
  #allocation1 [shape = 'u32[144,128]{1,0:T(1,128)}', space=vmem, size = 0x12000, scoped, tag = 'internal scratch']
  %s0 = inlined_call_operand.vmem [shape: f32[512,64], index: 0, kind: input, shape index: {}]
  %s1 = inlined_call_operand.vmem [shape: f32[64,128], index: 1, kind: input, shape index: {}]
  %s2 = inlined_call_operand.vmem [shape: f32[1,128], index: 2, kind: input, shape index: {}]
  %s3 = inlined_call_operand.vmem [shape: f32[1,128], index: 3, kind: input, shape index: {}]
  %s4 = inlined_call_operand.vmem [shape: f32[512,128], index: 4, kind: output, shape index: {}]
  %s5 = sld [smem:[#allocation0]]
  $region26: #{bottleneck_forward.14} parent=0
    _
  %s7 = ssub.s32 1, %s5
  %s8 = scalar_select 0, %s7, %s5
  // Predicated region
  $region2: #{bottleneck_forward.14} parent=0 // pred_check
    _
  $region3: #{bottleneck_forward.14} parent=0 // pred_check_branch
    %10 = sbr.rel (0) target = $region5
  $region4: #{bottleneck_forward.14} parent=0 // pred_region
    _
  $region5: #{bottleneck_forward.14} parent=0 // pred_fallthru
    _
  // Predicated region
  $region6: #{bottleneck_forward.14} parent=0 // pred_check
    _
  $region7: #{bottleneck_forward.14} parent=0 // pred_check_branch
    %12 = sbr.rel (0) target = $region9
  $region8: #{bottleneck_forward.14} parent=0 // pred_region
    _
  $region9: #{bottleneck_forward.14} parent=0 // pred_fallthru
    _
  // Predicated region
  $region10: #{bottleneck_forward.14} parent=0 // pred_check
    _
  $region11: #{bottleneck_forward.14} parent=0 // pred_check_branch
    %14 = sbr.rel (0) target = $region13
  $region12: #{bottleneck_forward.14} parent=0 // pred_region
    _
  $region13: #{bottleneck_forward.14} parent=0 // pred_fallthru
    _
  // Predicated region
  $region14: #{bottleneck_forward.14} parent=0 // pred_check
    _
  $region15: #{bottleneck_forward.14} parent=0 // pred_check_branch
    %16 = sbr.rel (0) target = $region17
  $region16: #{bottleneck_forward.14} parent=0 // pred_region
    _
  $region17: #{bottleneck_forward.14} parent=0 // pred_fallthru
    _
  %v17 = vld [vmem:[%s0] sm:$0xff]
  %v18 = vld [vmem:[%s0 + $0x8] sm:$0xff]
  %v19 = vld [vmem:[%s0 + $0x10] sm:$0xff]
  %v20 = vld [vmem:[%s0 + $0x18] sm:$0xff]
  %v21 = vld [vmem:[%s0 + $0x20] sm:$0xff]
  %v22 = vld [vmem:[%s0 + $0x28] sm:$0xff]
  %v23 = vld [vmem:[%s0 + $0x30] sm:$0xff]
  %v24 = vld [vmem:[%s0 + $0x38] sm:$0xff]
  %v25 = vld [vmem:[%s0 + $0x40] sm:$0xff]
  %v26 = vld [vmem:[%s0 + $0x48] sm:$0xff]
  %v27 = vld [vmem:[%s0 + $0x50] sm:$0xff]
  %v28 = vld [vmem:[%s0 + $0x58] sm:$0xff]
  %v29 = vld [vmem:[%s0 + $0x60] sm:$0xff]
  %v30 = vld [vmem:[%s0 + $0x68] sm:$0xff]
  %v31 = vld [vmem:[%s0 + $0x70] sm:$0xff]
  %v32 = vld [vmem:[%s0 + $0x78] sm:$0xff]
  %v33 = vld [vmem:[%s0 + $0x80] sm:$0xff]
  %v34 = vld [vmem:[%s0 + $0x88] sm:$0xff]
  %v35 = vld [vmem:[%s0 + $0x90] sm:$0xff]
  %v36 = vld [vmem:[%s0 + $0x98] sm:$0xff]
  %v37 = vld [vmem:[%s0 + $0xa0] sm:$0xff]
  %v38 = vld [vmem:[%s0 + $0xa8] sm:$0xff]
  %v39 = vld [vmem:[%s0 + $0xb0] sm:$0xff]
  %v40 = vld [vmem:[%s0 + $0xb8] sm:$0xff]
  %v41 = vld [vmem:[%s0 + $0xc0] sm:$0xff]
  %v42 = vld [vmem:[%s0 + $0xc8] sm:$0xff]
  %v43 = vld [vmem:[%s0 + $0xd0] sm:$0xff]
  %v44 = vld [vmem:[%s0 + $0xd8] sm:$0xff]
  %v45 = vld [vmem:[%s0 + $0xe0] sm:$0xff]
  %v46 = vld [vmem:[%s0 + $0xe8] sm:$0xff]
  %v47 = vld [vmem:[%s0 + $0xf0] sm:$0xff]
  %v48 = vld [vmem:[%s0 + $0xf8] sm:$0xff]
  %v49 = vld [vmem:[%s0 + $0x100] sm:$0xff]
  %v50 = vld [vmem:[%s0 + $0x108] sm:$0xff]
  %v51 = vld [vmem:[%s0 + $0x110] sm:$0xff]
  %v52 = vld [vmem:[%s0 + $0x118] sm:$0xff]
  %v53 = vld [vmem:[%s0 + $0x120] sm:$0xff]
  %v54 = vld [vmem:[%s0 + $0x128] sm:$0xff]
  %v55 = vld [vmem:[%s0 + $0x130] sm:$0xff]
  %v56 = vld [vmem:[%s0 + $0x138] sm:$0xff]
  %v57 = vld [vmem:[%s0 + $0x140] sm:$0xff]
  %v58 = vld [vmem:[%s0 + $0x148] sm:$0xff]
  %v59 = vld [vmem:[%s0 + $0x150] sm:$0xff]
  %v60 = vld [vmem:[%s0 + $0x158] sm:$0xff]
  %v61 = vld [vmem:[%s0 + $0x160] sm:$0xff]
  %v62 = vld [vmem:[%s0 + $0x168] sm:$0xff]
  %v63 = vld [vmem:[%s0 + $0x170] sm:$0xff]
  %v64 = vld [vmem:[%s0 + $0x178] sm:$0xff]
  %v65 = vld [vmem:[%s0 + $0x180] sm:$0xff]
  %v66 = vld [vmem:[%s0 + $0x188] sm:$0xff]
  %v67 = vld [vmem:[%s0 + $0x190] sm:$0xff]
  %v68 = vld [vmem:[%s0 + $0x198] sm:$0xff]
  %v69 = vld [vmem:[%s0 + $0x1a0] sm:$0xff]
  %v70 = vld [vmem:[%s0 + $0x1a8] sm:$0xff]
  %v71 = vld [vmem:[%s0 + $0x1b0] sm:$0xff]
  %v72 = vld [vmem:[%s0 + $0x1b8] sm:$0xff]
  %v73 = vld [vmem:[%s0 + $0x1c0] sm:$0xff]
  %v74 = vld [vmem:[%s0 + $0x1c8] sm:$0xff]
  %v75 = vld [vmem:[%s0 + $0x1d0] sm:$0xff]
  %v76 = vld [vmem:[%s0 + $0x1d8] sm:$0xff]
  %v77 = vld [vmem:[%s0 + $0x1e0] sm:$0xff]
  %v78 = vld [vmem:[%s0 + $0x1e8] sm:$0xff]
  %v79 = vld [vmem:[%s0 + $0x1f0] sm:$0xff]
  %v80 = vld [vmem:[%s0 + $0x1f8] sm:$0xff]
  %v81 = vld [vmem:[%s1] sm:$0xff]
  %v82 = vld [vmem:[%s1 + $0x8] sm:$0xff]
  %v83 = vld [vmem:[%s1 + $0x10] sm:$0xff]
  %v84 = vld [vmem:[%s1 + $0x18] sm:$0xff]
  %v85 = vld [vmem:[%s1 + $0x20] sm:$0xff]
  %v86 = vld [vmem:[%s1 + $0x28] sm:$0xff]
  %v87 = vld [vmem:[%s1 + $0x30] sm:$0xff]
  %v88 = vld [vmem:[%s1 + $0x38] sm:$0xff]
  %vm89 = vcmask 523264
  %v91 = vsel %vm89, %v17, 0
  %v94 = vsel %vm89, %v18, 0
  %v97 = vsel %vm89, %v19, 0
  %v100 = vsel %vm89, %v20, 0
  %v103 = vsel %vm89, %v21, 0
  %v106 = vsel %vm89, %v22, 0
  %v109 = vsel %vm89, %v23, 0
  %v112 = vsel %vm89, %v24, 0
  %v115 = vsel %vm89, %v25, 0
  %v118 = vsel %vm89, %v26, 0
  %v121 = vsel %vm89, %v27, 0
  %v124 = vsel %vm89, %v28, 0
  %v127 = vsel %vm89, %v29, 0
  %v130 = vsel %vm89, %v30, 0
  %v133 = vsel %vm89, %v31, 0
  %v136 = vsel %vm89, %v32, 0
  %v139 = vsel %vm89, %v33, 0
  %v142 = vsel %vm89, %v34, 0
  %v145 = vsel %vm89, %v35, 0
  %v148 = vsel %vm89, %v36, 0
  %v151 = vsel %vm89, %v37, 0
  %v154 = vsel %vm89, %v38, 0
  %v157 = vsel %vm89, %v39, 0
  %v160 = vsel %vm89, %v40, 0
  %v163 = vsel %vm89, %v41, 0
  %v166 = vsel %vm89, %v42, 0
  %v169 = vsel %vm89, %v43, 0
  %v172 = vsel %vm89, %v44, 0
  %v175 = vsel %vm89, %v45, 0
  %v178 = vsel %vm89, %v46, 0
  %v181 = vsel %vm89, %v47, 0
  %v184 = vsel %vm89, %v48, 0
  %v187 = vsel %vm89, %v49, 0
  %v190 = vsel %vm89, %v50, 0
  %v193 = vsel %vm89, %v51, 0
  %v196 = vsel %vm89, %v52, 0
  %v199 = vsel %vm89, %v53, 0
  %v202 = vsel %vm89, %v54, 0
  %v205 = vsel %vm89, %v55, 0
  %v208 = vsel %vm89, %v56, 0
  %v211 = vsel %vm89, %v57, 0
  %v214 = vsel %vm89, %v58, 0
  %v217 = vsel %vm89, %v59, 0
  %v220 = vsel %vm89, %v60, 0
  %v223 = vsel %vm89, %v61, 0
  %v226 = vsel %vm89, %v62, 0
  %v229 = vsel %vm89, %v63, 0
  %v232 = vsel %vm89, %v64, 0
  %v235 = vsel %vm89, %v65, 0
  %v238 = vsel %vm89, %v66, 0
  %v241 = vsel %vm89, %v67, 0
  %v244 = vsel %vm89, %v68, 0
  %v247 = vsel %vm89, %v69, 0
  %v250 = vsel %vm89, %v70, 0
  %v253 = vsel %vm89, %v71, 0
  %v256 = vsel %vm89, %v72, 0
  %v259 = vsel %vm89, %v73, 0
  %v262 = vsel %vm89, %v74, 0
  %v265 = vsel %vm89, %v75, 0
  %v268 = vsel %vm89, %v76, 0
  %v271 = vsel %vm89, %v77, 0
  %v274 = vsel %vm89, %v78, 0
  %v277 = vsel %vm89, %v79, 0
  %v280 = vsel %vm89, %v80, 0
  %282 = vmatprep.subr.mxu0 0.0
  %283 = vmatpush1.msra.mxu0 %v81
  %284 = vmatprep.subr.mxu0 0.0
  %285 = vmatpush1.msra.mxu0 %v82
  %286 = vmatprep.subr.mxu0 0.0
  %287 = vmatpush1.msra.mxu0 %v83
  %288 = vmatprep.subr.mxu0 0.0
  %289 = vmatpush1.msra.mxu0 %v84
  %290 = vmatprep.subr.mxu0 0.0
  %291 = vmatpush1.msra.mxu0 %v85
  %292 = vmatprep.subr.mxu0 0.0
  %293 = vmatpush1.msra.mxu0 %v86
  %294 = vmatprep.subr.mxu0 0.0
  %295 = vmatpush1.msra.mxu0 %v87
  %296 = vmatprep.subr.mxu0 0.0
  %297 = vmatpush1.msra.mxu0 %v88
  %298 = vmatprep.subr.mxu0 0.0
  %299 = vmatpush1.msra.mxu0 0.0
  %300 = vmatprep.subr.mxu0 0.0
  %301 = vmatpush1.msra.mxu0 0.0
  %302 = vmatprep.subr.mxu0 0.0
  %303 = vmatpush1.msra.mxu0 0.0
  %304 = vmatprep.subr.mxu0 0.0
  %305 = vmatpush1.msra.mxu0 0.0
  %306 = vmatprep.subr.mxu0 0.0
  %307 = vmatpush1.msra.mxu0 0.0
  %308 = vmatprep.subr.mxu0 0.0
  %309 = vmatpush1.msra.mxu0 0.0
  %310 = vmatprep.subr.mxu0 0.0
  %311 = vmatpush1.msra.mxu0 0.0
  %312 = vmatprep.subr.mxu0 0.0
  %313 = vmatpush1.msra.mxu0 0.0
  %314 = vmatprep.subr.mxu0 0.0
  %315 = vmatpush1.msra.mxu0 0.0
  %316 = vmatprep.subr.mxu0 0.0
  %317 = vmatpush1.msra.mxu0 0.0
  %318 = vmatprep.subr.mxu0 0.0
  %319 = vmatpush1.msra.mxu0 0.0
  %320 = vmatprep.subr.mxu0 0.0
  %321 = vmatpush1.msra.mxu0 0.0
  %322 = vmatprep.subr.mxu0 0.0
  %323 = vmatpush1.msra.mxu0 0.0
  %324 = vmatprep.subr.mxu0 0.0
  %325 = vmatpush1.msra.mxu0 0.0
  %326 = vmatprep.subr.mxu0 0.0
  %327 = vmatpush1.msra.mxu0 0.0
  %328 = vmatprep.subr.mxu0 0.0
  %329 = vmatpush1.msra.mxu0 0.0
  %330 = vmatprep.subr.mxu0 0.0
  %331 = vmatpush1.msra.mxu0 0.0
  %332 = vmatprep.subr.mxu0 0.0
  %333 = vmatpush1.msra.mxu0 0.0
  %334 = vmatprep.subr.mxu0 0.0
  %335 = vmatpush1.msra.mxu0 0.0
  %336 = vmatprep.subr.mxu0 0.0
  %337 = vmatpush1.msra.mxu0 0.0
  %338 = vmatprep.subr.mxu0 0.0
  %339 = vmatpush1.msra.mxu0 0.0
  %340 = vmatprep.subr.mxu0 0.0
  %341 = vmatpush1.msra.mxu0 0.0
  %342 = vmatprep.subr.mxu0 0.0
  %343 = vmatpush1.msra.mxu0 0.0
  %344 = vmatprep.subr.mxu0 0.0
  %345 = vmatpush1.msra.mxu0 0.0
  %346 = vmatprep.mubr.f32.mxu0 0.0
  %347 = vmatmul.mubr.f32.gmra.mrb[0].mxu0 %v91
  %v348 = vpop.f32.mrb[0].mxu0
  %v349 = vadd.f32 0.0, %v348
  %v350 = vpop.f32.mrb[0].mxu0
  %351 = vmatprep.mubr.f32.mxu0 0.0
  %352 = vmatmul.mubr.f32.gmra.mrb[0].mxu0 %v94
  %v353 = vpop.f32.mrb[0].mxu0
  %v354 = vadd.f32 0.0, %v353
  %v355 = vpop.f32.mrb[0].mxu0
  %356 = vmatprep.mubr.f32.mxu0 0.0
  %357 = vmatmul.mubr.f32.gmra.mrb[0].mxu0 %v97
  %v358 = vpop.f32.mrb[0].mxu0
  %v359 = vadd.f32 0.0, %v358
  %v360 = vpop.f32.mrb[0].mxu0
  %361 = vmatprep.mubr.f32.mxu0 0.0
  %362 = vmatmul.mubr.f32.gmra.mrb[0].mxu0 %v100
  %v363 = vpop.f32.mrb[0].mxu0
  %v364 = vadd.f32 0.0, %v363
  %v365 = vpop.f32.mrb[0].mxu0
  %366 = vmatprep.mubr.f32.mxu0 0.0
  %367 = vmatmul.mubr.f32.gmra.mrb[0].mxu0 %v103
  %v368 = vpop.f32.mrb[0].mxu0
  %v369 = vadd.f32 0.0, %v368
  %v370 = vpop.f32.mrb[0].mxu0
  %371 = vmatprep.mubr.f32.mxu0 0.0
  %372 = vmatmul.mubr.f32.gmra.mrb[0].mxu0 %v106
  %v373 = vpop.f32.mrb[0].mxu0
  %v374 = vadd.f32 0.0, %v373
  %v375 = vpop.f32.mrb[0].mxu0
  %376 = vmatprep.mubr.f32.mxu0 0.0
  %377 = vmatmul.mubr.f32.gmra.mrb[0].mxu0 %v109
  %v378 = vpop.f32.mrb[0].mxu0
  %v379 = vadd.f32 0.0, %v378
  %v380 = vpop.f32.mrb[0].mxu0
  %381 = vmatprep.mubr.f32.mxu0 0.0
  %382 = vmatmul.mubr.f32.gmra.mrb[0].mxu0 %v112
  %v383 = vpop.f32.mrb[0].mxu0
  %v384 = vadd.f32 0.0, %v383
  %v385 = vpop.f32.mrb[0].mxu0
  %386 = vmatprep.mubr.f32.mxu0 0.0
  %387 = vmatmul.mubr.f32.gmra.mrb[0].mxu0 %v115
  %v388 = vpop.f32.mrb[0].mxu0
  %v389 = vadd.f32 0.0, %v388
  %v390 = vpop.f32.mrb[0].mxu0
  %391 = vmatprep.mubr.f32.mxu0 0.0
  %392 = vmatmul.mubr.f32.gmra.mrb[0].mxu0 %v118
  %v393 = vpop.f32.mrb[0].mxu0
  %v394 = vadd.f32 0.0, %v393
  %v395 = vpop.f32.mrb[0].mxu0
  %396 = vmatprep.mubr.f32.mxu0 0.0
  %397 = vmatmul.mubr.f32.gmra.mrb[0].mxu0 %v121
  %v398 = vpop.f32.mrb[0].mxu0
  %v399 = vadd.f32 0.0, %v398
  %v400 = vpop.f32.mrb[0].mxu0
  %401 = vmatprep.mubr.f32.mxu0 0.0
  %402 = vmatmul.mubr.f32.gmra.mrb[0].mxu0 %v124
  %v403 = vpop.f32.mrb[0].mxu0
  %v404 = vadd.f32 0.0, %v403
  %v405 = vpop.f32.mrb[0].mxu0
  %406 = vmatprep.mubr.f32.mxu0 0.0
  %407 = vmatmul.mubr.f32.gmra.mrb[0].mxu0 %v127
  %v408 = vpop.f32.mrb[0].mxu0
  %v409 = vadd.f32 0.0, %v408
  %v410 = vpop.f32.mrb[0].mxu0
  %411 = vmatprep.mubr.f32.mxu0 0.0
  %412 = vmatmul.mubr.f32.gmra.mrb[0].mxu0 %v130
  %v413 = vpop.f32.mrb[0].mxu0
  %v414 = vadd.f32 0.0, %v413
  %v415 = vpop.f32.mrb[0].mxu0
  %416 = vmatprep.mubr.f32.mxu0 0.0
  %417 = vmatmul.mubr.f32.gmra.mrb[0].mxu0 %v133
  %v418 = vpop.f32.mrb[0].mxu0
  %v419 = vadd.f32 0.0, %v418
  %v420 = vpop.f32.mrb[0].mxu0
  %421 = vmatprep.mubr.f32.mxu0 0.0
  %422 = vmatmul.mubr.f32.gmra.mrb[0].mxu0 %v136
  %v423 = vpop.f32.mrb[0].mxu0
  %v424 = vadd.f32 0.0, %v423
  %v425 = vpop.f32.mrb[0].mxu0
  %426 = vmatprep.mubr.f32.mxu0 0.0
  %427 = vmatmul.mubr.f32.gmra.mrb[0].mxu0 %v139
  %v428 = vpop.f32.mrb[0].mxu0
  %v429 = vadd.f32 0.0, %v428
  %v430 = vpop.f32.mrb[0].mxu0
  %431 = vmatprep.mubr.f32.mxu0 0.0
  %432 = vmatmul.mubr.f32.gmra.mrb[0].mxu0 %v142
  %v433 = vpop.f32.mrb[0].mxu0
  %v434 = vadd.f32 0.0, %v433
  %v435 = vpop.f32.mrb[0].mxu0
  %436 = vmatprep.mubr.f32.mxu0 0.0
  %437 = vmatmul.mubr.f32.gmra.mrb[0].mxu0 %v145
  %v438 = vpop.f32.mrb[0].mxu0
  %v439 = vadd.f32 0.0, %v438
  %v440 = vpop.f32.mrb[0].mxu0
  %441 = vmatprep.mubr.f32.mxu0 0.0
  %442 = vmatmul.mubr.f32.gmra.mrb[0].mxu0 %v148
  %v443 = vpop.f32.mrb[0].mxu0
  %v444 = vadd.f32 0.0, %v443
  %v445 = vpop.f32.mrb[0].mxu0
  %446 = vmatprep.mubr.f32.mxu0 0.0
  %447 = vmatmul.mubr.f32.gmra.mrb[0].mxu0 %v151
  %v448 = vpop.f32.mrb[0].mxu0
  %v449 = vadd.f32 0.0, %v448
  %v450 = vpop.f32.mrb[0].mxu0
  %451 = vmatprep.mubr.f32.mxu0 0.0
  %452 = vmatmul.mubr.f32.gmra.mrb[0].mxu0 %v154
  %v453 = vpop.f32.mrb[0].mxu0
  %v454 = vadd.f32 0.0, %v453
  %v455 = vpop.f32.mrb[0].mxu0
  %456 = vmatprep.mubr.f32.mxu0 0.0
  %457 = vmatmul.mubr.f32.gmra.mrb[0].mxu0 %v157
  %v458 = vpop.f32.mrb[0].mxu0
  %v459 = vadd.f32 0.0, %v458
  %v460 = vpop.f32.mrb[0].mxu0
  %461 = vmatprep.mubr.f32.mxu0 0.0
  %462 = vmatmul.mubr.f32.gmra.mrb[0].mxu0 %v160
  %v463 = vpop.f32.mrb[0].mxu0
  %v464 = vadd.f32 0.0, %v463
  %v465 = vpop.f32.mrb[0].mxu0
  %466 = vmatprep.mubr.f32.mxu0 0.0
  %467 = vmatmul.mubr.f32.gmra.mrb[0].mxu0 %v163
  %v468 = vpop.f32.mrb[0].mxu0
  %v469 = vadd.f32 0.0, %v468
  %v470 = vpop.f32.mrb[0].mxu0
  %471 = vmatprep.mubr.f32.mxu0 0.0
  %472 = vmatmul.mubr.f32.gmra.mrb[0].mxu0 %v166
  %v473 = vpop.f32.mrb[0].mxu0
  %v474 = vadd.f32 0.0, %v473
  %v475 = vpop.f32.mrb[0].mxu0
  %476 = vmatprep.mubr.f32.mxu0 0.0
  %477 = vmatmul.mubr.f32.gmra.mrb[0].mxu0 %v169
  %v478 = vpop.f32.mrb[0].mxu0
  %v479 = vadd.f32 0.0, %v478
  %v480 = vpop.f32.mrb[0].mxu0
  %481 = vmatprep.mubr.f32.mxu0 0.0
  %482 = vmatmul.mubr.f32.gmra.mrb[0].mxu0 %v172
  %v483 = vpop.f32.mrb[0].mxu0
  %v484 = vadd.f32 0.0, %v483
  %v485 = vpop.f32.mrb[0].mxu0
  %486 = vmatprep.mubr.f32.mxu0 0.0
  %487 = vmatmul.mubr.f32.gmra.mrb[0].mxu0 %v175
  %v488 = vpop.f32.mrb[0].mxu0
  %v489 = vadd.f32 0.0, %v488
  %v490 = vpop.f32.mrb[0].mxu0
  %491 = vmatprep.mubr.f32.mxu0 0.0
  %492 = vmatmul.mubr.f32.gmra.mrb[0].mxu0 %v178
  %v493 = vpop.f32.mrb[0].mxu0
  %v494 = vadd.f32 0.0, %v493
  %v495 = vpop.f32.mrb[0].mxu0
  %496 = vmatprep.mubr.f32.mxu0 0.0
  %497 = vmatmul.mubr.f32.gmra.mrb[0].mxu0 %v181
  %v498 = vpop.f32.mrb[0].mxu0
  %v499 = vadd.f32 0.0, %v498
  %v500 = vpop.f32.mrb[0].mxu0
  %501 = vmatprep.mubr.f32.mxu0 0.0
  %502 = vmatmul.mubr.f32.gmra.mrb[0].mxu0 %v184
  %v503 = vpop.f32.mrb[0].mxu0
  %v504 = vadd.f32 0.0, %v503
  %v505 = vpop.f32.mrb[0].mxu0
  %506 = vmatprep.mubr.f32.mxu0 0.0
  %507 = vmatmul.mubr.f32.gmra.mrb[0].mxu0 %v187
  %v508 = vpop.f32.mrb[0].mxu0
  %v509 = vadd.f32 0.0, %v508
  %v510 = vpop.f32.mrb[0].mxu0
  %511 = vmatprep.mubr.f32.mxu0 0.0
  %512 = vmatmul.mubr.f32.gmra.mrb[0].mxu0 %v190
  %v513 = vpop.f32.mrb[0].mxu0
  %v514 = vadd.f32 0.0, %v513
  %v515 = vpop.f32.mrb[0].mxu0
  %516 = vmatprep.mubr.f32.mxu0 0.0
  %517 = vmatmul.mubr.f32.gmra.mrb[0].mxu0 %v193
  %v518 = vpop.f32.mrb[0].mxu0
  %v519 = vadd.f32 0.0, %v518
  %v520 = vpop.f32.mrb[0].mxu0
  %521 = vmatprep.mubr.f32.mxu0 0.0
  %522 = vmatmul.mubr.f32.gmra.mrb[0].mxu0 %v196
  %v523 = vpop.f32.mrb[0].mxu0
  %v524 = vadd.f32 0.0, %v523
  %v525 = vpop.f32.mrb[0].mxu0
  %526 = vmatprep.mubr.f32.mxu0 0.0
  %527 = vmatmul.mubr.f32.gmra.mrb[0].mxu0 %v199
  %v528 = vpop.f32.mrb[0].mxu0
  %v529 = vadd.f32 0.0, %v528
  %v530 = vpop.f32.mrb[0].mxu0
  %531 = vmatprep.mubr.f32.mxu0 0.0
  %532 = vmatmul.mubr.f32.gmra.mrb[0].mxu0 %v202
  %v533 = vpop.f32.mrb[0].mxu0
  %v534 = vadd.f32 0.0, %v533
  %v535 = vpop.f32.mrb[0].mxu0
  %536 = vmatprep.mubr.f32.mxu0 0.0
  %537 = vmatmul.mubr.f32.gmra.mrb[0].mxu0 %v205
  %v538 = vpop.f32.mrb[0].mxu0
  %v539 = vadd.f32 0.0, %v538
  %v540 = vpop.f32.mrb[0].mxu0
  %541 = vmatprep.mubr.f32.mxu0 0.0
  %542 = vmatmul.mubr.f32.gmra.mrb[0].mxu0 %v208
  %v543 = vpop.f32.mrb[0].mxu0
  %v544 = vadd.f32 0.0, %v543
  %v545 = vpop.f32.mrb[0].mxu0
  %546 = vmatprep.mubr.f32.mxu0 0.0
  %547 = vmatmul.mubr.f32.gmra.mrb[0].mxu0 %v211
  %v548 = vpop.f32.mrb[0].mxu0
  %v549 = vadd.f32 0.0, %v548
  %v550 = vpop.f32.mrb[0].mxu0
  %551 = vmatprep.mubr.f32.mxu0 0.0
  %552 = vmatmul.mubr.f32.gmra.mrb[0].mxu0 %v214
  %v553 = vpop.f32.mrb[0].mxu0
  %v554 = vadd.f32 0.0, %v553
  %v555 = vpop.f32.mrb[0].mxu0
  %556 = vmatprep.mubr.f32.mxu0 0.0
  %557 = vmatmul.mubr.f32.gmra.mrb[0].mxu0 %v217
  %v558 = vpop.f32.mrb[0].mxu0
  %v559 = vadd.f32 0.0, %v558
  %v560 = vpop.f32.mrb[0].mxu0
  %561 = vmatprep.mubr.f32.mxu0 0.0
  %562 = vmatmul.mubr.f32.gmra.mrb[0].mxu0 %v220
  %v563 = vpop.f32.mrb[0].mxu0
  %v564 = vadd.f32 0.0, %v563
  %v565 = vpop.f32.mrb[0].mxu0
  %566 = vmatprep.mubr.f32.mxu0 0.0
  %567 = vmatmul.mubr.f32.gmra.mrb[0].mxu0 %v223
  %v568 = vpop.f32.mrb[0].mxu0
  %v569 = vadd.f32 0.0, %v568
  %v570 = vpop.f32.mrb[0].mxu0
  %571 = vmatprep.mubr.f32.mxu0 0.0
  %572 = vmatmul.mubr.f32.gmra.mrb[0].mxu0 %v226
  %v573 = vpop.f32.mrb[0].mxu0
  %v574 = vadd.f32 0.0, %v573
  %v575 = vpop.f32.mrb[0].mxu0
  %576 = vmatprep.mubr.f32.mxu0 0.0
  %577 = vmatmul.mubr.f32.gmra.mrb[0].mxu0 %v229
  %v578 = vpop.f32.mrb[0].mxu0
  %v579 = vadd.f32 0.0, %v578
  %v580 = vpop.f32.mrb[0].mxu0
  %581 = vmatprep.mubr.f32.mxu0 0.0
  %582 = vmatmul.mubr.f32.gmra.mrb[0].mxu0 %v232
  %v583 = vpop.f32.mrb[0].mxu0
  %v584 = vadd.f32 0.0, %v583
  %v585 = vpop.f32.mrb[0].mxu0
  %586 = vmatprep.mubr.f32.mxu0 0.0
  %587 = vmatmul.mubr.f32.gmra.mrb[0].mxu0 %v235
  %v588 = vpop.f32.mrb[0].mxu0
  %v589 = vadd.f32 0.0, %v588
  %v590 = vpop.f32.mrb[0].mxu0
  %591 = vmatprep.mubr.f32.mxu0 0.0
  %592 = vmatmul.mubr.f32.gmra.mrb[0].mxu0 %v238
  %v593 = vpop.f32.mrb[0].mxu0
  %v594 = vadd.f32 0.0, %v593
  %v595 = vpop.f32.mrb[0].mxu0
  %596 = vmatprep.mubr.f32.mxu0 0.0
  %597 = vmatmul.mubr.f32.gmra.mrb[0].mxu0 %v241
  %v598 = vpop.f32.mrb[0].mxu0
  %v599 = vadd.f32 0.0, %v598
  %v600 = vpop.f32.mrb[0].mxu0
  %601 = vmatprep.mubr.f32.mxu0 0.0
  %602 = vmatmul.mubr.f32.gmra.mrb[0].mxu0 %v244
  %v603 = vpop.f32.mrb[0].mxu0
  %v604 = vadd.f32 0.0, %v603
  %v605 = vpop.f32.mrb[0].mxu0
  %606 = vmatprep.mubr.f32.mxu0 0.0
  %607 = vmatmul.mubr.f32.gmra.mrb[0].mxu0 %v247
  %v608 = vpop.f32.mrb[0].mxu0
  %v609 = vadd.f32 0.0, %v608
  %v610 = vpop.f32.mrb[0].mxu0
  %611 = vmatprep.mubr.f32.mxu0 0.0
  %612 = vmatmul.mubr.f32.gmra.mrb[0].mxu0 %v250
  %v613 = vpop.f32.mrb[0].mxu0
  %v614 = vadd.f32 0.0, %v613
  %v615 = vpop.f32.mrb[0].mxu0
  %616 = vmatprep.mubr.f32.mxu0 0.0
  %617 = vmatmul.mubr.f32.gmra.mrb[0].mxu0 %v253
  %v618 = vpop.f32.mrb[0].mxu0
  %v619 = vadd.f32 0.0, %v618
  %v620 = vpop.f32.mrb[0].mxu0
  %621 = vmatprep.mubr.f32.mxu0 0.0
  %622 = vmatmul.mubr.f32.gmra.mrb[0].mxu0 %v256
  %v623 = vpop.f32.mrb[0].mxu0
  %v624 = vadd.f32 0.0, %v623
  %v625 = vpop.f32.mrb[0].mxu0
  %626 = vmatprep.mubr.f32.mxu0 0.0
  %627 = vmatmul.mubr.f32.gmra.mrb[0].mxu0 %v259
  %v628 = vpop.f32.mrb[0].mxu0
  %v629 = vadd.f32 0.0, %v628
  %v630 = vpop.f32.mrb[0].mxu0
  %631 = vmatprep.mubr.f32.mxu0 0.0
  %632 = vmatmul.mubr.f32.gmra.mrb[0].mxu0 %v262
  %v633 = vpop.f32.mrb[0].mxu0
  %v634 = vadd.f32 0.0, %v633
  %v635 = vpop.f32.mrb[0].mxu0
  %636 = vmatprep.mubr.f32.mxu0 0.0
  %637 = vmatmul.mubr.f32.gmra.mrb[0].mxu0 %v265
  %v638 = vpop.f32.mrb[0].mxu0
  %v639 = vadd.f32 0.0, %v638
  %v640 = vpop.f32.mrb[0].mxu0
  %641 = vmatprep.mubr.f32.mxu0 0.0
  %642 = vmatmul.mubr.f32.gmra.mrb[0].mxu0 %v268
  %v643 = vpop.f32.mrb[0].mxu0
  %v644 = vadd.f32 0.0, %v643
  %v645 = vpop.f32.mrb[0].mxu0
  %646 = vmatprep.mubr.f32.mxu0 0.0
  %647 = vmatmul.mubr.f32.gmra.mrb[0].mxu0 %v271
  %v648 = vpop.f32.mrb[0].mxu0
  %v649 = vadd.f32 0.0, %v648
  %v650 = vpop.f32.mrb[0].mxu0
  %651 = vmatprep.mubr.f32.mxu0 0.0
  %652 = vmatmul.mubr.f32.gmra.mrb[0].mxu0 %v274
  %v653 = vpop.f32.mrb[0].mxu0
  %v654 = vadd.f32 0.0, %v653
  %v655 = vpop.f32.mrb[0].mxu0
  %656 = vmatprep.mubr.f32.mxu0 0.0
  %657 = vmatmul.mubr.f32.gmra.mrb[0].mxu0 %v277
  %v658 = vpop.f32.mrb[0].mxu0
  %v659 = vadd.f32 0.0, %v658
  %v660 = vpop.f32.mrb[0].mxu0
  %661 = vmatprep.mubr.f32.mxu0 0.0
  %662 = vmatmul.mubr.f32.gmra.mrb[0].mxu0 %v280
  %v663 = vpop.f32.mrb[0].mxu0
  %v664 = vadd.f32 0.0, %v663
  %v665 = vpop.f32.mrb[0].mxu0
  %666 = vdwg.mxu0
  %v667 = vld [vmem:[%s2] sm:$0x1]
  %v669 = vlaneseq
  %v670 = vshrl.u32 %v669, 7
  %v671 = vsub.s32 0, %v670
  %v672 = vrot.slane %v667, %v671
  %v674 = vmul.f32 %v349, %v672
  %v675 = vmul.f32 %v354, %v672
  %v676 = vmul.f32 %v359, %v672
  %v677 = vmul.f32 %v364, %v672
  %v678 = vmul.f32 %v369, %v672
  %v679 = vmul.f32 %v374, %v672
  %v680 = vmul.f32 %v379, %v672
  %v681 = vmul.f32 %v384, %v672
  %v682 = vmul.f32 %v389, %v672
  %v683 = vmul.f32 %v394, %v672
  %v684 = vmul.f32 %v399, %v672
  %v685 = vmul.f32 %v404, %v672
  %v686 = vmul.f32 %v409, %v672
  %v687 = vmul.f32 %v414, %v672
  %v688 = vmul.f32 %v419, %v672
  %v689 = vmul.f32 %v424, %v672
  %v690 = vmul.f32 %v429, %v672
  %v691 = vmul.f32 %v434, %v672
  %v692 = vmul.f32 %v439, %v672
  %v693 = vmul.f32 %v444, %v672
  %v694 = vmul.f32 %v449, %v672
  %v695 = vmul.f32 %v454, %v672
  %v696 = vmul.f32 %v459, %v672
  %v697 = vmul.f32 %v464, %v672
  %v698 = vmul.f32 %v469, %v672
  %v699 = vmul.f32 %v474, %v672
  %v700 = vmul.f32 %v479, %v672
  %v701 = vmul.f32 %v484, %v672
  %v702 = vmul.f32 %v489, %v672
  %v703 = vmul.f32 %v494, %v672
  %v704 = vmul.f32 %v499, %v672
  %v705 = vmul.f32 %v504, %v672
  %v706 = vmul.f32 %v509, %v672
  %v707 = vmul.f32 %v514, %v672
  %v708 = vmul.f32 %v519, %v672
  %v709 = vmul.f32 %v524, %v672
  %v710 = vmul.f32 %v529, %v672
  %v711 = vmul.f32 %v534, %v672
  %v712 = vmul.f32 %v539, %v672
  %v713 = vmul.f32 %v544, %v672
  %v714 = vmul.f32 %v549, %v672
  %v715 = vmul.f32 %v554, %v672
  %v716 = vmul.f32 %v559, %v672
  %v717 = vmul.f32 %v564, %v672
  %v718 = vmul.f32 %v569, %v672
  %v719 = vmul.f32 %v574, %v672
  %v720 = vmul.f32 %v579, %v672
  %v721 = vmul.f32 %v584, %v672
  %v722 = vmul.f32 %v589, %v672
  %v723 = vmul.f32 %v594, %v672
  %v724 = vmul.f32 %v599, %v672
  %v725 = vmul.f32 %v604, %v672
  %v726 = vmul.f32 %v609, %v672
  %v727 = vmul.f32 %v614, %v672
  %v728 = vmul.f32 %v619, %v672
  %v729 = vmul.f32 %v624, %v672
  %v730 = vmul.f32 %v629, %v672
  %v731 = vmul.f32 %v634, %v672
  %v732 = vmul.f32 %v639, %v672
  %v733 = vmul.f32 %v644, %v672
  %v734 = vmul.f32 %v649, %v672
  %v735 = vmul.f32 %v654, %v672
  %v736 = vmul.f32 %v659, %v672
  %v737 = vmul.f32 %v664, %v672
  %v738 = vld [vmem:[%s3] sm:$0x1]
  %v740 = vlaneseq
  %v741 = vshrl.u32 %v740, 7
  %v742 = vsub.s32 0, %v741
  %v743 = vrot.slane %v738, %v742
  %v745 = vadd.f32 %v674, %v743
  %v746 = vadd.f32 %v675, %v743
  %v747 = vadd.f32 %v676, %v743
  %v748 = vadd.f32 %v677, %v743
  %v749 = vadd.f32 %v678, %v743
  %v750 = vadd.f32 %v679, %v743
  %v751 = vadd.f32 %v680, %v743
  %v752 = vadd.f32 %v681, %v743
  %v753 = vadd.f32 %v682, %v743
  %v754 = vadd.f32 %v683, %v743
  %v755 = vadd.f32 %v684, %v743
  %v756 = vadd.f32 %v685, %v743
  %v757 = vadd.f32 %v686, %v743
  %v758 = vadd.f32 %v687, %v743
  %v759 = vadd.f32 %v688, %v743
  %v760 = vadd.f32 %v689, %v743
  %v761 = vadd.f32 %v690, %v743
  %v762 = vadd.f32 %v691, %v743
  %v763 = vadd.f32 %v692, %v743
  %v764 = vadd.f32 %v693, %v743
  %v765 = vadd.f32 %v694, %v743
  %v766 = vadd.f32 %v695, %v743
  %v767 = vadd.f32 %v696, %v743
  %v768 = vadd.f32 %v697, %v743
  %v769 = vadd.f32 %v698, %v743
  %v770 = vadd.f32 %v699, %v743
  %v771 = vadd.f32 %v700, %v743
  %v772 = vadd.f32 %v701, %v743
  %v773 = vadd.f32 %v702, %v743
  %v774 = vadd.f32 %v703, %v743
  %v775 = vadd.f32 %v704, %v743
  %v776 = vadd.f32 %v705, %v743
  %v777 = vadd.f32 %v706, %v743
  %v778 = vadd.f32 %v707, %v743
  %v779 = vadd.f32 %v708, %v743
  %v780 = vadd.f32 %v709, %v743
  %v781 = vadd.f32 %v710, %v743
  %v782 = vadd.f32 %v711, %v743
  %v783 = vadd.f32 %v712, %v743
  %v784 = vadd.f32 %v713, %v743
  %v785 = vadd.f32 %v714, %v743
  %v786 = vadd.f32 %v715, %v743
  %v787 = vadd.f32 %v716, %v743
  %v788 = vadd.f32 %v717, %v743
  %v789 = vadd.f32 %v718, %v743
  %v790 = vadd.f32 %v719, %v743
  %v791 = vadd.f32 %v720, %v743
  %v792 = vadd.f32 %v721, %v743
  %v793 = vadd.f32 %v722, %v743
  %v794 = vadd.f32 %v723, %v743
  %v795 = vadd.f32 %v724, %v743
  %v796 = vadd.f32 %v725, %v743
  %v797 = vadd.f32 %v726, %v743
  %v798 = vadd.f32 %v727, %v743
  %v799 = vadd.f32 %v728, %v743
  %v800 = vadd.f32 %v729, %v743
  %v801 = vadd.f32 %v730, %v743
  %v802 = vadd.f32 %v731, %v743
  %v803 = vadd.f32 %v732, %v743
  %v804 = vadd.f32 %v733, %v743
  %v805 = vadd.f32 %v734, %v743
  %v806 = vadd.f32 %v735, %v743
  %v807 = vadd.f32 %v736, %v743
  %v808 = vadd.f32 %v737, %v743
  %809 = vst [vmem:[%s4] sm:$0xff] %v745
  %810 = vst [vmem:[%s4 + $0x8] sm:$0xff] %v746
  %811 = vst [vmem:[%s4 + $0x10] sm:$0xff] %v747
  %812 = vst [vmem:[%s4 + $0x18] sm:$0xff] %v748
  %813 = vst [vmem:[%s4 + $0x20] sm:$0xff] %v749
  %814 = vst [vmem:[%s4 + $0x28] sm:$0xff] %v750
  %815 = vst [vmem:[%s4 + $0x30] sm:$0xff] %v751
  %816 = vst [vmem:[%s4 + $0x38] sm:$0xff] %v752
  %817 = vst [vmem:[%s4 + $0x40] sm:$0xff] %v753
  %818 = vst [vmem:[%s4 + $0x48] sm:$0xff] %v754
  %819 = vst [vmem:[%s4 + $0x50] sm:$0xff] %v755
  %820 = vst [vmem:[%s4 + $0x58] sm:$0xff] %v756
  %821 = vst [vmem:[%s4 + $0x60] sm:$0xff] %v757
  %822 = vst [vmem:[%s4 + $0x68] sm:$0xff] %v758
  %823 = vst [vmem:[%s4 + $0x70] sm:$0xff] %v759
  %824 = vst [vmem:[%s4 + $0x78] sm:$0xff] %v760
  %825 = vst [vmem:[%s4 + $0x80] sm:$0xff] %v761
  %826 = vst [vmem:[%s4 + $0x88] sm:$0xff] %v762
  %827 = vst [vmem:[%s4 + $0x90] sm:$0xff] %v763
  %828 = vst [vmem:[%s4 + $0x98] sm:$0xff] %v764
  %829 = vst [vmem:[%s4 + $0xa0] sm:$0xff] %v765
  %830 = vst [vmem:[%s4 + $0xa8] sm:$0xff] %v766
  %831 = vst [vmem:[%s4 + $0xb0] sm:$0xff] %v767
  %832 = vst [vmem:[%s4 + $0xb8] sm:$0xff] %v768
  %833 = vst [vmem:[%s4 + $0xc0] sm:$0xff] %v769
  %834 = vst [vmem:[%s4 + $0xc8] sm:$0xff] %v770
  %835 = vst [vmem:[%s4 + $0xd0] sm:$0xff] %v771
  %836 = vst [vmem:[%s4 + $0xd8] sm:$0xff] %v772
  %837 = vst [vmem:[%s4 + $0xe0] sm:$0xff] %v773
  %838 = vst [vmem:[%s4 + $0xe8] sm:$0xff] %v774
  %839 = vst [vmem:[%s4 + $0xf0] sm:$0xff] %v775
  %840 = vst [vmem:[%s4 + $0xf8] sm:$0xff] %v776
  %841 = vst [vmem:[%s4 + $0x100] sm:$0xff] %v777
  %842 = vst [vmem:[%s4 + $0x108] sm:$0xff] %v778
  %843 = vst [vmem:[%s4 + $0x110] sm:$0xff] %v779
  %844 = vst [vmem:[%s4 + $0x118] sm:$0xff] %v780
  %845 = vst [vmem:[%s4 + $0x120] sm:$0xff] %v781
  %846 = vst [vmem:[%s4 + $0x128] sm:$0xff] %v782
  %847 = vst [vmem:[%s4 + $0x130] sm:$0xff] %v783
  %848 = vst [vmem:[%s4 + $0x138] sm:$0xff] %v784
  %849 = vst [vmem:[%s4 + $0x140] sm:$0xff] %v785
  %850 = vst [vmem:[%s4 + $0x148] sm:$0xff] %v786
  %851 = vst [vmem:[%s4 + $0x150] sm:$0xff] %v787
  %852 = vst [vmem:[%s4 + $0x158] sm:$0xff] %v788
  %853 = vst [vmem:[%s4 + $0x160] sm:$0xff] %v789
  %854 = vst [vmem:[%s4 + $0x168] sm:$0xff] %v790
  %855 = vst [vmem:[%s4 + $0x170] sm:$0xff] %v791
  %856 = vst [vmem:[%s4 + $0x178] sm:$0xff] %v792
  %857 = vst [vmem:[%s4 + $0x180] sm:$0xff] %v793
  %858 = vst [vmem:[%s4 + $0x188] sm:$0xff] %v794
  %859 = vst [vmem:[%s4 + $0x190] sm:$0xff] %v795
  %860 = vst [vmem:[%s4 + $0x198] sm:$0xff] %v796
  %861 = vst [vmem:[%s4 + $0x1a0] sm:$0xff] %v797
  %862 = vst [vmem:[%s4 + $0x1a8] sm:$0xff] %v798
  %863 = vst [vmem:[%s4 + $0x1b0] sm:$0xff] %v799
  %864 = vst [vmem:[%s4 + $0x1b8] sm:$0xff] %v800
  %865 = vst [vmem:[%s4 + $0x1c0] sm:$0xff] %v801
  %866 = vst [vmem:[%s4 + $0x1c8] sm:$0xff] %v802
  %867 = vst [vmem:[%s4 + $0x1d0] sm:$0xff] %v803
  %868 = vst [vmem:[%s4 + $0x1d8] sm:$0xff] %v804
  %869 = vst [vmem:[%s4 + $0x1e0] sm:$0xff] %v805
  %870 = vst [vmem:[%s4 + $0x1e8] sm:$0xff] %v806
  %871 = vst [vmem:[%s4 + $0x1f0] sm:$0xff] %v807
  %872 = vst [vmem:[%s4 + $0x1f8] sm:$0xff] %v808
  // Predicated region
  $region18: #{bottleneck_forward.14} parent=0 // pred_check
    _
  $region19: #{bottleneck_forward.14} parent=0 // pred_check_branch
    %874 = sbr.rel (0) target = $region21
  $region20: #{bottleneck_forward.14} parent=0 // pred_region
    _
  $region21: #{bottleneck_forward.14} parent=0 // pred_fallthru
    _
  // Predicated region
  $region22: #{bottleneck_forward.14} parent=0 // pred_check
    _
  $region23: #{bottleneck_forward.14} parent=0 // pred_check_branch
    %876 = sbr.rel (0) target = $region25
  $region24: #{bottleneck_forward.14} parent=0 // pred_region
    _
  $region25: #{bottleneck_forward.14} parent=0 // pred_fallthru
    _

// kernel: bottleneck_forward.15
$region0: #{bottleneck_forward.15}
  #allocation0 [shape = 'u32[]', space=smem, size = 0x4, offset = 0x4, fixed_abs, tag = 'smem constant byte address 0x4 - core index']
  #allocation1 [shape = 'u32[144,128]{1,0:T(1,128)}', space=vmem, size = 0x12000, scoped, tag = 'internal scratch']
  %s0 = inlined_call_operand.vmem [shape: f32[512,128], index: 0, kind: input, shape index: {}]
  %s1 = inlined_call_operand.vmem [shape: f32[512,128], index: 1, kind: input, shape index: {}]
  %s2 = inlined_call_operand.hbm [shape: f32[512,128], index: 2, kind: output, shape index: {}]
  %s3 = sld [smem:[#allocation0]]
  $region18: #{bottleneck_forward.15} parent=0
    _
  %s5 = ssub.s32 1, %s3
  %s6 = scalar_select 0, %s5, %s3
  $region1: #{bottleneck_forward.15} parent=0
    #allocation2 [shape = 'u8[262144]{0}', space=vmem, size = 0x40000, scoped, tag = 'output window, operand 0, single buffered']
    #allocation3 [shape = 's32[1]{0}', space=sflag, size = 0x4, scoped, tag = 'scoped memory for bottleneck_forward.15']
    %7 = vsyncpa [#allocation3], 0
    // Predicated region
    $region2: #{bottleneck_forward.15} parent=1 // pred_check
      _
    $region3: #{bottleneck_forward.15} parent=1 // pred_check_branch
      %9 = sbr.rel (0) target = $region5
    $region4: #{bottleneck_forward.15} parent=1 // pred_region
      _
    $region5: #{bottleneck_forward.15} parent=1 // pred_fallthru
      _
    // Predicated region
    $region6: #{bottleneck_forward.15} parent=1 // pred_check
      _
    $region7: #{bottleneck_forward.15} parent=1 // pred_check_branch
      %11 = sbr.rel (0) target = $region9
    $region8: #{bottleneck_forward.15} parent=1 // pred_region
      _
    $region9: #{bottleneck_forward.15} parent=1 // pred_fallthru
      _
    %v12 = vld [vmem:[%s0] sm:$0xff]
    %v13 = vld [vmem:[%s0 + $0x8] sm:$0xff]
    %v14 = vld [vmem:[%s0 + $0x10] sm:$0xff]
    %v15 = vld [vmem:[%s0 + $0x18] sm:$0xff]
    %v16 = vld [vmem:[%s0 + $0x20] sm:$0xff]
    %v17 = vld [vmem:[%s0 + $0x28] sm:$0xff]
    %v18 = vld [vmem:[%s0 + $0x30] sm:$0xff]
    %v19 = vld [vmem:[%s0 + $0x38] sm:$0xff]
    %v20 = vld [vmem:[%s0 + $0x40] sm:$0xff]
    %v21 = vld [vmem:[%s0 + $0x48] sm:$0xff]
    %v22 = vld [vmem:[%s0 + $0x50] sm:$0xff]
    %v23 = vld [vmem:[%s0 + $0x58] sm:$0xff]
    %v24 = vld [vmem:[%s0 + $0x60] sm:$0xff]
    %v25 = vld [vmem:[%s0 + $0x68] sm:$0xff]
    %v26 = vld [vmem:[%s0 + $0x70] sm:$0xff]
    %v27 = vld [vmem:[%s0 + $0x78] sm:$0xff]
    %v28 = vld [vmem:[%s0 + $0x80] sm:$0xff]
    %v29 = vld [vmem:[%s0 + $0x88] sm:$0xff]
    %v30 = vld [vmem:[%s0 + $0x90] sm:$0xff]
    %v31 = vld [vmem:[%s0 + $0x98] sm:$0xff]
    %v32 = vld [vmem:[%s0 + $0xa0] sm:$0xff]
    %v33 = vld [vmem:[%s0 + $0xa8] sm:$0xff]
    %v34 = vld [vmem:[%s0 + $0xb0] sm:$0xff]
    %v35 = vld [vmem:[%s0 + $0xb8] sm:$0xff]
    %v36 = vld [vmem:[%s0 + $0xc0] sm:$0xff]
    %v37 = vld [vmem:[%s0 + $0xc8] sm:$0xff]
    %v38 = vld [vmem:[%s0 + $0xd0] sm:$0xff]
    %v39 = vld [vmem:[%s0 + $0xd8] sm:$0xff]
    %v40 = vld [vmem:[%s0 + $0xe0] sm:$0xff]
    %v41 = vld [vmem:[%s0 + $0xe8] sm:$0xff]
    %v42 = vld [vmem:[%s0 + $0xf0] sm:$0xff]
    %v43 = vld [vmem:[%s0 + $0xf8] sm:$0xff]
    %v44 = vld [vmem:[%s0 + $0x100] sm:$0xff]
    %v45 = vld [vmem:[%s0 + $0x108] sm:$0xff]
    %v46 = vld [vmem:[%s0 + $0x110] sm:$0xff]
    %v47 = vld [vmem:[%s0 + $0x118] sm:$0xff]
    %v48 = vld [vmem:[%s0 + $0x120] sm:$0xff]
    %v49 = vld [vmem:[%s0 + $0x128] sm:$0xff]
    %v50 = vld [vmem:[%s0 + $0x130] sm:$0xff]
    %v51 = vld [vmem:[%s0 + $0x138] sm:$0xff]
    %v52 = vld [vmem:[%s0 + $0x140] sm:$0xff]
    %v53 = vld [vmem:[%s0 + $0x148] sm:$0xff]
    %v54 = vld [vmem:[%s0 + $0x150] sm:$0xff]
    %v55 = vld [vmem:[%s0 + $0x158] sm:$0xff]
    %v56 = vld [vmem:[%s0 + $0x160] sm:$0xff]
    %v57 = vld [vmem:[%s0 + $0x168] sm:$0xff]
    %v58 = vld [vmem:[%s0 + $0x170] sm:$0xff]
    %v59 = vld [vmem:[%s0 + $0x178] sm:$0xff]
    %v60 = vld [vmem:[%s0 + $0x180] sm:$0xff]
    %v61 = vld [vmem:[%s0 + $0x188] sm:$0xff]
    %v62 = vld [vmem:[%s0 + $0x190] sm:$0xff]
    %v63 = vld [vmem:[%s0 + $0x198] sm:$0xff]
    %v64 = vld [vmem:[%s0 + $0x1a0] sm:$0xff]
    %v65 = vld [vmem:[%s0 + $0x1a8] sm:$0xff]
    %v66 = vld [vmem:[%s0 + $0x1b0] sm:$0xff]
    %v67 = vld [vmem:[%s0 + $0x1b8] sm:$0xff]
    %v68 = vld [vmem:[%s0 + $0x1c0] sm:$0xff]
    %v69 = vld [vmem:[%s0 + $0x1c8] sm:$0xff]
    %v70 = vld [vmem:[%s0 + $0x1d0] sm:$0xff]
    %v71 = vld [vmem:[%s0 + $0x1d8] sm:$0xff]
    %v72 = vld [vmem:[%s0 + $0x1e0] sm:$0xff]
    %v73 = vld [vmem:[%s0 + $0x1e8] sm:$0xff]
    %v74 = vld [vmem:[%s0 + $0x1f0] sm:$0xff]
    %v75 = vld [vmem:[%s0 + $0x1f8] sm:$0xff]
    %v76 = vld [vmem:[%s1] sm:$0xff]
    %v77 = vld [vmem:[%s1 + $0x8] sm:$0xff]
    %v78 = vld [vmem:[%s1 + $0x10] sm:$0xff]
    %v79 = vld [vmem:[%s1 + $0x18] sm:$0xff]
    %v80 = vld [vmem:[%s1 + $0x20] sm:$0xff]
    %v81 = vld [vmem:[%s1 + $0x28] sm:$0xff]
    %v82 = vld [vmem:[%s1 + $0x30] sm:$0xff]
    %v83 = vld [vmem:[%s1 + $0x38] sm:$0xff]
    %v84 = vld [vmem:[%s1 + $0x40] sm:$0xff]
    %v85 = vld [vmem:[%s1 + $0x48] sm:$0xff]
    %v86 = vld [vmem:[%s1 + $0x50] sm:$0xff]
    %v87 = vld [vmem:[%s1 + $0x58] sm:$0xff]
    %v88 = vld [vmem:[%s1 + $0x60] sm:$0xff]
    %v89 = vld [vmem:[%s1 + $0x68] sm:$0xff]
    %v90 = vld [vmem:[%s1 + $0x70] sm:$0xff]
    %v91 = vld [vmem:[%s1 + $0x78] sm:$0xff]
    %v92 = vld [vmem:[%s1 + $0x80] sm:$0xff]
    %v93 = vld [vmem:[%s1 + $0x88] sm:$0xff]
    %v94 = vld [vmem:[%s1 + $0x90] sm:$0xff]
    %v95 = vld [vmem:[%s1 + $0x98] sm:$0xff]
    %v96 = vld [vmem:[%s1 + $0xa0] sm:$0xff]
    %v97 = vld [vmem:[%s1 + $0xa8] sm:$0xff]
    %v98 = vld [vmem:[%s1 + $0xb0] sm:$0xff]
    %v99 = vld [vmem:[%s1 + $0xb8] sm:$0xff]
    %v100 = vld [vmem:[%s1 + $0xc0] sm:$0xff]
    %v101 = vld [vmem:[%s1 + $0xc8] sm:$0xff]
    %v102 = vld [vmem:[%s1 + $0xd0] sm:$0xff]
    %v103 = vld [vmem:[%s1 + $0xd8] sm:$0xff]
    %v104 = vld [vmem:[%s1 + $0xe0] sm:$0xff]
    %v105 = vld [vmem:[%s1 + $0xe8] sm:$0xff]
    %v106 = vld [vmem:[%s1 + $0xf0] sm:$0xff]
    %v107 = vld [vmem:[%s1 + $0xf8] sm:$0xff]
    %v108 = vld [vmem:[%s1 + $0x100] sm:$0xff]
    %v109 = vld [vmem:[%s1 + $0x108] sm:$0xff]
    %v110 = vld [vmem:[%s1 + $0x110] sm:$0xff]
    %v111 = vld [vmem:[%s1 + $0x118] sm:$0xff]
    %v112 = vld [vmem:[%s1 + $0x120] sm:$0xff]
    %v113 = vld [vmem:[%s1 + $0x128] sm:$0xff]
    %v114 = vld [vmem:[%s1 + $0x130] sm:$0xff]
    %v115 = vld [vmem:[%s1 + $0x138] sm:$0xff]
    %v116 = vld [vmem:[%s1 + $0x140] sm:$0xff]
    %v117 = vld [vmem:[%s1 + $0x148] sm:$0xff]
    %v118 = vld [vmem:[%s1 + $0x150] sm:$0xff]
    %v119 = vld [vmem:[%s1 + $0x158] sm:$0xff]
    %v120 = vld [vmem:[%s1 + $0x160] sm:$0xff]
    %v121 = vld [vmem:[%s1 + $0x168] sm:$0xff]
    %v122 = vld [vmem:[%s1 + $0x170] sm:$0xff]
    %v123 = vld [vmem:[%s1 + $0x178] sm:$0xff]
    %v124 = vld [vmem:[%s1 + $0x180] sm:$0xff]
    %v125 = vld [vmem:[%s1 + $0x188] sm:$0xff]
    %v126 = vld [vmem:[%s1 + $0x190] sm:$0xff]
    %v127 = vld [vmem:[%s1 + $0x198] sm:$0xff]
    %v128 = vld [vmem:[%s1 + $0x1a0] sm:$0xff]
    %v129 = vld [vmem:[%s1 + $0x1a8] sm:$0xff]
    %v130 = vld [vmem:[%s1 + $0x1b0] sm:$0xff]
    %v131 = vld [vmem:[%s1 + $0x1b8] sm:$0xff]
    %v132 = vld [vmem:[%s1 + $0x1c0] sm:$0xff]
    %v133 = vld [vmem:[%s1 + $0x1c8] sm:$0xff]
    %v134 = vld [vmem:[%s1 + $0x1d0] sm:$0xff]
    %v135 = vld [vmem:[%s1 + $0x1d8] sm:$0xff]
    %v136 = vld [vmem:[%s1 + $0x1e0] sm:$0xff]
    %v137 = vld [vmem:[%s1 + $0x1e8] sm:$0xff]
    %v138 = vld [vmem:[%s1 + $0x1f0] sm:$0xff]
    %v139 = vld [vmem:[%s1 + $0x1f8] sm:$0xff]
    %v140 = vadd.f32 %v12, %v76
    %v141 = vadd.f32 %v13, %v77
    %v142 = vadd.f32 %v14, %v78
    %v143 = vadd.f32 %v15, %v79
    %v144 = vadd.f32 %v16, %v80
    %v145 = vadd.f32 %v17, %v81
    %v146 = vadd.f32 %v18, %v82
    %v147 = vadd.f32 %v19, %v83
    %v148 = vadd.f32 %v20, %v84
    %v149 = vadd.f32 %v21, %v85
    %v150 = vadd.f32 %v22, %v86
    %v151 = vadd.f32 %v23, %v87
    %v152 = vadd.f32 %v24, %v88
    %v153 = vadd.f32 %v25, %v89
    %v154 = vadd.f32 %v26, %v90
    %v155 = vadd.f32 %v27, %v91
    %v156 = vadd.f32 %v28, %v92
    %v157 = vadd.f32 %v29, %v93
    %v158 = vadd.f32 %v30, %v94
    %v159 = vadd.f32 %v31, %v95
    %v160 = vadd.f32 %v32, %v96
    %v161 = vadd.f32 %v33, %v97
    %v162 = vadd.f32 %v34, %v98
    %v163 = vadd.f32 %v35, %v99
    %v164 = vadd.f32 %v36, %v100
    %v165 = vadd.f32 %v37, %v101
    %v166 = vadd.f32 %v38, %v102
    %v167 = vadd.f32 %v39, %v103
    %v168 = vadd.f32 %v40, %v104
    %v169 = vadd.f32 %v41, %v105
    %v170 = vadd.f32 %v42, %v106
    %v171 = vadd.f32 %v43, %v107
    %v172 = vadd.f32 %v44, %v108
    %v173 = vadd.f32 %v45, %v109
    %v174 = vadd.f32 %v46, %v110
    %v175 = vadd.f32 %v47, %v111
    %v176 = vadd.f32 %v48, %v112
    %v177 = vadd.f32 %v49, %v113
    %v178 = vadd.f32 %v50, %v114
    %v179 = vadd.f32 %v51, %v115
    %v180 = vadd.f32 %v52, %v116
    %v181 = vadd.f32 %v53, %v117
    %v182 = vadd.f32 %v54, %v118
    %v183 = vadd.f32 %v55, %v119
    %v184 = vadd.f32 %v56, %v120
    %v185 = vadd.f32 %v57, %v121
    %v186 = vadd.f32 %v58, %v122
    %v187 = vadd.f32 %v59, %v123
    %v188 = vadd.f32 %v60, %v124
    %v189 = vadd.f32 %v61, %v125
    %v190 = vadd.f32 %v62, %v126
    %v191 = vadd.f32 %v63, %v127
    %v192 = vadd.f32 %v64, %v128
    %v193 = vadd.f32 %v65, %v129
    %v194 = vadd.f32 %v66, %v130
    %v195 = vadd.f32 %v67, %v131
    %v196 = vadd.f32 %v68, %v132
    %v197 = vadd.f32 %v69, %v133
    %v198 = vadd.f32 %v70, %v134
    %v199 = vadd.f32 %v71, %v135
    %v200 = vadd.f32 %v72, %v136
    %v201 = vadd.f32 %v73, %v137
    %v202 = vadd.f32 %v74, %v138
    %v203 = vadd.f32 %v75, %v139
    %v204 = vmax.f32 %v140, 0.0
    %v205 = vmax.f32 %v141, 0.0
    %v206 = vmax.f32 %v142, 0.0
    %v207 = vmax.f32 %v143, 0.0
    %v208 = vmax.f32 %v144, 0.0
    %v209 = vmax.f32 %v145, 0.0
    %v210 = vmax.f32 %v146, 0.0
    %v211 = vmax.f32 %v147, 0.0
    %v212 = vmax.f32 %v148, 0.0
    %v213 = vmax.f32 %v149, 0.0
    %v214 = vmax.f32 %v150, 0.0
    %v215 = vmax.f32 %v151, 0.0
    %v216 = vmax.f32 %v152, 0.0
    %v217 = vmax.f32 %v153, 0.0
    %v218 = vmax.f32 %v154, 0.0
    %v219 = vmax.f32 %v155, 0.0
    %v220 = vmax.f32 %v156, 0.0
    %v221 = vmax.f32 %v157, 0.0
    %v222 = vmax.f32 %v158, 0.0
    %v223 = vmax.f32 %v159, 0.0
    %v224 = vmax.f32 %v160, 0.0
    %v225 = vmax.f32 %v161, 0.0
    %v226 = vmax.f32 %v162, 0.0
    %v227 = vmax.f32 %v163, 0.0
    %v228 = vmax.f32 %v164, 0.0
    %v229 = vmax.f32 %v165, 0.0
    %v230 = vmax.f32 %v166, 0.0
    %v231 = vmax.f32 %v167, 0.0
    %v232 = vmax.f32 %v168, 0.0
    %v233 = vmax.f32 %v169, 0.0
    %v234 = vmax.f32 %v170, 0.0
    %v235 = vmax.f32 %v171, 0.0
    %v236 = vmax.f32 %v172, 0.0
    %v237 = vmax.f32 %v173, 0.0
    %v238 = vmax.f32 %v174, 0.0
    %v239 = vmax.f32 %v175, 0.0
    %v240 = vmax.f32 %v176, 0.0
    %v241 = vmax.f32 %v177, 0.0
    %v242 = vmax.f32 %v178, 0.0
    %v243 = vmax.f32 %v179, 0.0
    %v244 = vmax.f32 %v180, 0.0
    %v245 = vmax.f32 %v181, 0.0
    %v246 = vmax.f32 %v182, 0.0
    %v247 = vmax.f32 %v183, 0.0
    %v248 = vmax.f32 %v184, 0.0
    %v249 = vmax.f32 %v185, 0.0
    %v250 = vmax.f32 %v186, 0.0
    %v251 = vmax.f32 %v187, 0.0
    %v252 = vmax.f32 %v188, 0.0
    %v253 = vmax.f32 %v189, 0.0
    %v254 = vmax.f32 %v190, 0.0
    %v255 = vmax.f32 %v191, 0.0
    %v256 = vmax.f32 %v192, 0.0
    %v257 = vmax.f32 %v193, 0.0
    %v258 = vmax.f32 %v194, 0.0
    %v259 = vmax.f32 %v195, 0.0
    %v260 = vmax.f32 %v196, 0.0
    %v261 = vmax.f32 %v197, 0.0
    %v262 = vmax.f32 %v198, 0.0
    %v263 = vmax.f32 %v199, 0.0
    %v264 = vmax.f32 %v200, 0.0
    %v265 = vmax.f32 %v201, 0.0
    %v266 = vmax.f32 %v202, 0.0
    %v267 = vmax.f32 %v203, 0.0
    %268 = vst [vmem:[#allocation2] sm:$0xff] %v204
    %269 = vst [vmem:[#allocation2 + $0x8] sm:$0xff] %v205
    %270 = vst [vmem:[#allocation2 + $0x10] sm:$0xff] %v206
    %271 = vst [vmem:[#allocation2 + $0x18] sm:$0xff] %v207
    %272 = vst [vmem:[#allocation2 + $0x20] sm:$0xff] %v208
    %273 = vst [vmem:[#allocation2 + $0x28] sm:$0xff] %v209
    %274 = vst [vmem:[#allocation2 + $0x30] sm:$0xff] %v210
    %275 = vst [vmem:[#allocation2 + $0x38] sm:$0xff] %v211
    %276 = vst [vmem:[#allocation2 + $0x40] sm:$0xff] %v212
    %277 = vst [vmem:[#allocation2 + $0x48] sm:$0xff] %v213
    %278 = vst [vmem:[#allocation2 + $0x50] sm:$0xff] %v214
    %279 = vst [vmem:[#allocation2 + $0x58] sm:$0xff] %v215
    %280 = vst [vmem:[#allocation2 + $0x60] sm:$0xff] %v216
    %281 = vst [vmem:[#allocation2 + $0x68] sm:$0xff] %v217
    %282 = vst [vmem:[#allocation2 + $0x70] sm:$0xff] %v218
    %283 = vst [vmem:[#allocation2 + $0x78] sm:$0xff] %v219
    %284 = vst [vmem:[#allocation2 + $0x80] sm:$0xff] %v220
    %285 = vst [vmem:[#allocation2 + $0x88] sm:$0xff] %v221
    %286 = vst [vmem:[#allocation2 + $0x90] sm:$0xff] %v222
    %287 = vst [vmem:[#allocation2 + $0x98] sm:$0xff] %v223
    %288 = vst [vmem:[#allocation2 + $0xa0] sm:$0xff] %v224
    %289 = vst [vmem:[#allocation2 + $0xa8] sm:$0xff] %v225
    %290 = vst [vmem:[#allocation2 + $0xb0] sm:$0xff] %v226
    %291 = vst [vmem:[#allocation2 + $0xb8] sm:$0xff] %v227
    %292 = vst [vmem:[#allocation2 + $0xc0] sm:$0xff] %v228
    %293 = vst [vmem:[#allocation2 + $0xc8] sm:$0xff] %v229
    %294 = vst [vmem:[#allocation2 + $0xd0] sm:$0xff] %v230
    %295 = vst [vmem:[#allocation2 + $0xd8] sm:$0xff] %v231
    %296 = vst [vmem:[#allocation2 + $0xe0] sm:$0xff] %v232
    %297 = vst [vmem:[#allocation2 + $0xe8] sm:$0xff] %v233
    %298 = vst [vmem:[#allocation2 + $0xf0] sm:$0xff] %v234
    %299 = vst [vmem:[#allocation2 + $0xf8] sm:$0xff] %v235
    %300 = vst [vmem:[#allocation2 + $0x100] sm:$0xff] %v236
    %301 = vst [vmem:[#allocation2 + $0x108] sm:$0xff] %v237
    %302 = vst [vmem:[#allocation2 + $0x110] sm:$0xff] %v238
    %303 = vst [vmem:[#allocation2 + $0x118] sm:$0xff] %v239
    %304 = vst [vmem:[#allocation2 + $0x120] sm:$0xff] %v240
    %305 = vst [vmem:[#allocation2 + $0x128] sm:$0xff] %v241
    %306 = vst [vmem:[#allocation2 + $0x130] sm:$0xff] %v242
    %307 = vst [vmem:[#allocation2 + $0x138] sm:$0xff] %v243
    %308 = vst [vmem:[#allocation2 + $0x140] sm:$0xff] %v244
    %309 = vst [vmem:[#allocation2 + $0x148] sm:$0xff] %v245
    %310 = vst [vmem:[#allocation2 + $0x150] sm:$0xff] %v246
    %311 = vst [vmem:[#allocation2 + $0x158] sm:$0xff] %v247
    %312 = vst [vmem:[#allocation2 + $0x160] sm:$0xff] %v248
    %313 = vst [vmem:[#allocation2 + $0x168] sm:$0xff] %v249
    %314 = vst [vmem:[#allocation2 + $0x170] sm:$0xff] %v250
    %315 = vst [vmem:[#allocation2 + $0x178] sm:$0xff] %v251
    %316 = vst [vmem:[#allocation2 + $0x180] sm:$0xff] %v252
    %317 = vst [vmem:[#allocation2 + $0x188] sm:$0xff] %v253
    %318 = vst [vmem:[#allocation2 + $0x190] sm:$0xff] %v254
    %319 = vst [vmem:[#allocation2 + $0x198] sm:$0xff] %v255
    %320 = vst [vmem:[#allocation2 + $0x1a0] sm:$0xff] %v256
    %321 = vst [vmem:[#allocation2 + $0x1a8] sm:$0xff] %v257
    %322 = vst [vmem:[#allocation2 + $0x1b0] sm:$0xff] %v258
    %323 = vst [vmem:[#allocation2 + $0x1b8] sm:$0xff] %v259
    %324 = vst [vmem:[#allocation2 + $0x1c0] sm:$0xff] %v260
    %325 = vst [vmem:[#allocation2 + $0x1c8] sm:$0xff] %v261
    %326 = vst [vmem:[#allocation2 + $0x1d0] sm:$0xff] %v262
    %327 = vst [vmem:[#allocation2 + $0x1d8] sm:$0xff] %v263
    %328 = vst [vmem:[#allocation2 + $0x1e0] sm:$0xff] %v264
    %329 = vst [vmem:[#allocation2 + $0x1e8] sm:$0xff] %v265
    %330 = vst [vmem:[#allocation2 + $0x1f0] sm:$0xff] %v266
    %331 = vst [vmem:[#allocation2 + $0x1f8] sm:$0xff] %v267
    // Predicated region
    $region10: #{bottleneck_forward.15} parent=1 // pred_check
      _
    $region11: #{bottleneck_forward.15} parent=1 // pred_check_branch
      %333 = sbr.rel (0) target = $region13
    $region12: #{bottleneck_forward.15} parent=1 // pred_region
      %s335 = ssub.s32 8192, 8192
      %336 = vsyncadd [#allocation3], %s335
      %s337 = sshll.u32 [#allocation2], 4
      %s338 = int_to_ptr.vmem [resolvable:$true] %s337
      %343 = dma.vmem_to_hbm [thread:$0]  %s338, 8192, %s2, [#allocation3], 128, 128, 8
    $region13: #{bottleneck_forward.15} parent=1 // pred_fallthru
      _
    // Predicated region
    $region14: #{bottleneck_forward.15} parent=1 // pred_check
      _
    $region15: #{bottleneck_forward.15} parent=1 // pred_check_branch
      %345 = sbr.rel (0) target = $region17
    $region16: #{bottleneck_forward.15} parent=1 // pred_region
      %346 = dma.done [#allocation3], 8192
    $region17: #{bottleneck_forward.15} parent=1 // pred_fallthru
      _
    %347 = vsyncpa [#allocation3], 1

// kernel: bottleneck_forward.13
$region0: #{bottleneck_forward.13}
  #allocation0 [shape = 'u32[]', space=smem, size = 0x4, offset = 0x4, fixed_abs, tag = 'smem constant byte address 0x4 - core index']
  #allocation1 [shape = 'u32[144,128]{1,0:T(1,128)}', space=vmem, size = 0x12000, scoped, tag = 'internal scratch']
  #allocation2 [shape = 'f32[2,18,18]{2,1,0:T(8,128)}', space=vmem, size = 0x6000, scoped, tag = 'scratch operand']
  #allocation3 [shape = 'f32[1]{0:T(128)S(6)}', space=smem, size = 0x200, scoped, tag = 'scoped memory for bottleneck_forward.13']
  %s0 = inlined_call_operand.vmem [shape: f32[18], index: 0, kind: input, shape index: {}]
  %s1 = inlined_call_operand.<no memory space> [shape: f32[1], index: 1, kind: input, shape index: {}]
  %s2 = inlined_call_operand.vmem [shape: f32[2,16,16,128], index: 2, kind: input, shape index: {}, may-alias: {2,3}]
  %s3 = inlined_call_operand.vmem [shape: f32[2,16,16,128], index: 3, kind: output, shape index: {}, may-alias: {2,3}]
  %s4 = sld [smem:[#allocation0]]
  $region30: #{bottleneck_forward.13} parent=0
    _
  %s6 = ssub.s32 1, %s4
  %s7 = scalar_select 0, %s6, %s4
  %8 = sst [smem:[#allocation3]] %s1
  $region1: #{bottleneck_forward.13} parent=0
    #allocation4 [shape = 'u8[512]{0}', space=smem, size = 0x200, scoped, tag = 'input window, operand 0, single buffered']
    #allocation5 [shape = 's32[1]{0}', space=sflag, size = 0x4, scoped, tag = 'scoped memory for bottleneck_forward.13']
    %9 = vsyncpa [#allocation5], 0
    // Predicated region
    $region2: #{bottleneck_forward.13} parent=1 // pred_check
      _
    $region3: #{bottleneck_forward.13} parent=1 // pred_check_branch
      %11 = sbr.rel (0) target = $region5
    $region4: #{bottleneck_forward.13} parent=1 // pred_region
      %s13 = ssub.s32 16, 16
      %14 = vsyncadd [#allocation5], %s13
      %s16 = sshll.u32 %s0, 4
      %s17 = int_to_ptr.vmem [resolvable:$true] %s16
      %19 = dma.vmem_to_smem %s17, 16, [#allocation4], [#allocation5]
    $region5: #{bottleneck_forward.13} parent=1 // pred_fallthru
      _
    // Predicated region
    $region6: #{bottleneck_forward.13} parent=1 // pred_check
      _
    $region7: #{bottleneck_forward.13} parent=1 // pred_check_branch
      %21 = sbr.rel (0) target = $region9
    $region8: #{bottleneck_forward.13} parent=1 // pred_region
      _
    $region9: #{bottleneck_forward.13} parent=1 // pred_fallthru
      _
    // Predicated region
    $region10: #{bottleneck_forward.13} parent=1 // pred_check
      _
    $region11: #{bottleneck_forward.13} parent=1 // pred_check_branch
      %23 = sbr.rel (0) target = $region13
    $region12: #{bottleneck_forward.13} parent=1 // pred_region
      _
    $region13: #{bottleneck_forward.13} parent=1 // pred_fallthru
      _
    // Predicated region
    $region14: #{bottleneck_forward.13} parent=1 // pred_check
      _
    $region15: #{bottleneck_forward.13} parent=1 // pred_check_branch
      %25 = sbr.rel (0) target = $region17
    $region16: #{bottleneck_forward.13} parent=1 // pred_region
      %26 = dma.done [#allocation5], 16
    $region17: #{bottleneck_forward.13} parent=1 // pred_fallthru
      _
    %27 = sfence
    %p28 = scmp.eq.s32.totalorder 0, 0
    // Predicated region
    $region18: #{bottleneck_forward.13} parent=1 // pred_check
      %p29 = pneg %p28
    $region19: #{bottleneck_forward.13} parent=1 // pred_check_branch
      %31 = sbr.rel (%p29) target = $region21
    $region20: #{bottleneck_forward.13} parent=1 // pred_region
      %vm32 = vcmask 146432
      %33 = vst.msk [vmem:[#allocation2] sm:$0xff] %vm32, 0.0
      %34 = vst.msk [vmem:[#allocation2 + $0x8] sm:$0xff] %vm32, 0.0
      %vm35 = vcmask 140288
      %36 = vst.msk [vmem:[#allocation2 + $0x10] sm:$0x3] %vm35, 0.0
      %37 = vst.msk [vmem:[#allocation2 + $0x18] sm:$0xff] %vm32, 0.0
      %38 = vst.msk [vmem:[#allocation2 + $0x20] sm:$0xff] %vm32, 0.0
      %39 = vst.msk [vmem:[#allocation2 + $0x28] sm:$0x3] %vm35, 0.0
    $region21: #{bottleneck_forward.13} parent=1 // pred_fallthru
      _
    %v40 = vld [vmem:[%s2] sm:$0xff]
    %v41 = vld [vmem:[%s2 + $0x8] sm:$0xff]
    %v42 = vld [vmem:[%s2 + $0x10] sm:$0xff]
    %v43 = vld [vmem:[%s2 + $0x18] sm:$0xff]
    %v44 = vld [vmem:[%s2 + $0x20] sm:$0xff]
    %v45 = vld [vmem:[%s2 + $0x28] sm:$0xff]
    %v46 = vld [vmem:[%s2 + $0x30] sm:$0xff]
    %v47 = vld [vmem:[%s2 + $0x38] sm:$0xff]
    %v48 = vld [vmem:[%s2 + $0x40] sm:$0xff]
    %v49 = vld [vmem:[%s2 + $0x48] sm:$0xff]
    %v50 = vld [vmem:[%s2 + $0x50] sm:$0xff]
    %v51 = vld [vmem:[%s2 + $0x58] sm:$0xff]
    %v52 = vld [vmem:[%s2 + $0x60] sm:$0xff]
    %v53 = vld [vmem:[%s2 + $0x68] sm:$0xff]
    %v54 = vld [vmem:[%s2 + $0x70] sm:$0xff]
    %v55 = vld [vmem:[%s2 + $0x78] sm:$0xff]
    %v56 = vld [vmem:[%s2 + $0x80] sm:$0xff]
    %v57 = vld [vmem:[%s2 + $0x88] sm:$0xff]
    %v58 = vld [vmem:[%s2 + $0x90] sm:$0xff]
    %v59 = vld [vmem:[%s2 + $0x98] sm:$0xff]
    %v60 = vld [vmem:[%s2 + $0xa0] sm:$0xff]
    %v61 = vld [vmem:[%s2 + $0xa8] sm:$0xff]
    %v62 = vld [vmem:[%s2 + $0xb0] sm:$0xff]
    %v63 = vld [vmem:[%s2 + $0xb8] sm:$0xff]
    %v64 = vld [vmem:[%s2 + $0xc0] sm:$0xff]
    %v65 = vld [vmem:[%s2 + $0xc8] sm:$0xff]
    %v66 = vld [vmem:[%s2 + $0xd0] sm:$0xff]
    %v67 = vld [vmem:[%s2 + $0xd8] sm:$0xff]
    %v68 = vld [vmem:[%s2 + $0xe0] sm:$0xff]
    %v69 = vld [vmem:[%s2 + $0xe8] sm:$0xff]
    %v70 = vld [vmem:[%s2 + $0xf0] sm:$0xff]
    %v71 = vld [vmem:[%s2 + $0xf8] sm:$0xff]
    %72 = vadd.xlane.f32.xlu0 %v40
    %v73 = vpop.xlane.xlu0 %72
    %74 = vadd.xlane.f32.xlu0 %v41
    %v75 = vpop.xlane.xlu0 %74
    %76 = vadd.xlane.f32.xlu0 %v42
    %v77 = vpop.xlane.xlu0 %76
    %78 = vadd.xlane.f32.xlu0 %v43
    %v79 = vpop.xlane.xlu0 %78
    %80 = vadd.xlane.f32.xlu0 %v44
    %v81 = vpop.xlane.xlu0 %80
    %82 = vadd.xlane.f32.xlu0 %v45
    %v83 = vpop.xlane.xlu0 %82
    %84 = vadd.xlane.f32.xlu0 %v46
    %v85 = vpop.xlane.xlu0 %84
    %86 = vadd.xlane.f32.xlu0 %v47
    %v87 = vpop.xlane.xlu0 %86
    %88 = vadd.xlane.f32.xlu0 %v48
    %v89 = vpop.xlane.xlu0 %88
    %90 = vadd.xlane.f32.xlu0 %v49
    %v91 = vpop.xlane.xlu0 %90
    %92 = vadd.xlane.f32.xlu0 %v50
    %v93 = vpop.xlane.xlu0 %92
    %94 = vadd.xlane.f32.xlu0 %v51
    %v95 = vpop.xlane.xlu0 %94
    %96 = vadd.xlane.f32.xlu0 %v52
    %v97 = vpop.xlane.xlu0 %96
    %98 = vadd.xlane.f32.xlu0 %v53
    %v99 = vpop.xlane.xlu0 %98
    %100 = vadd.xlane.f32.xlu0 %v54
    %v101 = vpop.xlane.xlu0 %100
    %102 = vadd.xlane.f32.xlu0 %v55
    %v103 = vpop.xlane.xlu0 %102
    %104 = vadd.xlane.f32.xlu0 %v56
    %v105 = vpop.xlane.xlu0 %104
    %106 = vadd.xlane.f32.xlu0 %v57
    %v107 = vpop.xlane.xlu0 %106
    %108 = vadd.xlane.f32.xlu0 %v58
    %v109 = vpop.xlane.xlu0 %108
    %110 = vadd.xlane.f32.xlu0 %v59
    %v111 = vpop.xlane.xlu0 %110
    %112 = vadd.xlane.f32.xlu0 %v60
    %v113 = vpop.xlane.xlu0 %112
    %114 = vadd.xlane.f32.xlu0 %v61
    %v115 = vpop.xlane.xlu0 %114
    %116 = vadd.xlane.f32.xlu0 %v62
    %v117 = vpop.xlane.xlu0 %116
    %118 = vadd.xlane.f32.xlu0 %v63
    %v119 = vpop.xlane.xlu0 %118
    %120 = vadd.xlane.f32.xlu0 %v64
    %v121 = vpop.xlane.xlu0 %120
    %122 = vadd.xlane.f32.xlu0 %v65
    %v123 = vpop.xlane.xlu0 %122
    %124 = vadd.xlane.f32.xlu0 %v66
    %v125 = vpop.xlane.xlu0 %124
    %126 = vadd.xlane.f32.xlu0 %v67
    %v127 = vpop.xlane.xlu0 %126
    %128 = vadd.xlane.f32.xlu0 %v68
    %v129 = vpop.xlane.xlu0 %128
    %130 = vadd.xlane.f32.xlu0 %v69
    %v131 = vpop.xlane.xlu0 %130
    %132 = vadd.xlane.f32.xlu0 %v70
    %v133 = vpop.xlane.xlu0 %132
    %134 = vadd.xlane.f32.xlu0 %v71
    %v135 = vpop.xlane.xlu0 %134
    %v136 = vrcp.pop 128.0
    %v137 = vmul.f32 %v73, %v136
    %v138 = vmul.f32 %v75, %v136
    %v139 = vmul.f32 %v77, %v136
    %v140 = vmul.f32 %v79, %v136
    %v141 = vmul.f32 %v81, %v136
    %v142 = vmul.f32 %v83, %v136
    %v143 = vmul.f32 %v85, %v136
    %v144 = vmul.f32 %v87, %v136
    %v145 = vmul.f32 %v89, %v136
    %v146 = vmul.f32 %v91, %v136
    %v147 = vmul.f32 %v93, %v136
    %v148 = vmul.f32 %v95, %v136
    %v149 = vmul.f32 %v97, %v136
    %v150 = vmul.f32 %v99, %v136
    %v151 = vmul.f32 %v101, %v136
    %v152 = vmul.f32 %v103, %v136
    %v153 = vmul.f32 %v105, %v136
    %v154 = vmul.f32 %v107, %v136
    %v155 = vmul.f32 %v109, %v136
    %v156 = vmul.f32 %v111, %v136
    %v157 = vmul.f32 %v113, %v136
    %v158 = vmul.f32 %v115, %v136
    %v159 = vmul.f32 %v117, %v136
    %v160 = vmul.f32 %v119, %v136
    %v161 = vmul.f32 %v121, %v136
    %v162 = vmul.f32 %v123, %v136
    %v163 = vmul.f32 %v125, %v136
    %v164 = vmul.f32 %v127, %v136
    %v165 = vmul.f32 %v129, %v136
    %v166 = vmul.f32 %v131, %v136
    %v167 = vmul.f32 %v133, %v136
    %v168 = vmul.f32 %v135, %v136
    %v201 = vlaneseq
    %v202 = vand.u32 %v201, 127
    %v203 = vadd.s32 %v202, 4294967295
    %v204 = vlaneseq
    %v205 = vshrl.u32 %v204, 7
    %v206 = vsub.s32 %v203, %v205
    %v207 = vrot.slane %v137, %v206
    %v208 = vadd.s32 %v202, 4294967287
    %v209 = vlaneseq
    %v210 = vshrl.u32 %v209, 7
    %v211 = vsub.s32 %v208, %v210
    %v212 = vrot.slane %v138, %v211
    %vm213 = vcmask 138312
    %v214 = vsel %vm213, %v212, %v207
    %v215 = vlaneseq
    %v216 = vshrl.u32 %v215, 7
    %v217 = vsub.s32 %v203, %v216
    %v218 = vrot.slane %v139, %v217
    %v219 = vlaneseq
    %v220 = vshrl.u32 %v219, 7
    %v221 = vsub.s32 %v208, %v220
    %v222 = vrot.slane %v140, %v221
    %v223 = vsel %vm213, %v222, %v218
    %v224 = vlaneseq
    %v225 = vshrl.u32 %v224, 7
    %v226 = vsub.s32 %v203, %v225
    %v227 = vrot.slane %v141, %v226
    %v228 = vlaneseq
    %v229 = vshrl.u32 %v228, 7
    %v230 = vsub.s32 %v208, %v229
    %v231 = vrot.slane %v142, %v230
    %v232 = vsel %vm213, %v231, %v227
    %v233 = vlaneseq
    %v234 = vshrl.u32 %v233, 7
    %v235 = vsub.s32 %v203, %v234
    %v236 = vrot.slane %v143, %v235
    %v237 = vlaneseq
    %v238 = vshrl.u32 %v237, 7
    %v239 = vsub.s32 %v208, %v238
    %v240 = vrot.slane %v144, %v239
    %v241 = vsel %vm213, %v240, %v236
    %v242 = vlaneseq
    %v243 = vshrl.u32 %v242, 7
    %v244 = vsub.s32 %v203, %v243
    %v245 = vrot.slane %v145, %v244
    %v246 = vlaneseq
    %v247 = vshrl.u32 %v246, 7
    %v248 = vsub.s32 %v208, %v247
    %v249 = vrot.slane %v146, %v248
    %v250 = vsel %vm213, %v249, %v245
    %v251 = vlaneseq
    %v252 = vshrl.u32 %v251, 7
    %v253 = vsub.s32 %v203, %v252
    %v254 = vrot.slane %v147, %v253
    %v255 = vlaneseq
    %v256 = vshrl.u32 %v255, 7
    %v257 = vsub.s32 %v208, %v256
    %v258 = vrot.slane %v148, %v257
    %v259 = vsel %vm213, %v258, %v254
    %v260 = vlaneseq
    %v261 = vshrl.u32 %v260, 7
    %v262 = vsub.s32 %v203, %v261
    %v263 = vrot.slane %v149, %v262
    %v264 = vlaneseq
    %v265 = vshrl.u32 %v264, 7
    %v266 = vsub.s32 %v208, %v265
    %v267 = vrot.slane %v150, %v266
    %v268 = vsel %vm213, %v267, %v263
    %v269 = vlaneseq
    %v270 = vshrl.u32 %v269, 7
    %v271 = vsub.s32 %v203, %v270
    %v272 = vrot.slane %v151, %v271
    %v273 = vlaneseq
    %v274 = vshrl.u32 %v273, 7
    %v275 = vsub.s32 %v208, %v274
    %v276 = vrot.slane %v152, %v275
    %v277 = vsel %vm213, %v276, %v272
    %v278 = vlaneseq
    %v279 = vshrl.u32 %v278, 7
    %v280 = vsub.s32 %v203, %v279
    %v281 = vrot.slane %v153, %v280
    %v282 = vlaneseq
    %v283 = vshrl.u32 %v282, 7
    %v284 = vsub.s32 %v208, %v283
    %v285 = vrot.slane %v154, %v284
    %v286 = vsel %vm213, %v285, %v281
    %v287 = vlaneseq
    %v288 = vshrl.u32 %v287, 7
    %v289 = vsub.s32 %v203, %v288
    %v290 = vrot.slane %v155, %v289
    %v291 = vlaneseq
    %v292 = vshrl.u32 %v291, 7
    %v293 = vsub.s32 %v208, %v292
    %v294 = vrot.slane %v156, %v293
    %v295 = vsel %vm213, %v294, %v290
    %v296 = vlaneseq
    %v297 = vshrl.u32 %v296, 7
    %v298 = vsub.s32 %v203, %v297
    %v299 = vrot.slane %v157, %v298
    %v300 = vlaneseq
    %v301 = vshrl.u32 %v300, 7
    %v302 = vsub.s32 %v208, %v301
    %v303 = vrot.slane %v158, %v302
    %v304 = vsel %vm213, %v303, %v299
    %v305 = vlaneseq
    %v306 = vshrl.u32 %v305, 7
    %v307 = vsub.s32 %v203, %v306
    %v308 = vrot.slane %v159, %v307
    %v309 = vlaneseq
    %v310 = vshrl.u32 %v309, 7
    %v311 = vsub.s32 %v208, %v310
    %v312 = vrot.slane %v160, %v311
    %v313 = vsel %vm213, %v312, %v308
    %v314 = vlaneseq
    %v315 = vshrl.u32 %v314, 7
    %v316 = vsub.s32 %v203, %v315
    %v317 = vrot.slane %v161, %v316
    %v318 = vlaneseq
    %v319 = vshrl.u32 %v318, 7
    %v320 = vsub.s32 %v208, %v319
    %v321 = vrot.slane %v162, %v320
    %v322 = vsel %vm213, %v321, %v317
    %v323 = vlaneseq
    %v324 = vshrl.u32 %v323, 7
    %v325 = vsub.s32 %v203, %v324
    %v326 = vrot.slane %v163, %v325
    %v327 = vlaneseq
    %v328 = vshrl.u32 %v327, 7
    %v329 = vsub.s32 %v208, %v328
    %v330 = vrot.slane %v164, %v329
    %v331 = vsel %vm213, %v330, %v326
    %v332 = vlaneseq
    %v333 = vshrl.u32 %v332, 7
    %v334 = vsub.s32 %v203, %v333
    %v335 = vrot.slane %v165, %v334
    %v336 = vlaneseq
    %v337 = vshrl.u32 %v336, 7
    %v338 = vsub.s32 %v208, %v337
    %v339 = vrot.slane %v166, %v338
    %v340 = vsel %vm213, %v339, %v335
    %v341 = vlaneseq
    %v342 = vshrl.u32 %v341, 7
    %v343 = vsub.s32 %v203, %v342
    %v344 = vrot.slane %v167, %v343
    %v345 = vlaneseq
    %v346 = vshrl.u32 %v345, 7
    %v347 = vsub.s32 %v208, %v346
    %v348 = vrot.slane %v168, %v347
    %v349 = vsel %vm213, %v348, %v344
    %vm350 = vcmask 1041409
    %v351 = vsel %vm350, %v223, %v214
    %vm352 = vcmask 1042434
    %v353 = vsel %vm352, %v232, %v351
    %vm354 = vcmask 1043459
    %v355 = vsel %vm354, %v241, %v353
    %vm356 = vcmask 1044484
    %v357 = vsel %vm356, %v250, %v355
    %vm358 = vcmask 1045509
    %v359 = vsel %vm358, %v259, %v357
    %vm360 = vcmask 1046534
    %v361 = vsel %vm360, %v268, %v359
    %vm362 = vcmask 1047559
    %v363 = vsel %vm362, %v277, %v361
    %v364 = vsel %vm350, %v295, %v286
    %v365 = vsel %vm352, %v304, %v364
    %v366 = vsel %vm354, %v313, %v365
    %v367 = vsel %vm356, %v322, %v366
    %v368 = vsel %vm358, %v331, %v367
    %v369 = vsel %vm360, %v340, %v368
    %v370 = vsel %vm362, %v349, %v369
    %vm373 = vcmask 138248
    %374 = vst.msk [vmem:[#allocation2 + $0x1] sm:$0xff] %vm373, %v363
    %375 = vst.msk [vmem:[#allocation2 + $0x9] sm:$0xff] %vm373, %v370
    %376 = vmax.xlane.f32.xlu0 %v40
    %v377 = vpop.xlane.xlu0 %376
    %378 = vmax.xlane.f32.xlu0 %v41
    %v379 = vpop.xlane.xlu0 %378
    %380 = vmax.xlane.f32.xlu0 %v42
    %v381 = vpop.xlane.xlu0 %380
    %382 = vmax.xlane.f32.xlu0 %v43
    %v383 = vpop.xlane.xlu0 %382
    %384 = vmax.xlane.f32.xlu0 %v44
    %v385 = vpop.xlane.xlu0 %384
    %386 = vmax.xlane.f32.xlu0 %v45
    %v387 = vpop.xlane.xlu0 %386
    %388 = vmax.xlane.f32.xlu0 %v46
    %v389 = vpop.xlane.xlu0 %388
    %390 = vmax.xlane.f32.xlu0 %v47
    %v391 = vpop.xlane.xlu0 %390
    %392 = vmax.xlane.f32.xlu0 %v48
    %v393 = vpop.xlane.xlu0 %392
    %394 = vmax.xlane.f32.xlu0 %v49
    %v395 = vpop.xlane.xlu0 %394
    %396 = vmax.xlane.f32.xlu0 %v50
    %v397 = vpop.xlane.xlu0 %396
    %398 = vmax.xlane.f32.xlu0 %v51
    %v399 = vpop.xlane.xlu0 %398
    %400 = vmax.xlane.f32.xlu0 %v52
    %v401 = vpop.xlane.xlu0 %400
    %402 = vmax.xlane.f32.xlu0 %v53
    %v403 = vpop.xlane.xlu0 %402
    %404 = vmax.xlane.f32.xlu0 %v54
    %v405 = vpop.xlane.xlu0 %404
    %406 = vmax.xlane.f32.xlu0 %v55
    %v407 = vpop.xlane.xlu0 %406
    %408 = vmax.xlane.f32.xlu0 %v56
    %v409 = vpop.xlane.xlu0 %408
    %410 = vmax.xlane.f32.xlu0 %v57
    %v411 = vpop.xlane.xlu0 %410
    %412 = vmax.xlane.f32.xlu0 %v58
    %v413 = vpop.xlane.xlu0 %412
    %414 = vmax.xlane.f32.xlu0 %v59
    %v415 = vpop.xlane.xlu0 %414
    %416 = vmax.xlane.f32.xlu0 %v60
    %v417 = vpop.xlane.xlu0 %416
    %418 = vmax.xlane.f32.xlu0 %v61
    %v419 = vpop.xlane.xlu0 %418
    %420 = vmax.xlane.f32.xlu0 %v62
    %v421 = vpop.xlane.xlu0 %420
    %422 = vmax.xlane.f32.xlu0 %v63
    %v423 = vpop.xlane.xlu0 %422
    %424 = vmax.xlane.f32.xlu0 %v64
    %v425 = vpop.xlane.xlu0 %424
    %426 = vmax.xlane.f32.xlu0 %v65
    %v427 = vpop.xlane.xlu0 %426
    %428 = vmax.xlane.f32.xlu0 %v66
    %v429 = vpop.xlane.xlu0 %428
    %430 = vmax.xlane.f32.xlu0 %v67
    %v431 = vpop.xlane.xlu0 %430
    %432 = vmax.xlane.f32.xlu0 %v68
    %v433 = vpop.xlane.xlu0 %432
    %434 = vmax.xlane.f32.xlu0 %v69
    %v435 = vpop.xlane.xlu0 %434
    %436 = vmax.xlane.f32.xlu0 %v70
    %v437 = vpop.xlane.xlu0 %436
    %438 = vmax.xlane.f32.xlu0 %v71
    %v439 = vpop.xlane.xlu0 %438
    %v472 = vlaneseq
    %v473 = vshrl.u32 %v472, 7
    %v474 = vsub.s32 %v203, %v473
    %v475 = vrot.slane %v377, %v474
    %v476 = vlaneseq
    %v477 = vshrl.u32 %v476, 7
    %v478 = vsub.s32 %v208, %v477
    %v479 = vrot.slane %v379, %v478
    %v480 = vsel %vm213, %v479, %v475
    %v481 = vlaneseq
    %v482 = vshrl.u32 %v481, 7
    %v483 = vsub.s32 %v203, %v482
    %v484 = vrot.slane %v381, %v483
    %v485 = vlaneseq
    %v486 = vshrl.u32 %v485, 7
    %v487 = vsub.s32 %v208, %v486
    %v488 = vrot.slane %v383, %v487
    %v489 = vsel %vm213, %v488, %v484
    %v490 = vlaneseq
    %v491 = vshrl.u32 %v490, 7
    %v492 = vsub.s32 %v203, %v491
    %v493 = vrot.slane %v385, %v492
    %v494 = vlaneseq
    %v495 = vshrl.u32 %v494, 7
    %v496 = vsub.s32 %v208, %v495
    %v497 = vrot.slane %v387, %v496
    %v498 = vsel %vm213, %v497, %v493
    %v499 = vlaneseq
    %v500 = vshrl.u32 %v499, 7
    %v501 = vsub.s32 %v203, %v500
    %v502 = vrot.slane %v389, %v501
    %v503 = vlaneseq
    %v504 = vshrl.u32 %v503, 7
    %v505 = vsub.s32 %v208, %v504
    %v506 = vrot.slane %v391, %v505
    %v507 = vsel %vm213, %v506, %v502
    %v508 = vlaneseq
    %v509 = vshrl.u32 %v508, 7
    %v510 = vsub.s32 %v203, %v509
    %v511 = vrot.slane %v393, %v510
    %v512 = vlaneseq
    %v513 = vshrl.u32 %v512, 7
    %v514 = vsub.s32 %v208, %v513
    %v515 = vrot.slane %v395, %v514
    %v516 = vsel %vm213, %v515, %v511
    %v517 = vlaneseq
    %v518 = vshrl.u32 %v517, 7
    %v519 = vsub.s32 %v203, %v518
    %v520 = vrot.slane %v397, %v519
    %v521 = vlaneseq
    %v522 = vshrl.u32 %v521, 7
    %v523 = vsub.s32 %v208, %v522
    %v524 = vrot.slane %v399, %v523
    %v525 = vsel %vm213, %v524, %v520
    %v526 = vlaneseq
    %v527 = vshrl.u32 %v526, 7
    %v528 = vsub.s32 %v203, %v527
    %v529 = vrot.slane %v401, %v528
    %v530 = vlaneseq
    %v531 = vshrl.u32 %v530, 7
    %v532 = vsub.s32 %v208, %v531
    %v533 = vrot.slane %v403, %v532
    %v534 = vsel %vm213, %v533, %v529
    %v535 = vlaneseq
    %v536 = vshrl.u32 %v535, 7
    %v537 = vsub.s32 %v203, %v536
    %v538 = vrot.slane %v405, %v537
    %v539 = vlaneseq
    %v540 = vshrl.u32 %v539, 7
    %v541 = vsub.s32 %v208, %v540
    %v542 = vrot.slane %v407, %v541
    %v543 = vsel %vm213, %v542, %v538
    %v544 = vlaneseq
    %v545 = vshrl.u32 %v544, 7
    %v546 = vsub.s32 %v203, %v545
    %v547 = vrot.slane %v409, %v546
    %v548 = vlaneseq
    %v549 = vshrl.u32 %v548, 7
    %v550 = vsub.s32 %v208, %v549
    %v551 = vrot.slane %v411, %v550
    %v552 = vsel %vm213, %v551, %v547
    %v553 = vlaneseq
    %v554 = vshrl.u32 %v553, 7
    %v555 = vsub.s32 %v203, %v554
    %v556 = vrot.slane %v413, %v555
    %v557 = vlaneseq
    %v558 = vshrl.u32 %v557, 7
    %v559 = vsub.s32 %v208, %v558
    %v560 = vrot.slane %v415, %v559
    %v561 = vsel %vm213, %v560, %v556
    %v562 = vlaneseq
    %v563 = vshrl.u32 %v562, 7
    %v564 = vsub.s32 %v203, %v563
    %v565 = vrot.slane %v417, %v564
    %v566 = vlaneseq
    %v567 = vshrl.u32 %v566, 7
    %v568 = vsub.s32 %v208, %v567
    %v569 = vrot.slane %v419, %v568
    %v570 = vsel %vm213, %v569, %v565
    %v571 = vlaneseq
    %v572 = vshrl.u32 %v571, 7
    %v573 = vsub.s32 %v203, %v572
    %v574 = vrot.slane %v421, %v573
    %v575 = vlaneseq
    %v576 = vshrl.u32 %v575, 7
    %v577 = vsub.s32 %v208, %v576
    %v578 = vrot.slane %v423, %v577
    %v579 = vsel %vm213, %v578, %v574
    %v580 = vlaneseq
    %v581 = vshrl.u32 %v580, 7
    %v582 = vsub.s32 %v203, %v581
    %v583 = vrot.slane %v425, %v582
    %v584 = vlaneseq
    %v585 = vshrl.u32 %v584, 7
    %v586 = vsub.s32 %v208, %v585
    %v587 = vrot.slane %v427, %v586
    %v588 = vsel %vm213, %v587, %v583
    %v589 = vlaneseq
    %v590 = vshrl.u32 %v589, 7
    %v591 = vsub.s32 %v203, %v590
    %v592 = vrot.slane %v429, %v591
    %v593 = vlaneseq
    %v594 = vshrl.u32 %v593, 7
    %v595 = vsub.s32 %v208, %v594
    %v596 = vrot.slane %v431, %v595
    %v597 = vsel %vm213, %v596, %v592
    %v598 = vlaneseq
    %v599 = vshrl.u32 %v598, 7
    %v600 = vsub.s32 %v203, %v599
    %v601 = vrot.slane %v433, %v600
    %v602 = vlaneseq
    %v603 = vshrl.u32 %v602, 7
    %v604 = vsub.s32 %v208, %v603
    %v605 = vrot.slane %v435, %v604
    %v606 = vsel %vm213, %v605, %v601
    %v607 = vlaneseq
    %v608 = vshrl.u32 %v607, 7
    %v609 = vsub.s32 %v203, %v608
    %v610 = vrot.slane %v437, %v609
    %v611 = vlaneseq
    %v612 = vshrl.u32 %v611, 7
    %v613 = vsub.s32 %v208, %v612
    %v614 = vrot.slane %v439, %v613
    %v615 = vsel %vm213, %v614, %v610
    %v616 = vsel %vm350, %v489, %v480
    %v617 = vsel %vm352, %v498, %v616
    %v618 = vsel %vm354, %v507, %v617
    %v619 = vsel %vm356, %v516, %v618
    %v620 = vsel %vm358, %v525, %v619
    %v621 = vsel %vm360, %v534, %v620
    %v622 = vsel %vm362, %v543, %v621
    %v623 = vsel %vm350, %v561, %v552
    %v624 = vsel %vm352, %v570, %v623
    %v625 = vsel %vm354, %v579, %v624
    %v626 = vsel %vm356, %v588, %v625
    %v627 = vsel %vm358, %v597, %v626
    %v628 = vsel %vm360, %v606, %v627
    %v629 = vsel %vm362, %v615, %v628
    %s632 = scalar_lea.vmem [#allocation2], 24
    %633 = vst.msk [vmem:[%s632 + $0x1] sm:$0xff] %vm373, %v622
    %634 = vst.msk [vmem:[%s632 + $0x9] sm:$0xff] %vm373, %v629
    %s635 = sld [smem:[#allocation3]]
    %v636 = vstv %s635
    %v637 = vld [vmem:[#allocation2] sm:$0xff]
    %v638 = vld [vmem:[#allocation2 + $0x8] sm:$0xff]
    %s639 = sld [smem:[#allocation4]]
    %v640 = vstv %s639
    %v641 = vmul.f32 %v640, %v637
    %v642 = vmul.f32 %v640, %v638
    %v643 = vadd.f32 %v636, %v641
    %v644 = vadd.f32 %v636, %v642
    %s645 = sld [smem:[#allocation4 + $0x1]]
    %v646 = vstv %s645
    %v647 = vmul.f32 %v646, %v637
    %v648 = vmul.f32 %v646, %v638
    %651 = vrot.lane.b32.xlu0 %v647, 127
    %v652 = vpop.permute.xlu0 %651
    %653 = vrot.lane.b32.xlu0 %v648, 127
    %v654 = vpop.permute.xlu0 %653
    %v657 = vadd.f32 %v643, %v652
    %v658 = vadd.f32 %v644, %v654
    %s659 = sld [smem:[#allocation4 + $0x2]]
    %v660 = vstv %s659
    %v661 = vmul.f32 %v660, %v637
    %v662 = vmul.f32 %v660, %v638
    %665 = vrot.lane.b32.xlu0 %v661, 126
    %v666 = vpop.permute.xlu0 %665
    %667 = vrot.lane.b32.xlu0 %v662, 126
    %v668 = vpop.permute.xlu0 %667
    %v671 = vadd.f32 %v657, %v666
    %v672 = vadd.f32 %v658, %v668
    %v673 = vld [vmem:[#allocation2 + $0x1] sm:$0xff]
    %v674 = vld [vmem:[#allocation2 + $0x9] sm:$0xff]
    %s675 = sld [smem:[#allocation4 + $0x3]]
    %v676 = vstv %s675
    %v677 = vmul.f32 %v676, %v673
    %v678 = vmul.f32 %v676, %v674
    %v679 = vadd.f32 %v671, %v677
    %v680 = vadd.f32 %v672, %v678
    %s681 = sld [smem:[#allocation4 + $0x4]]
    %v682 = vstv %s681
    %v683 = vmul.f32 %v682, %v673
    %v684 = vmul.f32 %v682, %v674
    %687 = vrot.lane.b32.xlu0 %v683, 127
    %v688 = vpop.permute.xlu0 %687
    %689 = vrot.lane.b32.xlu0 %v684, 127
    %v690 = vpop.permute.xlu0 %689
    %v693 = vadd.f32 %v679, %v688
    %v694 = vadd.f32 %v680, %v690
    %s695 = sld [smem:[#allocation4 + $0x5]]
    %v696 = vstv %s695
    %v697 = vmul.f32 %v696, %v673
    %v698 = vmul.f32 %v696, %v674
    %701 = vrot.lane.b32.xlu0 %v697, 126
    %v702 = vpop.permute.xlu0 %701
    %703 = vrot.lane.b32.xlu0 %v698, 126
    %v704 = vpop.permute.xlu0 %703
    %v707 = vadd.f32 %v693, %v702
    %v708 = vadd.f32 %v694, %v704
    %v709 = vld [vmem:[#allocation2 + $0x2] sm:$0xff]
    %v710 = vld [vmem:[#allocation2 + $0xa] sm:$0xff]
    %s711 = sld [smem:[#allocation4 + $0x6]]
    %v712 = vstv %s711
    %v713 = vmul.f32 %v712, %v709
    %v714 = vmul.f32 %v712, %v710
    %v715 = vadd.f32 %v707, %v713
    %v716 = vadd.f32 %v708, %v714
    %s717 = sld [smem:[#allocation4 + $0x7]]
    %v718 = vstv %s717
    %v719 = vmul.f32 %v718, %v709
    %v720 = vmul.f32 %v718, %v710
    %723 = vrot.lane.b32.xlu0 %v719, 127
    %v724 = vpop.permute.xlu0 %723
    %725 = vrot.lane.b32.xlu0 %v720, 127
    %v726 = vpop.permute.xlu0 %725
    %v729 = vadd.f32 %v715, %v724
    %v730 = vadd.f32 %v716, %v726
    %s731 = sld [smem:[#allocation4 + $0x8]]
    %v732 = vstv %s731
    %v733 = vmul.f32 %v732, %v709
    %v734 = vmul.f32 %v732, %v710
    %737 = vrot.lane.b32.xlu0 %v733, 126
    %v738 = vpop.permute.xlu0 %737
    %739 = vrot.lane.b32.xlu0 %v734, 126
    %v740 = vpop.permute.xlu0 %739
    %v743 = vadd.f32 %v729, %v738
    %v744 = vadd.f32 %v730, %v740
    %v745 = vld [vmem:[%s632] sm:$0xff]
    %v746 = vld [vmem:[%s632 + $0x8] sm:$0xff]
    %s747 = sld [smem:[#allocation4 + $0x9]]
    %v748 = vstv %s747
    %v749 = vmul.f32 %v748, %v745
    %v750 = vmul.f32 %v748, %v746
    %v751 = vadd.f32 %v743, %v749
    %v752 = vadd.f32 %v744, %v750
    %s753 = sld [smem:[#allocation4 + $0xa]]
    %v754 = vstv %s753
    %v755 = vmul.f32 %v754, %v745
    %v756 = vmul.f32 %v754, %v746
    %759 = vrot.lane.b32.xlu0 %v755, 127
    %v760 = vpop.permute.xlu0 %759
    %761 = vrot.lane.b32.xlu0 %v756, 127
    %v762 = vpop.permute.xlu0 %761
    %v765 = vadd.f32 %v751, %v760
    %v766 = vadd.f32 %v752, %v762
    %s767 = sld [smem:[#allocation4 + $0xb]]
    %v768 = vstv %s767
    %v769 = vmul.f32 %v768, %v745
    %v770 = vmul.f32 %v768, %v746
    %773 = vrot.lane.b32.xlu0 %v769, 126
    %v774 = vpop.permute.xlu0 %773
    %775 = vrot.lane.b32.xlu0 %v770, 126
    %v776 = vpop.permute.xlu0 %775
    %v779 = vadd.f32 %v765, %v774
    %v780 = vadd.f32 %v766, %v776
    %v781 = vld [vmem:[%s632 + $0x1] sm:$0xff]
    %v782 = vld [vmem:[%s632 + $0x9] sm:$0xff]
    %s783 = sld [smem:[#allocation4 + $0xc]]
    %v784 = vstv %s783
    %v785 = vmul.f32 %v784, %v781
    %v786 = vmul.f32 %v784, %v782
    %v787 = vadd.f32 %v779, %v785
    %v788 = vadd.f32 %v780, %v786
    %s789 = sld [smem:[#allocation4 + $0xd]]
    %v790 = vstv %s789
    %v791 = vmul.f32 %v790, %v781
    %v792 = vmul.f32 %v790, %v782
    %795 = vrot.lane.b32.xlu0 %v791, 127
    %v796 = vpop.permute.xlu0 %795
    %797 = vrot.lane.b32.xlu0 %v792, 127
    %v798 = vpop.permute.xlu0 %797
    %v801 = vadd.f32 %v787, %v796
    %v802 = vadd.f32 %v788, %v798
    %s803 = sld [smem:[#allocation4 + $0xe]]
    %v804 = vstv %s803
    %v805 = vmul.f32 %v804, %v781
    %v806 = vmul.f32 %v804, %v782
    %809 = vrot.lane.b32.xlu0 %v805, 126
    %v810 = vpop.permute.xlu0 %809
    %811 = vrot.lane.b32.xlu0 %v806, 126
    %v812 = vpop.permute.xlu0 %811
    %v815 = vadd.f32 %v801, %v810
    %v816 = vadd.f32 %v802, %v812
    %v817 = vld [vmem:[%s632 + $0x2] sm:$0xff]
    %v818 = vld [vmem:[%s632 + $0xa] sm:$0xff]
    %s819 = sld [smem:[#allocation4 + $0xf]]
    %v820 = vstv %s819
    %v821 = vmul.f32 %v820, %v817
    %v822 = vmul.f32 %v820, %v818
    %v823 = vadd.f32 %v815, %v821
    %v824 = vadd.f32 %v816, %v822
    %s825 = sld [smem:[#allocation4 + $0x10]]
    %v826 = vstv %s825
    %v827 = vmul.f32 %v826, %v817
    %v828 = vmul.f32 %v826, %v818
    %831 = vrot.lane.b32.xlu0 %v827, 127
    %v832 = vpop.permute.xlu0 %831
    %833 = vrot.lane.b32.xlu0 %v828, 127
    %v834 = vpop.permute.xlu0 %833
    %v837 = vadd.f32 %v823, %v832
    %v838 = vadd.f32 %v824, %v834
    %s839 = sld [smem:[#allocation4 + $0x11]]
    %v840 = vstv %s839
    %v841 = vmul.f32 %v840, %v817
    %v842 = vmul.f32 %v840, %v818
    %845 = vrot.lane.b32.xlu0 %v841, 126
    %v846 = vpop.permute.xlu0 %845
    %847 = vrot.lane.b32.xlu0 %v842, 126
    %v848 = vpop.permute.xlu0 %847
    %v851 = vadd.f32 %v837, %v846
    %v852 = vadd.f32 %v838, %v848
    %v853 = vxor.u32 %v851, 2147483648
    %v854 = vxor.u32 %v852, 2147483648
    %v855 = vmul.f32 %v853, 1.442695
    %v856 = vpow.pop %v855
    %v857 = vmul.f32 %v854, 1.442695
    %v858 = vpow.pop %v857
    %v859 = vadd.f32 %v856, 1.0
    %v860 = vadd.f32 %v858, 1.0
    %v861 = vrcp.pop %v859
    %v862 = vmul.f32 1.0, %v861
    %v863 = vrcp.pop %v860
    %v864 = vmul.f32 1.0, %v863
    %v865 = vlaneseq
    %v866 = vshrl.u32 %v865, 7
    %v867 = vsub.s32 0, %v866
    %v868 = vrot.slane %v862, %v867
    %870 = vbcast.lane.b32.xlu0 %v868, 256
    %v871 = vpop.permute.xlu0 %870
    %s873 = sor.u32 256, 8
    %874 = vbcast.lane.b32.xlu0 %v868, %s873
    %v875 = vpop.permute.xlu0 %874
    %v876 = vlaneseq
    %v877 = vshrl.u32 %v876, 7
    %v878 = vsub.s32 1, %v877
    %v879 = vrot.slane %v862, %v878
    %881 = vbcast.lane.b32.xlu0 %v879, 256
    %v882 = vpop.permute.xlu0 %881
    %s884 = sor.u32 256, 8
    %885 = vbcast.lane.b32.xlu0 %v879, %s884
    %v886 = vpop.permute.xlu0 %885
    %v887 = vlaneseq
    %v888 = vshrl.u32 %v887, 7
    %v889 = vsub.s32 2, %v888
    %v890 = vrot.slane %v862, %v889
    %892 = vbcast.lane.b32.xlu0 %v890, 256
    %v893 = vpop.permute.xlu0 %892
    %s895 = sor.u32 256, 8
    %896 = vbcast.lane.b32.xlu0 %v890, %s895
    %v897 = vpop.permute.xlu0 %896
    %v898 = vlaneseq
    %v899 = vshrl.u32 %v898, 7
    %v900 = vsub.s32 3, %v899
    %v901 = vrot.slane %v862, %v900
    %903 = vbcast.lane.b32.xlu0 %v901, 256
    %v904 = vpop.permute.xlu0 %903
    %s906 = sor.u32 256, 8
    %907 = vbcast.lane.b32.xlu0 %v901, %s906
    %v908 = vpop.permute.xlu0 %907
    %v909 = vlaneseq
    %v910 = vshrl.u32 %v909, 7
    %v911 = vsub.s32 4, %v910
    %v912 = vrot.slane %v862, %v911
    %914 = vbcast.lane.b32.xlu0 %v912, 256
    %v915 = vpop.permute.xlu0 %914
    %s917 = sor.u32 256, 8
    %918 = vbcast.lane.b32.xlu0 %v912, %s917
    %v919 = vpop.permute.xlu0 %918
    %v920 = vlaneseq
    %v921 = vshrl.u32 %v920, 7
    %v922 = vsub.s32 5, %v921
    %v923 = vrot.slane %v862, %v922
    %925 = vbcast.lane.b32.xlu0 %v923, 256
    %v926 = vpop.permute.xlu0 %925
    %s928 = sor.u32 256, 8
    %929 = vbcast.lane.b32.xlu0 %v923, %s928
    %v930 = vpop.permute.xlu0 %929
    %v931 = vlaneseq
    %v932 = vshrl.u32 %v931, 7
    %v933 = vsub.s32 6, %v932
    %v934 = vrot.slane %v862, %v933
    %936 = vbcast.lane.b32.xlu0 %v934, 256
    %v937 = vpop.permute.xlu0 %936
    %s939 = sor.u32 256, 8
    %940 = vbcast.lane.b32.xlu0 %v934, %s939
    %v941 = vpop.permute.xlu0 %940
    %v942 = vlaneseq
    %v943 = vshrl.u32 %v942, 7
    %v944 = vsub.s32 7, %v943
    %v945 = vrot.slane %v862, %v944
    %947 = vbcast.lane.b32.xlu0 %v945, 256
    %v948 = vpop.permute.xlu0 %947
    %s950 = sor.u32 256, 8
    %951 = vbcast.lane.b32.xlu0 %v945, %s950
    %v952 = vpop.permute.xlu0 %951
    %v953 = vlaneseq
    %v954 = vshrl.u32 %v953, 7
    %v955 = vsub.s32 0, %v954
    %v956 = vrot.slane %v864, %v955
    %958 = vbcast.lane.b32.xlu0 %v956, 256
    %v959 = vpop.permute.xlu0 %958
    %s961 = sor.u32 256, 8
    %962 = vbcast.lane.b32.xlu0 %v956, %s961
    %v963 = vpop.permute.xlu0 %962
    %v964 = vlaneseq
    %v965 = vshrl.u32 %v964, 7
    %v966 = vsub.s32 1, %v965
    %v967 = vrot.slane %v864, %v966
    %969 = vbcast.lane.b32.xlu0 %v967, 256
    %v970 = vpop.permute.xlu0 %969
    %s972 = sor.u32 256, 8
    %973 = vbcast.lane.b32.xlu0 %v967, %s972
    %v974 = vpop.permute.xlu0 %973
    %v975 = vlaneseq
    %v976 = vshrl.u32 %v975, 7
    %v977 = vsub.s32 2, %v976
    %v978 = vrot.slane %v864, %v977
    %980 = vbcast.lane.b32.xlu0 %v978, 256
    %v981 = vpop.permute.xlu0 %980
    %s983 = sor.u32 256, 8
    %984 = vbcast.lane.b32.xlu0 %v978, %s983
    %v985 = vpop.permute.xlu0 %984
    %v986 = vlaneseq
    %v987 = vshrl.u32 %v986, 7
    %v988 = vsub.s32 3, %v987
    %v989 = vrot.slane %v864, %v988
    %991 = vbcast.lane.b32.xlu0 %v989, 256
    %v992 = vpop.permute.xlu0 %991
    %s994 = sor.u32 256, 8
    %995 = vbcast.lane.b32.xlu0 %v989, %s994
    %v996 = vpop.permute.xlu0 %995
    %v997 = vlaneseq
    %v998 = vshrl.u32 %v997, 7
    %v999 = vsub.s32 4, %v998
    %v1000 = vrot.slane %v864, %v999
    %1002 = vbcast.lane.b32.xlu0 %v1000, 256
    %v1003 = vpop.permute.xlu0 %1002
    %s1005 = sor.u32 256, 8
    %1006 = vbcast.lane.b32.xlu0 %v1000, %s1005
    %v1007 = vpop.permute.xlu0 %1006
    %v1008 = vlaneseq
    %v1009 = vshrl.u32 %v1008, 7
    %v1010 = vsub.s32 5, %v1009
    %v1011 = vrot.slane %v864, %v1010
    %1013 = vbcast.lane.b32.xlu0 %v1011, 256
    %v1014 = vpop.permute.xlu0 %1013
    %s1016 = sor.u32 256, 8
    %1017 = vbcast.lane.b32.xlu0 %v1011, %s1016
    %v1018 = vpop.permute.xlu0 %1017
    %v1019 = vlaneseq
    %v1020 = vshrl.u32 %v1019, 7
    %v1021 = vsub.s32 6, %v1020
    %v1022 = vrot.slane %v864, %v1021
    %1024 = vbcast.lane.b32.xlu0 %v1022, 256
    %v1025 = vpop.permute.xlu0 %1024
    %s1027 = sor.u32 256, 8
    %1028 = vbcast.lane.b32.xlu0 %v1022, %s1027
    %v1029 = vpop.permute.xlu0 %1028
    %v1030 = vlaneseq
    %v1031 = vshrl.u32 %v1030, 7
    %v1032 = vsub.s32 7, %v1031
    %v1033 = vrot.slane %v864, %v1032
    %1035 = vbcast.lane.b32.xlu0 %v1033, 256
    %v1036 = vpop.permute.xlu0 %1035
    %s1038 = sor.u32 256, 8
    %1039 = vbcast.lane.b32.xlu0 %v1033, %s1038
    %v1040 = vpop.permute.xlu0 %1039
    %v1041 = vmul.f32 %v40, %v871
    %v1042 = vmul.f32 %v41, %v875
    %v1043 = vmul.f32 %v42, %v882
    %v1044 = vmul.f32 %v43, %v886
    %v1045 = vmul.f32 %v44, %v893
    %v1046 = vmul.f32 %v45, %v897
    %v1047 = vmul.f32 %v46, %v904
    %v1048 = vmul.f32 %v47, %v908
    %v1049 = vmul.f32 %v48, %v915
    %v1050 = vmul.f32 %v49, %v919
    %v1051 = vmul.f32 %v50, %v926
    %v1052 = vmul.f32 %v51, %v930
    %v1053 = vmul.f32 %v52, %v937
    %v1054 = vmul.f32 %v53, %v941
    %v1055 = vmul.f32 %v54, %v948
    %v1056 = vmul.f32 %v55, %v952
    %v1057 = vmul.f32 %v56, %v959
    %v1058 = vmul.f32 %v57, %v963
    %v1059 = vmul.f32 %v58, %v970
    %v1060 = vmul.f32 %v59, %v974
    %v1061 = vmul.f32 %v60, %v981
    %v1062 = vmul.f32 %v61, %v985
    %v1063 = vmul.f32 %v62, %v992
    %v1064 = vmul.f32 %v63, %v996
    %v1065 = vmul.f32 %v64, %v1003
    %v1066 = vmul.f32 %v65, %v1007
    %v1067 = vmul.f32 %v66, %v1014
    %v1068 = vmul.f32 %v67, %v1018
    %v1069 = vmul.f32 %v68, %v1025
    %v1070 = vmul.f32 %v69, %v1029
    %v1071 = vmul.f32 %v70, %v1036
    %v1072 = vmul.f32 %v71, %v1040
    %1073 = vst [vmem:[%s3] sm:$0xff] %v1041
    %1074 = vst [vmem:[%s3 + $0x8] sm:$0xff] %v1042
    %1075 = vst [vmem:[%s3 + $0x10] sm:$0xff] %v1043
    %1076 = vst [vmem:[%s3 + $0x18] sm:$0xff] %v1044
    %1077 = vst [vmem:[%s3 + $0x20] sm:$0xff] %v1045
    %1078 = vst [vmem:[%s3 + $0x28] sm:$0xff] %v1046
    %1079 = vst [vmem:[%s3 + $0x30] sm:$0xff] %v1047
    %1080 = vst [vmem:[%s3 + $0x38] sm:$0xff] %v1048
    %1081 = vst [vmem:[%s3 + $0x40] sm:$0xff] %v1049
    %1082 = vst [vmem:[%s3 + $0x48] sm:$0xff] %v1050
    %1083 = vst [vmem:[%s3 + $0x50] sm:$0xff] %v1051
    %1084 = vst [vmem:[%s3 + $0x58] sm:$0xff] %v1052
    %1085 = vst [vmem:[%s3 + $0x60] sm:$0xff] %v1053
    %1086 = vst [vmem:[%s3 + $0x68] sm:$0xff] %v1054
    %1087 = vst [vmem:[%s3 + $0x70] sm:$0xff] %v1055
    %1088 = vst [vmem:[%s3 + $0x78] sm:$0xff] %v1056
    %1089 = vst [vmem:[%s3 + $0x80] sm:$0xff] %v1057
    %1090 = vst [vmem:[%s3 + $0x88] sm:$0xff] %v1058
    %1091 = vst [vmem:[%s3 + $0x90] sm:$0xff] %v1059
    %1092 = vst [vmem:[%s3 + $0x98] sm:$0xff] %v1060
    %1093 = vst [vmem:[%s3 + $0xa0] sm:$0xff] %v1061
    %1094 = vst [vmem:[%s3 + $0xa8] sm:$0xff] %v1062
    %1095 = vst [vmem:[%s3 + $0xb0] sm:$0xff] %v1063
    %1096 = vst [vmem:[%s3 + $0xb8] sm:$0xff] %v1064
    %1097 = vst [vmem:[%s3 + $0xc0] sm:$0xff] %v1065
    %1098 = vst [vmem:[%s3 + $0xc8] sm:$0xff] %v1066
    %1099 = vst [vmem:[%s3 + $0xd0] sm:$0xff] %v1067
    %1100 = vst [vmem:[%s3 + $0xd8] sm:$0xff] %v1068
    %1101 = vst [vmem:[%s3 + $0xe0] sm:$0xff] %v1069
    %1102 = vst [vmem:[%s3 + $0xe8] sm:$0xff] %v1070
    %1103 = vst [vmem:[%s3 + $0xf0] sm:$0xff] %v1071
    %1104 = vst [vmem:[%s3 + $0xf8] sm:$0xff] %v1072
    %s1105 = scalar_lea.vmem %s2, 256
    %v1106 = vld [vmem:[%s1105] sm:$0xff]
    %v1107 = vld [vmem:[%s1105 + $0x8] sm:$0xff]
    %v1108 = vld [vmem:[%s1105 + $0x10] sm:$0xff]
    %v1109 = vld [vmem:[%s1105 + $0x18] sm:$0xff]
    %v1110 = vld [vmem:[%s1105 + $0x20] sm:$0xff]
    %v1111 = vld [vmem:[%s1105 + $0x28] sm:$0xff]
    %v1112 = vld [vmem:[%s1105 + $0x30] sm:$0xff]
    %v1113 = vld [vmem:[%s1105 + $0x38] sm:$0xff]
    %v1114 = vld [vmem:[%s1105 + $0x40] sm:$0xff]
    %v1115 = vld [vmem:[%s1105 + $0x48] sm:$0xff]
    %v1116 = vld [vmem:[%s1105 + $0x50] sm:$0xff]
    %v1117 = vld [vmem:[%s1105 + $0x58] sm:$0xff]
    %v1118 = vld [vmem:[%s1105 + $0x60] sm:$0xff]
    %v1119 = vld [vmem:[%s1105 + $0x68] sm:$0xff]
    %v1120 = vld [vmem:[%s1105 + $0x70] sm:$0xff]
    %v1121 = vld [vmem:[%s1105 + $0x78] sm:$0xff]
    %v1122 = vld [vmem:[%s1105 + $0x80] sm:$0xff]
    %v1123 = vld [vmem:[%s1105 + $0x88] sm:$0xff]
    %v1124 = vld [vmem:[%s1105 + $0x90] sm:$0xff]
    %v1125 = vld [vmem:[%s1105 + $0x98] sm:$0xff]
    %v1126 = vld [vmem:[%s1105 + $0xa0] sm:$0xff]
    %v1127 = vld [vmem:[%s1105 + $0xa8] sm:$0xff]
    %v1128 = vld [vmem:[%s1105 + $0xb0] sm:$0xff]
    %v1129 = vld [vmem:[%s1105 + $0xb8] sm:$0xff]
    %v1130 = vld [vmem:[%s1105 + $0xc0] sm:$0xff]
    %v1131 = vld [vmem:[%s1105 + $0xc8] sm:$0xff]
    %v1132 = vld [vmem:[%s1105 + $0xd0] sm:$0xff]
    %v1133 = vld [vmem:[%s1105 + $0xd8] sm:$0xff]
    %v1134 = vld [vmem:[%s1105 + $0xe0] sm:$0xff]
    %v1135 = vld [vmem:[%s1105 + $0xe8] sm:$0xff]
    %v1136 = vld [vmem:[%s1105 + $0xf0] sm:$0xff]
    %v1137 = vld [vmem:[%s1105 + $0xf8] sm:$0xff]
    %1138 = vadd.xlane.f32.xlu0 %v1106
    %v1139 = vpop.xlane.xlu0 %1138
    %1140 = vadd.xlane.f32.xlu0 %v1107
    %v1141 = vpop.xlane.xlu0 %1140
    %1142 = vadd.xlane.f32.xlu0 %v1108
    %v1143 = vpop.xlane.xlu0 %1142
    %1144 = vadd.xlane.f32.xlu0 %v1109
    %v1145 = vpop.xlane.xlu0 %1144
    %1146 = vadd.xlane.f32.xlu0 %v1110
    %v1147 = vpop.xlane.xlu0 %1146
    %1148 = vadd.xlane.f32.xlu0 %v1111
    %v1149 = vpop.xlane.xlu0 %1148
    %1150 = vadd.xlane.f32.xlu0 %v1112
    %v1151 = vpop.xlane.xlu0 %1150
    %1152 = vadd.xlane.f32.xlu0 %v1113
    %v1153 = vpop.xlane.xlu0 %1152
    %1154 = vadd.xlane.f32.xlu0 %v1114
    %v1155 = vpop.xlane.xlu0 %1154
    %1156 = vadd.xlane.f32.xlu0 %v1115
    %v1157 = vpop.xlane.xlu0 %1156
    %1158 = vadd.xlane.f32.xlu0 %v1116
    %v1159 = vpop.xlane.xlu0 %1158
    %1160 = vadd.xlane.f32.xlu0 %v1117
    %v1161 = vpop.xlane.xlu0 %1160
    %1162 = vadd.xlane.f32.xlu0 %v1118
    %v1163 = vpop.xlane.xlu0 %1162
    %1164 = vadd.xlane.f32.xlu0 %v1119
    %v1165 = vpop.xlane.xlu0 %1164
    %1166 = vadd.xlane.f32.xlu0 %v1120
    %v1167 = vpop.xlane.xlu0 %1166
    %1168 = vadd.xlane.f32.xlu0 %v1121
    %v1169 = vpop.xlane.xlu0 %1168
    %1170 = vadd.xlane.f32.xlu0 %v1122
    %v1171 = vpop.xlane.xlu0 %1170
    %1172 = vadd.xlane.f32.xlu0 %v1123
    %v1173 = vpop.xlane.xlu0 %1172
    %1174 = vadd.xlane.f32.xlu0 %v1124
    %v1175 = vpop.xlane.xlu0 %1174
    %1176 = vadd.xlane.f32.xlu0 %v1125
    %v1177 = vpop.xlane.xlu0 %1176
    %1178 = vadd.xlane.f32.xlu0 %v1126
    %v1179 = vpop.xlane.xlu0 %1178
    %1180 = vadd.xlane.f32.xlu0 %v1127
    %v1181 = vpop.xlane.xlu0 %1180
    %1182 = vadd.xlane.f32.xlu0 %v1128
    %v1183 = vpop.xlane.xlu0 %1182
    %1184 = vadd.xlane.f32.xlu0 %v1129
    %v1185 = vpop.xlane.xlu0 %1184
    %1186 = vadd.xlane.f32.xlu0 %v1130
    %v1187 = vpop.xlane.xlu0 %1186
    %1188 = vadd.xlane.f32.xlu0 %v1131
    %v1189 = vpop.xlane.xlu0 %1188
    %1190 = vadd.xlane.f32.xlu0 %v1132
    %v1191 = vpop.xlane.xlu0 %1190
    %1192 = vadd.xlane.f32.xlu0 %v1133
    %v1193 = vpop.xlane.xlu0 %1192
    %1194 = vadd.xlane.f32.xlu0 %v1134
    %v1195 = vpop.xlane.xlu0 %1194
    %1196 = vadd.xlane.f32.xlu0 %v1135
    %v1197 = vpop.xlane.xlu0 %1196
    %1198 = vadd.xlane.f32.xlu0 %v1136
    %v1199 = vpop.xlane.xlu0 %1198
    %1200 = vadd.xlane.f32.xlu0 %v1137
    %v1201 = vpop.xlane.xlu0 %1200
    %v1202 = vmul.f32 %v1139, %v136
    %v1203 = vmul.f32 %v1141, %v136
    %v1204 = vmul.f32 %v1143, %v136
    %v1205 = vmul.f32 %v1145, %v136
    %v1206 = vmul.f32 %v1147, %v136
    %v1207 = vmul.f32 %v1149, %v136
    %v1208 = vmul.f32 %v1151, %v136
    %v1209 = vmul.f32 %v1153, %v136
    %v1210 = vmul.f32 %v1155, %v136
    %v1211 = vmul.f32 %v1157, %v136
    %v1212 = vmul.f32 %v1159, %v136
    %v1213 = vmul.f32 %v1161, %v136
    %v1214 = vmul.f32 %v1163, %v136
    %v1215 = vmul.f32 %v1165, %v136
    %v1216 = vmul.f32 %v1167, %v136
    %v1217 = vmul.f32 %v1169, %v136
    %v1218 = vmul.f32 %v1171, %v136
    %v1219 = vmul.f32 %v1173, %v136
    %v1220 = vmul.f32 %v1175, %v136
    %v1221 = vmul.f32 %v1177, %v136
    %v1222 = vmul.f32 %v1179, %v136
    %v1223 = vmul.f32 %v1181, %v136
    %v1224 = vmul.f32 %v1183, %v136
    %v1225 = vmul.f32 %v1185, %v136
    %v1226 = vmul.f32 %v1187, %v136
    %v1227 = vmul.f32 %v1189, %v136
    %v1228 = vmul.f32 %v1191, %v136
    %v1229 = vmul.f32 %v1193, %v136
    %v1230 = vmul.f32 %v1195, %v136
    %v1231 = vmul.f32 %v1197, %v136
    %v1232 = vmul.f32 %v1199, %v136
    %v1233 = vmul.f32 %v1201, %v136
    %v1266 = vlaneseq
    %v1267 = vshrl.u32 %v1266, 7
    %v1268 = vsub.s32 %v203, %v1267
    %v1269 = vrot.slane %v1202, %v1268
    %v1270 = vlaneseq
    %v1271 = vshrl.u32 %v1270, 7
    %v1272 = vsub.s32 %v208, %v1271
    %v1273 = vrot.slane %v1203, %v1272
    %v1274 = vsel %vm213, %v1273, %v1269
    %v1275 = vlaneseq
    %v1276 = vshrl.u32 %v1275, 7
    %v1277 = vsub.s32 %v203, %v1276
    %v1278 = vrot.slane %v1204, %v1277
    %v1279 = vlaneseq
    %v1280 = vshrl.u32 %v1279, 7
    %v1281 = vsub.s32 %v208, %v1280
    %v1282 = vrot.slane %v1205, %v1281
    %v1283 = vsel %vm213, %v1282, %v1278
    %v1284 = vlaneseq
    %v1285 = vshrl.u32 %v1284, 7
    %v1286 = vsub.s32 %v203, %v1285
    %v1287 = vrot.slane %v1206, %v1286
    %v1288 = vlaneseq
    %v1289 = vshrl.u32 %v1288, 7
    %v1290 = vsub.s32 %v208, %v1289
    %v1291 = vrot.slane %v1207, %v1290
    %v1292 = vsel %vm213, %v1291, %v1287
    %v1293 = vlaneseq
    %v1294 = vshrl.u32 %v1293, 7
    %v1295 = vsub.s32 %v203, %v1294
    %v1296 = vrot.slane %v1208, %v1295
    %v1297 = vlaneseq
    %v1298 = vshrl.u32 %v1297, 7
    %v1299 = vsub.s32 %v208, %v1298
    %v1300 = vrot.slane %v1209, %v1299
    %v1301 = vsel %vm213, %v1300, %v1296
    %v1302 = vlaneseq
    %v1303 = vshrl.u32 %v1302, 7
    %v1304 = vsub.s32 %v203, %v1303
    %v1305 = vrot.slane %v1210, %v1304
    %v1306 = vlaneseq
    %v1307 = vshrl.u32 %v1306, 7
    %v1308 = vsub.s32 %v208, %v1307
    %v1309 = vrot.slane %v1211, %v1308
    %v1310 = vsel %vm213, %v1309, %v1305
    %v1311 = vlaneseq
    %v1312 = vshrl.u32 %v1311, 7
    %v1313 = vsub.s32 %v203, %v1312
    %v1314 = vrot.slane %v1212, %v1313
    %v1315 = vlaneseq
    %v1316 = vshrl.u32 %v1315, 7
    %v1317 = vsub.s32 %v208, %v1316
    %v1318 = vrot.slane %v1213, %v1317
    %v1319 = vsel %vm213, %v1318, %v1314
    %v1320 = vlaneseq
    %v1321 = vshrl.u32 %v1320, 7
    %v1322 = vsub.s32 %v203, %v1321
    %v1323 = vrot.slane %v1214, %v1322
    %v1324 = vlaneseq
    %v1325 = vshrl.u32 %v1324, 7
    %v1326 = vsub.s32 %v208, %v1325
    %v1327 = vrot.slane %v1215, %v1326
    %v1328 = vsel %vm213, %v1327, %v1323
    %v1329 = vlaneseq
    %v1330 = vshrl.u32 %v1329, 7
    %v1331 = vsub.s32 %v203, %v1330
    %v1332 = vrot.slane %v1216, %v1331
    %v1333 = vlaneseq
    %v1334 = vshrl.u32 %v1333, 7
    %v1335 = vsub.s32 %v208, %v1334
    %v1336 = vrot.slane %v1217, %v1335
    %v1337 = vsel %vm213, %v1336, %v1332
    %v1338 = vlaneseq
    %v1339 = vshrl.u32 %v1338, 7
    %v1340 = vsub.s32 %v203, %v1339
    %v1341 = vrot.slane %v1218, %v1340
    %v1342 = vlaneseq
    %v1343 = vshrl.u32 %v1342, 7
    %v1344 = vsub.s32 %v208, %v1343
    %v1345 = vrot.slane %v1219, %v1344
    %v1346 = vsel %vm213, %v1345, %v1341
    %v1347 = vlaneseq
    %v1348 = vshrl.u32 %v1347, 7
    %v1349 = vsub.s32 %v203, %v1348
    %v1350 = vrot.slane %v1220, %v1349
    %v1351 = vlaneseq
    %v1352 = vshrl.u32 %v1351, 7
    %v1353 = vsub.s32 %v208, %v1352
    %v1354 = vrot.slane %v1221, %v1353
    %v1355 = vsel %vm213, %v1354, %v1350
    %v1356 = vlaneseq
    %v1357 = vshrl.u32 %v1356, 7
    %v1358 = vsub.s32 %v203, %v1357
    %v1359 = vrot.slane %v1222, %v1358
    %v1360 = vlaneseq
    %v1361 = vshrl.u32 %v1360, 7
    %v1362 = vsub.s32 %v208, %v1361
    %v1363 = vrot.slane %v1223, %v1362
    %v1364 = vsel %vm213, %v1363, %v1359
    %v1365 = vlaneseq
    %v1366 = vshrl.u32 %v1365, 7
    %v1367 = vsub.s32 %v203, %v1366
    %v1368 = vrot.slane %v1224, %v1367
    %v1369 = vlaneseq
    %v1370 = vshrl.u32 %v1369, 7
    %v1371 = vsub.s32 %v208, %v1370
    %v1372 = vrot.slane %v1225, %v1371
    %v1373 = vsel %vm213, %v1372, %v1368
    %v1374 = vlaneseq
    %v1375 = vshrl.u32 %v1374, 7
    %v1376 = vsub.s32 %v203, %v1375
    %v1377 = vrot.slane %v1226, %v1376
    %v1378 = vlaneseq
    %v1379 = vshrl.u32 %v1378, 7
    %v1380 = vsub.s32 %v208, %v1379
    %v1381 = vrot.slane %v1227, %v1380
    %v1382 = vsel %vm213, %v1381, %v1377
    %v1383 = vlaneseq
    %v1384 = vshrl.u32 %v1383, 7
    %v1385 = vsub.s32 %v203, %v1384
    %v1386 = vrot.slane %v1228, %v1385
    %v1387 = vlaneseq
    %v1388 = vshrl.u32 %v1387, 7
    %v1389 = vsub.s32 %v208, %v1388
    %v1390 = vrot.slane %v1229, %v1389
    %v1391 = vsel %vm213, %v1390, %v1386
    %v1392 = vlaneseq
    %v1393 = vshrl.u32 %v1392, 7
    %v1394 = vsub.s32 %v203, %v1393
    %v1395 = vrot.slane %v1230, %v1394
    %v1396 = vlaneseq
    %v1397 = vshrl.u32 %v1396, 7
    %v1398 = vsub.s32 %v208, %v1397
    %v1399 = vrot.slane %v1231, %v1398
    %v1400 = vsel %vm213, %v1399, %v1395
    %v1401 = vlaneseq
    %v1402 = vshrl.u32 %v1401, 7
    %v1403 = vsub.s32 %v203, %v1402
    %v1404 = vrot.slane %v1232, %v1403
    %v1405 = vlaneseq
    %v1406 = vshrl.u32 %v1405, 7
    %v1407 = vsub.s32 %v208, %v1406
    %v1408 = vrot.slane %v1233, %v1407
    %v1409 = vsel %vm213, %v1408, %v1404
    %v1410 = vsel %vm350, %v1283, %v1274
    %v1411 = vsel %vm352, %v1292, %v1410
    %v1412 = vsel %vm354, %v1301, %v1411
    %v1413 = vsel %vm356, %v1310, %v1412
    %v1414 = vsel %vm358, %v1319, %v1413
    %v1415 = vsel %vm360, %v1328, %v1414
    %v1416 = vsel %vm362, %v1337, %v1415
    %v1417 = vsel %vm350, %v1355, %v1346
    %v1418 = vsel %vm352, %v1364, %v1417
    %v1419 = vsel %vm354, %v1373, %v1418
    %v1420 = vsel %vm356, %v1382, %v1419
    %v1421 = vsel %vm358, %v1391, %v1420
    %v1422 = vsel %vm360, %v1400, %v1421
    %v1423 = vsel %vm362, %v1409, %v1422
    %1426 = vst.msk [vmem:[#allocation2 + $0x1] sm:$0xff] %vm373, %v1416
    %1427 = vst.msk [vmem:[#allocation2 + $0x9] sm:$0xff] %vm373, %v1423
    %1428 = vmax.xlane.f32.xlu0 %v1106
    %v1429 = vpop.xlane.xlu0 %1428
    %1430 = vmax.xlane.f32.xlu0 %v1107
    %v1431 = vpop.xlane.xlu0 %1430
    %1432 = vmax.xlane.f32.xlu0 %v1108
    %v1433 = vpop.xlane.xlu0 %1432
    %1434 = vmax.xlane.f32.xlu0 %v1109
    %v1435 = vpop.xlane.xlu0 %1434
    %1436 = vmax.xlane.f32.xlu0 %v1110
    %v1437 = vpop.xlane.xlu0 %1436
    %1438 = vmax.xlane.f32.xlu0 %v1111
    %v1439 = vpop.xlane.xlu0 %1438
    %1440 = vmax.xlane.f32.xlu0 %v1112
    %v1441 = vpop.xlane.xlu0 %1440
    %1442 = vmax.xlane.f32.xlu0 %v1113
    %v1443 = vpop.xlane.xlu0 %1442
    %1444 = vmax.xlane.f32.xlu0 %v1114
    %v1445 = vpop.xlane.xlu0 %1444
    %1446 = vmax.xlane.f32.xlu0 %v1115
    %v1447 = vpop.xlane.xlu0 %1446
    %1448 = vmax.xlane.f32.xlu0 %v1116
    %v1449 = vpop.xlane.xlu0 %1448
    %1450 = vmax.xlane.f32.xlu0 %v1117
    %v1451 = vpop.xlane.xlu0 %1450
    %1452 = vmax.xlane.f32.xlu0 %v1118
    %v1453 = vpop.xlane.xlu0 %1452
    %1454 = vmax.xlane.f32.xlu0 %v1119
    %v1455 = vpop.xlane.xlu0 %1454
    %1456 = vmax.xlane.f32.xlu0 %v1120
    %v1457 = vpop.xlane.xlu0 %1456
    %1458 = vmax.xlane.f32.xlu0 %v1121
    %v1459 = vpop.xlane.xlu0 %1458
    %1460 = vmax.xlane.f32.xlu0 %v1122
    %v1461 = vpop.xlane.xlu0 %1460
    %1462 = vmax.xlane.f32.xlu0 %v1123
    %v1463 = vpop.xlane.xlu0 %1462
    %1464 = vmax.xlane.f32.xlu0 %v1124
    %v1465 = vpop.xlane.xlu0 %1464
    %1466 = vmax.xlane.f32.xlu0 %v1125
    %v1467 = vpop.xlane.xlu0 %1466
    %1468 = vmax.xlane.f32.xlu0 %v1126
    %v1469 = vpop.xlane.xlu0 %1468
    %1470 = vmax.xlane.f32.xlu0 %v1127
    %v1471 = vpop.xlane.xlu0 %1470
    %1472 = vmax.xlane.f32.xlu0 %v1128
    %v1473 = vpop.xlane.xlu0 %1472
    %1474 = vmax.xlane.f32.xlu0 %v1129
    %v1475 = vpop.xlane.xlu0 %1474
    %1476 = vmax.xlane.f32.xlu0 %v1130
    %v1477 = vpop.xlane.xlu0 %1476
    %1478 = vmax.xlane.f32.xlu0 %v1131
    %v1479 = vpop.xlane.xlu0 %1478
    %1480 = vmax.xlane.f32.xlu0 %v1132
    %v1481 = vpop.xlane.xlu0 %1480
    %1482 = vmax.xlane.f32.xlu0 %v1133
    %v1483 = vpop.xlane.xlu0 %1482
    %1484 = vmax.xlane.f32.xlu0 %v1134
    %v1485 = vpop.xlane.xlu0 %1484
    %1486 = vmax.xlane.f32.xlu0 %v1135
    %v1487 = vpop.xlane.xlu0 %1486
    %1488 = vmax.xlane.f32.xlu0 %v1136
    %v1489 = vpop.xlane.xlu0 %1488
    %1490 = vmax.xlane.f32.xlu0 %v1137
    %v1491 = vpop.xlane.xlu0 %1490
    %v1524 = vlaneseq
    %v1525 = vshrl.u32 %v1524, 7
    %v1526 = vsub.s32 %v203, %v1525
    %v1527 = vrot.slane %v1429, %v1526
    %v1528 = vlaneseq
    %v1529 = vshrl.u32 %v1528, 7
    %v1530 = vsub.s32 %v208, %v1529
    %v1531 = vrot.slane %v1431, %v1530
    %v1532 = vsel %vm213, %v1531, %v1527
    %v1533 = vlaneseq
    %v1534 = vshrl.u32 %v1533, 7
    %v1535 = vsub.s32 %v203, %v1534
    %v1536 = vrot.slane %v1433, %v1535
    %v1537 = vlaneseq
    %v1538 = vshrl.u32 %v1537, 7
    %v1539 = vsub.s32 %v208, %v1538
    %v1540 = vrot.slane %v1435, %v1539
    %v1541 = vsel %vm213, %v1540, %v1536
    %v1542 = vlaneseq
    %v1543 = vshrl.u32 %v1542, 7
    %v1544 = vsub.s32 %v203, %v1543
    %v1545 = vrot.slane %v1437, %v1544
    %v1546 = vlaneseq
    %v1547 = vshrl.u32 %v1546, 7
    %v1548 = vsub.s32 %v208, %v1547
    %v1549 = vrot.slane %v1439, %v1548
    %v1550 = vsel %vm213, %v1549, %v1545
    %v1551 = vlaneseq
    %v1552 = vshrl.u32 %v1551, 7
    %v1553 = vsub.s32 %v203, %v1552
    %v1554 = vrot.slane %v1441, %v1553
    %v1555 = vlaneseq
    %v1556 = vshrl.u32 %v1555, 7
    %v1557 = vsub.s32 %v208, %v1556
    %v1558 = vrot.slane %v1443, %v1557
    %v1559 = vsel %vm213, %v1558, %v1554
    %v1560 = vlaneseq
    %v1561 = vshrl.u32 %v1560, 7
    %v1562 = vsub.s32 %v203, %v1561
    %v1563 = vrot.slane %v1445, %v1562
    %v1564 = vlaneseq
    %v1565 = vshrl.u32 %v1564, 7
    %v1566 = vsub.s32 %v208, %v1565
    %v1567 = vrot.slane %v1447, %v1566
    %v1568 = vsel %vm213, %v1567, %v1563
    %v1569 = vlaneseq
    %v1570 = vshrl.u32 %v1569, 7
    %v1571 = vsub.s32 %v203, %v1570
    %v1572 = vrot.slane %v1449, %v1571
    %v1573 = vlaneseq
    %v1574 = vshrl.u32 %v1573, 7
    %v1575 = vsub.s32 %v208, %v1574
    %v1576 = vrot.slane %v1451, %v1575
    %v1577 = vsel %vm213, %v1576, %v1572
    %v1578 = vlaneseq
    %v1579 = vshrl.u32 %v1578, 7
    %v1580 = vsub.s32 %v203, %v1579
    %v1581 = vrot.slane %v1453, %v1580
    %v1582 = vlaneseq
    %v1583 = vshrl.u32 %v1582, 7
    %v1584 = vsub.s32 %v208, %v1583
    %v1585 = vrot.slane %v1455, %v1584
    %v1586 = vsel %vm213, %v1585, %v1581
    %v1587 = vlaneseq
    %v1588 = vshrl.u32 %v1587, 7
    %v1589 = vsub.s32 %v203, %v1588
    %v1590 = vrot.slane %v1457, %v1589
    %v1591 = vlaneseq
    %v1592 = vshrl.u32 %v1591, 7
    %v1593 = vsub.s32 %v208, %v1592
    %v1594 = vrot.slane %v1459, %v1593
    %v1595 = vsel %vm213, %v1594, %v1590
    %v1596 = vlaneseq
    %v1597 = vshrl.u32 %v1596, 7
    %v1598 = vsub.s32 %v203, %v1597
    %v1599 = vrot.slane %v1461, %v1598
    %v1600 = vlaneseq
    %v1601 = vshrl.u32 %v1600, 7
    %v1602 = vsub.s32 %v208, %v1601
    %v1603 = vrot.slane %v1463, %v1602
    %v1604 = vsel %vm213, %v1603, %v1599
    %v1605 = vlaneseq
    %v1606 = vshrl.u32 %v1605, 7
    %v1607 = vsub.s32 %v203, %v1606
    %v1608 = vrot.slane %v1465, %v1607
    %v1609 = vlaneseq
    %v1610 = vshrl.u32 %v1609, 7
    %v1611 = vsub.s32 %v208, %v1610
    %v1612 = vrot.slane %v1467, %v1611
    %v1613 = vsel %vm213, %v1612, %v1608
    %v1614 = vlaneseq
    %v1615 = vshrl.u32 %v1614, 7
    %v1616 = vsub.s32 %v203, %v1615
    %v1617 = vrot.slane %v1469, %v1616
    %v1618 = vlaneseq
    %v1619 = vshrl.u32 %v1618, 7
    %v1620 = vsub.s32 %v208, %v1619
    %v1621 = vrot.slane %v1471, %v1620
    %v1622 = vsel %vm213, %v1621, %v1617
    %v1623 = vlaneseq
    %v1624 = vshrl.u32 %v1623, 7
    %v1625 = vsub.s32 %v203, %v1624
    %v1626 = vrot.slane %v1473, %v1625
    %v1627 = vlaneseq
    %v1628 = vshrl.u32 %v1627, 7
    %v1629 = vsub.s32 %v208, %v1628
    %v1630 = vrot.slane %v1475, %v1629
    %v1631 = vsel %vm213, %v1630, %v1626
    %v1632 = vlaneseq
    %v1633 = vshrl.u32 %v1632, 7
    %v1634 = vsub.s32 %v203, %v1633
    %v1635 = vrot.slane %v1477, %v1634
    %v1636 = vlaneseq
    %v1637 = vshrl.u32 %v1636, 7
    %v1638 = vsub.s32 %v208, %v1637
    %v1639 = vrot.slane %v1479, %v1638
    %v1640 = vsel %vm213, %v1639, %v1635
    %v1641 = vlaneseq
    %v1642 = vshrl.u32 %v1641, 7
    %v1643 = vsub.s32 %v203, %v1642
    %v1644 = vrot.slane %v1481, %v1643
    %v1645 = vlaneseq
    %v1646 = vshrl.u32 %v1645, 7
    %v1647 = vsub.s32 %v208, %v1646
    %v1648 = vrot.slane %v1483, %v1647
    %v1649 = vsel %vm213, %v1648, %v1644
    %v1650 = vlaneseq
    %v1651 = vshrl.u32 %v1650, 7
    %v1652 = vsub.s32 %v203, %v1651
    %v1653 = vrot.slane %v1485, %v1652
    %v1654 = vlaneseq
    %v1655 = vshrl.u32 %v1654, 7
    %v1656 = vsub.s32 %v208, %v1655
    %v1657 = vrot.slane %v1487, %v1656
    %v1658 = vsel %vm213, %v1657, %v1653
    %v1659 = vlaneseq
    %v1660 = vshrl.u32 %v1659, 7
    %v1661 = vsub.s32 %v203, %v1660
    %v1662 = vrot.slane %v1489, %v1661
    %v1663 = vlaneseq
    %v1664 = vshrl.u32 %v1663, 7
    %v1665 = vsub.s32 %v208, %v1664
    %v1666 = vrot.slane %v1491, %v1665
    %v1667 = vsel %vm213, %v1666, %v1662
    %v1668 = vsel %vm350, %v1541, %v1532
    %v1669 = vsel %vm352, %v1550, %v1668
    %v1670 = vsel %vm354, %v1559, %v1669
    %v1671 = vsel %vm356, %v1568, %v1670
    %v1672 = vsel %vm358, %v1577, %v1671
    %v1673 = vsel %vm360, %v1586, %v1672
    %v1674 = vsel %vm362, %v1595, %v1673
    %v1675 = vsel %vm350, %v1613, %v1604
    %v1676 = vsel %vm352, %v1622, %v1675
    %v1677 = vsel %vm354, %v1631, %v1676
    %v1678 = vsel %vm356, %v1640, %v1677
    %v1679 = vsel %vm358, %v1649, %v1678
    %v1680 = vsel %vm360, %v1658, %v1679
    %v1681 = vsel %vm362, %v1667, %v1680
    %1684 = vst.msk [vmem:[%s632 + $0x1] sm:$0xff] %vm373, %v1674
    %1685 = vst.msk [vmem:[%s632 + $0x9] sm:$0xff] %vm373, %v1681
    %s1686 = sld [smem:[#allocation3]]
    %v1687 = vstv %s1686
    %v1688 = vld [vmem:[#allocation2] sm:$0xff]
    %v1689 = vld [vmem:[#allocation2 + $0x8] sm:$0xff]
    %s1690 = sld [smem:[#allocation4]]
    %v1691 = vstv %s1690
    %v1692 = vmul.f32 %v1691, %v1688
    %v1693 = vmul.f32 %v1691, %v1689
    %v1694 = vadd.f32 %v1687, %v1692
    %v1695 = vadd.f32 %v1687, %v1693
    %s1696 = sld [smem:[#allocation4 + $0x1]]
    %v1697 = vstv %s1696
    %v1698 = vmul.f32 %v1697, %v1688
    %v1699 = vmul.f32 %v1697, %v1689
    %1702 = vrot.lane.b32.xlu0 %v1698, 127
    %v1703 = vpop.permute.xlu0 %1702
    %1704 = vrot.lane.b32.xlu0 %v1699, 127
    %v1705 = vpop.permute.xlu0 %1704
    %v1708 = vadd.f32 %v1694, %v1703
    %v1709 = vadd.f32 %v1695, %v1705
    %s1710 = sld [smem:[#allocation4 + $0x2]]
    %v1711 = vstv %s1710
    %v1712 = vmul.f32 %v1711, %v1688
    %v1713 = vmul.f32 %v1711, %v1689
    %1716 = vrot.lane.b32.xlu0 %v1712, 126
    %v1717 = vpop.permute.xlu0 %1716
    %1718 = vrot.lane.b32.xlu0 %v1713, 126
    %v1719 = vpop.permute.xlu0 %1718
    %v1722 = vadd.f32 %v1708, %v1717
    %v1723 = vadd.f32 %v1709, %v1719
    %v1724 = vld [vmem:[#allocation2 + $0x1] sm:$0xff]
    %v1725 = vld [vmem:[#allocation2 + $0x9] sm:$0xff]
    %s1726 = sld [smem:[#allocation4 + $0x3]]
    %v1727 = vstv %s1726
    %v1728 = vmul.f32 %v1727, %v1724
    %v1729 = vmul.f32 %v1727, %v1725
    %v1730 = vadd.f32 %v1722, %v1728
    %v1731 = vadd.f32 %v1723, %v1729
    %s1732 = sld [smem:[#allocation4 + $0x4]]
    %v1733 = vstv %s1732
    %v1734 = vmul.f32 %v1733, %v1724
    %v1735 = vmul.f32 %v1733, %v1725
    %1738 = vrot.lane.b32.xlu0 %v1734, 127
    %v1739 = vpop.permute.xlu0 %1738
    %1740 = vrot.lane.b32.xlu0 %v1735, 127
    %v1741 = vpop.permute.xlu0 %1740
    %v1744 = vadd.f32 %v1730, %v1739
    %v1745 = vadd.f32 %v1731, %v1741
    %s1746 = sld [smem:[#allocation4 + $0x5]]
    %v1747 = vstv %s1746
    %v1748 = vmul.f32 %v1747, %v1724
    %v1749 = vmul.f32 %v1747, %v1725
    %1752 = vrot.lane.b32.xlu0 %v1748, 126
    %v1753 = vpop.permute.xlu0 %1752
    %1754 = vrot.lane.b32.xlu0 %v1749, 126
    %v1755 = vpop.permute.xlu0 %1754
    %v1758 = vadd.f32 %v1744, %v1753
    %v1759 = vadd.f32 %v1745, %v1755
    %v1760 = vld [vmem:[#allocation2 + $0x2] sm:$0xff]
    %v1761 = vld [vmem:[#allocation2 + $0xa] sm:$0xff]
    %s1762 = sld [smem:[#allocation4 + $0x6]]
    %v1763 = vstv %s1762
    %v1764 = vmul.f32 %v1763, %v1760
    %v1765 = vmul.f32 %v1763, %v1761
    %v1766 = vadd.f32 %v1758, %v1764
    %v1767 = vadd.f32 %v1759, %v1765
    %s1768 = sld [smem:[#allocation4 + $0x7]]
    %v1769 = vstv %s1768
    %v1770 = vmul.f32 %v1769, %v1760
    %v1771 = vmul.f32 %v1769, %v1761
    %1774 = vrot.lane.b32.xlu0 %v1770, 127
    %v1775 = vpop.permute.xlu0 %1774
    %1776 = vrot.lane.b32.xlu0 %v1771, 127
    %v1777 = vpop.permute.xlu0 %1776
    %v1780 = vadd.f32 %v1766, %v1775
    %v1781 = vadd.f32 %v1767, %v1777
    %s1782 = sld [smem:[#allocation4 + $0x8]]
    %v1783 = vstv %s1782
    %v1784 = vmul.f32 %v1783, %v1760
    %v1785 = vmul.f32 %v1783, %v1761
    %1788 = vrot.lane.b32.xlu0 %v1784, 126
    %v1789 = vpop.permute.xlu0 %1788
    %1790 = vrot.lane.b32.xlu0 %v1785, 126
    %v1791 = vpop.permute.xlu0 %1790
    %v1794 = vadd.f32 %v1780, %v1789
    %v1795 = vadd.f32 %v1781, %v1791
    %v1796 = vld [vmem:[%s632] sm:$0xff]
    %v1797 = vld [vmem:[%s632 + $0x8] sm:$0xff]
    %s1798 = sld [smem:[#allocation4 + $0x9]]
    %v1799 = vstv %s1798
    %v1800 = vmul.f32 %v1799, %v1796
    %v1801 = vmul.f32 %v1799, %v1797
    %v1802 = vadd.f32 %v1794, %v1800
    %v1803 = vadd.f32 %v1795, %v1801
    %s1804 = sld [smem:[#allocation4 + $0xa]]
    %v1805 = vstv %s1804
    %v1806 = vmul.f32 %v1805, %v1796
    %v1807 = vmul.f32 %v1805, %v1797
    %1810 = vrot.lane.b32.xlu0 %v1806, 127
    %v1811 = vpop.permute.xlu0 %1810
    %1812 = vrot.lane.b32.xlu0 %v1807, 127
    %v1813 = vpop.permute.xlu0 %1812
    %v1816 = vadd.f32 %v1802, %v1811
    %v1817 = vadd.f32 %v1803, %v1813
    %s1818 = sld [smem:[#allocation4 + $0xb]]
    %v1819 = vstv %s1818
    %v1820 = vmul.f32 %v1819, %v1796
    %v1821 = vmul.f32 %v1819, %v1797
    %1824 = vrot.lane.b32.xlu0 %v1820, 126
    %v1825 = vpop.permute.xlu0 %1824
    %1826 = vrot.lane.b32.xlu0 %v1821, 126
    %v1827 = vpop.permute.xlu0 %1826
    %v1830 = vadd.f32 %v1816, %v1825
    %v1831 = vadd.f32 %v1817, %v1827
    %v1832 = vld [vmem:[%s632 + $0x1] sm:$0xff]
    %v1833 = vld [vmem:[%s632 + $0x9] sm:$0xff]
    %s1834 = sld [smem:[#allocation4 + $0xc]]
    %v1835 = vstv %s1834
    %v1836 = vmul.f32 %v1835, %v1832
    %v1837 = vmul.f32 %v1835, %v1833
    %v1838 = vadd.f32 %v1830, %v1836
    %v1839 = vadd.f32 %v1831, %v1837
    %s1840 = sld [smem:[#allocation4 + $0xd]]
    %v1841 = vstv %s1840
    %v1842 = vmul.f32 %v1841, %v1832
    %v1843 = vmul.f32 %v1841, %v1833
    %1846 = vrot.lane.b32.xlu0 %v1842, 127
    %v1847 = vpop.permute.xlu0 %1846
    %1848 = vrot.lane.b32.xlu0 %v1843, 127
    %v1849 = vpop.permute.xlu0 %1848
    %v1852 = vadd.f32 %v1838, %v1847
    %v1853 = vadd.f32 %v1839, %v1849
    %s1854 = sld [smem:[#allocation4 + $0xe]]
    %v1855 = vstv %s1854
    %v1856 = vmul.f32 %v1855, %v1832
    %v1857 = vmul.f32 %v1855, %v1833
    %1860 = vrot.lane.b32.xlu0 %v1856, 126
    %v1861 = vpop.permute.xlu0 %1860
    %1862 = vrot.lane.b32.xlu0 %v1857, 126
    %v1863 = vpop.permute.xlu0 %1862
    %v1866 = vadd.f32 %v1852, %v1861
    %v1867 = vadd.f32 %v1853, %v1863
    %v1868 = vld [vmem:[%s632 + $0x2] sm:$0xff]
    %v1869 = vld [vmem:[%s632 + $0xa] sm:$0xff]
    %s1870 = sld [smem:[#allocation4 + $0xf]]
    %v1871 = vstv %s1870
    %v1872 = vmul.f32 %v1871, %v1868
    %v1873 = vmul.f32 %v1871, %v1869
    %v1874 = vadd.f32 %v1866, %v1872
    %v1875 = vadd.f32 %v1867, %v1873
    %s1876 = sld [smem:[#allocation4 + $0x10]]
    %v1877 = vstv %s1876
    %v1878 = vmul.f32 %v1877, %v1868
    %v1879 = vmul.f32 %v1877, %v1869
    %1882 = vrot.lane.b32.xlu0 %v1878, 127
    %v1883 = vpop.permute.xlu0 %1882
    %1884 = vrot.lane.b32.xlu0 %v1879, 127
    %v1885 = vpop.permute.xlu0 %1884
    %v1888 = vadd.f32 %v1874, %v1883
    %v1889 = vadd.f32 %v1875, %v1885
    %s1890 = sld [smem:[#allocation4 + $0x11]]
    %v1891 = vstv %s1890
    %v1892 = vmul.f32 %v1891, %v1868
    %v1893 = vmul.f32 %v1891, %v1869
    %1896 = vrot.lane.b32.xlu0 %v1892, 126
    %v1897 = vpop.permute.xlu0 %1896
    %1898 = vrot.lane.b32.xlu0 %v1893, 126
    %v1899 = vpop.permute.xlu0 %1898
    %v1902 = vadd.f32 %v1888, %v1897
    %v1903 = vadd.f32 %v1889, %v1899
    %v1904 = vxor.u32 %v1902, 2147483648
    %v1905 = vxor.u32 %v1903, 2147483648
    %v1906 = vmul.f32 %v1904, 1.442695
    %v1907 = vpow.pop %v1906
    %v1908 = vmul.f32 %v1905, 1.442695
    %v1909 = vpow.pop %v1908
    %v1910 = vadd.f32 %v1907, 1.0
    %v1911 = vadd.f32 %v1909, 1.0
    %v1912 = vrcp.pop %v1910
    %v1913 = vmul.f32 1.0, %v1912
    %v1914 = vrcp.pop %v1911
    %v1915 = vmul.f32 1.0, %v1914
    %v1916 = vlaneseq
    %v1917 = vshrl.u32 %v1916, 7
    %v1918 = vsub.s32 0, %v1917
    %v1919 = vrot.slane %v1913, %v1918
    %1921 = vbcast.lane.b32.xlu0 %v1919, 256
    %v1922 = vpop.permute.xlu0 %1921
    %s1924 = sor.u32 256, 8
    %1925 = vbcast.lane.b32.xlu0 %v1919, %s1924
    %v1926 = vpop.permute.xlu0 %1925
    %v1927 = vlaneseq
    %v1928 = vshrl.u32 %v1927, 7
    %v1929 = vsub.s32 1, %v1928
    %v1930 = vrot.slane %v1913, %v1929
    %1932 = vbcast.lane.b32.xlu0 %v1930, 256
    %v1933 = vpop.permute.xlu0 %1932
    %s1935 = sor.u32 256, 8
    %1936 = vbcast.lane.b32.xlu0 %v1930, %s1935
    %v1937 = vpop.permute.xlu0 %1936
    %v1938 = vlaneseq
    %v1939 = vshrl.u32 %v1938, 7
    %v1940 = vsub.s32 2, %v1939
    %v1941 = vrot.slane %v1913, %v1940
    %1943 = vbcast.lane.b32.xlu0 %v1941, 256
    %v1944 = vpop.permute.xlu0 %1943
    %s1946 = sor.u32 256, 8
    %1947 = vbcast.lane.b32.xlu0 %v1941, %s1946
    %v1948 = vpop.permute.xlu0 %1947
    %v1949 = vlaneseq
    %v1950 = vshrl.u32 %v1949, 7
    %v1951 = vsub.s32 3, %v1950
    %v1952 = vrot.slane %v1913, %v1951
    %1954 = vbcast.lane.b32.xlu0 %v1952, 256
    %v1955 = vpop.permute.xlu0 %1954
    %s1957 = sor.u32 256, 8
    %1958 = vbcast.lane.b32.xlu0 %v1952, %s1957
    %v1959 = vpop.permute.xlu0 %1958
    %v1960 = vlaneseq
    %v1961 = vshrl.u32 %v1960, 7
    %v1962 = vsub.s32 4, %v1961
    %v1963 = vrot.slane %v1913, %v1962
    %1965 = vbcast.lane.b32.xlu0 %v1963, 256
    %v1966 = vpop.permute.xlu0 %1965
    %s1968 = sor.u32 256, 8
    %1969 = vbcast.lane.b32.xlu0 %v1963, %s1968
    %v1970 = vpop.permute.xlu0 %1969
    %v1971 = vlaneseq
    %v1972 = vshrl.u32 %v1971, 7
    %v1973 = vsub.s32 5, %v1972
    %v1974 = vrot.slane %v1913, %v1973
    %1976 = vbcast.lane.b32.xlu0 %v1974, 256
    %v1977 = vpop.permute.xlu0 %1976
    %s1979 = sor.u32 256, 8
    %1980 = vbcast.lane.b32.xlu0 %v1974, %s1979
    %v1981 = vpop.permute.xlu0 %1980
    %v1982 = vlaneseq
    %v1983 = vshrl.u32 %v1982, 7
    %v1984 = vsub.s32 6, %v1983
    %v1985 = vrot.slane %v1913, %v1984
    %1987 = vbcast.lane.b32.xlu0 %v1985, 256
    %v1988 = vpop.permute.xlu0 %1987
    %s1990 = sor.u32 256, 8
    %1991 = vbcast.lane.b32.xlu0 %v1985, %s1990
    %v1992 = vpop.permute.xlu0 %1991
    %v1993 = vlaneseq
    %v1994 = vshrl.u32 %v1993, 7
    %v1995 = vsub.s32 7, %v1994
    %v1996 = vrot.slane %v1913, %v1995
    %1998 = vbcast.lane.b32.xlu0 %v1996, 256
    %v1999 = vpop.permute.xlu0 %1998
    %s2001 = sor.u32 256, 8
    %2002 = vbcast.lane.b32.xlu0 %v1996, %s2001
    %v2003 = vpop.permute.xlu0 %2002
    %v2004 = vlaneseq
    %v2005 = vshrl.u32 %v2004, 7
    %v2006 = vsub.s32 0, %v2005
    %v2007 = vrot.slane %v1915, %v2006
    %2009 = vbcast.lane.b32.xlu0 %v2007, 256
    %v2010 = vpop.permute.xlu0 %2009
    %s2012 = sor.u32 256, 8
    %2013 = vbcast.lane.b32.xlu0 %v2007, %s2012
    %v2014 = vpop.permute.xlu0 %2013
    %v2015 = vlaneseq
    %v2016 = vshrl.u32 %v2015, 7
    %v2017 = vsub.s32 1, %v2016
    %v2018 = vrot.slane %v1915, %v2017
    %2020 = vbcast.lane.b32.xlu0 %v2018, 256
    %v2021 = vpop.permute.xlu0 %2020
    %s2023 = sor.u32 256, 8
    %2024 = vbcast.lane.b32.xlu0 %v2018, %s2023
    %v2025 = vpop.permute.xlu0 %2024
    %v2026 = vlaneseq
    %v2027 = vshrl.u32 %v2026, 7
    %v2028 = vsub.s32 2, %v2027
    %v2029 = vrot.slane %v1915, %v2028
    %2031 = vbcast.lane.b32.xlu0 %v2029, 256
    %v2032 = vpop.permute.xlu0 %2031
    %s2034 = sor.u32 256, 8
    %2035 = vbcast.lane.b32.xlu0 %v2029, %s2034
    %v2036 = vpop.permute.xlu0 %2035
    %v2037 = vlaneseq
    %v2038 = vshrl.u32 %v2037, 7
    %v2039 = vsub.s32 3, %v2038
    %v2040 = vrot.slane %v1915, %v2039
    %2042 = vbcast.lane.b32.xlu0 %v2040, 256
    %v2043 = vpop.permute.xlu0 %2042
    %s2045 = sor.u32 256, 8
    %2046 = vbcast.lane.b32.xlu0 %v2040, %s2045
    %v2047 = vpop.permute.xlu0 %2046
    %v2048 = vlaneseq
    %v2049 = vshrl.u32 %v2048, 7
    %v2050 = vsub.s32 4, %v2049
    %v2051 = vrot.slane %v1915, %v2050
    %2053 = vbcast.lane.b32.xlu0 %v2051, 256
    %v2054 = vpop.permute.xlu0 %2053
    %s2056 = sor.u32 256, 8
    %2057 = vbcast.lane.b32.xlu0 %v2051, %s2056
    %v2058 = vpop.permute.xlu0 %2057
    %v2059 = vlaneseq
    %v2060 = vshrl.u32 %v2059, 7
    %v2061 = vsub.s32 5, %v2060
    %v2062 = vrot.slane %v1915, %v2061
    %2064 = vbcast.lane.b32.xlu0 %v2062, 256
    %v2065 = vpop.permute.xlu0 %2064
    %s2067 = sor.u32 256, 8
    %2068 = vbcast.lane.b32.xlu0 %v2062, %s2067
    %v2069 = vpop.permute.xlu0 %2068
    %v2070 = vlaneseq
    %v2071 = vshrl.u32 %v2070, 7
    %v2072 = vsub.s32 6, %v2071
    %v2073 = vrot.slane %v1915, %v2072
    %2075 = vbcast.lane.b32.xlu0 %v2073, 256
    %v2076 = vpop.permute.xlu0 %2075
    %s2078 = sor.u32 256, 8
    %2079 = vbcast.lane.b32.xlu0 %v2073, %s2078
    %v2080 = vpop.permute.xlu0 %2079
    %v2081 = vlaneseq
    %v2082 = vshrl.u32 %v2081, 7
    %v2083 = vsub.s32 7, %v2082
    %v2084 = vrot.slane %v1915, %v2083
    %2086 = vbcast.lane.b32.xlu0 %v2084, 256
    %v2087 = vpop.permute.xlu0 %2086
    %s2089 = sor.u32 256, 8
    %2090 = vbcast.lane.b32.xlu0 %v2084, %s2089
    %v2091 = vpop.permute.xlu0 %2090
    %v2092 = vmul.f32 %v1106, %v1922
    %v2093 = vmul.f32 %v1107, %v1926
    %v2094 = vmul.f32 %v1108, %v1933
    %v2095 = vmul.f32 %v1109, %v1937
    %v2096 = vmul.f32 %v1110, %v1944
    %v2097 = vmul.f32 %v1111, %v1948
    %v2098 = vmul.f32 %v1112, %v1955
    %v2099 = vmul.f32 %v1113, %v1959
    %v2100 = vmul.f32 %v1114, %v1966
    %v2101 = vmul.f32 %v1115, %v1970
    %v2102 = vmul.f32 %v1116, %v1977
    %v2103 = vmul.f32 %v1117, %v1981
    %v2104 = vmul.f32 %v1118, %v1988
    %v2105 = vmul.f32 %v1119, %v1992
    %v2106 = vmul.f32 %v1120, %v1999
    %v2107 = vmul.f32 %v1121, %v2003
    %v2108 = vmul.f32 %v1122, %v2010
    %v2109 = vmul.f32 %v1123, %v2014
    %v2110 = vmul.f32 %v1124, %v2021
    %v2111 = vmul.f32 %v1125, %v2025
    %v2112 = vmul.f32 %v1126, %v2032
    %v2113 = vmul.f32 %v1127, %v2036
    %v2114 = vmul.f32 %v1128, %v2043
    %v2115 = vmul.f32 %v1129, %v2047
    %v2116 = vmul.f32 %v1130, %v2054
    %v2117 = vmul.f32 %v1131, %v2058
    %v2118 = vmul.f32 %v1132, %v2065
    %v2119 = vmul.f32 %v1133, %v2069
    %v2120 = vmul.f32 %v1134, %v2076
    %v2121 = vmul.f32 %v1135, %v2080
    %v2122 = vmul.f32 %v1136, %v2087
    %v2123 = vmul.f32 %v1137, %v2091
    %s2124 = scalar_lea.vmem %s3, 256
    %2125 = vst [vmem:[%s2124] sm:$0xff] %v2092
    %2126 = vst [vmem:[%s2124 + $0x8] sm:$0xff] %v2093
    %2127 = vst [vmem:[%s2124 + $0x10] sm:$0xff] %v2094
    %2128 = vst [vmem:[%s2124 + $0x18] sm:$0xff] %v2095
    %2129 = vst [vmem:[%s2124 + $0x20] sm:$0xff] %v2096
    %2130 = vst [vmem:[%s2124 + $0x28] sm:$0xff] %v2097
    %2131 = vst [vmem:[%s2124 + $0x30] sm:$0xff] %v2098
    %2132 = vst [vmem:[%s2124 + $0x38] sm:$0xff] %v2099
    %2133 = vst [vmem:[%s2124 + $0x40] sm:$0xff] %v2100
    %2134 = vst [vmem:[%s2124 + $0x48] sm:$0xff] %v2101
    %2135 = vst [vmem:[%s2124 + $0x50] sm:$0xff] %v2102
    %2136 = vst [vmem:[%s2124 + $0x58] sm:$0xff] %v2103
    %2137 = vst [vmem:[%s2124 + $0x60] sm:$0xff] %v2104
    %2138 = vst [vmem:[%s2124 + $0x68] sm:$0xff] %v2105
    %2139 = vst [vmem:[%s2124 + $0x70] sm:$0xff] %v2106
    %2140 = vst [vmem:[%s2124 + $0x78] sm:$0xff] %v2107
    %2141 = vst [vmem:[%s2124 + $0x80] sm:$0xff] %v2108
    %2142 = vst [vmem:[%s2124 + $0x88] sm:$0xff] %v2109
    %2143 = vst [vmem:[%s2124 + $0x90] sm:$0xff] %v2110
    %2144 = vst [vmem:[%s2124 + $0x98] sm:$0xff] %v2111
    %2145 = vst [vmem:[%s2124 + $0xa0] sm:$0xff] %v2112
    %2146 = vst [vmem:[%s2124 + $0xa8] sm:$0xff] %v2113
    %2147 = vst [vmem:[%s2124 + $0xb0] sm:$0xff] %v2114
    %2148 = vst [vmem:[%s2124 + $0xb8] sm:$0xff] %v2115
    %2149 = vst [vmem:[%s2124 + $0xc0] sm:$0xff] %v2116
    %2150 = vst [vmem:[%s2124 + $0xc8] sm:$0xff] %v2117
    %2151 = vst [vmem:[%s2124 + $0xd0] sm:$0xff] %v2118
    %2152 = vst [vmem:[%s2124 + $0xd8] sm:$0xff] %v2119
    %2153 = vst [vmem:[%s2124 + $0xe0] sm:$0xff] %v2120
    %2154 = vst [vmem:[%s2124 + $0xe8] sm:$0xff] %v2121
    %2155 = vst [vmem:[%s2124 + $0xf0] sm:$0xff] %v2122
    %2156 = vst [vmem:[%s2124 + $0xf8] sm:$0xff] %v2123
    // Predicated region
    $region22: #{bottleneck_forward.13} parent=1 // pred_check
      _
    $region23: #{bottleneck_forward.13} parent=1 // pred_check_branch
      %2158 = sbr.rel (0) target = $region25
    $region24: #{bottleneck_forward.13} parent=1 // pred_region
      _
    $region25: #{bottleneck_forward.13} parent=1 // pred_fallthru
      _
    // Predicated region
    $region26: #{bottleneck_forward.13} parent=1 // pred_check
      _
    $region27: #{bottleneck_forward.13} parent=1 // pred_check_branch
      %2160 = sbr.rel (0) target = $region29
    $region28: #{bottleneck_forward.13} parent=1 // pred_region
      _
    $region29: #{bottleneck_forward.13} parent=1 // pred_fallthru
      _
    %2161 = vsyncpa [#allocation5], 1

</llo_original>
